<compile_context>
chip_gen: v5e
topology: v5e:2x2
jax: 0.10.0
libtpu: 0.0.40
codegen_flags: <defaults>
</compile_context>

<pallas_src>
import functools

import jax
import jax.numpy as jnp
from jax import lax
from jax.experimental import pallas as pl
from jax.experimental.pallas import tpu as pltpu


def _sepconv_kernel(x_ref, xt_ref, xb_ref, dww_ref, pww_ref, shift_ref,
                    o_ref, xpad_ref, *, TH, W, C, K, P, CH, n_h_tiles):
    # x_ref    : (1, TH, W, C)   main rows of this H tile (input dtype)
    # xt_ref   : (1, P,  W, C)   P rows just above the tile (junk at t == 0)
    # xb_ref   : (1, P,  W, C)   P rows just below the tile (junk at t == T-1)
    # dww_ref  : (K*K, C)        depthwise weights (compute dtype), row kh*K+kw
    # pww_ref  : (C, C)  bf16    pointwise weights (C_in, C_out), BN scale folded
    # shift_ref: (1, C)  f32     folded depthwise-bias + BN shift
    # o_ref    : (1, TH, W, C)
    # xpad_ref : (TH+2P, W+2P, C) compute-dtype scratch: zero-padded tile
    t = pl.program_id(1)
    cdt = xpad_ref.dtype

    # ---- assemble the spatially zero-padded tile in VMEM (compute dtype) ----
    # Left/right zero columns (P wide, tiny).  Re-written every step since
    # scratch contents are not guaranteed across (megacore-sharded) steps.
    zcol = jnp.zeros((TH + 2 * P, P, C), cdt)
    xpad_ref[:, :P, :] = zcol
    xpad_ref[:, P + W:, :] = zcol

    # Top/bottom halo rows: copy the neighbour rows unless this tile touches
    # the image border, in which case write zeros (no write-then-overwrite).
    @pl.when(t > 0)
    def _():
        xpad_ref[:P, P:P + W, :] = xt_ref[0].astype(cdt)

    @pl.when(t == 0)
    def _():
        xpad_ref[:P, P:P + W, :] = jnp.zeros((P, W, C), cdt)

    @pl.when(t < n_h_tiles - 1)
    def _():
        xpad_ref[P + TH:, P:P + W, :] = xb_ref[0].astype(cdt)

    @pl.when(t == n_h_tiles - 1)
    def _():
        xpad_ref[P + TH:, P:P + W, :] = jnp.zeros((P, W, C), cdt)

    # Interior rows.  On the f32-compute path this copy is also the one-time
    # upcast, so the 9 window reads below need no per-tap casts.
    xpad_ref[P:P + TH, P:P + W, :] = x_ref[0].astype(cdt)

    shift = shift_ref[...].astype(jnp.float32)        # (1, C), tiny

    # ---- chunked depthwise (VPU) + pointwise matmul (MXU) + SiLU (EUP) ----
    def chunk_body(c):
        static = isinstance(c, int)
        r0 = c * CH if static else pl.multiple_of(c * CH, CH)
        acc = jnp.zeros((CH, W, C), cdt)
        for kh in range(K):
            row_sl = (slice(r0 + kh, r0 + kh + CH) if static
                      else pl.ds(r0 + kh, CH))
            for kw in range(K):
                win = xpad_ref[row_sl, kw:kw + W, :]
                acc = acc + win * dww_ref[kh * K + kw]
        # Pointwise 1x1 conv == channel matmul on the MXU (bf16 x bf16, f32 acc).
        y = jnp.dot(acc.reshape(CH * W, C).astype(jnp.bfloat16), pww_ref[...],
                    preferred_element_type=jnp.float32)
        y = y + shift                                  # folded dw-bias + BN
        # SiLU: y * sigmoid(y); approximate reciprocal stays on the EUP.
        y = y * pl.reciprocal(1.0 + jnp.exp(-y), approx=True)
        out_sl = slice(r0, r0 + CH) if static else pl.ds(r0, CH)
        o_ref[:, out_sl, :, :] = y.reshape(1, CH, W, C).astype(o_ref.dtype)

    n_chunks = TH // CH
    if n_chunks <= 16:
        # Fully unrolled: chunk i's MXU matmul overlaps chunk i+1's VPU taps.
        for c in range(n_chunks):
            chunk_body(c)
    else:
        @pl.loop(0, n_chunks)
        def _(c):
            chunk_body(c)


def _device_kind():
    try:
        return jax.devices()[0].device_kind.lower()
    except Exception:
        return ""


def _vmem_capacity_bytes():
    cap = None
    try:
        cap = getattr(pltpu.get_tpu_info(), "vmem_capacity_bytes", None)
    except Exception:
        cap = None
    if not cap:
        cap = (64 if "v7" in _device_kind() else 128) * 1024 * 1024
    return int(max(32 * 1024 * 1024, min(int(cap), 128 * 1024 * 1024)))


def separable_conv2d_nhwc(x, dw_w, pw_w_folded, shift, *, kernel_size,
                          padding, h_tile=None, compute_dtype=None,
                          vmem_limit_bytes=None):
    """Fused SeparableConv2d forward.  x: (N, H, W, C) NHWC.

    dw_w        : (K*K, C)  f32   depthwise weights, row kh*K + kw
    pw_w_folded : (C, C)    bf16  pointwise weights (C_in, C_out) * bn_scale
    shift       : (1, C)    f32   (dw_b @ pw) * bn_scale + bn_shift

    compute_dtype: dtype of the depthwise accumulation (default f32; pass
    jnp.bfloat16 on v6e/v7x to halve the VALU work of the depthwise phase).
    Best performance when C % 128 == 0 (lane-dense) and W % 8 == 0
    (sublane-aligned reshape before the MXU); other sizes work but are slower.
    """
    N, H, W, C = x.shape
    K = kernel_size
    P = padding
    if K < 3 or K % 2 != 1 or P != (K - 1) // 2 or H % max(P, 1) != 0:
        raise NotImplementedError(
            "only stride=1 'same' conv (K odd >=3, padding=(K-1)//2) supported")
    assert dw_w.shape == (K * K, C)
    assert pw_w_folded.shape == (C, C)   # module usage has in_ch == out_ch
    assert shift.shape == (1, C)

    if compute_dtype is None:
        compute_dtype = jnp.float32
    compute_dtype = jnp.dtype(compute_dtype)
    x_isz = x.dtype.itemsize
    c_isz = compute_dtype.itemsize

    # Generation-aware VMEM budgeting (128 MiB on v5e/v6e, 64 MiB per TC on v7x).
    vmem_cap = _vmem_capacity_bytes()
    if vmem_limit_bytes is None:
        vmem_limit_bytes = int(vmem_cap * 0.85)
    tile_budget = int(vmem_limit_bytes * 0.6)   # headroom for compiler scratch

    def est_vmem(th):
        pad = (th + 2 * P) * (W + 2 * P) * C * c_isz        # scratch (single)
        io = 4 * th * W * C * x_isz                          # in+out, 2x buffered
        halo = 4 * P * W * C * x_isz                         # two halos, 2x buf
        wts = 2 * (K * K * C * c_isz + C * C * 2 + C * 4)    # dw + pw + shift
        return pad + io + halo + wts

    if h_tile is None:
        valid = [th for th in range(P, H + 1, P) if H % th == 0]
        fits = [th for th in valid if est_vmem(th) <= tile_budget] or [min(valid)]
        # Megacore balance (v7x: 2 TCs share the parallel grid): prefer tile
        # counts that keep N * (H // th) >= 4 when such a tile also fits.
        balanced = [th for th in fits if N * (H // th) >= 4]
        h_tile = max(balanced) if balanced else max(fits)
    TH = h_tile
    if H % TH != 0 or TH % P != 0:
        raise ValueError("h_tile must divide H and be a multiple of padding")
    T = H // TH
    THP = TH // P          # H tile size in units of P rows
    HP = H // P            # image height in units of P rows

    # Row-chunk size: aim for an MXU M dimension of ~512 (bf16 acc) / ~256 (f32).
    target_m = 512 if c_isz <= 2 else 256
    CH = max(1, min(TH, max(1, target_m // W)))
    while TH % CH != 0:
        CH -= 1

    kern = functools.partial(_sepconv_kernel, TH=TH, W=W, C=C, K=K, P=P,
                             CH=CH, n_h_tiles=T)

    # Note: the weight/shift specs have constant index maps, so Pallas does not
    # re-DMA them between grid steps; their double-buffer VMEM cost is tiny.
    out = pl.pallas_call(
        kern,
        out_shape=jax.ShapeDtypeStruct((N, H, W, C), x.dtype),
        grid_spec=pltpu.PrefetchScalarGridSpec(
            num_scalar_prefetch=0,
            grid=(N, T),
            in_specs=[
                # main tile rows [t*TH, (t+1)*TH)
                pl.BlockSpec((1, TH, W, C), lambda n, t: (n, t, 0, 0)),
                # P rows just above the tile (clamped; zeroed in-kernel at t==0)
                pl.BlockSpec(
                    (1, P, W, C),
                    lambda n, t: (n, jnp.maximum(t * THP - 1, 0), 0, 0)),
                # P rows just below the tile (clamped; zeroed at t==T-1)
                pl.BlockSpec(
                    (1, P, W, C),
                    lambda n, t: (n, jnp.minimum((t + 1) * THP, HP - 1), 0, 0)),
                pl.BlockSpec((K * K, C), lambda n, t: (0, 0)),
                pl.BlockSpec((C, C), lambda n, t: (0, 0)),
                pl.BlockSpec((1, C), lambda n, t: (0, 0)),
            ],
            out_specs=pl.BlockSpec((1, TH, W, C), lambda n, t: (n, t, 0, 0)),
            scratch_shapes=[
                pltpu.VMEM((TH + 2 * P, W + 2 * P, C), compute_dtype)],
        ),
        compiler_params=pltpu.CompilerParams(
            dimension_semantics=("parallel", "parallel"),
            vmem_limit_bytes=vmem_limit_bytes),
    )(x, x, x, dw_w.astype(compute_dtype), pw_w_folded, shift)
    return out


def separable_conv2d_nchw(x_nchw, dw_w, pw_w_folded, shift, **kw):
    """PyTorch-layout (NCHW) compatibility wrapper.

    Prefer separable_conv2d_nhwc and keep activations NHWC (and bf16) end to
    end: these two transposes are full HBM passes that the NHWC path avoids.
    """
    x = jnp.transpose(x_nchw, (0, 2, 3, 1))
    y = separable_conv2d_nhwc(x, dw_w, pw_w_folded, shift, **kw)
    return jnp.transpose(y, (0, 3, 1, 2))


def fold_separable_conv_params(dw_w_t, dw_b_t, pw_w_t, gamma, beta,
                               running_mean, running_var, eps=1e-5):
    """Repack PyTorch-layout params into the kernel's fused layouts.

    dw_w_t: (C, 1, K, K), dw_b_t: (C,), pw_w_t: (C, C, 1, 1), BN params: (C,).
    Inference BatchNorm and the depthwise bias are folded into the pointwise
    weight / shift:  s = gamma/sqrt(var+eps);  W' = W_pw * s;
                     shift' = (dw_b @ W_pw) * s + (beta - mean * s).
    """
    C, _, K, _ = dw_w_t.shape
    s = gamma / jnp.sqrt(running_var + eps)                       # (C,)
    dww = jnp.transpose(dw_w_t[:, 0, :, :], (1, 2, 0)).reshape(K * K, C)
    dww = dww.astype(jnp.float32)
    pw = jnp.transpose(pw_w_t[:, :, 0, 0], (1, 0))                # (C_in, C_out)
    pw_folded = (pw * s[None, :]).astype(jnp.bfloat16)
    shift = ((dw_b_t @ pw) * s + (beta - running_mean * s)).reshape(1, C)
    return dww, pw_folded, shift.astype(jnp.float32)


if __name__ == "__main__":
    key = jax.random.PRNGKey(0)
    N, C, H, W = 2, 128, 16, 128     # C on the 128-lane axis, W sublane-aligned
    K, padding = 3, 1

    ks = jax.random.split(key, 8)
    # Keep activations bf16 in HBM (halves HBM read/write bytes vs f32).
    x_nhwc = jax.random.normal(ks[0], (N, H, W, C),
                               jnp.float32).astype(jnp.bfloat16)

    # Deterministic synthetic parameters in PyTorch layouts.
    dw_w_t = 0.1 * jax.random.normal(ks[1], (C, 1, K, K), jnp.float32)
    dw_b_t = 0.1 * jax.random.normal(ks[2], (C,), jnp.float32)
    pw_w_t = 0.1 * jax.random.normal(ks[3], (C, C, 1, 1), jnp.float32)
    gamma = 1.0 + 0.1 * jax.random.normal(ks[4], (C,), jnp.float32)
    beta = 0.1 * jax.random.normal(ks[5], (C,), jnp.float32)
    r_mean = 0.1 * jax.random.normal(ks[6], (C,), jnp.float32)
    r_var = jnp.abs(jax.random.normal(ks[7], (C,), jnp.float32)) + 0.5
    eps = 1e-5

    dww, pwf, shift = fold_separable_conv_params(
        dw_w_t, dw_b_t, pw_w_t, gamma, beta, r_mean, r_var, eps)

    # Auto tile pick (megacore-balanced) -> 2 H tiles per image: exercises the
    # halo reads, border zero padding and the multi-chunk depthwise/MXU loop.
    out = separable_conv2d_nhwc(x_nhwc, dww, pwf, shift,
                                kernel_size=K, padding=padding)
    out = jax.block_until_ready(out)

    # ---- pure-JAX/XLA reference (NHWC, torch-format f32 weights) ----
    x_f32 = x_nhwc.astype(jnp.float32)
    dw_hwio = jnp.transpose(dw_w_t, (2, 3, 1, 0))    # (K, K, 1, C)
    pw_hwio = jnp.transpose(pw_w_t, (2, 3, 1, 0))    # (1, 1, C, C)
    y = lax.conv_general_dilated(x_f32, dw_hwio, (1, 1),
                                 [(padding, padding)] * 2,
                                 feature_group_count=C,
                                 dimension_numbers=("NHWC", "HWIO", "NHWC"))
    y = y + dw_b_t.reshape(1, 1, 1, C)
    y = lax.conv_general_dilated(y, pw_hwio, (1, 1), [(0, 0)] * 2,
                                 dimension_numbers=("NHWC", "HWIO", "NHWC"))
    sc = gamma / jnp.sqrt(r_var + eps)
    y = y * sc.reshape(1, 1, 1, C) + (beta - r_mean * sc).reshape(1, 1, 1, C)
    y = y * jax.nn.sigmoid(y)

    assert out.shape == (N, H, W, C)
    out_f32 = out.astype(jnp.float32)
    err = float(jnp.max(jnp.abs(out_f32 - y)))
    # bf16 activations / MXU operands + approx-EUP sigmoid -> bf16 tolerance.
    assert jnp.allclose(out_f32, y, atol=7e-2, rtol=7e-2), err

    # NCHW compatibility wrapper (PyTorch layout) should match as well.
    out_nchw = separable_conv2d_nchw(jnp.transpose(x_nhwc, (0, 3, 1, 2)),
                                     dww, pwf, shift,
                                     kernel_size=K, padding=padding)
    out_nchw = jax.block_until_ready(out_nchw)
    assert jnp.allclose(
        jnp.transpose(out_nchw, (0, 2, 3, 1)).astype(jnp.float32), y,
        atol=7e-2, rtol=7e-2)

    print("KERNEL_OK")
</pallas_src>

<mosaic_0001>
module attributes {stable_mosaic.version = 11 : i64} {
  func.func @_sepconv_kernel(%arg0: i32, %arg1: i32, %arg2: memref<1x8x128x128xbf16, #tpu.memory_space<vmem>>, %arg3: memref<1x1x128x128xbf16, #tpu.memory_space<vmem>>, %arg4: memref<1x1x128x128xbf16, #tpu.memory_space<vmem>>, %arg5: memref<9x128xf32, #tpu.memory_space<vmem>>, %arg6: memref<128x128xbf16, #tpu.memory_space<vmem>>, %arg7: memref<1x128xf32, #tpu.memory_space<vmem>>, %arg8: memref<1x8x128x128xbf16, #tpu.memory_space<vmem>>, %arg9: memref<10x130x128xf32, #tpu.memory_space<vmem>>) attributes {dimension_semantics = [#tpu.dimension_semantics<parallel>, #tpu.dimension_semantics<parallel>], iteration_bounds = array<i64: 2, 2>, scalar_prefetch = 0 : i64, scratch_operands = 1 : i64, tpu.core_type = #tpu.core_type<tc>, window_params = [{transform_indices = @transform_0, window_bounds = array<i64: 1, 8, 128, 128>}, {transform_indices = @transform_1, window_bounds = array<i64: 1, 1, 128, 128>}, {transform_indices = @transform_2, window_bounds = array<i64: 1, 1, 128, 128>}, {pipeline_mode = #tpu.pipeline_mode<synchronous>, transform_indices = @transform_3, window_bounds = array<i64: 9, 128>}, {pipeline_mode = #tpu.pipeline_mode<synchronous>, transform_indices = @transform_4, window_bounds = array<i64: 128, 128>}, {pipeline_mode = #tpu.pipeline_mode<synchronous>, transform_indices = @transform_5, window_bounds = array<i64: 1, 128>}, {transform_indices = @transform_6, window_bounds = array<i64: 1, 8, 128, 128>}]} {
    %cst = arith.constant 0.000000e+00 : f32
    %0 = vector.broadcast %cst : f32 to vector<10x1x128xf32>
    %c0 = arith.constant 0 : index
    %c0_0 = arith.constant 0 : index
    %c0_1 = arith.constant 0 : index
    %1 = vector.load %arg9[%c0, %c0_0, %c0_1] : memref<10x130x128xf32, #tpu.memory_space<vmem>>, vector<10x1x128xf32>
    tpu.vector_store %arg9[%c0, %c0_0, %c0_1], %0 {strides = array<i32>} : memref<10x130x128xf32, #tpu.memory_space<vmem>>, vector<10x1x128xf32>,
    %c0_2 = arith.constant 0 : index
    %c129 = arith.constant 129 : index
    %c0_3 = arith.constant 0 : index
    %2 = vector.load %arg9[%c0_2, %c129, %c0_3] : memref<10x130x128xf32, #tpu.memory_space<vmem>>, vector<10x1x128xf32>
    tpu.vector_store %arg9[%c0_2, %c129, %c0_3], %0 {strides = array<i32>} : memref<10x130x128xf32, #tpu.memory_space<vmem>>, vector<10x1x128xf32>,
    %c0_i32 = arith.constant 0 : i32
    %3 = arith.cmpi sgt, %arg1, %c0_i32 : i32
    %4 = arith.extui %3 : i1 to i32
    %c0_i32_4 = arith.constant 0 : i32
    %5 = arith.cmpi ne, %4, %c0_i32_4 : i32
    scf.if %5 {
      %c0_231 = arith.constant 0 : index
      %c0_232 = arith.constant 0 : index
      %c0_233 = arith.constant 0 : index
      %c0_234 = arith.constant 0 : index
      %340 = vector.load %arg3[%c0_231, %c0_232, %c0_233, %c0_234] : memref<1x1x128x128xbf16, #tpu.memory_space<vmem>>, vector<1x1x128x128xbf16>
      %341 = vector.shape_cast %340 : vector<1x1x128x128xbf16> to vector<1x128x128xbf16>
      %342 = arith.extf %341 : vector<1x128x128xbf16> to vector<1x128x128xf32>
      %c0_235 = arith.constant 0 : index
      %c1_236 = arith.constant 1 : index
      %c0_237 = arith.constant 0 : index
      %343 = vector.load %arg9[%c0_235, %c1_236, %c0_237] : memref<10x130x128xf32, #tpu.memory_space<vmem>>, vector<1x128x128xf32>
      tpu.vector_store %arg9[%c0_235, %c1_236, %c0_237], %342 {strides = array<i32>} : memref<10x130x128xf32, #tpu.memory_space<vmem>>, vector<1x128x128xf32>,
    } else {
    }
    %c0_i32_5 = arith.constant 0 : i32
    %6 = arith.cmpi eq, %arg1, %c0_i32_5 : i32
    %7 = arith.extui %6 : i1 to i32
    %c0_i32_6 = arith.constant 0 : i32
    %8 = arith.cmpi ne, %7, %c0_i32_6 : i32
    scf.if %8 {
      %cst_231 = arith.constant 0.000000e+00 : f32
      %340 = vector.broadcast %cst_231 : f32 to vector<1x128x128xf32>
      %c0_232 = arith.constant 0 : index
      %c1_233 = arith.constant 1 : index
      %c0_234 = arith.constant 0 : index
      %341 = vector.load %arg9[%c0_232, %c1_233, %c0_234] : memref<10x130x128xf32, #tpu.memory_space<vmem>>, vector<1x128x128xf32>
      tpu.vector_store %arg9[%c0_232, %c1_233, %c0_234], %340 {strides = array<i32>} : memref<10x130x128xf32, #tpu.memory_space<vmem>>, vector<1x128x128xf32>,
    } else {
    }
    %c1_i32 = arith.constant 1 : i32
    %9 = arith.cmpi slt, %arg1, %c1_i32 : i32
    %10 = arith.extui %9 : i1 to i32
    %c0_i32_7 = arith.constant 0 : i32
    %11 = arith.cmpi ne, %10, %c0_i32_7 : i32
    scf.if %11 {
      %c0_231 = arith.constant 0 : index
      %c0_232 = arith.constant 0 : index
      %c0_233 = arith.constant 0 : index
      %c0_234 = arith.constant 0 : index
      %340 = vector.load %arg4[%c0_231, %c0_232, %c0_233, %c0_234] : memref<1x1x128x128xbf16, #tpu.memory_space<vmem>>, vector<1x1x128x128xbf16>
      %341 = vector.shape_cast %340 : vector<1x1x128x128xbf16> to vector<1x128x128xbf16>
      %342 = arith.extf %341 : vector<1x128x128xbf16> to vector<1x128x128xf32>
      %c9 = arith.constant 9 : index
      %c1_235 = arith.constant 1 : index
      %c0_236 = arith.constant 0 : index
      %343 = vector.load %arg9[%c9, %c1_235, %c0_236] : memref<10x130x128xf32, #tpu.memory_space<vmem>>, vector<1x128x128xf32>
      tpu.vector_store %arg9[%c9, %c1_235, %c0_236], %342 {strides = array<i32>} : memref<10x130x128xf32, #tpu.memory_space<vmem>>, vector<1x128x128xf32>,
    } else {
    }
    %c1_i32_8 = arith.constant 1 : i32
    %12 = arith.cmpi eq, %arg1, %c1_i32_8 : i32
    %13 = arith.extui %12 : i1 to i32
    %c0_i32_9 = arith.constant 0 : i32
    %14 = arith.cmpi ne, %13, %c0_i32_9 : i32
    scf.if %14 {
      %cst_231 = arith.constant 0.000000e+00 : f32
      %340 = vector.broadcast %cst_231 : f32 to vector<1x128x128xf32>
      %c9 = arith.constant 9 : index
      %c1_232 = arith.constant 1 : index
      %c0_233 = arith.constant 0 : index
      %341 = vector.load %arg9[%c9, %c1_232, %c0_233] : memref<10x130x128xf32, #tpu.memory_space<vmem>>, vector<1x128x128xf32>
      tpu.vector_store %arg9[%c9, %c1_232, %c0_233], %340 {strides = array<i32>} : memref<10x130x128xf32, #tpu.memory_space<vmem>>, vector<1x128x128xf32>,
    } else {
    }
    %c0_10 = arith.constant 0 : index
    %c0_11 = arith.constant 0 : index
    %c0_12 = arith.constant 0 : index
    %c0_13 = arith.constant 0 : index
    %15 = vector.load %arg2[%c0_10, %c0_11, %c0_12, %c0_13] : memref<1x8x128x128xbf16, #tpu.memory_space<vmem>>, vector<1x8x128x128xbf16>
    %16 = vector.shape_cast %15 : vector<1x8x128x128xbf16> to vector<8x128x128xbf16>
    %17 = arith.extf %16 : vector<8x128x128xbf16> to vector<8x128x128xf32>
    %c1 = arith.constant 1 : index
    %c1_14 = arith.constant 1 : index
    %c0_15 = arith.constant 0 : index
    %18 = vector.load %arg9[%c1, %c1_14, %c0_15] : memref<10x130x128xf32, #tpu.memory_space<vmem>>, vector<8x128x128xf32>
    tpu.vector_store %arg9[%c1, %c1_14, %c0_15], %17 {strides = array<i32>} : memref<10x130x128xf32, #tpu.memory_space<vmem>>, vector<8x128x128xf32>,
    %c0_16 = arith.constant 0 : index
    %c0_17 = arith.constant 0 : index
    %19 = vector.load %arg7[%c0_16, %c0_17] : memref<1x128xf32, #tpu.memory_space<vmem>>, vector<1x128xf32>
    %cst_18 = arith.constant 0.000000e+00 : f32
    %20 = vector.broadcast %cst_18 : f32 to vector<2x128x128xf32>
    %c0_19 = arith.constant 0 : index
    %c0_20 = arith.constant 0 : index
    %c0_21 = arith.constant 0 : index
    %21 = vector.load %arg9[%c0_19, %c0_20, %c0_21] : memref<10x130x128xf32, #tpu.memory_space<vmem>>, vector<2x128x128xf32>
    %c0_22 = arith.constant 0 : index
    %c0_23 = arith.constant 0 : index
    %22 = vector.load %arg5[%c0_22, %c0_23] : memref<9x128xf32, #tpu.memory_space<vmem>>, vector<1x128xf32>
    %23 = vector.shape_cast %22 : vector<1x128xf32> to vector<128xf32>
    %24 = vector.shape_cast %23 : vector<128xf32> to vector<1x1x128xf32>
    %25 = vector.broadcast %24 : vector<1x1x128xf32> to vector<2x128x128xf32>
    %26 = arith.mulf %21, %25 : vector<2x128x128xf32>
    %27 = arith.addf %20, %26 : vector<2x128x128xf32>
    %c0_24 = arith.constant 0 : index
    %c1_25 = arith.constant 1 : index
    %c0_26 = arith.constant 0 : index
    %28 = vector.load %arg9[%c0_24, %c1_25, %c0_26] : memref<10x130x128xf32, #tpu.memory_space<vmem>>, vector<2x128x128xf32>
    %c1_27 = arith.constant 1 : index
    %c0_28 = arith.constant 0 : index
    %29 = vector.load %arg5[%c1_27, %c0_28] : memref<9x128xf32, #tpu.memory_space<vmem>>, vector<1x128xf32>
    %30 = vector.shape_cast %29 : vector<1x128xf32> to vector<128xf32>
    %31 = vector.shape_cast %30 : vector<128xf32> to vector<1x1x128xf32>
    %32 = vector.broadcast %31 : vector<1x1x128xf32> to vector<2x128x128xf32>
    %33 = arith.mulf %28, %32 : vector<2x128x128xf32>
    %34 = arith.addf %27, %33 : vector<2x128x128xf32>
    %c0_29 = arith.constant 0 : index
    %c2 = arith.constant 2 : index
    %c0_30 = arith.constant 0 : index
    %35 = vector.load %arg9[%c0_29, %c2, %c0_30] : memref<10x130x128xf32, #tpu.memory_space<vmem>>, vector<2x128x128xf32>
    %c2_31 = arith.constant 2 : index
    %c0_32 = arith.constant 0 : index
    %36 = vector.load %arg5[%c2_31, %c0_32] : memref<9x128xf32, #tpu.memory_space<vmem>>, vector<1x128xf32>
    %37 = vector.shape_cast %36 : vector<1x128xf32> to vector<128xf32>
    %38 = vector.shape_cast %37 : vector<128xf32> to vector<1x1x128xf32>
    %39 = vector.broadcast %38 : vector<1x1x128xf32> to vector<2x128x128xf32>
    %40 = arith.mulf %35, %39 : vector<2x128x128xf32>
    %41 = arith.addf %34, %40 : vector<2x128x128xf32>
    %c1_33 = arith.constant 1 : index
    %c0_34 = arith.constant 0 : index
    %c0_35 = arith.constant 0 : index
    %42 = vector.load %arg9[%c1_33, %c0_34, %c0_35] : memref<10x130x128xf32, #tpu.memory_space<vmem>>, vector<2x128x128xf32>
    %c3 = arith.constant 3 : index
    %c0_36 = arith.constant 0 : index
    %43 = vector.load %arg5[%c3, %c0_36] : memref<9x128xf32, #tpu.memory_space<vmem>>, vector<1x128xf32>
    %44 = vector.shape_cast %43 : vector<1x128xf32> to vector<128xf32>
    %45 = vector.shape_cast %44 : vector<128xf32> to vector<1x1x128xf32>
    %46 = vector.broadcast %45 : vector<1x1x128xf32> to vector<2x128x128xf32>
    %47 = arith.mulf %42, %46 : vector<2x128x128xf32>
    %48 = arith.addf %41, %47 : vector<2x128x128xf32>
    %c1_37 = arith.constant 1 : index
    %c1_38 = arith.constant 1 : index
    %c0_39 = arith.constant 0 : index
    %49 = vector.load %arg9[%c1_37, %c1_38, %c0_39] : memref<10x130x128xf32, #tpu.memory_space<vmem>>, vector<2x128x128xf32>
    %c4 = arith.constant 4 : index
    %c0_40 = arith.constant 0 : index
    %50 = vector.load %arg5[%c4, %c0_40] : memref<9x128xf32, #tpu.memory_space<vmem>>, vector<1x128xf32>
    %51 = vector.shape_cast %50 : vector<1x128xf32> to vector<128xf32>
    %52 = vector.shape_cast %51 : vector<128xf32> to vector<1x1x128xf32>
    %53 = vector.broadcast %52 : vector<1x1x128xf32> to vector<2x128x128xf32>
    %54 = arith.mulf %49, %53 : vector<2x128x128xf32>
    %55 = arith.addf %48, %54 : vector<2x128x128xf32>
    %c1_41 = arith.constant 1 : index
    %c2_42 = arith.constant 2 : index
    %c0_43 = arith.constant 0 : index
    %56 = vector.load %arg9[%c1_41, %c2_42, %c0_43] : memref<10x130x128xf32, #tpu.memory_space<vmem>>, vector<2x128x128xf32>
    %c5 = arith.constant 5 : index
    %c0_44 = arith.constant 0 : index
    %57 = vector.load %arg5[%c5, %c0_44] : memref<9x128xf32, #tpu.memory_space<vmem>>, vector<1x128xf32>
    %58 = vector.shape_cast %57 : vector<1x128xf32> to vector<128xf32>
    %59 = vector.shape_cast %58 : vector<128xf32> to vector<1x1x128xf32>
    %60 = vector.broadcast %59 : vector<1x1x128xf32> to vector<2x128x128xf32>
    %61 = arith.mulf %56, %60 : vector<2x128x128xf32>
    %62 = arith.addf %55, %61 : vector<2x128x128xf32>
    %c2_45 = arith.constant 2 : index
    %c0_46 = arith.constant 0 : index
    %c0_47 = arith.constant 0 : index
    %63 = vector.load %arg9[%c2_45, %c0_46, %c0_47] : memref<10x130x128xf32, #tpu.memory_space<vmem>>, vector<2x128x128xf32>
    %c6 = arith.constant 6 : index
    %c0_48 = arith.constant 0 : index
    %64 = vector.load %arg5[%c6, %c0_48] : memref<9x128xf32, #tpu.memory_space<vmem>>, vector<1x128xf32>
    %65 = vector.shape_cast %64 : vector<1x128xf32> to vector<128xf32>
    %66 = vector.shape_cast %65 : vector<128xf32> to vector<1x1x128xf32>
    %67 = vector.broadcast %66 : vector<1x1x128xf32> to vector<2x128x128xf32>
    %68 = arith.mulf %63, %67 : vector<2x128x128xf32>
    %69 = arith.addf %62, %68 : vector<2x128x128xf32>
    %c2_49 = arith.constant 2 : index
    %c1_50 = arith.constant 1 : index
    %c0_51 = arith.constant 0 : index
    %70 = vector.load %arg9[%c2_49, %c1_50, %c0_51] : memref<10x130x128xf32, #tpu.memory_space<vmem>>, vector<2x128x128xf32>
    %c7 = arith.constant 7 : index
    %c0_52 = arith.constant 0 : index
    %71 = vector.load %arg5[%c7, %c0_52] : memref<9x128xf32, #tpu.memory_space<vmem>>, vector<1x128xf32>
    %72 = vector.shape_cast %71 : vector<1x128xf32> to vector<128xf32>
    %73 = vector.shape_cast %72 : vector<128xf32> to vector<1x1x128xf32>
    %74 = vector.broadcast %73 : vector<1x1x128xf32> to vector<2x128x128xf32>
    %75 = arith.mulf %70, %74 : vector<2x128x128xf32>
    %76 = arith.addf %69, %75 : vector<2x128x128xf32>
    %c2_53 = arith.constant 2 : index
    %c2_54 = arith.constant 2 : index
    %c0_55 = arith.constant 0 : index
    %77 = vector.load %arg9[%c2_53, %c2_54, %c0_55] : memref<10x130x128xf32, #tpu.memory_space<vmem>>, vector<2x128x128xf32>
    %c8 = arith.constant 8 : index
    %c0_56 = arith.constant 0 : index
    %78 = vector.load %arg5[%c8, %c0_56] : memref<9x128xf32, #tpu.memory_space<vmem>>, vector<1x128xf32>
    %79 = vector.shape_cast %78 : vector<1x128xf32> to vector<128xf32>
    %80 = vector.shape_cast %79 : vector<128xf32> to vector<1x1x128xf32>
    %81 = vector.broadcast %80 : vector<1x1x128xf32> to vector<2x128x128xf32>
    %82 = arith.mulf %77, %81 : vector<2x128x128xf32>
    %83 = arith.addf %76, %82 : vector<2x128x128xf32>
    %84 = vector.shape_cast %83 : vector<2x128x128xf32> to vector<256x128xf32>
    %85 = arith.truncf %84 : vector<256x128xf32> to vector<256x128xbf16>
    %c0_57 = arith.constant 0 : index
    %c0_58 = arith.constant 0 : index
    %86 = vector.load %arg6[%c0_57, %c0_58] : memref<128x128xbf16, #tpu.memory_space<vmem>>, vector<128x128xbf16>
    %cst_59 = arith.constant dense<0.000000e+00> : vector<256x128xf32>
    %87 = tpu.matmul %85, %86, %cst_59 {dimension_numbers = #tpu.dot_dimension_numbers<[1], [0], [0], [1], [0, 0, 1, 1], [], []>} : vector<256x128xbf16>, vector<128x128xbf16>, vector<256x128xf32> -> vector<256x128xf32>
    %88 = vector.broadcast %19 : vector<1x128xf32> to vector<256x128xf32>
    %89 = arith.addf %87, %88 : vector<256x128xf32>
    %cst_60 = arith.constant 0.000000e+00 : f32
    %90 = vector.broadcast %cst_60 : f32 to vector<256x128xf32>
    %91 = arith.subf %90, %89 : vector<256x128xf32>
    %92 = math.exp %91 : vector<256x128xf32>
    %cst_61 = arith.constant 1.000000e+00 : f32
    %93 = vector.broadcast %cst_61 : f32 to vector<256x128xf32>
    %94 = arith.addf %93, %92 : vector<256x128xf32>
    %95 = tpu.reciprocal %94 {approx = true} : vector<256x128xf32> -> vector<256x128xf32>
    %96 = arith.mulf %89, %95 : vector<256x128xf32>
    %97 = vector.shape_cast %96 : vector<256x128xf32> to vector<1x2x128x128xf32>
    %98 = arith.truncf %97 : vector<1x2x128x128xf32> to vector<1x2x128x128xbf16>
    %c0_62 = arith.constant 0 : index
    %c0_63 = arith.constant 0 : index
    %c0_64 = arith.constant 0 : index
    %c0_65 = arith.constant 0 : index
    %99 = vector.load %arg8[%c0_62, %c0_63, %c0_64, %c0_65] : memref<1x8x128x128xbf16, #tpu.memory_space<vmem>>, vector<1x2x128x128xbf16>
    tpu.vector_store %arg8[%c0_62, %c0_63, %c0_64, %c0_65], %98 {strides = array<i32>} : memref<1x8x128x128xbf16, #tpu.memory_space<vmem>>, vector<1x2x128x128xbf16>,
    %cst_66 = arith.constant 0.000000e+00 : f32
    %100 = vector.broadcast %cst_66 : f32 to vector<2x128x128xf32>
    %c2_67 = arith.constant 2 : index
    %c0_68 = arith.constant 0 : index
    %c0_69 = arith.constant 0 : index
    %101 = vector.load %arg9[%c2_67, %c0_68, %c0_69] : memref<10x130x128xf32, #tpu.memory_space<vmem>>, vector<2x128x128xf32>
    %c0_70 = arith.constant 0 : index
    %c0_71 = arith.constant 0 : index
    %102 = vector.load %arg5[%c0_70, %c0_71] : memref<9x128xf32, #tpu.memory_space<vmem>>, vector<1x128xf32>
    %103 = vector.shape_cast %102 : vector<1x128xf32> to vector<128xf32>
    %104 = vector.shape_cast %103 : vector<128xf32> to vector<1x1x128xf32>
    %105 = vector.broadcast %104 : vector<1x1x128xf32> to vector<2x128x128xf32>
    %106 = arith.mulf %101, %105 : vector<2x128x128xf32>
    %107 = arith.addf %100, %106 : vector<2x128x128xf32>
    %c2_72 = arith.constant 2 : index
    %c1_73 = arith.constant 1 : index
    %c0_74 = arith.constant 0 : index
    %108 = vector.load %arg9[%c2_72, %c1_73, %c0_74] : memref<10x130x128xf32, #tpu.memory_space<vmem>>, vector<2x128x128xf32>
    %c1_75 = arith.constant 1 : index
    %c0_76 = arith.constant 0 : index
    %109 = vector.load %arg5[%c1_75, %c0_76] : memref<9x128xf32, #tpu.memory_space<vmem>>, vector<1x128xf32>
    %110 = vector.shape_cast %109 : vector<1x128xf32> to vector<128xf32>
    %111 = vector.shape_cast %110 : vector<128xf32> to vector<1x1x128xf32>
    %112 = vector.broadcast %111 : vector<1x1x128xf32> to vector<2x128x128xf32>
    %113 = arith.mulf %108, %112 : vector<2x128x128xf32>
    %114 = arith.addf %107, %113 : vector<2x128x128xf32>
    %c2_77 = arith.constant 2 : index
    %c2_78 = arith.constant 2 : index
    %c0_79 = arith.constant 0 : index
    %115 = vector.load %arg9[%c2_77, %c2_78, %c0_79] : memref<10x130x128xf32, #tpu.memory_space<vmem>>, vector<2x128x128xf32>
    %c2_80 = arith.constant 2 : index
    %c0_81 = arith.constant 0 : index
    %116 = vector.load %arg5[%c2_80, %c0_81] : memref<9x128xf32, #tpu.memory_space<vmem>>, vector<1x128xf32>
    %117 = vector.shape_cast %116 : vector<1x128xf32> to vector<128xf32>
    %118 = vector.shape_cast %117 : vector<128xf32> to vector<1x1x128xf32>
    %119 = vector.broadcast %118 : vector<1x1x128xf32> to vector<2x128x128xf32>
    %120 = arith.mulf %115, %119 : vector<2x128x128xf32>
    %121 = arith.addf %114, %120 : vector<2x128x128xf32>
    %c3_82 = arith.constant 3 : index
    %c0_83 = arith.constant 0 : index
    %c0_84 = arith.constant 0 : index
    %122 = vector.load %arg9[%c3_82, %c0_83, %c0_84] : memref<10x130x128xf32, #tpu.memory_space<vmem>>, vector<2x128x128xf32>
    %c3_85 = arith.constant 3 : index
    %c0_86 = arith.constant 0 : index
    %123 = vector.load %arg5[%c3_85, %c0_86] : memref<9x128xf32, #tpu.memory_space<vmem>>, vector<1x128xf32>
    %124 = vector.shape_cast %123 : vector<1x128xf32> to vector<128xf32>
    %125 = vector.shape_cast %124 : vector<128xf32> to vector<1x1x128xf32>
    %126 = vector.broadcast %125 : vector<1x1x128xf32> to vector<2x128x128xf32>
    %127 = arith.mulf %122, %126 : vector<2x128x128xf32>
    %128 = arith.addf %121, %127 : vector<2x128x128xf32>
    %c3_87 = arith.constant 3 : index
    %c1_88 = arith.constant 1 : index
    %c0_89 = arith.constant 0 : index
    %129 = vector.load %arg9[%c3_87, %c1_88, %c0_89] : memref<10x130x128xf32, #tpu.memory_space<vmem>>, vector<2x128x128xf32>
    %c4_90 = arith.constant 4 : index
    %c0_91 = arith.constant 0 : index
    %130 = vector.load %arg5[%c4_90, %c0_91] : memref<9x128xf32, #tpu.memory_space<vmem>>, vector<1x128xf32>
    %131 = vector.shape_cast %130 : vector<1x128xf32> to vector<128xf32>
    %132 = vector.shape_cast %131 : vector<128xf32> to vector<1x1x128xf32>
    %133 = vector.broadcast %132 : vector<1x1x128xf32> to vector<2x128x128xf32>
    %134 = arith.mulf %129, %133 : vector<2x128x128xf32>
    %135 = arith.addf %128, %134 : vector<2x128x128xf32>
    %c3_92 = arith.constant 3 : index
    %c2_93 = arith.constant 2 : index
    %c0_94 = arith.constant 0 : index
    %136 = vector.load %arg9[%c3_92, %c2_93, %c0_94] : memref<10x130x128xf32, #tpu.memory_space<vmem>>, vector<2x128x128xf32>
    %c5_95 = arith.constant 5 : index
    %c0_96 = arith.constant 0 : index
    %137 = vector.load %arg5[%c5_95, %c0_96] : memref<9x128xf32, #tpu.memory_space<vmem>>, vector<1x128xf32>
    %138 = vector.shape_cast %137 : vector<1x128xf32> to vector<128xf32>
    %139 = vector.shape_cast %138 : vector<128xf32> to vector<1x1x128xf32>
    %140 = vector.broadcast %139 : vector<1x1x128xf32> to vector<2x128x128xf32>
    %141 = arith.mulf %136, %140 : vector<2x128x128xf32>
    %142 = arith.addf %135, %141 : vector<2x128x128xf32>
    %c4_97 = arith.constant 4 : index
    %c0_98 = arith.constant 0 : index
    %c0_99 = arith.constant 0 : index
    %143 = vector.load %arg9[%c4_97, %c0_98, %c0_99] : memref<10x130x128xf32, #tpu.memory_space<vmem>>, vector<2x128x128xf32>
    %c6_100 = arith.constant 6 : index
    %c0_101 = arith.constant 0 : index
    %144 = vector.load %arg5[%c6_100, %c0_101] : memref<9x128xf32, #tpu.memory_space<vmem>>, vector<1x128xf32>
    %145 = vector.shape_cast %144 : vector<1x128xf32> to vector<128xf32>
    %146 = vector.shape_cast %145 : vector<128xf32> to vector<1x1x128xf32>
    %147 = vector.broadcast %146 : vector<1x1x128xf32> to vector<2x128x128xf32>
    %148 = arith.mulf %143, %147 : vector<2x128x128xf32>
    %149 = arith.addf %142, %148 : vector<2x128x128xf32>
    %c4_102 = arith.constant 4 : index
    %c1_103 = arith.constant 1 : index
    %c0_104 = arith.constant 0 : index
    %150 = vector.load %arg9[%c4_102, %c1_103, %c0_104] : memref<10x130x128xf32, #tpu.memory_space<vmem>>, vector<2x128x128xf32>
    %c7_105 = arith.constant 7 : index
    %c0_106 = arith.constant 0 : index
    %151 = vector.load %arg5[%c7_105, %c0_106] : memref<9x128xf32, #tpu.memory_space<vmem>>, vector<1x128xf32>
    %152 = vector.shape_cast %151 : vector<1x128xf32> to vector<128xf32>
    %153 = vector.shape_cast %152 : vector<128xf32> to vector<1x1x128xf32>
    %154 = vector.broadcast %153 : vector<1x1x128xf32> to vector<2x128x128xf32>
    %155 = arith.mulf %150, %154 : vector<2x128x128xf32>
    %156 = arith.addf %149, %155 : vector<2x128x128xf32>
    %c4_107 = arith.constant 4 : index
    %c2_108 = arith.constant 2 : index
    %c0_109 = arith.constant 0 : index
    %157 = vector.load %arg9[%c4_107, %c2_108, %c0_109] : memref<10x130x128xf32, #tpu.memory_space<vmem>>, vector<2x128x128xf32>
    %c8_110 = arith.constant 8 : index
    %c0_111 = arith.constant 0 : index
    %158 = vector.load %arg5[%c8_110, %c0_111] : memref<9x128xf32, #tpu.memory_space<vmem>>, vector<1x128xf32>
    %159 = vector.shape_cast %158 : vector<1x128xf32> to vector<128xf32>
    %160 = vector.shape_cast %159 : vector<128xf32> to vector<1x1x128xf32>
    %161 = vector.broadcast %160 : vector<1x1x128xf32> to vector<2x128x128xf32>
    %162 = arith.mulf %157, %161 : vector<2x128x128xf32>
    %163 = arith.addf %156, %162 : vector<2x128x128xf32>
    %164 = vector.shape_cast %163 : vector<2x128x128xf32> to vector<256x128xf32>
    %165 = arith.truncf %164 : vector<256x128xf32> to vector<256x128xbf16>
    %c0_112 = arith.constant 0 : index
    %c0_113 = arith.constant 0 : index
    %166 = vector.load %arg6[%c0_112, %c0_113] : memref<128x128xbf16, #tpu.memory_space<vmem>>, vector<128x128xbf16>
    %cst_114 = arith.constant dense<0.000000e+00> : vector<256x128xf32>
    %167 = tpu.matmul %165, %166, %cst_114 {dimension_numbers = #tpu.dot_dimension_numbers<[1], [0], [0], [1], [0, 0, 1, 1], [], []>} : vector<256x128xbf16>, vector<128x128xbf16>, vector<256x128xf32> -> vector<256x128xf32>
    %168 = vector.broadcast %19 : vector<1x128xf32> to vector<256x128xf32>
    %169 = arith.addf %167, %168 : vector<256x128xf32>
    %cst_115 = arith.constant 0.000000e+00 : f32
    %170 = vector.broadcast %cst_115 : f32 to vector<256x128xf32>
    %171 = arith.subf %170, %169 : vector<256x128xf32>
    %172 = math.exp %171 : vector<256x128xf32>
    %cst_116 = arith.constant 1.000000e+00 : f32
    %173 = vector.broadcast %cst_116 : f32 to vector<256x128xf32>
    %174 = arith.addf %173, %172 : vector<256x128xf32>
    %175 = tpu.reciprocal %174 {approx = true} : vector<256x128xf32> -> vector<256x128xf32>
    %176 = arith.mulf %169, %175 : vector<256x128xf32>
    %177 = vector.shape_cast %176 : vector<256x128xf32> to vector<1x2x128x128xf32>
    %178 = arith.truncf %177 : vector<1x2x128x128xf32> to vector<1x2x128x128xbf16>
    %c0_117 = arith.constant 0 : index
    %c2_118 = arith.constant 2 : index
    %c0_119 = arith.constant 0 : index
    %c0_120 = arith.constant 0 : index
    %179 = vector.load %arg8[%c0_117, %c2_118, %c0_119, %c0_120] : memref<1x8x128x128xbf16, #tpu.memory_space<vmem>>, vector<1x2x128x128xbf16>
    tpu.vector_store %arg8[%c0_117, %c2_118, %c0_119, %c0_120], %178 {strides = array<i32>} : memref<1x8x128x128xbf16, #tpu.memory_space<vmem>>, vector<1x2x128x128xbf16>,
    %cst_121 = arith.constant 0.000000e+00 : f32
    %180 = vector.broadcast %cst_121 : f32 to vector<2x128x128xf32>
    %c4_122 = arith.constant 4 : index
    %c0_123 = arith.constant 0 : index
    %c0_124 = arith.constant 0 : index
    %181 = vector.load %arg9[%c4_122, %c0_123, %c0_124] : memref<10x130x128xf32, #tpu.memory_space<vmem>>, vector<2x128x128xf32>
    %c0_125 = arith.constant 0 : index
    %c0_126 = arith.constant 0 : index
    %182 = vector.load %arg5[%c0_125, %c0_126] : memref<9x128xf32, #tpu.memory_space<vmem>>, vector<1x128xf32>
    %183 = vector.shape_cast %182 : vector<1x128xf32> to vector<128xf32>
    %184 = vector.shape_cast %183 : vector<128xf32> to vector<1x1x128xf32>
    %185 = vector.broadcast %184 : vector<1x1x128xf32> to vector<2x128x128xf32>
    %186 = arith.mulf %181, %185 : vector<2x128x128xf32>
    %187 = arith.addf %180, %186 : vector<2x128x128xf32>
    %c4_127 = arith.constant 4 : index
    %c1_128 = arith.constant 1 : index
    %c0_129 = arith.constant 0 : index
    %188 = vector.load %arg9[%c4_127, %c1_128, %c0_129] : memref<10x130x128xf32, #tpu.memory_space<vmem>>, vector<2x128x128xf32>
    %c1_130 = arith.constant 1 : index
    %c0_131 = arith.constant 0 : index
    %189 = vector.load %arg5[%c1_130, %c0_131] : memref<9x128xf32, #tpu.memory_space<vmem>>, vector<1x128xf32>
    %190 = vector.shape_cast %189 : vector<1x128xf32> to vector<128xf32>
    %191 = vector.shape_cast %190 : vector<128xf32> to vector<1x1x128xf32>
    %192 = vector.broadcast %191 : vector<1x1x128xf32> to vector<2x128x128xf32>
    %193 = arith.mulf %188, %192 : vector<2x128x128xf32>
    %194 = arith.addf %187, %193 : vector<2x128x128xf32>
    %c4_132 = arith.constant 4 : index
    %c2_133 = arith.constant 2 : index
    %c0_134 = arith.constant 0 : index
    %195 = vector.load %arg9[%c4_132, %c2_133, %c0_134] : memref<10x130x128xf32, #tpu.memory_space<vmem>>, vector<2x128x128xf32>
    %c2_135 = arith.constant 2 : index
    %c0_136 = arith.constant 0 : index
    %196 = vector.load %arg5[%c2_135, %c0_136] : memref<9x128xf32, #tpu.memory_space<vmem>>, vector<1x128xf32>
    %197 = vector.shape_cast %196 : vector<1x128xf32> to vector<128xf32>
    %198 = vector.shape_cast %197 : vector<128xf32> to vector<1x1x128xf32>
    %199 = vector.broadcast %198 : vector<1x1x128xf32> to vector<2x128x128xf32>
    %200 = arith.mulf %195, %199 : vector<2x128x128xf32>
    %201 = arith.addf %194, %200 : vector<2x128x128xf32>
    %c5_137 = arith.constant 5 : index
    %c0_138 = arith.constant 0 : index
    %c0_139 = arith.constant 0 : index
    %202 = vector.load %arg9[%c5_137, %c0_138, %c0_139] : memref<10x130x128xf32, #tpu.memory_space<vmem>>, vector<2x128x128xf32>
    %c3_140 = arith.constant 3 : index
    %c0_141 = arith.constant 0 : index
    %203 = vector.load %arg5[%c3_140, %c0_141] : memref<9x128xf32, #tpu.memory_space<vmem>>, vector<1x128xf32>
    %204 = vector.shape_cast %203 : vector<1x128xf32> to vector<128xf32>
    %205 = vector.shape_cast %204 : vector<128xf32> to vector<1x1x128xf32>
    %206 = vector.broadcast %205 : vector<1x1x128xf32> to vector<2x128x128xf32>
    %207 = arith.mulf %202, %206 : vector<2x128x128xf32>
    %208 = arith.addf %201, %207 : vector<2x128x128xf32>
    %c5_142 = arith.constant 5 : index
    %c1_143 = arith.constant 1 : index
    %c0_144 = arith.constant 0 : index
    %209 = vector.load %arg9[%c5_142, %c1_143, %c0_144] : memref<10x130x128xf32, #tpu.memory_space<vmem>>, vector<2x128x128xf32>
    %c4_145 = arith.constant 4 : index
    %c0_146 = arith.constant 0 : index
    %210 = vector.load %arg5[%c4_145, %c0_146] : memref<9x128xf32, #tpu.memory_space<vmem>>, vector<1x128xf32>
    %211 = vector.shape_cast %210 : vector<1x128xf32> to vector<128xf32>
    %212 = vector.shape_cast %211 : vector<128xf32> to vector<1x1x128xf32>
    %213 = vector.broadcast %212 : vector<1x1x128xf32> to vector<2x128x128xf32>
    %214 = arith.mulf %209, %213 : vector<2x128x128xf32>
    %215 = arith.addf %208, %214 : vector<2x128x128xf32>
    %c5_147 = arith.constant 5 : index
    %c2_148 = arith.constant 2 : index
    %c0_149 = arith.constant 0 : index
    %216 = vector.load %arg9[%c5_147, %c2_148, %c0_149] : memref<10x130x128xf32, #tpu.memory_space<vmem>>, vector<2x128x128xf32>
    %c5_150 = arith.constant 5 : index
    %c0_151 = arith.constant 0 : index
    %217 = vector.load %arg5[%c5_150, %c0_151] : memref<9x128xf32, #tpu.memory_space<vmem>>, vector<1x128xf32>
    %218 = vector.shape_cast %217 : vector<1x128xf32> to vector<128xf32>
    %219 = vector.shape_cast %218 : vector<128xf32> to vector<1x1x128xf32>
    %220 = vector.broadcast %219 : vector<1x1x128xf32> to vector<2x128x128xf32>
    %221 = arith.mulf %216, %220 : vector<2x128x128xf32>
    %222 = arith.addf %215, %221 : vector<2x128x128xf32>
    %c6_152 = arith.constant 6 : index
    %c0_153 = arith.constant 0 : index
    %c0_154 = arith.constant 0 : index
    %223 = vector.load %arg9[%c6_152, %c0_153, %c0_154] : memref<10x130x128xf32, #tpu.memory_space<vmem>>, vector<2x128x128xf32>
    %c6_155 = arith.constant 6 : index
    %c0_156 = arith.constant 0 : index
    %224 = vector.load %arg5[%c6_155, %c0_156] : memref<9x128xf32, #tpu.memory_space<vmem>>, vector<1x128xf32>
    %225 = vector.shape_cast %224 : vector<1x128xf32> to vector<128xf32>
    %226 = vector.shape_cast %225 : vector<128xf32> to vector<1x1x128xf32>
    %227 = vector.broadcast %226 : vector<1x1x128xf32> to vector<2x128x128xf32>
    %228 = arith.mulf %223, %227 : vector<2x128x128xf32>
    %229 = arith.addf %222, %228 : vector<2x128x128xf32>
    %c6_157 = arith.constant 6 : index
    %c1_158 = arith.constant 1 : index
    %c0_159 = arith.constant 0 : index
    %230 = vector.load %arg9[%c6_157, %c1_158, %c0_159] : memref<10x130x128xf32, #tpu.memory_space<vmem>>, vector<2x128x128xf32>
    %c7_160 = arith.constant 7 : index
    %c0_161 = arith.constant 0 : index
    %231 = vector.load %arg5[%c7_160, %c0_161] : memref<9x128xf32, #tpu.memory_space<vmem>>, vector<1x128xf32>
    %232 = vector.shape_cast %231 : vector<1x128xf32> to vector<128xf32>
    %233 = vector.shape_cast %232 : vector<128xf32> to vector<1x1x128xf32>
    %234 = vector.broadcast %233 : vector<1x1x128xf32> to vector<2x128x128xf32>
    %235 = arith.mulf %230, %234 : vector<2x128x128xf32>
    %236 = arith.addf %229, %235 : vector<2x128x128xf32>
    %c6_162 = arith.constant 6 : index
    %c2_163 = arith.constant 2 : index
    %c0_164 = arith.constant 0 : index
    %237 = vector.load %arg9[%c6_162, %c2_163, %c0_164] : memref<10x130x128xf32, #tpu.memory_space<vmem>>, vector<2x128x128xf32>
    %c8_165 = arith.constant 8 : index
    %c0_166 = arith.constant 0 : index
    %238 = vector.load %arg5[%c8_165, %c0_166] : memref<9x128xf32, #tpu.memory_space<vmem>>, vector<1x128xf32>
    %239 = vector.shape_cast %238 : vector<1x128xf32> to vector<128xf32>
    %240 = vector.shape_cast %239 : vector<128xf32> to vector<1x1x128xf32>
    %241 = vector.broadcast %240 : vector<1x1x128xf32> to vector<2x128x128xf32>
    %242 = arith.mulf %237, %241 : vector<2x128x128xf32>
    %243 = arith.addf %236, %242 : vector<2x128x128xf32>
    %244 = vector.shape_cast %243 : vector<2x128x128xf32> to vector<256x128xf32>
    %245 = arith.truncf %244 : vector<256x128xf32> to vector<256x128xbf16>
    %c0_167 = arith.constant 0 : index
    %c0_168 = arith.constant 0 : index
    %246 = vector.load %arg6[%c0_167, %c0_168] : memref<128x128xbf16, #tpu.memory_space<vmem>>, vector<128x128xbf16>
    %cst_169 = arith.constant dense<0.000000e+00> : vector<256x128xf32>
    %247 = tpu.matmul %245, %246, %cst_169 {dimension_numbers = #tpu.dot_dimension_numbers<[1], [0], [0], [1], [0, 0, 1, 1], [], []>} : vector<256x128xbf16>, vector<128x128xbf16>, vector<256x128xf32> -> vector<256x128xf32>
    %248 = vector.broadcast %19 : vector<1x128xf32> to vector<256x128xf32>
    %249 = arith.addf %247, %248 : vector<256x128xf32>
    %cst_170 = arith.constant 0.000000e+00 : f32
    %250 = vector.broadcast %cst_170 : f32 to vector<256x128xf32>
    %251 = arith.subf %250, %249 : vector<256x128xf32>
    %252 = math.exp %251 : vector<256x128xf32>
    %cst_171 = arith.constant 1.000000e+00 : f32
    %253 = vector.broadcast %cst_171 : f32 to vector<256x128xf32>
    %254 = arith.addf %253, %252 : vector<256x128xf32>
    %255 = tpu.reciprocal %254 {approx = true} : vector<256x128xf32> -> vector<256x128xf32>
    %256 = arith.mulf %249, %255 : vector<256x128xf32>
    %257 = vector.shape_cast %256 : vector<256x128xf32> to vector<1x2x128x128xf32>
    %258 = arith.truncf %257 : vector<1x2x128x128xf32> to vector<1x2x128x128xbf16>
    %c0_172 = arith.constant 0 : index
    %c4_173 = arith.constant 4 : index
    %c0_174 = arith.constant 0 : index
    %c0_175 = arith.constant 0 : index
    %259 = vector.load %arg8[%c0_172, %c4_173, %c0_174, %c0_175] : memref<1x8x128x128xbf16, #tpu.memory_space<vmem>>, vector<1x2x128x128xbf16>
    tpu.vector_store %arg8[%c0_172, %c4_173, %c0_174, %c0_175], %258 {strides = array<i32>} : memref<1x8x128x128xbf16, #tpu.memory_space<vmem>>, vector<1x2x128x128xbf16>,
    %cst_176 = arith.constant 0.000000e+00 : f32
    %260 = vector.broadcast %cst_176 : f32 to vector<2x128x128xf32>
    %c6_177 = arith.constant 6 : index
    %c0_178 = arith.constant 0 : index
    %c0_179 = arith.constant 0 : index
    %261 = vector.load %arg9[%c6_177, %c0_178, %c0_179] : memref<10x130x128xf32, #tpu.memory_space<vmem>>, vector<2x128x128xf32>
    %c0_180 = arith.constant 0 : index
    %c0_181 = arith.constant 0 : index
    %262 = vector.load %arg5[%c0_180, %c0_181] : memref<9x128xf32, #tpu.memory_space<vmem>>, vector<1x128xf32>
    %263 = vector.shape_cast %262 : vector<1x128xf32> to vector<128xf32>
    %264 = vector.shape_cast %263 : vector<128xf32> to vector<1x1x128xf32>
    %265 = vector.broadcast %264 : vector<1x1x128xf32> to vector<2x128x128xf32>
    %266 = arith.mulf %261, %265 : vector<2x128x128xf32>
    %267 = arith.addf %260, %266 : vector<2x128x128xf32>
    %c6_182 = arith.constant 6 : index
    %c1_183 = arith.constant 1 : index
    %c0_184 = arith.constant 0 : index
    %268 = vector.load %arg9[%c6_182, %c1_183, %c0_184] : memref<10x130x128xf32, #tpu.memory_space<vmem>>, vector<2x128x128xf32>
    %c1_185 = arith.constant 1 : index
    %c0_186 = arith.constant 0 : index
    %269 = vector.load %arg5[%c1_185, %c0_186] : memref<9x128xf32, #tpu.memory_space<vmem>>, vector<1x128xf32>
    %270 = vector.shape_cast %269 : vector<1x128xf32> to vector<128xf32>
    %271 = vector.shape_cast %270 : vector<128xf32> to vector<1x1x128xf32>
    %272 = vector.broadcast %271 : vector<1x1x128xf32> to vector<2x128x128xf32>
    %273 = arith.mulf %268, %272 : vector<2x128x128xf32>
    %274 = arith.addf %267, %273 : vector<2x128x128xf32>
    %c6_187 = arith.constant 6 : index
    %c2_188 = arith.constant 2 : index
    %c0_189 = arith.constant 0 : index
    %275 = vector.load %arg9[%c6_187, %c2_188, %c0_189] : memref<10x130x128xf32, #tpu.memory_space<vmem>>, vector<2x128x128xf32>
    %c2_190 = arith.constant 2 : index
    %c0_191 = arith.constant 0 : index
    %276 = vector.load %arg5[%c2_190, %c0_191] : memref<9x128xf32, #tpu.memory_space<vmem>>, vector<1x128xf32>
    %277 = vector.shape_cast %276 : vector<1x128xf32> to vector<128xf32>
    %278 = vector.shape_cast %277 : vector<128xf32> to vector<1x1x128xf32>
    %279 = vector.broadcast %278 : vector<1x1x128xf32> to vector<2x128x128xf32>
    %280 = arith.mulf %275, %279 : vector<2x128x128xf32>
    %281 = arith.addf %274, %280 : vector<2x128x128xf32>
    %c7_192 = arith.constant 7 : index
    %c0_193 = arith.constant 0 : index
    %c0_194 = arith.constant 0 : index
    %282 = vector.load %arg9[%c7_192, %c0_193, %c0_194] : memref<10x130x128xf32, #tpu.memory_space<vmem>>, vector<2x128x128xf32>
    %c3_195 = arith.constant 3 : index
    %c0_196 = arith.constant 0 : index
    %283 = vector.load %arg5[%c3_195, %c0_196] : memref<9x128xf32, #tpu.memory_space<vmem>>, vector<1x128xf32>
    %284 = vector.shape_cast %283 : vector<1x128xf32> to vector<128xf32>
    %285 = vector.shape_cast %284 : vector<128xf32> to vector<1x1x128xf32>
    %286 = vector.broadcast %285 : vector<1x1x128xf32> to vector<2x128x128xf32>
    %287 = arith.mulf %282, %286 : vector<2x128x128xf32>
    %288 = arith.addf %281, %287 : vector<2x128x128xf32>
    %c7_197 = arith.constant 7 : index
    %c1_198 = arith.constant 1 : index
    %c0_199 = arith.constant 0 : index
    %289 = vector.load %arg9[%c7_197, %c1_198, %c0_199] : memref<10x130x128xf32, #tpu.memory_space<vmem>>, vector<2x128x128xf32>
    %c4_200 = arith.constant 4 : index
    %c0_201 = arith.constant 0 : index
    %290 = vector.load %arg5[%c4_200, %c0_201] : memref<9x128xf32, #tpu.memory_space<vmem>>, vector<1x128xf32>
    %291 = vector.shape_cast %290 : vector<1x128xf32> to vector<128xf32>
    %292 = vector.shape_cast %291 : vector<128xf32> to vector<1x1x128xf32>
    %293 = vector.broadcast %292 : vector<1x1x128xf32> to vector<2x128x128xf32>
    %294 = arith.mulf %289, %293 : vector<2x128x128xf32>
    %295 = arith.addf %288, %294 : vector<2x128x128xf32>
    %c7_202 = arith.constant 7 : index
    %c2_203 = arith.constant 2 : index
    %c0_204 = arith.constant 0 : index
    %296 = vector.load %arg9[%c7_202, %c2_203, %c0_204] : memref<10x130x128xf32, #tpu.memory_space<vmem>>, vector<2x128x128xf32>
    %c5_205 = arith.constant 5 : index
    %c0_206 = arith.constant 0 : index
    %297 = vector.load %arg5[%c5_205, %c0_206] : memref<9x128xf32, #tpu.memory_space<vmem>>, vector<1x128xf32>
    %298 = vector.shape_cast %297 : vector<1x128xf32> to vector<128xf32>
    %299 = vector.shape_cast %298 : vector<128xf32> to vector<1x1x128xf32>
    %300 = vector.broadcast %299 : vector<1x1x128xf32> to vector<2x128x128xf32>
    %301 = arith.mulf %296, %300 : vector<2x128x128xf32>
    %302 = arith.addf %295, %301 : vector<2x128x128xf32>
    %c8_207 = arith.constant 8 : index
    %c0_208 = arith.constant 0 : index
    %c0_209 = arith.constant 0 : index
    %303 = vector.load %arg9[%c8_207, %c0_208, %c0_209] : memref<10x130x128xf32, #tpu.memory_space<vmem>>, vector<2x128x128xf32>
    %c6_210 = arith.constant 6 : index
    %c0_211 = arith.constant 0 : index
    %304 = vector.load %arg5[%c6_210, %c0_211] : memref<9x128xf32, #tpu.memory_space<vmem>>, vector<1x128xf32>
    %305 = vector.shape_cast %304 : vector<1x128xf32> to vector<128xf32>
    %306 = vector.shape_cast %305 : vector<128xf32> to vector<1x1x128xf32>
    %307 = vector.broadcast %306 : vector<1x1x128xf32> to vector<2x128x128xf32>
    %308 = arith.mulf %303, %307 : vector<2x128x128xf32>
    %309 = arith.addf %302, %308 : vector<2x128x128xf32>
    %c8_212 = arith.constant 8 : index
    %c1_213 = arith.constant 1 : index
    %c0_214 = arith.constant 0 : index
    %310 = vector.load %arg9[%c8_212, %c1_213, %c0_214] : memref<10x130x128xf32, #tpu.memory_space<vmem>>, vector<2x128x128xf32>
    %c7_215 = arith.constant 7 : index
    %c0_216 = arith.constant 0 : index
    %311 = vector.load %arg5[%c7_215, %c0_216] : memref<9x128xf32, #tpu.memory_space<vmem>>, vector<1x128xf32>
    %312 = vector.shape_cast %311 : vector<1x128xf32> to vector<128xf32>
    %313 = vector.shape_cast %312 : vector<128xf32> to vector<1x1x128xf32>
    %314 = vector.broadcast %313 : vector<1x1x128xf32> to vector<2x128x128xf32>
    %315 = arith.mulf %310, %314 : vector<2x128x128xf32>
    %316 = arith.addf %309, %315 : vector<2x128x128xf32>
    %c8_217 = arith.constant 8 : index
    %c2_218 = arith.constant 2 : index
    %c0_219 = arith.constant 0 : index
    %317 = vector.load %arg9[%c8_217, %c2_218, %c0_219] : memref<10x130x128xf32, #tpu.memory_space<vmem>>, vector<2x128x128xf32>
    %c8_220 = arith.constant 8 : index
    %c0_221 = arith.constant 0 : index
    %318 = vector.load %arg5[%c8_220, %c0_221] : memref<9x128xf32, #tpu.memory_space<vmem>>, vector<1x128xf32>
    %319 = vector.shape_cast %318 : vector<1x128xf32> to vector<128xf32>
    %320 = vector.shape_cast %319 : vector<128xf32> to vector<1x1x128xf32>
    %321 = vector.broadcast %320 : vector<1x1x128xf32> to vector<2x128x128xf32>
    %322 = arith.mulf %317, %321 : vector<2x128x128xf32>
    %323 = arith.addf %316, %322 : vector<2x128x128xf32>
    %324 = vector.shape_cast %323 : vector<2x128x128xf32> to vector<256x128xf32>
    %325 = arith.truncf %324 : vector<256x128xf32> to vector<256x128xbf16>
    %c0_222 = arith.constant 0 : index
    %c0_223 = arith.constant 0 : index
    %326 = vector.load %arg6[%c0_222, %c0_223] : memref<128x128xbf16, #tpu.memory_space<vmem>>, vector<128x128xbf16>
    %cst_224 = arith.constant dense<0.000000e+00> : vector<256x128xf32>
    %327 = tpu.matmul %325, %326, %cst_224 {dimension_numbers = #tpu.dot_dimension_numbers<[1], [0], [0], [1], [0, 0, 1, 1], [], []>} : vector<256x128xbf16>, vector<128x128xbf16>, vector<256x128xf32> -> vector<256x128xf32>
    %328 = vector.broadcast %19 : vector<1x128xf32> to vector<256x128xf32>
    %329 = arith.addf %327, %328 : vector<256x128xf32>
    %cst_225 = arith.constant 0.000000e+00 : f32
    %330 = vector.broadcast %cst_225 : f32 to vector<256x128xf32>
    %331 = arith.subf %330, %329 : vector<256x128xf32>
    %332 = math.exp %331 : vector<256x128xf32>
    %cst_226 = arith.constant 1.000000e+00 : f32
    %333 = vector.broadcast %cst_226 : f32 to vector<256x128xf32>
    %334 = arith.addf %333, %332 : vector<256x128xf32>
    %335 = tpu.reciprocal %334 {approx = true} : vector<256x128xf32> -> vector<256x128xf32>
    %336 = arith.mulf %329, %335 : vector<256x128xf32>
    %337 = vector.shape_cast %336 : vector<256x128xf32> to vector<1x2x128x128xf32>
    %338 = arith.truncf %337 : vector<1x2x128x128xf32> to vector<1x2x128x128xbf16>
    %c0_227 = arith.constant 0 : index
    %c6_228 = arith.constant 6 : index
    %c0_229 = arith.constant 0 : index
    %c0_230 = arith.constant 0 : index
    %339 = vector.load %arg8[%c0_227, %c6_228, %c0_229, %c0_230] : memref<1x8x128x128xbf16, #tpu.memory_space<vmem>>, vector<1x2x128x128xbf16>
    tpu.vector_store %arg8[%c0_227, %c6_228, %c0_229, %c0_230], %338 {strides = array<i32>} : memref<1x8x128x128xbf16, #tpu.memory_space<vmem>>, vector<1x2x128x128xbf16>,
    return
  }
  func.func @transform_0(%arg0: i32, %arg1: i32) -> (i32, i32, i32, i32) {
    %c0_i32 = arith.constant 0 : i32
    %c0_i32_0 = arith.constant 0 : i32
    %c0_i32_1 = arith.constant 0 : i32
    return %arg0, %arg1, %c0_i32, %c0_i32_0 : i32, i32, i32, i32
  }
  func.func @transform_1(%arg0: i32, %arg1: i32) -> (i32, i32, i32, i32) {
    %c8_i32 = arith.constant 8 : i32
    %0 = arith.muli %arg1, %c8_i32 : i32
    %c1_i32 = arith.constant 1 : i32
    %1 = arith.subi %0, %c1_i32 : i32
    %c0_i32 = arith.constant 0 : i32
    %2 = arith.maxsi %1, %c0_i32 : i32
    %c0_i32_0 = arith.constant 0 : i32
    %c0_i32_1 = arith.constant 0 : i32
    %c0_i32_2 = arith.constant 0 : i32
    return %arg0, %2, %c0_i32_0, %c0_i32_1 : i32, i32, i32, i32
  }
  func.func @transform_2(%arg0: i32, %arg1: i32) -> (i32, i32, i32, i32) {
    %c1_i32 = arith.constant 1 : i32
    %0 = arith.addi %arg1, %c1_i32 : i32
    %c8_i32 = arith.constant 8 : i32
    %1 = arith.muli %0, %c8_i32 : i32
    %c15_i32 = arith.constant 15 : i32
    %2 = arith.minsi %1, %c15_i32 : i32
    %c0_i32 = arith.constant 0 : i32
    %c0_i32_0 = arith.constant 0 : i32
    %c0_i32_1 = arith.constant 0 : i32
    return %arg0, %2, %c0_i32, %c0_i32_0 : i32, i32, i32, i32
  }
  func.func @transform_3(%arg0: i32, %arg1: i32) -> (i32, i32) {
    %c0_i32 = arith.constant 0 : i32
    %c0_i32_0 = arith.constant 0 : i32
    %c0_i32_1 = arith.constant 0 : i32
    return %c0_i32, %c0_i32_0 : i32, i32
  }
  func.func @transform_4(%arg0: i32, %arg1: i32) -> (i32, i32) {
    %c0_i32 = arith.constant 0 : i32
    %c0_i32_0 = arith.constant 0 : i32
    %c0_i32_1 = arith.constant 0 : i32
    return %c0_i32, %c0_i32_0 : i32, i32
  }
  func.func @transform_5(%arg0: i32, %arg1: i32) -> (i32, i32) {
    %c0_i32 = arith.constant 0 : i32
    %c0_i32_0 = arith.constant 0 : i32
    %c0_i32_1 = arith.constant 0 : i32
    return %c0_i32, %c0_i32_0 : i32, i32
  }
  func.func @transform_6(%arg0: i32, %arg1: i32) -> (i32, i32, i32, i32) {
    %c0_i32 = arith.constant 0 : i32
    %c0_i32_0 = arith.constant 0 : i32
    %c0_i32_1 = arith.constant 0 : i32
    return %arg0, %arg1, %c0_i32, %c0_i32_0 : i32, i32, i32, i32
  }
}

</mosaic_0001>

<llo_original>
// kernel: tpu_custom_call.1
$region0: #{tpu_custom_call.1}
  #allocation0 [shape = 'u32[]', space=smem, size = 0x4, offset = 0x4, fixed_abs, tag = 'smem constant byte address 0x4 - core index']
  #allocation1 [shape = 'u32[72,128]{1,0:T(1,128)}', space=vmem, size = 0x9000, scoped, tag = 'internal scratch']
  #allocation2 [shape = 'f32[10,130,128]{2,1,0:T(8,128)}', space=vmem, size = 0xaa000, scoped, tag = 'scratch operand']
  %s0 = inlined_call_operand.hbm [shape: bf16[2,16,128,128], index: 0, kind: input, shape index: {}]
  %s1 = inlined_call_operand.hbm [shape: bf16[2,16,128,128], index: 1, kind: input, shape index: {}]
  %s2 = inlined_call_operand.hbm [shape: bf16[2,16,128,128], index: 2, kind: input, shape index: {}]
  %s3 = inlined_call_operand.hbm [shape: f32[9,128], index: 3, kind: input, shape index: {}]
  %s4 = inlined_call_operand.hbm [shape: bf16[128,128], index: 4, kind: input, shape index: {}]
  %s5 = inlined_call_operand.vmem [shape: f32[1,128], index: 5, kind: input, shape index: {}]
  %s6 = inlined_call_operand.hbm [shape: bf16[2,16,128,128], index: 6, kind: output, shape index: {}]
  %s7 = sld [smem:[#allocation0]]
  $region93: #{tpu_custom_call.1} parent=0
    _
  %s9 = ssub.s32 1, %s7
  %s10 = scalar_select 0, %s9, %s7
  $region1: #{tpu_custom_call.1} parent=0
    #allocation3 [shape = 'u8[524288]{0}', space=vmem, size = 0x80000, scoped, tag = 'input window, operand 0']
    #allocation4 [shape = 's32[2]{0}', space=sflag, size = 0x8, scoped, tag = 'scoped memory for tpu_custom_call.1']
    #allocation5 [shape = 's32[2]{0}', space=sflag, size = 0x8, scoped, tag = 'scoped memory for tpu_custom_call.1']
    #allocation6 [shape = 'u8[65536]{0}', space=vmem, size = 0x10000, scoped, tag = 'input window, operand 1']
    #allocation7 [shape = 's32[2]{0}', space=sflag, size = 0x8, scoped, tag = 'scoped memory for tpu_custom_call.1']
    #allocation8 [shape = 'u8[65536]{0}', space=vmem, size = 0x10000, scoped, tag = 'input window, operand 2']
    #allocation9 [shape = 'u8[8192]{0}', space=vmem, size = 0x2000, scoped, tag = 'input window, operand 3, single buffered']
    #allocation10 [shape = 's32[1]{0}', space=sflag, size = 0x4, scoped, tag = 'scoped memory for tpu_custom_call.1']
    #allocation11 [shape = 'u8[32768]{0}', space=vmem, size = 0x8000, scoped, tag = 'input window, operand 4, single buffered']
    #allocation12 [shape = 'u8[524288]{0}', space=vmem, size = 0x80000, scoped, tag = 'output window, operand 0']
    %11 = vsyncpa [#allocation4], 0
    %s12 = scalar_lea.sflag [#allocation4], 1
    %13 = vsyncpa %s12, 0
    %14 = vsyncpa [#allocation7], 0
    %s15 = scalar_lea.sflag [#allocation7], 1
    %16 = vsyncpa %s15, 0
    %17 = vsyncpa [#allocation10], 0
    %18 = vsyncpa [#allocation5], 0
    %s19 = scalar_lea.sflag [#allocation5], 1
    %20 = vsyncpa %s19, 0
    loop: start=0, step=1, limit=6
    $region2: #{tpu_custom_call.1} parent=1 // loop_pre_header
      _
    $region3: #{tpu_custom_call.1} parent=1 // loop_header
      %s22 = sphi 0, %s26
      %p23 = scmp.ge.s32.totalorder %s22, 6
      %s29 = sphi 0, %s41
      %s30 = sphi 0, %s37
      %s31 = sphi 0, %s29
      %s32 = sphi 0, %s30
      %s33 = sphi 0, %s31
      %s34 = sphi 0, %s32
      %s46 = sphi 0, %s48
      %s49 = sphi 0, %s46
      %s50 = sphi 0, %s49
      %s66 = sphi 0, %s50
      %s82 = sphi 0, %s84
      %s85 = sphi 0, %s82
      %s86 = sphi 0, %s85
      %s102 = sphi 0, %s86
      %s118 = sphi 0, %s120
      %s121 = sphi 0, %s118
      %s122 = sphi 0, %s121
      %s138 = sphi 0, %s122
      %s142 = sphi 0, %s142
      %s144 = sphi 0, %s142
      %s145 = sphi 0, %s144
      %s159 = sphi 0, %s145
      %s163 = sphi 0, %s163
      %s165 = sphi 0, %s163
      %s166 = sphi 0, %s165
      %s180 = sphi 0, %s166
      %s184 = sphi 0, %s184
      %s186 = sphi 0, %s184
      %s187 = sphi 0, %s186
      %s201 = sphi 0, %s187
      %s209 = sphi 0, %s211
      %s212 = sphi 0, %s209
      %s213 = sphi 0, %s212
      %s229 = sphi 0, %s213
    $region4: #{tpu_custom_call.1} parent=1 // loop_header_branch
      %25 = sbr.rel (%p23) target = $region8
    $region5: #{tpu_custom_call.1} parent=1 // loop_body
      %s27 = ssub.s32 %s22, 1
      %s28 = ssub.s32 %s22, 2
      %s35 = sadd.s32 1, %s30
      %p36 = scmp.ge.s32.totalorder %s35, 2
      %s37 = scalar_select %p36, 0, %s35
      %s38 = sadd.s32 1, %s29
      %s39 = scalar_select %p36, %s38, %s29
      %p40 = scmp.ge.s32.totalorder %s39, 2
      %s41 = scalar_select %p40, 0, %s39
      %s42 = ssub.s32 %s29, %s41
      %s43 = ssub.s32 %s30, %s37
      %s44 = sor.u32 %s42, %s43
      %p45 = scmp.eq.s32.totalorder %s44, 0
      %s47 = sadd.s32 %s46, 1
      %s48 = scalar_select %p45, %s46, %s47
      %p51 = pneg %p45
      %p52 = scmp.eq.s32.totalorder %s22, 3
      %p53 = por %p51, %p52
      %p54 = scmp.ne.s32.totalorder %s46, %s49
      %p55 = scmp.eq.s32.totalorder %s22, 0
      %p56 = por %p54, %p55
      %p57 = scmp.ne.s32.totalorder %s46, %s49
      %p58 = scmp.eq.s32.totalorder %s27, 3
      %p59 = por %p57, %p58
      %p60 = scmp.ne.s32.totalorder %s49, %s50
      %p61 = scmp.eq.s32.totalorder %s27, 0
      %p62 = por %p60, %p61
      %p63 = scmp.ne.s32.totalorder %s49, %s50
      %p64 = scmp.eq.s32.totalorder %s28, 3
      %p65 = por %p63, %p64
      %p67 = scmp.ne.s32.totalorder %s50, %s66
      %p68 = scmp.eq.s32.totalorder %s28, 0
      %p69 = por %p67, %p68
      %s70 = smul.u32 %s30, 8
      %s71 = ssub.s32 %s70, 1
      %p72 = scmp.gt.s32.totalorder %s71, 0
      %s73 = scalar_select %p72, %s71, 0
      %s74 = smul.u32 %s37, 8
      %s75 = ssub.s32 %s74, 1
      %p76 = scmp.gt.s32.totalorder %s75, 0
      %s77 = scalar_select %p76, %s75, 0
      %s78 = ssub.s32 %s29, %s41
      %s79 = ssub.s32 %s73, %s77
      %s80 = sor.u32 %s78, %s79
      %p81 = scmp.eq.s32.totalorder %s80, 0
      %s83 = sadd.s32 %s82, 1
      %s84 = scalar_select %p81, %s82, %s83
      %p87 = pneg %p81
      %p88 = scmp.eq.s32.totalorder %s22, 3
      %p89 = por %p87, %p88
      %p90 = scmp.ne.s32.totalorder %s82, %s85
      %p91 = scmp.eq.s32.totalorder %s22, 0
      %p92 = por %p90, %p91
      %p93 = scmp.ne.s32.totalorder %s82, %s85
      %p94 = scmp.eq.s32.totalorder %s27, 3
      %p95 = por %p93, %p94
      %p96 = scmp.ne.s32.totalorder %s85, %s86
      %p97 = scmp.eq.s32.totalorder %s27, 0
      %p98 = por %p96, %p97
      %p99 = scmp.ne.s32.totalorder %s85, %s86
      %p100 = scmp.eq.s32.totalorder %s28, 3
      %p101 = por %p99, %p100
      %p103 = scmp.ne.s32.totalorder %s86, %s102
      %p104 = scmp.eq.s32.totalorder %s28, 0
      %p105 = por %p103, %p104
      %s106 = sadd.s32 %s30, 1
      %s107 = smul.u32 %s106, 8
      %p108 = scmp.lt.s32.totalorder %s107, 15
      %s109 = scalar_select %p108, %s107, 15
      %s110 = sadd.s32 %s37, 1
      %s111 = smul.u32 %s110, 8
      %p112 = scmp.lt.s32.totalorder %s111, 15
      %s113 = scalar_select %p112, %s111, 15
      %s114 = ssub.s32 %s29, %s41
      %s115 = ssub.s32 %s109, %s113
      %s116 = sor.u32 %s114, %s115
      %p117 = scmp.eq.s32.totalorder %s116, 0
      %s119 = sadd.s32 %s118, 1
      %s120 = scalar_select %p117, %s118, %s119
      %p123 = pneg %p117
      %p124 = scmp.eq.s32.totalorder %s22, 3
      %p125 = por %p123, %p124
      %p126 = scmp.ne.s32.totalorder %s118, %s121
      %p127 = scmp.eq.s32.totalorder %s22, 0
      %p128 = por %p126, %p127
      %p129 = scmp.ne.s32.totalorder %s118, %s121
      %p130 = scmp.eq.s32.totalorder %s27, 3
      %p131 = por %p129, %p130
      %p132 = scmp.ne.s32.totalorder %s121, %s122
      %p133 = scmp.eq.s32.totalorder %s27, 0
      %p134 = por %p132, %p133
      %p135 = scmp.ne.s32.totalorder %s121, %s122
      %p136 = scmp.eq.s32.totalorder %s28, 3
      %p137 = por %p135, %p136
      %p139 = scmp.ne.s32.totalorder %s122, %s138
      %p140 = scmp.eq.s32.totalorder %s28, 0
      %p141 = por %p139, %p140
      %s143 = sadd.s32 %s142, 1
      %p146 = scmp.eq.s32.totalorder %s22, 3
      %p147 = scmp.ne.s32.totalorder %s142, %s144
      %p148 = scmp.eq.s32.totalorder %s22, 0
      %p149 = por %p147, %p148
      %p150 = scmp.ne.s32.totalorder %s142, %s144
      %p151 = scmp.eq.s32.totalorder %s27, 3
      %p152 = por %p150, %p151
      %p153 = scmp.ne.s32.totalorder %s144, %s145
      %p154 = scmp.eq.s32.totalorder %s27, 0
      %p155 = por %p153, %p154
      %p156 = scmp.ne.s32.totalorder %s144, %s145
      %p157 = scmp.eq.s32.totalorder %s28, 3
      %p158 = por %p156, %p157
      %p160 = scmp.ne.s32.totalorder %s145, %s159
      %p161 = scmp.eq.s32.totalorder %s28, 0
      %p162 = por %p160, %p161
      %s164 = sadd.s32 %s163, 1
      %p167 = scmp.eq.s32.totalorder %s22, 3
      %p168 = scmp.ne.s32.totalorder %s163, %s165
      %p169 = scmp.eq.s32.totalorder %s22, 0
      %p170 = por %p168, %p169
      %p171 = scmp.ne.s32.totalorder %s163, %s165
      %p172 = scmp.eq.s32.totalorder %s27, 3
      %p173 = por %p171, %p172
      %p174 = scmp.ne.s32.totalorder %s165, %s166
      %p175 = scmp.eq.s32.totalorder %s27, 0
      %p176 = por %p174, %p175
      %p177 = scmp.ne.s32.totalorder %s165, %s166
      %p178 = scmp.eq.s32.totalorder %s28, 3
      %p179 = por %p177, %p178
      %p181 = scmp.ne.s32.totalorder %s166, %s180
      %p182 = scmp.eq.s32.totalorder %s28, 0
      %p183 = por %p181, %p182
      %s185 = sadd.s32 %s184, 1
      %p188 = scmp.eq.s32.totalorder %s22, 3
      %p189 = scmp.ne.s32.totalorder %s184, %s186
      %p190 = scmp.eq.s32.totalorder %s22, 0
      %p191 = por %p189, %p190
      %p192 = scmp.ne.s32.totalorder %s184, %s186
      %p193 = scmp.eq.s32.totalorder %s27, 3
      %p194 = por %p192, %p193
      %p195 = scmp.ne.s32.totalorder %s186, %s187
      %p196 = scmp.eq.s32.totalorder %s27, 0
      %p197 = por %p195, %p196
      %p198 = scmp.ne.s32.totalorder %s186, %s187
      %p199 = scmp.eq.s32.totalorder %s28, 3
      %p200 = por %p198, %p199
      %p202 = scmp.ne.s32.totalorder %s187, %s201
      %p203 = scmp.eq.s32.totalorder %s28, 0
      %p204 = por %p202, %p203
      %s205 = ssub.s32 %s29, %s41
      %s206 = ssub.s32 %s30, %s37
      %s207 = sor.u32 %s205, %s206
      %p208 = scmp.eq.s32.totalorder %s207, 0
      %s210 = sadd.s32 %s209, 1
      %s211 = scalar_select %p208, %s209, %s210
      %p214 = pneg %p208
      %p215 = scmp.eq.s32.totalorder %s22, 3
      %p216 = por %p214, %p215
      %p217 = scmp.ne.s32.totalorder %s209, %s212
      %p218 = scmp.eq.s32.totalorder %s22, 0
      %p219 = por %p217, %p218
      %p220 = scmp.ne.s32.totalorder %s209, %s212
      %p221 = scmp.eq.s32.totalorder %s27, 3
      %p222 = por %p220, %p221
      %p223 = scmp.ne.s32.totalorder %s212, %s213
      %p224 = scmp.eq.s32.totalorder %s27, 0
      %p225 = por %p223, %p224
      %p226 = scmp.ne.s32.totalorder %s212, %s213
      %p227 = scmp.eq.s32.totalorder %s28, 3
      %p228 = por %p226, %p227
      %p230 = scmp.ne.s32.totalorder %s213, %s229
      %p231 = scmp.eq.s32.totalorder %s28, 0
      %p232 = por %p230, %p231
      %p233 = scmp.le.s32.totalorder 1, %s22
      %p234 = scmp.lt.s32.totalorder %s22, 5
      %p235 = pnand %p233, %p234
      %p236 = pneg %p235
      // Predicated region
      $region9: #{tpu_custom_call.1} parent=5 // pred_check
        _
      $region10: #{tpu_custom_call.1} parent=5 // pred_check_branch
        %238 = sbr.rel (%p235) target = $region12
      $region11: #{tpu_custom_call.1} parent=5 // pred_region
        %s239 = ssub.s32 %s22, 1
        // Predicated region
        $region13: #{tpu_custom_call.1} parent=11 // pred_check
          %p240 = pneg %p155
        $region14: #{tpu_custom_call.1} parent=11 // pred_check_branch
          %242 = sbr.rel (%p240) target = $region16
        $region15: #{tpu_custom_call.1} parent=11 // pred_region
          %244 = vsyncadd [#allocation10], 0
          %s245 = sshll.u32 %s3, 4
          %s246 = int_to_ptr.hbm [resolvable:$true] %s245
          %s247 = sshll.u32 [#allocation9], 4
          %s248 = int_to_ptr.vmem [resolvable:$true] %s247
          %253 = dma.hbm_to_vmem [thread:$0]  %s246, 256, %s248, [#allocation10], 128, 128, 8
        $region16: #{tpu_custom_call.1} parent=11 // pred_fallthru
          _
        // Predicated region
        $region17: #{tpu_custom_call.1} parent=11 // pred_check
          %p254 = pneg %p176
        $region18: #{tpu_custom_call.1} parent=11 // pred_check_branch
          %256 = sbr.rel (%p254) target = $region20
        $region19: #{tpu_custom_call.1} parent=11 // pred_region
          %258 = vsyncadd [#allocation10], 0
          %s259 = sshll.u32 %s4, 4
          %s260 = int_to_ptr.hbm [resolvable:$true] %s259
          %s261 = sshll.u32 [#allocation11], 4
          %s262 = int_to_ptr.vmem [resolvable:$true] %s261
          %267 = dma.hbm_to_vmem [thread:$0]  %s260, 1024, %s262, [#allocation10], 64, 64, 4
        $region20: #{tpu_custom_call.1} parent=11 // pred_fallthru
          _
        // Predicated region
        $region21: #{tpu_custom_call.1} parent=11 // pred_check
          %p268 = pneg %p197
        $region22: #{tpu_custom_call.1} parent=11 // pred_check_branch
          %270 = sbr.rel (%p268) target = $region24
        $region23: #{tpu_custom_call.1} parent=11 // pred_region
          _
        $region24: #{tpu_custom_call.1} parent=11 // pred_fallthru
          _
      $region12: #{tpu_custom_call.1} parent=5 // pred_fallthru
        _
      %p271 = scmp.lt.s32.totalorder %s22, 4
      // Predicated region
      $region25: #{tpu_custom_call.1} parent=5 // pred_check
        %p272 = pneg %p271
      $region26: #{tpu_custom_call.1} parent=5 // pred_check_branch
        %274 = sbr.rel (%p272) target = $region28
      $region27: #{tpu_custom_call.1} parent=5 // pred_region
        // Predicated region
        $region29: #{tpu_custom_call.1} parent=27 // pred_check
          %p275 = pneg %p56
        $region30: #{tpu_custom_call.1} parent=27 // pred_check_branch
          %277 = sbr.rel (%p275) target = $region32
        $region31: #{tpu_custom_call.1} parent=27 // pred_region
          %s278 = sand.u32 %s46, 1
          %s279 = scalar_lea.sflag [#allocation4], %s278
          %s280 = sand.u32 %s46, 1
          %s281 = smul.addr %s280, 512
          %s282 = scalar_lea.vmem [#allocation3], %s281
          %s283 = smul.u32 8, %s30
          %285 = vsyncadd %s279, 0
          %s286 = smul.addr %s283, 16
          %s287 = smul.addr %s29, 256
          %s288 = sadd.s32 %s286, %s287
          %s289 = smul.addr %s288, 4
          %s290 = scalar_lea.hbm %s0, %s289
          %s291 = sshll.u32 %s290, 4
          %s292 = int_to_ptr.hbm [resolvable:$true] %s291
          %s293 = sshll.u32 %s282, 4
          %s294 = int_to_ptr.vmem [resolvable:$true] %s293
          %299 = dma.hbm_to_vmem [thread:$0]  %s292, 8192, %s294, %s279, 64, 64, 4
        $region32: #{tpu_custom_call.1} parent=27 // pred_fallthru
          _
        // Predicated region
        $region33: #{tpu_custom_call.1} parent=27 // pred_check
          %p300 = pneg %p92
        $region34: #{tpu_custom_call.1} parent=27 // pred_check_branch
          %302 = sbr.rel (%p300) target = $region36
        $region35: #{tpu_custom_call.1} parent=27 // pred_region
          %s303 = sand.u32 %s22, 1
          %s304 = scalar_lea.sflag [#allocation7], %s303
          %s305 = sand.u32 %s82, 1
          %s306 = smul.addr %s305, 64
          %s307 = scalar_lea.vmem [#allocation6], %s306
          %s308 = smul.u32 %s30, 8
          %s309 = ssub.s32 %s308, 1
          %p310 = scmp.gt.s32.totalorder %s309, 0
          %s311 = scalar_select %p310, %s309, 0
          %313 = vsyncadd %s304, 0
          %s314 = smul.addr %s311, 16
          %s315 = smul.addr %s29, 256
          %s316 = sadd.s32 %s314, %s315
          %s317 = smul.addr %s316, 4
          %s318 = scalar_lea.hbm %s1, %s317
          %s319 = sshll.u32 %s318, 4
          %s320 = int_to_ptr.hbm [resolvable:$true] %s319
          %s321 = sshll.u32 %s307, 4
          %s322 = int_to_ptr.vmem [resolvable:$true] %s321
          %327 = dma.hbm_to_vmem [thread:$0]  %s320, 1024, %s322, %s304, 64, 64, 4
        $region36: #{tpu_custom_call.1} parent=27 // pred_fallthru
          _
        // Predicated region
        $region37: #{tpu_custom_call.1} parent=27 // pred_check
          %p328 = pneg %p128
        $region38: #{tpu_custom_call.1} parent=27 // pred_check_branch
          %330 = sbr.rel (%p328) target = $region40
        $region39: #{tpu_custom_call.1} parent=27 // pred_region
          %s331 = sand.u32 %s22, 1
          %s332 = scalar_lea.sflag [#allocation7], %s331
          %s333 = sand.u32 %s118, 1
          %s334 = smul.addr %s333, 64
          %s335 = scalar_lea.vmem [#allocation8], %s334
          %s336 = sadd.s32 %s30, 1
          %s337 = smul.u32 %s336, 8
          %p338 = scmp.lt.s32.totalorder %s337, 15
          %s339 = scalar_select %p338, %s337, 15
          %341 = vsyncadd %s332, 0
          %s342 = smul.addr %s339, 16
          %s343 = smul.addr %s29, 256
          %s344 = sadd.s32 %s342, %s343
          %s345 = smul.addr %s344, 4
          %s346 = scalar_lea.hbm %s2, %s345
          %s347 = sshll.u32 %s346, 4
          %s348 = int_to_ptr.hbm [resolvable:$true] %s347
          %s349 = sshll.u32 %s335, 4
          %s350 = int_to_ptr.vmem [resolvable:$true] %s349
          %355 = dma.hbm_to_vmem [thread:$0]  %s348, 1024, %s350, %s332, 64, 64, 4
        $region40: #{tpu_custom_call.1} parent=27 // pred_fallthru
          _
      $region28: #{tpu_custom_call.1} parent=5 // pred_fallthru
        _
      %p356 = scmp.le.s32.totalorder 1, %s22
      %p357 = scmp.lt.s32.totalorder %s22, 5
      %p358 = pnand %p356, %p357
      %p359 = pneg %p358
      // Predicated region
      $region41: #{tpu_custom_call.1} parent=5 // pred_check
        _
      $region42: #{tpu_custom_call.1} parent=5 // pred_check_branch
        %361 = sbr.rel (%p358) target = $region44
      $region43: #{tpu_custom_call.1} parent=5 // pred_region
        %s362 = ssub.s32 %s22, 1
        %s363 = sand.u32 %s49, 1
        %s364 = scalar_lea.sflag [#allocation4], %s363
        %s365 = sand.u32 %s49, 1
        %s366 = smul.addr %s365, 512
        %s367 = scalar_lea.vmem [#allocation3], %s366
        // Predicated region
        $region45: #{tpu_custom_call.1} parent=43 // pred_check
          %p368 = pneg %p62
        $region46: #{tpu_custom_call.1} parent=43 // pred_check_branch
          %370 = sbr.rel (%p368) target = $region48
        $region47: #{tpu_custom_call.1} parent=43 // pred_region
          %372 = dma.done %s364, 8192
        $region48: #{tpu_custom_call.1} parent=43 // pred_fallthru
          _
        %s373 = sand.u32 %s27, 1
        %s374 = scalar_lea.sflag [#allocation7], %s373
        %s375 = sand.u32 %s85, 1
        %s376 = smul.addr %s375, 64
        %s377 = scalar_lea.vmem [#allocation6], %s376
        // Predicated region
        $region49: #{tpu_custom_call.1} parent=43 // pred_check
          %p378 = pneg %p98
        $region50: #{tpu_custom_call.1} parent=43 // pred_check_branch
          %380 = sbr.rel (%p378) target = $region52
        $region51: #{tpu_custom_call.1} parent=43 // pred_region
          %382 = dma.done %s374, 1024
        $region52: #{tpu_custom_call.1} parent=43 // pred_fallthru
          _
        %s383 = sand.u32 %s27, 1
        %s384 = scalar_lea.sflag [#allocation7], %s383
        %s385 = sand.u32 %s121, 1
        %s386 = smul.addr %s385, 64
        %s387 = scalar_lea.vmem [#allocation8], %s386
        // Predicated region
        $region53: #{tpu_custom_call.1} parent=43 // pred_check
          %p388 = pneg %p134
        $region54: #{tpu_custom_call.1} parent=43 // pred_check_branch
          %390 = sbr.rel (%p388) target = $region56
        $region55: #{tpu_custom_call.1} parent=43 // pred_region
          %392 = dma.done %s384, 1024
        $region56: #{tpu_custom_call.1} parent=43 // pred_fallthru
          _
        // Predicated region
        $region57: #{tpu_custom_call.1} parent=43 // pred_check
          %p393 = pneg %p155
        $region58: #{tpu_custom_call.1} parent=43 // pred_check_branch
          %395 = sbr.rel (%p393) target = $region60
        $region59: #{tpu_custom_call.1} parent=43 // pred_region
          %397 = dma.done [#allocation10], 256
        $region60: #{tpu_custom_call.1} parent=43 // pred_fallthru
          _
        // Predicated region
        $region61: #{tpu_custom_call.1} parent=43 // pred_check
          %p398 = pneg %p176
        $region62: #{tpu_custom_call.1} parent=43 // pred_check_branch
          %400 = sbr.rel (%p398) target = $region64
        $region63: #{tpu_custom_call.1} parent=43 // pred_region
          %402 = dma.done [#allocation10], 1024
        $region64: #{tpu_custom_call.1} parent=43 // pred_fallthru
          _
        %s403 = sand.u32 %s49, 1
        %s404 = scalar_lea.sflag [#allocation4], %s403
        %s405 = sand.u32 %s49, 1
        %s406 = smul.addr %s405, 512
        %s407 = scalar_lea.vmem [#allocation3], %s406
        %p408 = pneg %p62
        %p409 = pneg %p59
        %s410 = sand.u32 %s27, 1
        %s411 = scalar_lea.sflag [#allocation7], %s410
        %s412 = sand.u32 %s85, 1
        %s413 = smul.addr %s412, 64
        %s414 = scalar_lea.vmem [#allocation6], %s413
        %p415 = pneg %p98
        %p416 = pneg %p95
        %s417 = sand.u32 %s27, 1
        %s418 = scalar_lea.sflag [#allocation7], %s417
        %s419 = sand.u32 %s121, 1
        %s420 = smul.addr %s419, 64
        %s421 = scalar_lea.vmem [#allocation8], %s420
        %p422 = pneg %p134
        %p423 = pneg %p131
        %p424 = pneg %p155
        %p425 = pneg %p152
        %p426 = pneg %p176
        %p427 = pneg %p173
        %p428 = pneg %p197
        %p429 = pneg %p194
        %p430 = pneg %p225
        %p431 = pneg %p222
        %s432 = sand.u32 %s212, 1
        %s433 = scalar_lea.sflag [#allocation5], %s432
        %s434 = sand.u32 %s212, 1
        %s435 = smul.addr %s434, 512
        %s436 = scalar_lea.vmem [#allocation12], %s435
        %s437 = smul.u32 8, %s32
        %s438 = smul.u32 %s32, 8
        %s439 = ssub.s32 %s438, 1
        %p440 = scmp.gt.s32.totalorder %s439, 0
        %s441 = scalar_select %p440, %s439, 0
        %s442 = sadd.s32 %s32, 1
        %s443 = smul.u32 %s442, 8
        %p444 = scmp.lt.s32.totalorder %s443, 15
        %s445 = scalar_select %p444, %s443, 15
        %s446 = smul.u32 8, %s32
        %447 = vst [vmem:[#allocation2] sm:$0x1] 0.0
        %448 = vst [vmem:[#allocation2 + $0x88] sm:$0x1] 0.0
        %449 = vst [vmem:[#allocation2 + $0x110] sm:$0x1] 0.0
        %450 = vst [vmem:[#allocation2 + $0x198] sm:$0x1] 0.0
        %451 = vst [vmem:[#allocation2 + $0x220] sm:$0x1] 0.0
        %452 = vst [vmem:[#allocation2 + $0x2a8] sm:$0x1] 0.0
        %453 = vst [vmem:[#allocation2 + $0x330] sm:$0x1] 0.0
        %454 = vst [vmem:[#allocation2 + $0x3b8] sm:$0x1] 0.0
        %455 = vst [vmem:[#allocation2 + $0x440] sm:$0x1] 0.0
        %456 = vst [vmem:[#allocation2 + $0x4c8] sm:$0x1] 0.0
        %457 = vst [vmem:[#allocation2 + $0x81] sm:$0x1] 0.0
        %458 = vst [vmem:[#allocation2 + $0x109] sm:$0x1] 0.0
        %459 = vst [vmem:[#allocation2 + $0x191] sm:$0x1] 0.0
        %460 = vst [vmem:[#allocation2 + $0x219] sm:$0x1] 0.0
        %461 = vst [vmem:[#allocation2 + $0x2a1] sm:$0x1] 0.0
        %462 = vst [vmem:[#allocation2 + $0x329] sm:$0x1] 0.0
        %463 = vst [vmem:[#allocation2 + $0x3b1] sm:$0x1] 0.0
        %464 = vst [vmem:[#allocation2 + $0x439] sm:$0x1] 0.0
        %465 = vst [vmem:[#allocation2 + $0x4c1] sm:$0x1] 0.0
        %466 = vst [vmem:[#allocation2 + $0x549] sm:$0x1] 0.0
        %p467 = scmp.gt.s32.totalorder %s32, 0
        // Predicated region
        $region65: #{tpu_custom_call.1} parent=43 // pred_check
          %p468 = pneg %p467
        $region66: #{tpu_custom_call.1} parent=43 // pred_check_branch
          %470 = sbr.rel (%p468) target = $region68
        $region67: #{tpu_custom_call.1} parent=43 // pred_region
          %v471 = vld [vmem:[%s377] sm:$0xf]
          %v472 = vld [vmem:[%s377 + $0x4] sm:$0xf]
          %v473 = vld [vmem:[%s377 + $0x8] sm:$0xf]
          %v474 = vld [vmem:[%s377 + $0xc] sm:$0xf]
          %v475 = vld [vmem:[%s377 + $0x10] sm:$0xf]
          %v476 = vld [vmem:[%s377 + $0x14] sm:$0xf]
          %v477 = vld [vmem:[%s377 + $0x18] sm:$0xf]
          %v478 = vld [vmem:[%s377 + $0x1c] sm:$0xf]
          %v479 = vld [vmem:[%s377 + $0x20] sm:$0xf]
          %v480 = vld [vmem:[%s377 + $0x24] sm:$0xf]
          %v481 = vld [vmem:[%s377 + $0x28] sm:$0xf]
          %v482 = vld [vmem:[%s377 + $0x2c] sm:$0xf]
          %v483 = vld [vmem:[%s377 + $0x30] sm:$0xf]
          %v484 = vld [vmem:[%s377 + $0x34] sm:$0xf]
          %v485 = vld [vmem:[%s377 + $0x38] sm:$0xf]
          %v486 = vld [vmem:[%s377 + $0x3c] sm:$0xf]
          %v487 = vunpack.c.l.bf16 %v471
          %v488 = vunpack.c.l.bf16 %v472
          %v489 = vunpack.c.l.bf16 %v473
          %v490 = vunpack.c.l.bf16 %v474
          %v491 = vunpack.c.l.bf16 %v475
          %v492 = vunpack.c.l.bf16 %v476
          %v493 = vunpack.c.l.bf16 %v477
          %v494 = vunpack.c.l.bf16 %v478
          %v495 = vunpack.c.l.bf16 %v479
          %v496 = vunpack.c.l.bf16 %v480
          %v497 = vunpack.c.l.bf16 %v481
          %v498 = vunpack.c.l.bf16 %v482
          %v499 = vunpack.c.l.bf16 %v483
          %v500 = vunpack.c.l.bf16 %v484
          %v501 = vunpack.c.l.bf16 %v485
          %v502 = vunpack.c.l.bf16 %v486
          %503 = vst [vmem:[#allocation2 + $0x1] sm:$0xff] %v487
          %504 = vst [vmem:[#allocation2 + $0x9] sm:$0xff] %v488
          %505 = vst [vmem:[#allocation2 + $0x11] sm:$0xff] %v489
          %506 = vst [vmem:[#allocation2 + $0x19] sm:$0xff] %v490
          %507 = vst [vmem:[#allocation2 + $0x21] sm:$0xff] %v491
          %508 = vst [vmem:[#allocation2 + $0x29] sm:$0xff] %v492
          %509 = vst [vmem:[#allocation2 + $0x31] sm:$0xff] %v493
          %510 = vst [vmem:[#allocation2 + $0x39] sm:$0xff] %v494
          %511 = vst [vmem:[#allocation2 + $0x41] sm:$0xff] %v495
          %512 = vst [vmem:[#allocation2 + $0x49] sm:$0xff] %v496
          %513 = vst [vmem:[#allocation2 + $0x51] sm:$0xff] %v497
          %514 = vst [vmem:[#allocation2 + $0x59] sm:$0xff] %v498
          %515 = vst [vmem:[#allocation2 + $0x61] sm:$0xff] %v499
          %516 = vst [vmem:[#allocation2 + $0x69] sm:$0xff] %v500
          %517 = vst [vmem:[#allocation2 + $0x71] sm:$0xff] %v501
          %518 = vst [vmem:[#allocation2 + $0x79] sm:$0xff] %v502
        $region68: #{tpu_custom_call.1} parent=43 // pred_fallthru
          _
        %p519 = scmp.eq.s32.totalorder %s32, 0
        // Predicated region
        $region69: #{tpu_custom_call.1} parent=43 // pred_check
          %p520 = pneg %p519
        $region70: #{tpu_custom_call.1} parent=43 // pred_check_branch
          %522 = sbr.rel (%p520) target = $region72
        $region71: #{tpu_custom_call.1} parent=43 // pred_region
          %523 = vst [vmem:[#allocation2 + $0x1] sm:$0xff] 0.0
          %524 = vst [vmem:[#allocation2 + $0x9] sm:$0xff] 0.0
          %525 = vst [vmem:[#allocation2 + $0x11] sm:$0xff] 0.0
          %526 = vst [vmem:[#allocation2 + $0x19] sm:$0xff] 0.0
          %527 = vst [vmem:[#allocation2 + $0x21] sm:$0xff] 0.0
          %528 = vst [vmem:[#allocation2 + $0x29] sm:$0xff] 0.0
          %529 = vst [vmem:[#allocation2 + $0x31] sm:$0xff] 0.0
          %530 = vst [vmem:[#allocation2 + $0x39] sm:$0xff] 0.0
          %531 = vst [vmem:[#allocation2 + $0x41] sm:$0xff] 0.0
          %532 = vst [vmem:[#allocation2 + $0x49] sm:$0xff] 0.0
          %533 = vst [vmem:[#allocation2 + $0x51] sm:$0xff] 0.0
          %534 = vst [vmem:[#allocation2 + $0x59] sm:$0xff] 0.0
          %535 = vst [vmem:[#allocation2 + $0x61] sm:$0xff] 0.0
          %536 = vst [vmem:[#allocation2 + $0x69] sm:$0xff] 0.0
          %537 = vst [vmem:[#allocation2 + $0x71] sm:$0xff] 0.0
          %538 = vst [vmem:[#allocation2 + $0x79] sm:$0xff] 0.0
        $region72: #{tpu_custom_call.1} parent=43 // pred_fallthru
          _
        %p539 = scmp.lt.s32.totalorder %s32, 1
        // Predicated region
        $region73: #{tpu_custom_call.1} parent=43 // pred_check
          %p540 = pneg %p539
        $region74: #{tpu_custom_call.1} parent=43 // pred_check_branch
          %542 = sbr.rel (%p540) target = $region76
        $region75: #{tpu_custom_call.1} parent=43 // pred_region
          %v543 = vld [vmem:[%s387] sm:$0xf]
          %v544 = vld [vmem:[%s387 + $0x4] sm:$0xf]
          %v545 = vld [vmem:[%s387 + $0x8] sm:$0xf]
          %v546 = vld [vmem:[%s387 + $0xc] sm:$0xf]
          %v547 = vld [vmem:[%s387 + $0x10] sm:$0xf]
          %v548 = vld [vmem:[%s387 + $0x14] sm:$0xf]
          %v549 = vld [vmem:[%s387 + $0x18] sm:$0xf]
          %v550 = vld [vmem:[%s387 + $0x1c] sm:$0xf]
          %v551 = vld [vmem:[%s387 + $0x20] sm:$0xf]
          %v552 = vld [vmem:[%s387 + $0x24] sm:$0xf]
          %v553 = vld [vmem:[%s387 + $0x28] sm:$0xf]
          %v554 = vld [vmem:[%s387 + $0x2c] sm:$0xf]
          %v555 = vld [vmem:[%s387 + $0x30] sm:$0xf]
          %v556 = vld [vmem:[%s387 + $0x34] sm:$0xf]
          %v557 = vld [vmem:[%s387 + $0x38] sm:$0xf]
          %v558 = vld [vmem:[%s387 + $0x3c] sm:$0xf]
          %v559 = vunpack.c.l.bf16 %v543
          %v560 = vunpack.c.l.bf16 %v544
          %v561 = vunpack.c.l.bf16 %v545
          %v562 = vunpack.c.l.bf16 %v546
          %v563 = vunpack.c.l.bf16 %v547
          %v564 = vunpack.c.l.bf16 %v548
          %v565 = vunpack.c.l.bf16 %v549
          %v566 = vunpack.c.l.bf16 %v550
          %v567 = vunpack.c.l.bf16 %v551
          %v568 = vunpack.c.l.bf16 %v552
          %v569 = vunpack.c.l.bf16 %v553
          %v570 = vunpack.c.l.bf16 %v554
          %v571 = vunpack.c.l.bf16 %v555
          %v572 = vunpack.c.l.bf16 %v556
          %v573 = vunpack.c.l.bf16 %v557
          %v574 = vunpack.c.l.bf16 %v558
          %s575 = scalar_lea.vmem [#allocation2], 1224
          %576 = vst [vmem:[%s575 + $0x1] sm:$0xff] %v559
          %577 = vst [vmem:[%s575 + $0x9] sm:$0xff] %v560
          %578 = vst [vmem:[%s575 + $0x11] sm:$0xff] %v561
          %579 = vst [vmem:[%s575 + $0x19] sm:$0xff] %v562
          %580 = vst [vmem:[%s575 + $0x21] sm:$0xff] %v563
          %581 = vst [vmem:[%s575 + $0x29] sm:$0xff] %v564
          %582 = vst [vmem:[%s575 + $0x31] sm:$0xff] %v565
          %583 = vst [vmem:[%s575 + $0x39] sm:$0xff] %v566
          %584 = vst [vmem:[%s575 + $0x41] sm:$0xff] %v567
          %585 = vst [vmem:[%s575 + $0x49] sm:$0xff] %v568
          %586 = vst [vmem:[%s575 + $0x51] sm:$0xff] %v569
          %587 = vst [vmem:[%s575 + $0x59] sm:$0xff] %v570
          %588 = vst [vmem:[%s575 + $0x61] sm:$0xff] %v571
          %589 = vst [vmem:[%s575 + $0x69] sm:$0xff] %v572
          %590 = vst [vmem:[%s575 + $0x71] sm:$0xff] %v573
          %591 = vst [vmem:[%s575 + $0x79] sm:$0xff] %v574
        $region76: #{tpu_custom_call.1} parent=43 // pred_fallthru
          _
        %p592 = scmp.eq.s32.totalorder %s32, 1
        // Predicated region
        $region77: #{tpu_custom_call.1} parent=43 // pred_check
          %p593 = pneg %p592
        $region78: #{tpu_custom_call.1} parent=43 // pred_check_branch
          %595 = sbr.rel (%p593) target = $region80
        $region79: #{tpu_custom_call.1} parent=43 // pred_region
          %s596 = scalar_lea.vmem [#allocation2], 1224
          %597 = vst [vmem:[%s596 + $0x1] sm:$0xff] 0.0
          %598 = vst [vmem:[%s596 + $0x9] sm:$0xff] 0.0
          %599 = vst [vmem:[%s596 + $0x11] sm:$0xff] 0.0
          %600 = vst [vmem:[%s596 + $0x19] sm:$0xff] 0.0
          %601 = vst [vmem:[%s596 + $0x21] sm:$0xff] 0.0
          %602 = vst [vmem:[%s596 + $0x29] sm:$0xff] 0.0
          %603 = vst [vmem:[%s596 + $0x31] sm:$0xff] 0.0
          %604 = vst [vmem:[%s596 + $0x39] sm:$0xff] 0.0
          %605 = vst [vmem:[%s596 + $0x41] sm:$0xff] 0.0
          %606 = vst [vmem:[%s596 + $0x49] sm:$0xff] 0.0
          %607 = vst [vmem:[%s596 + $0x51] sm:$0xff] 0.0
          %608 = vst [vmem:[%s596 + $0x59] sm:$0xff] 0.0
          %609 = vst [vmem:[%s596 + $0x61] sm:$0xff] 0.0
          %610 = vst [vmem:[%s596 + $0x69] sm:$0xff] 0.0
          %611 = vst [vmem:[%s596 + $0x71] sm:$0xff] 0.0
          %612 = vst [vmem:[%s596 + $0x79] sm:$0xff] 0.0
        $region80: #{tpu_custom_call.1} parent=43 // pred_fallthru
          _
        %v613 = vld [vmem:[%s367] sm:$0xf]
        %v614 = vld [vmem:[%s367 + $0x4] sm:$0xf]
        %v615 = vld [vmem:[%s367 + $0x8] sm:$0xf]
        %v616 = vld [vmem:[%s367 + $0xc] sm:$0xf]
        %v617 = vld [vmem:[%s367 + $0x10] sm:$0xf]
        %v618 = vld [vmem:[%s367 + $0x14] sm:$0xf]
        %v619 = vld [vmem:[%s367 + $0x18] sm:$0xf]
        %v620 = vld [vmem:[%s367 + $0x1c] sm:$0xf]
        %v621 = vld [vmem:[%s367 + $0x20] sm:$0xf]
        %v622 = vld [vmem:[%s367 + $0x24] sm:$0xf]
        %v623 = vld [vmem:[%s367 + $0x28] sm:$0xf]
        %v624 = vld [vmem:[%s367 + $0x2c] sm:$0xf]
        %v625 = vld [vmem:[%s367 + $0x30] sm:$0xf]
        %v626 = vld [vmem:[%s367 + $0x34] sm:$0xf]
        %v627 = vld [vmem:[%s367 + $0x38] sm:$0xf]
        %v628 = vld [vmem:[%s367 + $0x3c] sm:$0xf]
        %v629 = vld [vmem:[%s367 + $0x40] sm:$0xf]
        %v630 = vld [vmem:[%s367 + $0x44] sm:$0xf]
        %v631 = vld [vmem:[%s367 + $0x48] sm:$0xf]
        %v632 = vld [vmem:[%s367 + $0x4c] sm:$0xf]
        %v633 = vld [vmem:[%s367 + $0x50] sm:$0xf]
        %v634 = vld [vmem:[%s367 + $0x54] sm:$0xf]
        %v635 = vld [vmem:[%s367 + $0x58] sm:$0xf]
        %v636 = vld [vmem:[%s367 + $0x5c] sm:$0xf]
        %v637 = vld [vmem:[%s367 + $0x60] sm:$0xf]
        %v638 = vld [vmem:[%s367 + $0x64] sm:$0xf]
        %v639 = vld [vmem:[%s367 + $0x68] sm:$0xf]
        %v640 = vld [vmem:[%s367 + $0x6c] sm:$0xf]
        %v641 = vld [vmem:[%s367 + $0x70] sm:$0xf]
        %v642 = vld [vmem:[%s367 + $0x74] sm:$0xf]
        %v643 = vld [vmem:[%s367 + $0x78] sm:$0xf]
        %v644 = vld [vmem:[%s367 + $0x7c] sm:$0xf]
        %v645 = vld [vmem:[%s367 + $0x80] sm:$0xf]
        %v646 = vld [vmem:[%s367 + $0x84] sm:$0xf]
        %v647 = vld [vmem:[%s367 + $0x88] sm:$0xf]
        %v648 = vld [vmem:[%s367 + $0x8c] sm:$0xf]
        %v649 = vld [vmem:[%s367 + $0x90] sm:$0xf]
        %v650 = vld [vmem:[%s367 + $0x94] sm:$0xf]
        %v651 = vld [vmem:[%s367 + $0x98] sm:$0xf]
        %v652 = vld [vmem:[%s367 + $0x9c] sm:$0xf]
        %v653 = vld [vmem:[%s367 + $0xa0] sm:$0xf]
        %v654 = vld [vmem:[%s367 + $0xa4] sm:$0xf]
        %v655 = vld [vmem:[%s367 + $0xa8] sm:$0xf]
        %v656 = vld [vmem:[%s367 + $0xac] sm:$0xf]
        %v657 = vld [vmem:[%s367 + $0xb0] sm:$0xf]
        %v658 = vld [vmem:[%s367 + $0xb4] sm:$0xf]
        %v659 = vld [vmem:[%s367 + $0xb8] sm:$0xf]
        %v660 = vld [vmem:[%s367 + $0xbc] sm:$0xf]
        %v661 = vld [vmem:[%s367 + $0xc0] sm:$0xf]
        %v662 = vld [vmem:[%s367 + $0xc4] sm:$0xf]
        %v663 = vld [vmem:[%s367 + $0xc8] sm:$0xf]
        %v664 = vld [vmem:[%s367 + $0xcc] sm:$0xf]
        %v665 = vld [vmem:[%s367 + $0xd0] sm:$0xf]
        %v666 = vld [vmem:[%s367 + $0xd4] sm:$0xf]
        %v667 = vld [vmem:[%s367 + $0xd8] sm:$0xf]
        %v668 = vld [vmem:[%s367 + $0xdc] sm:$0xf]
        %v669 = vld [vmem:[%s367 + $0xe0] sm:$0xf]
        %v670 = vld [vmem:[%s367 + $0xe4] sm:$0xf]
        %v671 = vld [vmem:[%s367 + $0xe8] sm:$0xf]
        %v672 = vld [vmem:[%s367 + $0xec] sm:$0xf]
        %v673 = vld [vmem:[%s367 + $0xf0] sm:$0xf]
        %v674 = vld [vmem:[%s367 + $0xf4] sm:$0xf]
        %v675 = vld [vmem:[%s367 + $0xf8] sm:$0xf]
        %v676 = vld [vmem:[%s367 + $0xfc] sm:$0xf]
        %v677 = vld [vmem:[%s367 + $0x100] sm:$0xf]
        %v678 = vld [vmem:[%s367 + $0x104] sm:$0xf]
        %v679 = vld [vmem:[%s367 + $0x108] sm:$0xf]
        %v680 = vld [vmem:[%s367 + $0x10c] sm:$0xf]
        %v681 = vld [vmem:[%s367 + $0x110] sm:$0xf]
        %v682 = vld [vmem:[%s367 + $0x114] sm:$0xf]
        %v683 = vld [vmem:[%s367 + $0x118] sm:$0xf]
        %v684 = vld [vmem:[%s367 + $0x11c] sm:$0xf]
        %v685 = vld [vmem:[%s367 + $0x120] sm:$0xf]
        %v686 = vld [vmem:[%s367 + $0x124] sm:$0xf]
        %v687 = vld [vmem:[%s367 + $0x128] sm:$0xf]
        %v688 = vld [vmem:[%s367 + $0x12c] sm:$0xf]
        %v689 = vld [vmem:[%s367 + $0x130] sm:$0xf]
        %v690 = vld [vmem:[%s367 + $0x134] sm:$0xf]
        %v691 = vld [vmem:[%s367 + $0x138] sm:$0xf]
        %v692 = vld [vmem:[%s367 + $0x13c] sm:$0xf]
        %v693 = vld [vmem:[%s367 + $0x140] sm:$0xf]
        %v694 = vld [vmem:[%s367 + $0x144] sm:$0xf]
        %v695 = vld [vmem:[%s367 + $0x148] sm:$0xf]
        %v696 = vld [vmem:[%s367 + $0x14c] sm:$0xf]
        %v697 = vld [vmem:[%s367 + $0x150] sm:$0xf]
        %v698 = vld [vmem:[%s367 + $0x154] sm:$0xf]
        %v699 = vld [vmem:[%s367 + $0x158] sm:$0xf]
        %v700 = vld [vmem:[%s367 + $0x15c] sm:$0xf]
        %v701 = vld [vmem:[%s367 + $0x160] sm:$0xf]
        %v702 = vld [vmem:[%s367 + $0x164] sm:$0xf]
        %v703 = vld [vmem:[%s367 + $0x168] sm:$0xf]
        %v704 = vld [vmem:[%s367 + $0x16c] sm:$0xf]
        %v705 = vld [vmem:[%s367 + $0x170] sm:$0xf]
        %v706 = vld [vmem:[%s367 + $0x174] sm:$0xf]
        %v707 = vld [vmem:[%s367 + $0x178] sm:$0xf]
        %v708 = vld [vmem:[%s367 + $0x17c] sm:$0xf]
        %v709 = vld [vmem:[%s367 + $0x180] sm:$0xf]
        %v710 = vld [vmem:[%s367 + $0x184] sm:$0xf]
        %v711 = vld [vmem:[%s367 + $0x188] sm:$0xf]
        %v712 = vld [vmem:[%s367 + $0x18c] sm:$0xf]
        %v713 = vld [vmem:[%s367 + $0x190] sm:$0xf]
        %v714 = vld [vmem:[%s367 + $0x194] sm:$0xf]
        %v715 = vld [vmem:[%s367 + $0x198] sm:$0xf]
        %v716 = vld [vmem:[%s367 + $0x19c] sm:$0xf]
        %v717 = vld [vmem:[%s367 + $0x1a0] sm:$0xf]
        %v718 = vld [vmem:[%s367 + $0x1a4] sm:$0xf]
        %v719 = vld [vmem:[%s367 + $0x1a8] sm:$0xf]
        %v720 = vld [vmem:[%s367 + $0x1ac] sm:$0xf]
        %v721 = vld [vmem:[%s367 + $0x1b0] sm:$0xf]
        %v722 = vld [vmem:[%s367 + $0x1b4] sm:$0xf]
        %v723 = vld [vmem:[%s367 + $0x1b8] sm:$0xf]
        %v724 = vld [vmem:[%s367 + $0x1bc] sm:$0xf]
        %v725 = vld [vmem:[%s367 + $0x1c0] sm:$0xf]
        %v726 = vld [vmem:[%s367 + $0x1c4] sm:$0xf]
        %v727 = vld [vmem:[%s367 + $0x1c8] sm:$0xf]
        %v728 = vld [vmem:[%s367 + $0x1cc] sm:$0xf]
        %v729 = vld [vmem:[%s367 + $0x1d0] sm:$0xf]
        %v730 = vld [vmem:[%s367 + $0x1d4] sm:$0xf]
        %v731 = vld [vmem:[%s367 + $0x1d8] sm:$0xf]
        %v732 = vld [vmem:[%s367 + $0x1dc] sm:$0xf]
        %v733 = vld [vmem:[%s367 + $0x1e0] sm:$0xf]
        %v734 = vld [vmem:[%s367 + $0x1e4] sm:$0xf]
        %v735 = vld [vmem:[%s367 + $0x1e8] sm:$0xf]
        %v736 = vld [vmem:[%s367 + $0x1ec] sm:$0xf]
        %v737 = vld [vmem:[%s367 + $0x1f0] sm:$0xf]
        %v738 = vld [vmem:[%s367 + $0x1f4] sm:$0xf]
        %v739 = vld [vmem:[%s367 + $0x1f8] sm:$0xf]
        %v740 = vld [vmem:[%s367 + $0x1fc] sm:$0xf]
        %v741 = vunpack.c.l.bf16 %v613
        %v742 = vunpack.c.l.bf16 %v614
        %v743 = vunpack.c.l.bf16 %v615
        %v744 = vunpack.c.l.bf16 %v616
        %v745 = vunpack.c.l.bf16 %v617
        %v746 = vunpack.c.l.bf16 %v618
        %v747 = vunpack.c.l.bf16 %v619
        %v748 = vunpack.c.l.bf16 %v620
        %v749 = vunpack.c.l.bf16 %v621
        %v750 = vunpack.c.l.bf16 %v622
        %v751 = vunpack.c.l.bf16 %v623
        %v752 = vunpack.c.l.bf16 %v624
        %v753 = vunpack.c.l.bf16 %v625
        %v754 = vunpack.c.l.bf16 %v626
        %v755 = vunpack.c.l.bf16 %v627
        %v756 = vunpack.c.l.bf16 %v628
        %v757 = vunpack.c.l.bf16 %v629
        %v758 = vunpack.c.l.bf16 %v630
        %v759 = vunpack.c.l.bf16 %v631
        %v760 = vunpack.c.l.bf16 %v632
        %v761 = vunpack.c.l.bf16 %v633
        %v762 = vunpack.c.l.bf16 %v634
        %v763 = vunpack.c.l.bf16 %v635
        %v764 = vunpack.c.l.bf16 %v636
        %v765 = vunpack.c.l.bf16 %v637
        %v766 = vunpack.c.l.bf16 %v638
        %v767 = vunpack.c.l.bf16 %v639
        %v768 = vunpack.c.l.bf16 %v640
        %v769 = vunpack.c.l.bf16 %v641
        %v770 = vunpack.c.l.bf16 %v642
        %v771 = vunpack.c.l.bf16 %v643
        %v772 = vunpack.c.l.bf16 %v644
        %v773 = vunpack.c.l.bf16 %v645
        %v774 = vunpack.c.l.bf16 %v646
        %v775 = vunpack.c.l.bf16 %v647
        %v776 = vunpack.c.l.bf16 %v648
        %v777 = vunpack.c.l.bf16 %v649
        %v778 = vunpack.c.l.bf16 %v650
        %v779 = vunpack.c.l.bf16 %v651
        %v780 = vunpack.c.l.bf16 %v652
        %v781 = vunpack.c.l.bf16 %v653
        %v782 = vunpack.c.l.bf16 %v654
        %v783 = vunpack.c.l.bf16 %v655
        %v784 = vunpack.c.l.bf16 %v656
        %v785 = vunpack.c.l.bf16 %v657
        %v786 = vunpack.c.l.bf16 %v658
        %v787 = vunpack.c.l.bf16 %v659
        %v788 = vunpack.c.l.bf16 %v660
        %v789 = vunpack.c.l.bf16 %v661
        %v790 = vunpack.c.l.bf16 %v662
        %v791 = vunpack.c.l.bf16 %v663
        %v792 = vunpack.c.l.bf16 %v664
        %v793 = vunpack.c.l.bf16 %v665
        %v794 = vunpack.c.l.bf16 %v666
        %v795 = vunpack.c.l.bf16 %v667
        %v796 = vunpack.c.l.bf16 %v668
        %v797 = vunpack.c.l.bf16 %v669
        %v798 = vunpack.c.l.bf16 %v670
        %v799 = vunpack.c.l.bf16 %v671
        %v800 = vunpack.c.l.bf16 %v672
        %v801 = vunpack.c.l.bf16 %v673
        %v802 = vunpack.c.l.bf16 %v674
        %v803 = vunpack.c.l.bf16 %v675
        %v804 = vunpack.c.l.bf16 %v676
        %v805 = vunpack.c.l.bf16 %v677
        %v806 = vunpack.c.l.bf16 %v678
        %v807 = vunpack.c.l.bf16 %v679
        %v808 = vunpack.c.l.bf16 %v680
        %v809 = vunpack.c.l.bf16 %v681
        %v810 = vunpack.c.l.bf16 %v682
        %v811 = vunpack.c.l.bf16 %v683
        %v812 = vunpack.c.l.bf16 %v684
        %v813 = vunpack.c.l.bf16 %v685
        %v814 = vunpack.c.l.bf16 %v686
        %v815 = vunpack.c.l.bf16 %v687
        %v816 = vunpack.c.l.bf16 %v688
        %v817 = vunpack.c.l.bf16 %v689
        %v818 = vunpack.c.l.bf16 %v690
        %v819 = vunpack.c.l.bf16 %v691
        %v820 = vunpack.c.l.bf16 %v692
        %v821 = vunpack.c.l.bf16 %v693
        %v822 = vunpack.c.l.bf16 %v694
        %v823 = vunpack.c.l.bf16 %v695
        %v824 = vunpack.c.l.bf16 %v696
        %v825 = vunpack.c.l.bf16 %v697
        %v826 = vunpack.c.l.bf16 %v698
        %v827 = vunpack.c.l.bf16 %v699
        %v828 = vunpack.c.l.bf16 %v700
        %v829 = vunpack.c.l.bf16 %v701
        %v830 = vunpack.c.l.bf16 %v702
        %v831 = vunpack.c.l.bf16 %v703
        %v832 = vunpack.c.l.bf16 %v704
        %v833 = vunpack.c.l.bf16 %v705
        %v834 = vunpack.c.l.bf16 %v706
        %v835 = vunpack.c.l.bf16 %v707
        %v836 = vunpack.c.l.bf16 %v708
        %v837 = vunpack.c.l.bf16 %v709
        %v838 = vunpack.c.l.bf16 %v710
        %v839 = vunpack.c.l.bf16 %v711
        %v840 = vunpack.c.l.bf16 %v712
        %v841 = vunpack.c.l.bf16 %v713
        %v842 = vunpack.c.l.bf16 %v714
        %v843 = vunpack.c.l.bf16 %v715
        %v844 = vunpack.c.l.bf16 %v716
        %v845 = vunpack.c.l.bf16 %v717
        %v846 = vunpack.c.l.bf16 %v718
        %v847 = vunpack.c.l.bf16 %v719
        %v848 = vunpack.c.l.bf16 %v720
        %v849 = vunpack.c.l.bf16 %v721
        %v850 = vunpack.c.l.bf16 %v722
        %v851 = vunpack.c.l.bf16 %v723
        %v852 = vunpack.c.l.bf16 %v724
        %v853 = vunpack.c.l.bf16 %v725
        %v854 = vunpack.c.l.bf16 %v726
        %v855 = vunpack.c.l.bf16 %v727
        %v856 = vunpack.c.l.bf16 %v728
        %v857 = vunpack.c.l.bf16 %v729
        %v858 = vunpack.c.l.bf16 %v730
        %v859 = vunpack.c.l.bf16 %v731
        %v860 = vunpack.c.l.bf16 %v732
        %v861 = vunpack.c.l.bf16 %v733
        %v862 = vunpack.c.l.bf16 %v734
        %v863 = vunpack.c.l.bf16 %v735
        %v864 = vunpack.c.l.bf16 %v736
        %v865 = vunpack.c.l.bf16 %v737
        %v866 = vunpack.c.l.bf16 %v738
        %v867 = vunpack.c.l.bf16 %v739
        %v868 = vunpack.c.l.bf16 %v740
        %s869 = scalar_lea.vmem [#allocation2], 136
        %870 = vst [vmem:[%s869 + $0x1] sm:$0xff] %v741
        %871 = vst [vmem:[%s869 + $0x9] sm:$0xff] %v742
        %872 = vst [vmem:[%s869 + $0x11] sm:$0xff] %v743
        %873 = vst [vmem:[%s869 + $0x19] sm:$0xff] %v744
        %874 = vst [vmem:[%s869 + $0x21] sm:$0xff] %v745
        %875 = vst [vmem:[%s869 + $0x29] sm:$0xff] %v746
        %876 = vst [vmem:[%s869 + $0x31] sm:$0xff] %v747
        %877 = vst [vmem:[%s869 + $0x39] sm:$0xff] %v748
        %878 = vst [vmem:[%s869 + $0x41] sm:$0xff] %v749
        %879 = vst [vmem:[%s869 + $0x49] sm:$0xff] %v750
        %880 = vst [vmem:[%s869 + $0x51] sm:$0xff] %v751
        %881 = vst [vmem:[%s869 + $0x59] sm:$0xff] %v752
        %882 = vst [vmem:[%s869 + $0x61] sm:$0xff] %v753
        %883 = vst [vmem:[%s869 + $0x69] sm:$0xff] %v754
        %884 = vst [vmem:[%s869 + $0x71] sm:$0xff] %v755
        %885 = vst [vmem:[%s869 + $0x79] sm:$0xff] %v756
        %886 = vst [vmem:[%s869 + $0x89] sm:$0xff] %v757
        %887 = vst [vmem:[%s869 + $0x91] sm:$0xff] %v758
        %888 = vst [vmem:[%s869 + $0x99] sm:$0xff] %v759
        %889 = vst [vmem:[%s869 + $0xa1] sm:$0xff] %v760
        %890 = vst [vmem:[%s869 + $0xa9] sm:$0xff] %v761
        %891 = vst [vmem:[%s869 + $0xb1] sm:$0xff] %v762
        %892 = vst [vmem:[%s869 + $0xb9] sm:$0xff] %v763
        %893 = vst [vmem:[%s869 + $0xc1] sm:$0xff] %v764
        %894 = vst [vmem:[%s869 + $0xc9] sm:$0xff] %v765
        %895 = vst [vmem:[%s869 + $0xd1] sm:$0xff] %v766
        %896 = vst [vmem:[%s869 + $0xd9] sm:$0xff] %v767
        %897 = vst [vmem:[%s869 + $0xe1] sm:$0xff] %v768
        %898 = vst [vmem:[%s869 + $0xe9] sm:$0xff] %v769
        %899 = vst [vmem:[%s869 + $0xf1] sm:$0xff] %v770
        %900 = vst [vmem:[%s869 + $0xf9] sm:$0xff] %v771
        %901 = vst [vmem:[%s869 + $0x101] sm:$0xff] %v772
        %902 = vst [vmem:[%s869 + $0x111] sm:$0xff] %v773
        %903 = vst [vmem:[%s869 + $0x119] sm:$0xff] %v774
        %904 = vst [vmem:[%s869 + $0x121] sm:$0xff] %v775
        %905 = vst [vmem:[%s869 + $0x129] sm:$0xff] %v776
        %906 = vst [vmem:[%s869 + $0x131] sm:$0xff] %v777
        %907 = vst [vmem:[%s869 + $0x139] sm:$0xff] %v778
        %908 = vst [vmem:[%s869 + $0x141] sm:$0xff] %v779
        %909 = vst [vmem:[%s869 + $0x149] sm:$0xff] %v780
        %910 = vst [vmem:[%s869 + $0x151] sm:$0xff] %v781
        %911 = vst [vmem:[%s869 + $0x159] sm:$0xff] %v782
        %912 = vst [vmem:[%s869 + $0x161] sm:$0xff] %v783
        %913 = vst [vmem:[%s869 + $0x169] sm:$0xff] %v784
        %914 = vst [vmem:[%s869 + $0x171] sm:$0xff] %v785
        %915 = vst [vmem:[%s869 + $0x179] sm:$0xff] %v786
        %916 = vst [vmem:[%s869 + $0x181] sm:$0xff] %v787
        %917 = vst [vmem:[%s869 + $0x189] sm:$0xff] %v788
        %918 = vst [vmem:[%s869 + $0x199] sm:$0xff] %v789
        %919 = vst [vmem:[%s869 + $0x1a1] sm:$0xff] %v790
        %920 = vst [vmem:[%s869 + $0x1a9] sm:$0xff] %v791
        %921 = vst [vmem:[%s869 + $0x1b1] sm:$0xff] %v792
        %922 = vst [vmem:[%s869 + $0x1b9] sm:$0xff] %v793
        %923 = vst [vmem:[%s869 + $0x1c1] sm:$0xff] %v794
        %924 = vst [vmem:[%s869 + $0x1c9] sm:$0xff] %v795
        %925 = vst [vmem:[%s869 + $0x1d1] sm:$0xff] %v796
        %926 = vst [vmem:[%s869 + $0x1d9] sm:$0xff] %v797
        %927 = vst [vmem:[%s869 + $0x1e1] sm:$0xff] %v798
        %928 = vst [vmem:[%s869 + $0x1e9] sm:$0xff] %v799
        %929 = vst [vmem:[%s869 + $0x1f1] sm:$0xff] %v800
        %930 = vst [vmem:[%s869 + $0x1f9] sm:$0xff] %v801
        %931 = vst [vmem:[%s869 + $0x201] sm:$0xff] %v802
        %932 = vst [vmem:[%s869 + $0x209] sm:$0xff] %v803
        %933 = vst [vmem:[%s869 + $0x211] sm:$0xff] %v804
        %934 = vst [vmem:[%s869 + $0x221] sm:$0xff] %v805
        %935 = vst [vmem:[%s869 + $0x229] sm:$0xff] %v806
        %936 = vst [vmem:[%s869 + $0x231] sm:$0xff] %v807
        %937 = vst [vmem:[%s869 + $0x239] sm:$0xff] %v808
        %938 = vst [vmem:[%s869 + $0x241] sm:$0xff] %v809
        %939 = vst [vmem:[%s869 + $0x249] sm:$0xff] %v810
        %940 = vst [vmem:[%s869 + $0x251] sm:$0xff] %v811
        %941 = vst [vmem:[%s869 + $0x259] sm:$0xff] %v812
        %942 = vst [vmem:[%s869 + $0x261] sm:$0xff] %v813
        %943 = vst [vmem:[%s869 + $0x269] sm:$0xff] %v814
        %944 = vst [vmem:[%s869 + $0x271] sm:$0xff] %v815
        %945 = vst [vmem:[%s869 + $0x279] sm:$0xff] %v816
        %946 = vst [vmem:[%s869 + $0x281] sm:$0xff] %v817
        %947 = vst [vmem:[%s869 + $0x289] sm:$0xff] %v818
        %948 = vst [vmem:[%s869 + $0x291] sm:$0xff] %v819
        %949 = vst [vmem:[%s869 + $0x299] sm:$0xff] %v820
        %950 = vst [vmem:[%s869 + $0x2a9] sm:$0xff] %v821
        %951 = vst [vmem:[%s869 + $0x2b1] sm:$0xff] %v822
        %952 = vst [vmem:[%s869 + $0x2b9] sm:$0xff] %v823
        %953 = vst [vmem:[%s869 + $0x2c1] sm:$0xff] %v824
        %954 = vst [vmem:[%s869 + $0x2c9] sm:$0xff] %v825
        %955 = vst [vmem:[%s869 + $0x2d1] sm:$0xff] %v826
        %956 = vst [vmem:[%s869 + $0x2d9] sm:$0xff] %v827
        %957 = vst [vmem:[%s869 + $0x2e1] sm:$0xff] %v828
        %958 = vst [vmem:[%s869 + $0x2e9] sm:$0xff] %v829
        %959 = vst [vmem:[%s869 + $0x2f1] sm:$0xff] %v830
        %960 = vst [vmem:[%s869 + $0x2f9] sm:$0xff] %v831
        %961 = vst [vmem:[%s869 + $0x301] sm:$0xff] %v832
        %962 = vst [vmem:[%s869 + $0x309] sm:$0xff] %v833
        %963 = vst [vmem:[%s869 + $0x311] sm:$0xff] %v834
        %964 = vst [vmem:[%s869 + $0x319] sm:$0xff] %v835
        %965 = vst [vmem:[%s869 + $0x321] sm:$0xff] %v836
        %966 = vst [vmem:[%s869 + $0x331] sm:$0xff] %v837
        %967 = vst [vmem:[%s869 + $0x339] sm:$0xff] %v838
        %968 = vst [vmem:[%s869 + $0x341] sm:$0xff] %v839
        %969 = vst [vmem:[%s869 + $0x349] sm:$0xff] %v840
        %970 = vst [vmem:[%s869 + $0x351] sm:$0xff] %v841
        %971 = vst [vmem:[%s869 + $0x359] sm:$0xff] %v842
        %972 = vst [vmem:[%s869 + $0x361] sm:$0xff] %v843
        %973 = vst [vmem:[%s869 + $0x369] sm:$0xff] %v844
        %974 = vst [vmem:[%s869 + $0x371] sm:$0xff] %v845
        %975 = vst [vmem:[%s869 + $0x379] sm:$0xff] %v846
        %976 = vst [vmem:[%s869 + $0x381] sm:$0xff] %v847
        %977 = vst [vmem:[%s869 + $0x389] sm:$0xff] %v848
        %978 = vst [vmem:[%s869 + $0x391] sm:$0xff] %v849
        %979 = vst [vmem:[%s869 + $0x399] sm:$0xff] %v850
        %980 = vst [vmem:[%s869 + $0x3a1] sm:$0xff] %v851
        %981 = vst [vmem:[%s869 + $0x3a9] sm:$0xff] %v852
        %982 = vst [vmem:[%s869 + $0x3b9] sm:$0xff] %v853
        %983 = vst [vmem:[%s869 + $0x3c1] sm:$0xff] %v854
        %984 = vst [vmem:[%s869 + $0x3c9] sm:$0xff] %v855
        %985 = vst [vmem:[%s869 + $0x3d1] sm:$0xff] %v856
        %986 = vst [vmem:[%s869 + $0x3d9] sm:$0xff] %v857
        %987 = vst [vmem:[%s869 + $0x3e1] sm:$0xff] %v858
        %988 = vst [vmem:[%s869 + $0x3e9] sm:$0xff] %v859
        %989 = vst [vmem:[%s869 + $0x3f1] sm:$0xff] %v860
        %990 = vst [vmem:[%s869 + $0x3f9] sm:$0xff] %v861
        %991 = vst [vmem:[%s869 + $0x401] sm:$0xff] %v862
        %992 = vst [vmem:[%s869 + $0x409] sm:$0xff] %v863
        %993 = vst [vmem:[%s869 + $0x411] sm:$0xff] %v864
        %994 = vst [vmem:[%s869 + $0x419] sm:$0xff] %v865
        %995 = vst [vmem:[%s869 + $0x421] sm:$0xff] %v866
        %996 = vst [vmem:[%s869 + $0x429] sm:$0xff] %v867
        %997 = vst [vmem:[%s869 + $0x431] sm:$0xff] %v868
        %v998 = vld [vmem:[%s5] sm:$0x1]
        %v999 = vld [vmem:[#allocation2] sm:$0xff]
        %v1000 = vld [vmem:[#allocation2 + $0x8] sm:$0xff]
        %v1001 = vld [vmem:[#allocation2 + $0x10] sm:$0xff]
        %v1002 = vld [vmem:[#allocation2 + $0x18] sm:$0xff]
        %v1003 = vld [vmem:[#allocation2 + $0x20] sm:$0xff]
        %v1004 = vld [vmem:[#allocation2 + $0x28] sm:$0xff]
        %v1005 = vld [vmem:[#allocation2 + $0x30] sm:$0xff]
        %v1006 = vld [vmem:[#allocation2 + $0x38] sm:$0xff]
        %v1007 = vld [vmem:[#allocation2 + $0x40] sm:$0xff]
        %v1008 = vld [vmem:[#allocation2 + $0x48] sm:$0xff]
        %v1009 = vld [vmem:[#allocation2 + $0x50] sm:$0xff]
        %v1010 = vld [vmem:[#allocation2 + $0x58] sm:$0xff]
        %v1011 = vld [vmem:[#allocation2 + $0x60] sm:$0xff]
        %v1012 = vld [vmem:[#allocation2 + $0x68] sm:$0xff]
        %v1013 = vld [vmem:[#allocation2 + $0x70] sm:$0xff]
        %v1014 = vld [vmem:[#allocation2 + $0x78] sm:$0xff]
        %v1015 = vld [vmem:[#allocation2 + $0x88] sm:$0xff]
        %v1016 = vld [vmem:[#allocation2 + $0x90] sm:$0xff]
        %v1017 = vld [vmem:[#allocation2 + $0x98] sm:$0xff]
        %v1018 = vld [vmem:[#allocation2 + $0xa0] sm:$0xff]
        %v1019 = vld [vmem:[#allocation2 + $0xa8] sm:$0xff]
        %v1020 = vld [vmem:[#allocation2 + $0xb0] sm:$0xff]
        %v1021 = vld [vmem:[#allocation2 + $0xb8] sm:$0xff]
        %v1022 = vld [vmem:[#allocation2 + $0xc0] sm:$0xff]
        %v1023 = vld [vmem:[#allocation2 + $0xc8] sm:$0xff]
        %v1024 = vld [vmem:[#allocation2 + $0xd0] sm:$0xff]
        %v1025 = vld [vmem:[#allocation2 + $0xd8] sm:$0xff]
        %v1026 = vld [vmem:[#allocation2 + $0xe0] sm:$0xff]
        %v1027 = vld [vmem:[#allocation2 + $0xe8] sm:$0xff]
        %v1028 = vld [vmem:[#allocation2 + $0xf0] sm:$0xff]
        %v1029 = vld [vmem:[#allocation2 + $0xf8] sm:$0xff]
        %v1030 = vld [vmem:[#allocation2 + $0x100] sm:$0xff]
        %v1031 = vld [vmem:[#allocation9] sm:$0x1]
        %v1032 = vperm.slane %v1031, 0
        %v1033 = vmul.f32 %v999, %v1032
        %v1034 = vmul.f32 %v1000, %v1032
        %v1035 = vmul.f32 %v1001, %v1032
        %v1036 = vmul.f32 %v1002, %v1032
        %v1037 = vmul.f32 %v1003, %v1032
        %v1038 = vmul.f32 %v1004, %v1032
        %v1039 = vmul.f32 %v1005, %v1032
        %v1040 = vmul.f32 %v1006, %v1032
        %v1041 = vmul.f32 %v1007, %v1032
        %v1042 = vmul.f32 %v1008, %v1032
        %v1043 = vmul.f32 %v1009, %v1032
        %v1044 = vmul.f32 %v1010, %v1032
        %v1045 = vmul.f32 %v1011, %v1032
        %v1046 = vmul.f32 %v1012, %v1032
        %v1047 = vmul.f32 %v1013, %v1032
        %v1048 = vmul.f32 %v1014, %v1032
        %v1049 = vmul.f32 %v1015, %v1032
        %v1050 = vmul.f32 %v1016, %v1032
        %v1051 = vmul.f32 %v1017, %v1032
        %v1052 = vmul.f32 %v1018, %v1032
        %v1053 = vmul.f32 %v1019, %v1032
        %v1054 = vmul.f32 %v1020, %v1032
        %v1055 = vmul.f32 %v1021, %v1032
        %v1056 = vmul.f32 %v1022, %v1032
        %v1057 = vmul.f32 %v1023, %v1032
        %v1058 = vmul.f32 %v1024, %v1032
        %v1059 = vmul.f32 %v1025, %v1032
        %v1060 = vmul.f32 %v1026, %v1032
        %v1061 = vmul.f32 %v1027, %v1032
        %v1062 = vmul.f32 %v1028, %v1032
        %v1063 = vmul.f32 %v1029, %v1032
        %v1064 = vmul.f32 %v1030, %v1032
        %v1065 = vadd.f32 %v1033, 0.0
        %v1066 = vadd.f32 %v1034, 0.0
        %v1067 = vadd.f32 %v1035, 0.0
        %v1068 = vadd.f32 %v1036, 0.0
        %v1069 = vadd.f32 %v1037, 0.0
        %v1070 = vadd.f32 %v1038, 0.0
        %v1071 = vadd.f32 %v1039, 0.0
        %v1072 = vadd.f32 %v1040, 0.0
        %v1073 = vadd.f32 %v1041, 0.0
        %v1074 = vadd.f32 %v1042, 0.0
        %v1075 = vadd.f32 %v1043, 0.0
        %v1076 = vadd.f32 %v1044, 0.0
        %v1077 = vadd.f32 %v1045, 0.0
        %v1078 = vadd.f32 %v1046, 0.0
        %v1079 = vadd.f32 %v1047, 0.0
        %v1080 = vadd.f32 %v1048, 0.0
        %v1081 = vadd.f32 %v1049, 0.0
        %v1082 = vadd.f32 %v1050, 0.0
        %v1083 = vadd.f32 %v1051, 0.0
        %v1084 = vadd.f32 %v1052, 0.0
        %v1085 = vadd.f32 %v1053, 0.0
        %v1086 = vadd.f32 %v1054, 0.0
        %v1087 = vadd.f32 %v1055, 0.0
        %v1088 = vadd.f32 %v1056, 0.0
        %v1089 = vadd.f32 %v1057, 0.0
        %v1090 = vadd.f32 %v1058, 0.0
        %v1091 = vadd.f32 %v1059, 0.0
        %v1092 = vadd.f32 %v1060, 0.0
        %v1093 = vadd.f32 %v1061, 0.0
        %v1094 = vadd.f32 %v1062, 0.0
        %v1095 = vadd.f32 %v1063, 0.0
        %v1096 = vadd.f32 %v1064, 0.0
        %v1097 = vld [vmem:[#allocation2 + $0x1] sm:$0xff]
        %v1098 = vld [vmem:[#allocation2 + $0x9] sm:$0xff]
        %v1099 = vld [vmem:[#allocation2 + $0x11] sm:$0xff]
        %v1100 = vld [vmem:[#allocation2 + $0x19] sm:$0xff]
        %v1101 = vld [vmem:[#allocation2 + $0x21] sm:$0xff]
        %v1102 = vld [vmem:[#allocation2 + $0x29] sm:$0xff]
        %v1103 = vld [vmem:[#allocation2 + $0x31] sm:$0xff]
        %v1104 = vld [vmem:[#allocation2 + $0x39] sm:$0xff]
        %v1105 = vld [vmem:[#allocation2 + $0x41] sm:$0xff]
        %v1106 = vld [vmem:[#allocation2 + $0x49] sm:$0xff]
        %v1107 = vld [vmem:[#allocation2 + $0x51] sm:$0xff]
        %v1108 = vld [vmem:[#allocation2 + $0x59] sm:$0xff]
        %v1109 = vld [vmem:[#allocation2 + $0x61] sm:$0xff]
        %v1110 = vld [vmem:[#allocation2 + $0x69] sm:$0xff]
        %v1111 = vld [vmem:[#allocation2 + $0x71] sm:$0xff]
        %v1112 = vld [vmem:[#allocation2 + $0x79] sm:$0xff]
        %v1113 = vld [vmem:[#allocation2 + $0x89] sm:$0xff]
        %v1114 = vld [vmem:[#allocation2 + $0x91] sm:$0xff]
        %v1115 = vld [vmem:[#allocation2 + $0x99] sm:$0xff]
        %v1116 = vld [vmem:[#allocation2 + $0xa1] sm:$0xff]
        %v1117 = vld [vmem:[#allocation2 + $0xa9] sm:$0xff]
        %v1118 = vld [vmem:[#allocation2 + $0xb1] sm:$0xff]
        %v1119 = vld [vmem:[#allocation2 + $0xb9] sm:$0xff]
        %v1120 = vld [vmem:[#allocation2 + $0xc1] sm:$0xff]
        %v1121 = vld [vmem:[#allocation2 + $0xc9] sm:$0xff]
        %v1122 = vld [vmem:[#allocation2 + $0xd1] sm:$0xff]
        %v1123 = vld [vmem:[#allocation2 + $0xd9] sm:$0xff]
        %v1124 = vld [vmem:[#allocation2 + $0xe1] sm:$0xff]
        %v1125 = vld [vmem:[#allocation2 + $0xe9] sm:$0xff]
        %v1126 = vld [vmem:[#allocation2 + $0xf1] sm:$0xff]
        %v1127 = vld [vmem:[#allocation2 + $0xf9] sm:$0xff]
        %v1128 = vld [vmem:[#allocation2 + $0x101] sm:$0xff]
        %v1129 = vld [vmem:[#allocation9 + $0x1] sm:$0x1]
        %v1130 = vperm.slane %v1129, 0
        %v1131 = vmul.f32 %v1097, %v1130
        %v1132 = vmul.f32 %v1098, %v1130
        %v1133 = vmul.f32 %v1099, %v1130
        %v1134 = vmul.f32 %v1100, %v1130
        %v1135 = vmul.f32 %v1101, %v1130
        %v1136 = vmul.f32 %v1102, %v1130
        %v1137 = vmul.f32 %v1103, %v1130
        %v1138 = vmul.f32 %v1104, %v1130
        %v1139 = vmul.f32 %v1105, %v1130
        %v1140 = vmul.f32 %v1106, %v1130
        %v1141 = vmul.f32 %v1107, %v1130
        %v1142 = vmul.f32 %v1108, %v1130
        %v1143 = vmul.f32 %v1109, %v1130
        %v1144 = vmul.f32 %v1110, %v1130
        %v1145 = vmul.f32 %v1111, %v1130
        %v1146 = vmul.f32 %v1112, %v1130
        %v1147 = vmul.f32 %v1113, %v1130
        %v1148 = vmul.f32 %v1114, %v1130
        %v1149 = vmul.f32 %v1115, %v1130
        %v1150 = vmul.f32 %v1116, %v1130
        %v1151 = vmul.f32 %v1117, %v1130
        %v1152 = vmul.f32 %v1118, %v1130
        %v1153 = vmul.f32 %v1119, %v1130
        %v1154 = vmul.f32 %v1120, %v1130
        %v1155 = vmul.f32 %v1121, %v1130
        %v1156 = vmul.f32 %v1122, %v1130
        %v1157 = vmul.f32 %v1123, %v1130
        %v1158 = vmul.f32 %v1124, %v1130
        %v1159 = vmul.f32 %v1125, %v1130
        %v1160 = vmul.f32 %v1126, %v1130
        %v1161 = vmul.f32 %v1127, %v1130
        %v1162 = vmul.f32 %v1128, %v1130
        %v1163 = vadd.f32 %v1065, %v1131
        %v1164 = vadd.f32 %v1066, %v1132
        %v1165 = vadd.f32 %v1067, %v1133
        %v1166 = vadd.f32 %v1068, %v1134
        %v1167 = vadd.f32 %v1069, %v1135
        %v1168 = vadd.f32 %v1070, %v1136
        %v1169 = vadd.f32 %v1071, %v1137
        %v1170 = vadd.f32 %v1072, %v1138
        %v1171 = vadd.f32 %v1073, %v1139
        %v1172 = vadd.f32 %v1074, %v1140
        %v1173 = vadd.f32 %v1075, %v1141
        %v1174 = vadd.f32 %v1076, %v1142
        %v1175 = vadd.f32 %v1077, %v1143
        %v1176 = vadd.f32 %v1078, %v1144
        %v1177 = vadd.f32 %v1079, %v1145
        %v1178 = vadd.f32 %v1080, %v1146
        %v1179 = vadd.f32 %v1081, %v1147
        %v1180 = vadd.f32 %v1082, %v1148
        %v1181 = vadd.f32 %v1083, %v1149
        %v1182 = vadd.f32 %v1084, %v1150
        %v1183 = vadd.f32 %v1085, %v1151
        %v1184 = vadd.f32 %v1086, %v1152
        %v1185 = vadd.f32 %v1087, %v1153
        %v1186 = vadd.f32 %v1088, %v1154
        %v1187 = vadd.f32 %v1089, %v1155
        %v1188 = vadd.f32 %v1090, %v1156
        %v1189 = vadd.f32 %v1091, %v1157
        %v1190 = vadd.f32 %v1092, %v1158
        %v1191 = vadd.f32 %v1093, %v1159
        %v1192 = vadd.f32 %v1094, %v1160
        %v1193 = vadd.f32 %v1095, %v1161
        %v1194 = vadd.f32 %v1096, %v1162
        %v1195 = vld [vmem:[#allocation2 + $0x2] sm:$0xff]
        %v1196 = vld [vmem:[#allocation2 + $0xa] sm:$0xff]
        %v1197 = vld [vmem:[#allocation2 + $0x12] sm:$0xff]
        %v1198 = vld [vmem:[#allocation2 + $0x1a] sm:$0xff]
        %v1199 = vld [vmem:[#allocation2 + $0x22] sm:$0xff]
        %v1200 = vld [vmem:[#allocation2 + $0x2a] sm:$0xff]
        %v1201 = vld [vmem:[#allocation2 + $0x32] sm:$0xff]
        %v1202 = vld [vmem:[#allocation2 + $0x3a] sm:$0xff]
        %v1203 = vld [vmem:[#allocation2 + $0x42] sm:$0xff]
        %v1204 = vld [vmem:[#allocation2 + $0x4a] sm:$0xff]
        %v1205 = vld [vmem:[#allocation2 + $0x52] sm:$0xff]
        %v1206 = vld [vmem:[#allocation2 + $0x5a] sm:$0xff]
        %v1207 = vld [vmem:[#allocation2 + $0x62] sm:$0xff]
        %v1208 = vld [vmem:[#allocation2 + $0x6a] sm:$0xff]
        %v1209 = vld [vmem:[#allocation2 + $0x72] sm:$0xff]
        %v1210 = vld [vmem:[#allocation2 + $0x7a] sm:$0xff]
        %v1211 = vld [vmem:[#allocation2 + $0x8a] sm:$0xff]
        %v1212 = vld [vmem:[#allocation2 + $0x92] sm:$0xff]
        %v1213 = vld [vmem:[#allocation2 + $0x9a] sm:$0xff]
        %v1214 = vld [vmem:[#allocation2 + $0xa2] sm:$0xff]
        %v1215 = vld [vmem:[#allocation2 + $0xaa] sm:$0xff]
        %v1216 = vld [vmem:[#allocation2 + $0xb2] sm:$0xff]
        %v1217 = vld [vmem:[#allocation2 + $0xba] sm:$0xff]
        %v1218 = vld [vmem:[#allocation2 + $0xc2] sm:$0xff]
        %v1219 = vld [vmem:[#allocation2 + $0xca] sm:$0xff]
        %v1220 = vld [vmem:[#allocation2 + $0xd2] sm:$0xff]
        %v1221 = vld [vmem:[#allocation2 + $0xda] sm:$0xff]
        %v1222 = vld [vmem:[#allocation2 + $0xe2] sm:$0xff]
        %v1223 = vld [vmem:[#allocation2 + $0xea] sm:$0xff]
        %v1224 = vld [vmem:[#allocation2 + $0xf2] sm:$0xff]
        %v1225 = vld [vmem:[#allocation2 + $0xfa] sm:$0xff]
        %v1226 = vld [vmem:[#allocation2 + $0x102] sm:$0xff]
        %v1227 = vld [vmem:[#allocation9 + $0x2] sm:$0x1]
        %v1228 = vperm.slane %v1227, 0
        %v1229 = vmul.f32 %v1195, %v1228
        %v1230 = vmul.f32 %v1196, %v1228
        %v1231 = vmul.f32 %v1197, %v1228
        %v1232 = vmul.f32 %v1198, %v1228
        %v1233 = vmul.f32 %v1199, %v1228
        %v1234 = vmul.f32 %v1200, %v1228
        %v1235 = vmul.f32 %v1201, %v1228
        %v1236 = vmul.f32 %v1202, %v1228
        %v1237 = vmul.f32 %v1203, %v1228
        %v1238 = vmul.f32 %v1204, %v1228
        %v1239 = vmul.f32 %v1205, %v1228
        %v1240 = vmul.f32 %v1206, %v1228
        %v1241 = vmul.f32 %v1207, %v1228
        %v1242 = vmul.f32 %v1208, %v1228
        %v1243 = vmul.f32 %v1209, %v1228
        %v1244 = vmul.f32 %v1210, %v1228
        %v1245 = vmul.f32 %v1211, %v1228
        %v1246 = vmul.f32 %v1212, %v1228
        %v1247 = vmul.f32 %v1213, %v1228
        %v1248 = vmul.f32 %v1214, %v1228
        %v1249 = vmul.f32 %v1215, %v1228
        %v1250 = vmul.f32 %v1216, %v1228
        %v1251 = vmul.f32 %v1217, %v1228
        %v1252 = vmul.f32 %v1218, %v1228
        %v1253 = vmul.f32 %v1219, %v1228
        %v1254 = vmul.f32 %v1220, %v1228
        %v1255 = vmul.f32 %v1221, %v1228
        %v1256 = vmul.f32 %v1222, %v1228
        %v1257 = vmul.f32 %v1223, %v1228
        %v1258 = vmul.f32 %v1224, %v1228
        %v1259 = vmul.f32 %v1225, %v1228
        %v1260 = vmul.f32 %v1226, %v1228
        %v1261 = vadd.f32 %v1163, %v1229
        %v1262 = vadd.f32 %v1164, %v1230
        %v1263 = vadd.f32 %v1165, %v1231
        %v1264 = vadd.f32 %v1166, %v1232
        %v1265 = vadd.f32 %v1167, %v1233
        %v1266 = vadd.f32 %v1168, %v1234
        %v1267 = vadd.f32 %v1169, %v1235
        %v1268 = vadd.f32 %v1170, %v1236
        %v1269 = vadd.f32 %v1171, %v1237
        %v1270 = vadd.f32 %v1172, %v1238
        %v1271 = vadd.f32 %v1173, %v1239
        %v1272 = vadd.f32 %v1174, %v1240
        %v1273 = vadd.f32 %v1175, %v1241
        %v1274 = vadd.f32 %v1176, %v1242
        %v1275 = vadd.f32 %v1177, %v1243
        %v1276 = vadd.f32 %v1178, %v1244
        %v1277 = vadd.f32 %v1179, %v1245
        %v1278 = vadd.f32 %v1180, %v1246
        %v1279 = vadd.f32 %v1181, %v1247
        %v1280 = vadd.f32 %v1182, %v1248
        %v1281 = vadd.f32 %v1183, %v1249
        %v1282 = vadd.f32 %v1184, %v1250
        %v1283 = vadd.f32 %v1185, %v1251
        %v1284 = vadd.f32 %v1186, %v1252
        %v1285 = vadd.f32 %v1187, %v1253
        %v1286 = vadd.f32 %v1188, %v1254
        %v1287 = vadd.f32 %v1189, %v1255
        %v1288 = vadd.f32 %v1190, %v1256
        %v1289 = vadd.f32 %v1191, %v1257
        %v1290 = vadd.f32 %v1192, %v1258
        %v1291 = vadd.f32 %v1193, %v1259
        %v1292 = vadd.f32 %v1194, %v1260
        %v1293 = vld [vmem:[%s869] sm:$0xff]
        %v1294 = vld [vmem:[%s869 + $0x8] sm:$0xff]
        %v1295 = vld [vmem:[%s869 + $0x10] sm:$0xff]
        %v1296 = vld [vmem:[%s869 + $0x18] sm:$0xff]
        %v1297 = vld [vmem:[%s869 + $0x20] sm:$0xff]
        %v1298 = vld [vmem:[%s869 + $0x28] sm:$0xff]
        %v1299 = vld [vmem:[%s869 + $0x30] sm:$0xff]
        %v1300 = vld [vmem:[%s869 + $0x38] sm:$0xff]
        %v1301 = vld [vmem:[%s869 + $0x40] sm:$0xff]
        %v1302 = vld [vmem:[%s869 + $0x48] sm:$0xff]
        %v1303 = vld [vmem:[%s869 + $0x50] sm:$0xff]
        %v1304 = vld [vmem:[%s869 + $0x58] sm:$0xff]
        %v1305 = vld [vmem:[%s869 + $0x60] sm:$0xff]
        %v1306 = vld [vmem:[%s869 + $0x68] sm:$0xff]
        %v1307 = vld [vmem:[%s869 + $0x70] sm:$0xff]
        %v1308 = vld [vmem:[%s869 + $0x78] sm:$0xff]
        %v1309 = vld [vmem:[%s869 + $0x88] sm:$0xff]
        %v1310 = vld [vmem:[%s869 + $0x90] sm:$0xff]
        %v1311 = vld [vmem:[%s869 + $0x98] sm:$0xff]
        %v1312 = vld [vmem:[%s869 + $0xa0] sm:$0xff]
        %v1313 = vld [vmem:[%s869 + $0xa8] sm:$0xff]
        %v1314 = vld [vmem:[%s869 + $0xb0] sm:$0xff]
        %v1315 = vld [vmem:[%s869 + $0xb8] sm:$0xff]
        %v1316 = vld [vmem:[%s869 + $0xc0] sm:$0xff]
        %v1317 = vld [vmem:[%s869 + $0xc8] sm:$0xff]
        %v1318 = vld [vmem:[%s869 + $0xd0] sm:$0xff]
        %v1319 = vld [vmem:[%s869 + $0xd8] sm:$0xff]
        %v1320 = vld [vmem:[%s869 + $0xe0] sm:$0xff]
        %v1321 = vld [vmem:[%s869 + $0xe8] sm:$0xff]
        %v1322 = vld [vmem:[%s869 + $0xf0] sm:$0xff]
        %v1323 = vld [vmem:[%s869 + $0xf8] sm:$0xff]
        %v1324 = vld [vmem:[%s869 + $0x100] sm:$0xff]
        %v1325 = vld [vmem:[#allocation9 + $0x3] sm:$0x1]
        %v1326 = vperm.slane %v1325, 0
        %v1327 = vmul.f32 %v1293, %v1326
        %v1328 = vmul.f32 %v1294, %v1326
        %v1329 = vmul.f32 %v1295, %v1326
        %v1330 = vmul.f32 %v1296, %v1326
        %v1331 = vmul.f32 %v1297, %v1326
        %v1332 = vmul.f32 %v1298, %v1326
        %v1333 = vmul.f32 %v1299, %v1326
        %v1334 = vmul.f32 %v1300, %v1326
        %v1335 = vmul.f32 %v1301, %v1326
        %v1336 = vmul.f32 %v1302, %v1326
        %v1337 = vmul.f32 %v1303, %v1326
        %v1338 = vmul.f32 %v1304, %v1326
        %v1339 = vmul.f32 %v1305, %v1326
        %v1340 = vmul.f32 %v1306, %v1326
        %v1341 = vmul.f32 %v1307, %v1326
        %v1342 = vmul.f32 %v1308, %v1326
        %v1343 = vmul.f32 %v1309, %v1326
        %v1344 = vmul.f32 %v1310, %v1326
        %v1345 = vmul.f32 %v1311, %v1326
        %v1346 = vmul.f32 %v1312, %v1326
        %v1347 = vmul.f32 %v1313, %v1326
        %v1348 = vmul.f32 %v1314, %v1326
        %v1349 = vmul.f32 %v1315, %v1326
        %v1350 = vmul.f32 %v1316, %v1326
        %v1351 = vmul.f32 %v1317, %v1326
        %v1352 = vmul.f32 %v1318, %v1326
        %v1353 = vmul.f32 %v1319, %v1326
        %v1354 = vmul.f32 %v1320, %v1326
        %v1355 = vmul.f32 %v1321, %v1326
        %v1356 = vmul.f32 %v1322, %v1326
        %v1357 = vmul.f32 %v1323, %v1326
        %v1358 = vmul.f32 %v1324, %v1326
        %v1359 = vadd.f32 %v1261, %v1327
        %v1360 = vadd.f32 %v1262, %v1328
        %v1361 = vadd.f32 %v1263, %v1329
        %v1362 = vadd.f32 %v1264, %v1330
        %v1363 = vadd.f32 %v1265, %v1331
        %v1364 = vadd.f32 %v1266, %v1332
        %v1365 = vadd.f32 %v1267, %v1333
        %v1366 = vadd.f32 %v1268, %v1334
        %v1367 = vadd.f32 %v1269, %v1335
        %v1368 = vadd.f32 %v1270, %v1336
        %v1369 = vadd.f32 %v1271, %v1337
        %v1370 = vadd.f32 %v1272, %v1338
        %v1371 = vadd.f32 %v1273, %v1339
        %v1372 = vadd.f32 %v1274, %v1340
        %v1373 = vadd.f32 %v1275, %v1341
        %v1374 = vadd.f32 %v1276, %v1342
        %v1375 = vadd.f32 %v1277, %v1343
        %v1376 = vadd.f32 %v1278, %v1344
        %v1377 = vadd.f32 %v1279, %v1345
        %v1378 = vadd.f32 %v1280, %v1346
        %v1379 = vadd.f32 %v1281, %v1347
        %v1380 = vadd.f32 %v1282, %v1348
        %v1381 = vadd.f32 %v1283, %v1349
        %v1382 = vadd.f32 %v1284, %v1350
        %v1383 = vadd.f32 %v1285, %v1351
        %v1384 = vadd.f32 %v1286, %v1352
        %v1385 = vadd.f32 %v1287, %v1353
        %v1386 = vadd.f32 %v1288, %v1354
        %v1387 = vadd.f32 %v1289, %v1355
        %v1388 = vadd.f32 %v1290, %v1356
        %v1389 = vadd.f32 %v1291, %v1357
        %v1390 = vadd.f32 %v1292, %v1358
        %v1391 = vld [vmem:[%s869 + $0x1] sm:$0xff]
        %v1392 = vld [vmem:[%s869 + $0x9] sm:$0xff]
        %v1393 = vld [vmem:[%s869 + $0x11] sm:$0xff]
        %v1394 = vld [vmem:[%s869 + $0x19] sm:$0xff]
        %v1395 = vld [vmem:[%s869 + $0x21] sm:$0xff]
        %v1396 = vld [vmem:[%s869 + $0x29] sm:$0xff]
        %v1397 = vld [vmem:[%s869 + $0x31] sm:$0xff]
        %v1398 = vld [vmem:[%s869 + $0x39] sm:$0xff]
        %v1399 = vld [vmem:[%s869 + $0x41] sm:$0xff]
        %v1400 = vld [vmem:[%s869 + $0x49] sm:$0xff]
        %v1401 = vld [vmem:[%s869 + $0x51] sm:$0xff]
        %v1402 = vld [vmem:[%s869 + $0x59] sm:$0xff]
        %v1403 = vld [vmem:[%s869 + $0x61] sm:$0xff]
        %v1404 = vld [vmem:[%s869 + $0x69] sm:$0xff]
        %v1405 = vld [vmem:[%s869 + $0x71] sm:$0xff]
        %v1406 = vld [vmem:[%s869 + $0x79] sm:$0xff]
        %v1407 = vld [vmem:[%s869 + $0x89] sm:$0xff]
        %v1408 = vld [vmem:[%s869 + $0x91] sm:$0xff]
        %v1409 = vld [vmem:[%s869 + $0x99] sm:$0xff]
        %v1410 = vld [vmem:[%s869 + $0xa1] sm:$0xff]
        %v1411 = vld [vmem:[%s869 + $0xa9] sm:$0xff]
        %v1412 = vld [vmem:[%s869 + $0xb1] sm:$0xff]
        %v1413 = vld [vmem:[%s869 + $0xb9] sm:$0xff]
        %v1414 = vld [vmem:[%s869 + $0xc1] sm:$0xff]
        %v1415 = vld [vmem:[%s869 + $0xc9] sm:$0xff]
        %v1416 = vld [vmem:[%s869 + $0xd1] sm:$0xff]
        %v1417 = vld [vmem:[%s869 + $0xd9] sm:$0xff]
        %v1418 = vld [vmem:[%s869 + $0xe1] sm:$0xff]
        %v1419 = vld [vmem:[%s869 + $0xe9] sm:$0xff]
        %v1420 = vld [vmem:[%s869 + $0xf1] sm:$0xff]
        %v1421 = vld [vmem:[%s869 + $0xf9] sm:$0xff]
        %v1422 = vld [vmem:[%s869 + $0x101] sm:$0xff]
        %v1423 = vld [vmem:[#allocation9 + $0x4] sm:$0x1]
        %v1424 = vperm.slane %v1423, 0
        %v1425 = vmul.f32 %v1391, %v1424
        %v1426 = vmul.f32 %v1392, %v1424
        %v1427 = vmul.f32 %v1393, %v1424
        %v1428 = vmul.f32 %v1394, %v1424
        %v1429 = vmul.f32 %v1395, %v1424
        %v1430 = vmul.f32 %v1396, %v1424
        %v1431 = vmul.f32 %v1397, %v1424
        %v1432 = vmul.f32 %v1398, %v1424
        %v1433 = vmul.f32 %v1399, %v1424
        %v1434 = vmul.f32 %v1400, %v1424
        %v1435 = vmul.f32 %v1401, %v1424
        %v1436 = vmul.f32 %v1402, %v1424
        %v1437 = vmul.f32 %v1403, %v1424
        %v1438 = vmul.f32 %v1404, %v1424
        %v1439 = vmul.f32 %v1405, %v1424
        %v1440 = vmul.f32 %v1406, %v1424
        %v1441 = vmul.f32 %v1407, %v1424
        %v1442 = vmul.f32 %v1408, %v1424
        %v1443 = vmul.f32 %v1409, %v1424
        %v1444 = vmul.f32 %v1410, %v1424
        %v1445 = vmul.f32 %v1411, %v1424
        %v1446 = vmul.f32 %v1412, %v1424
        %v1447 = vmul.f32 %v1413, %v1424
        %v1448 = vmul.f32 %v1414, %v1424
        %v1449 = vmul.f32 %v1415, %v1424
        %v1450 = vmul.f32 %v1416, %v1424
        %v1451 = vmul.f32 %v1417, %v1424
        %v1452 = vmul.f32 %v1418, %v1424
        %v1453 = vmul.f32 %v1419, %v1424
        %v1454 = vmul.f32 %v1420, %v1424
        %v1455 = vmul.f32 %v1421, %v1424
        %v1456 = vmul.f32 %v1422, %v1424
        %v1457 = vadd.f32 %v1359, %v1425
        %v1458 = vadd.f32 %v1360, %v1426
        %v1459 = vadd.f32 %v1361, %v1427
        %v1460 = vadd.f32 %v1362, %v1428
        %v1461 = vadd.f32 %v1363, %v1429
        %v1462 = vadd.f32 %v1364, %v1430
        %v1463 = vadd.f32 %v1365, %v1431
        %v1464 = vadd.f32 %v1366, %v1432
        %v1465 = vadd.f32 %v1367, %v1433
        %v1466 = vadd.f32 %v1368, %v1434
        %v1467 = vadd.f32 %v1369, %v1435
        %v1468 = vadd.f32 %v1370, %v1436
        %v1469 = vadd.f32 %v1371, %v1437
        %v1470 = vadd.f32 %v1372, %v1438
        %v1471 = vadd.f32 %v1373, %v1439
        %v1472 = vadd.f32 %v1374, %v1440
        %v1473 = vadd.f32 %v1375, %v1441
        %v1474 = vadd.f32 %v1376, %v1442
        %v1475 = vadd.f32 %v1377, %v1443
        %v1476 = vadd.f32 %v1378, %v1444
        %v1477 = vadd.f32 %v1379, %v1445
        %v1478 = vadd.f32 %v1380, %v1446
        %v1479 = vadd.f32 %v1381, %v1447
        %v1480 = vadd.f32 %v1382, %v1448
        %v1481 = vadd.f32 %v1383, %v1449
        %v1482 = vadd.f32 %v1384, %v1450
        %v1483 = vadd.f32 %v1385, %v1451
        %v1484 = vadd.f32 %v1386, %v1452
        %v1485 = vadd.f32 %v1387, %v1453
        %v1486 = vadd.f32 %v1388, %v1454
        %v1487 = vadd.f32 %v1389, %v1455
        %v1488 = vadd.f32 %v1390, %v1456
        %v1489 = vld [vmem:[%s869 + $0x2] sm:$0xff]
        %v1490 = vld [vmem:[%s869 + $0xa] sm:$0xff]
        %v1491 = vld [vmem:[%s869 + $0x12] sm:$0xff]
        %v1492 = vld [vmem:[%s869 + $0x1a] sm:$0xff]
        %v1493 = vld [vmem:[%s869 + $0x22] sm:$0xff]
        %v1494 = vld [vmem:[%s869 + $0x2a] sm:$0xff]
        %v1495 = vld [vmem:[%s869 + $0x32] sm:$0xff]
        %v1496 = vld [vmem:[%s869 + $0x3a] sm:$0xff]
        %v1497 = vld [vmem:[%s869 + $0x42] sm:$0xff]
        %v1498 = vld [vmem:[%s869 + $0x4a] sm:$0xff]
        %v1499 = vld [vmem:[%s869 + $0x52] sm:$0xff]
        %v1500 = vld [vmem:[%s869 + $0x5a] sm:$0xff]
        %v1501 = vld [vmem:[%s869 + $0x62] sm:$0xff]
        %v1502 = vld [vmem:[%s869 + $0x6a] sm:$0xff]
        %v1503 = vld [vmem:[%s869 + $0x72] sm:$0xff]
        %v1504 = vld [vmem:[%s869 + $0x7a] sm:$0xff]
        %v1505 = vld [vmem:[%s869 + $0x8a] sm:$0xff]
        %v1506 = vld [vmem:[%s869 + $0x92] sm:$0xff]
        %v1507 = vld [vmem:[%s869 + $0x9a] sm:$0xff]
        %v1508 = vld [vmem:[%s869 + $0xa2] sm:$0xff]
        %v1509 = vld [vmem:[%s869 + $0xaa] sm:$0xff]
        %v1510 = vld [vmem:[%s869 + $0xb2] sm:$0xff]
        %v1511 = vld [vmem:[%s869 + $0xba] sm:$0xff]
        %v1512 = vld [vmem:[%s869 + $0xc2] sm:$0xff]
        %v1513 = vld [vmem:[%s869 + $0xca] sm:$0xff]
        %v1514 = vld [vmem:[%s869 + $0xd2] sm:$0xff]
        %v1515 = vld [vmem:[%s869 + $0xda] sm:$0xff]
        %v1516 = vld [vmem:[%s869 + $0xe2] sm:$0xff]
        %v1517 = vld [vmem:[%s869 + $0xea] sm:$0xff]
        %v1518 = vld [vmem:[%s869 + $0xf2] sm:$0xff]
        %v1519 = vld [vmem:[%s869 + $0xfa] sm:$0xff]
        %v1520 = vld [vmem:[%s869 + $0x102] sm:$0xff]
        %v1521 = vld [vmem:[#allocation9 + $0x5] sm:$0x1]
        %v1522 = vperm.slane %v1521, 0
        %v1523 = vmul.f32 %v1489, %v1522
        %v1524 = vmul.f32 %v1490, %v1522
        %v1525 = vmul.f32 %v1491, %v1522
        %v1526 = vmul.f32 %v1492, %v1522
        %v1527 = vmul.f32 %v1493, %v1522
        %v1528 = vmul.f32 %v1494, %v1522
        %v1529 = vmul.f32 %v1495, %v1522
        %v1530 = vmul.f32 %v1496, %v1522
        %v1531 = vmul.f32 %v1497, %v1522
        %v1532 = vmul.f32 %v1498, %v1522
        %v1533 = vmul.f32 %v1499, %v1522
        %v1534 = vmul.f32 %v1500, %v1522
        %v1535 = vmul.f32 %v1501, %v1522
        %v1536 = vmul.f32 %v1502, %v1522
        %v1537 = vmul.f32 %v1503, %v1522
        %v1538 = vmul.f32 %v1504, %v1522
        %v1539 = vmul.f32 %v1505, %v1522
        %v1540 = vmul.f32 %v1506, %v1522
        %v1541 = vmul.f32 %v1507, %v1522
        %v1542 = vmul.f32 %v1508, %v1522
        %v1543 = vmul.f32 %v1509, %v1522
        %v1544 = vmul.f32 %v1510, %v1522
        %v1545 = vmul.f32 %v1511, %v1522
        %v1546 = vmul.f32 %v1512, %v1522
        %v1547 = vmul.f32 %v1513, %v1522
        %v1548 = vmul.f32 %v1514, %v1522
        %v1549 = vmul.f32 %v1515, %v1522
        %v1550 = vmul.f32 %v1516, %v1522
        %v1551 = vmul.f32 %v1517, %v1522
        %v1552 = vmul.f32 %v1518, %v1522
        %v1553 = vmul.f32 %v1519, %v1522
        %v1554 = vmul.f32 %v1520, %v1522
        %v1555 = vadd.f32 %v1457, %v1523
        %v1556 = vadd.f32 %v1458, %v1524
        %v1557 = vadd.f32 %v1459, %v1525
        %v1558 = vadd.f32 %v1460, %v1526
        %v1559 = vadd.f32 %v1461, %v1527
        %v1560 = vadd.f32 %v1462, %v1528
        %v1561 = vadd.f32 %v1463, %v1529
        %v1562 = vadd.f32 %v1464, %v1530
        %v1563 = vadd.f32 %v1465, %v1531
        %v1564 = vadd.f32 %v1466, %v1532
        %v1565 = vadd.f32 %v1467, %v1533
        %v1566 = vadd.f32 %v1468, %v1534
        %v1567 = vadd.f32 %v1469, %v1535
        %v1568 = vadd.f32 %v1470, %v1536
        %v1569 = vadd.f32 %v1471, %v1537
        %v1570 = vadd.f32 %v1472, %v1538
        %v1571 = vadd.f32 %v1473, %v1539
        %v1572 = vadd.f32 %v1474, %v1540
        %v1573 = vadd.f32 %v1475, %v1541
        %v1574 = vadd.f32 %v1476, %v1542
        %v1575 = vadd.f32 %v1477, %v1543
        %v1576 = vadd.f32 %v1478, %v1544
        %v1577 = vadd.f32 %v1479, %v1545
        %v1578 = vadd.f32 %v1480, %v1546
        %v1579 = vadd.f32 %v1481, %v1547
        %v1580 = vadd.f32 %v1482, %v1548
        %v1581 = vadd.f32 %v1483, %v1549
        %v1582 = vadd.f32 %v1484, %v1550
        %v1583 = vadd.f32 %v1485, %v1551
        %v1584 = vadd.f32 %v1486, %v1552
        %v1585 = vadd.f32 %v1487, %v1553
        %v1586 = vadd.f32 %v1488, %v1554
        %s1587 = scalar_lea.vmem [#allocation2], 272
        %v1588 = vld [vmem:[%s1587] sm:$0xff]
        %v1589 = vld [vmem:[%s1587 + $0x8] sm:$0xff]
        %v1590 = vld [vmem:[%s1587 + $0x10] sm:$0xff]
        %v1591 = vld [vmem:[%s1587 + $0x18] sm:$0xff]
        %v1592 = vld [vmem:[%s1587 + $0x20] sm:$0xff]
        %v1593 = vld [vmem:[%s1587 + $0x28] sm:$0xff]
        %v1594 = vld [vmem:[%s1587 + $0x30] sm:$0xff]
        %v1595 = vld [vmem:[%s1587 + $0x38] sm:$0xff]
        %v1596 = vld [vmem:[%s1587 + $0x40] sm:$0xff]
        %v1597 = vld [vmem:[%s1587 + $0x48] sm:$0xff]
        %v1598 = vld [vmem:[%s1587 + $0x50] sm:$0xff]
        %v1599 = vld [vmem:[%s1587 + $0x58] sm:$0xff]
        %v1600 = vld [vmem:[%s1587 + $0x60] sm:$0xff]
        %v1601 = vld [vmem:[%s1587 + $0x68] sm:$0xff]
        %v1602 = vld [vmem:[%s1587 + $0x70] sm:$0xff]
        %v1603 = vld [vmem:[%s1587 + $0x78] sm:$0xff]
        %v1604 = vld [vmem:[%s1587 + $0x88] sm:$0xff]
        %v1605 = vld [vmem:[%s1587 + $0x90] sm:$0xff]
        %v1606 = vld [vmem:[%s1587 + $0x98] sm:$0xff]
        %v1607 = vld [vmem:[%s1587 + $0xa0] sm:$0xff]
        %v1608 = vld [vmem:[%s1587 + $0xa8] sm:$0xff]
        %v1609 = vld [vmem:[%s1587 + $0xb0] sm:$0xff]
        %v1610 = vld [vmem:[%s1587 + $0xb8] sm:$0xff]
        %v1611 = vld [vmem:[%s1587 + $0xc0] sm:$0xff]
        %v1612 = vld [vmem:[%s1587 + $0xc8] sm:$0xff]
        %v1613 = vld [vmem:[%s1587 + $0xd0] sm:$0xff]
        %v1614 = vld [vmem:[%s1587 + $0xd8] sm:$0xff]
        %v1615 = vld [vmem:[%s1587 + $0xe0] sm:$0xff]
        %v1616 = vld [vmem:[%s1587 + $0xe8] sm:$0xff]
        %v1617 = vld [vmem:[%s1587 + $0xf0] sm:$0xff]
        %v1618 = vld [vmem:[%s1587 + $0xf8] sm:$0xff]
        %v1619 = vld [vmem:[%s1587 + $0x100] sm:$0xff]
        %v1620 = vld [vmem:[#allocation9 + $0x6] sm:$0x1]
        %v1621 = vperm.slane %v1620, 0
        %v1622 = vmul.f32 %v1588, %v1621
        %v1623 = vmul.f32 %v1589, %v1621
        %v1624 = vmul.f32 %v1590, %v1621
        %v1625 = vmul.f32 %v1591, %v1621
        %v1626 = vmul.f32 %v1592, %v1621
        %v1627 = vmul.f32 %v1593, %v1621
        %v1628 = vmul.f32 %v1594, %v1621
        %v1629 = vmul.f32 %v1595, %v1621
        %v1630 = vmul.f32 %v1596, %v1621
        %v1631 = vmul.f32 %v1597, %v1621
        %v1632 = vmul.f32 %v1598, %v1621
        %v1633 = vmul.f32 %v1599, %v1621
        %v1634 = vmul.f32 %v1600, %v1621
        %v1635 = vmul.f32 %v1601, %v1621
        %v1636 = vmul.f32 %v1602, %v1621
        %v1637 = vmul.f32 %v1603, %v1621
        %v1638 = vmul.f32 %v1604, %v1621
        %v1639 = vmul.f32 %v1605, %v1621
        %v1640 = vmul.f32 %v1606, %v1621
        %v1641 = vmul.f32 %v1607, %v1621
        %v1642 = vmul.f32 %v1608, %v1621
        %v1643 = vmul.f32 %v1609, %v1621
        %v1644 = vmul.f32 %v1610, %v1621
        %v1645 = vmul.f32 %v1611, %v1621
        %v1646 = vmul.f32 %v1612, %v1621
        %v1647 = vmul.f32 %v1613, %v1621
        %v1648 = vmul.f32 %v1614, %v1621
        %v1649 = vmul.f32 %v1615, %v1621
        %v1650 = vmul.f32 %v1616, %v1621
        %v1651 = vmul.f32 %v1617, %v1621
        %v1652 = vmul.f32 %v1618, %v1621
        %v1653 = vmul.f32 %v1619, %v1621
        %v1654 = vadd.f32 %v1555, %v1622
        %v1655 = vadd.f32 %v1556, %v1623
        %v1656 = vadd.f32 %v1557, %v1624
        %v1657 = vadd.f32 %v1558, %v1625
        %v1658 = vadd.f32 %v1559, %v1626
        %v1659 = vadd.f32 %v1560, %v1627
        %v1660 = vadd.f32 %v1561, %v1628
        %v1661 = vadd.f32 %v1562, %v1629
        %v1662 = vadd.f32 %v1563, %v1630
        %v1663 = vadd.f32 %v1564, %v1631
        %v1664 = vadd.f32 %v1565, %v1632
        %v1665 = vadd.f32 %v1566, %v1633
        %v1666 = vadd.f32 %v1567, %v1634
        %v1667 = vadd.f32 %v1568, %v1635
        %v1668 = vadd.f32 %v1569, %v1636
        %v1669 = vadd.f32 %v1570, %v1637
        %v1670 = vadd.f32 %v1571, %v1638
        %v1671 = vadd.f32 %v1572, %v1639
        %v1672 = vadd.f32 %v1573, %v1640
        %v1673 = vadd.f32 %v1574, %v1641
        %v1674 = vadd.f32 %v1575, %v1642
        %v1675 = vadd.f32 %v1576, %v1643
        %v1676 = vadd.f32 %v1577, %v1644
        %v1677 = vadd.f32 %v1578, %v1645
        %v1678 = vadd.f32 %v1579, %v1646
        %v1679 = vadd.f32 %v1580, %v1647
        %v1680 = vadd.f32 %v1581, %v1648
        %v1681 = vadd.f32 %v1582, %v1649
        %v1682 = vadd.f32 %v1583, %v1650
        %v1683 = vadd.f32 %v1584, %v1651
        %v1684 = vadd.f32 %v1585, %v1652
        %v1685 = vadd.f32 %v1586, %v1653
        %v1686 = vld [vmem:[%s1587 + $0x1] sm:$0xff]
        %v1687 = vld [vmem:[%s1587 + $0x9] sm:$0xff]
        %v1688 = vld [vmem:[%s1587 + $0x11] sm:$0xff]
        %v1689 = vld [vmem:[%s1587 + $0x19] sm:$0xff]
        %v1690 = vld [vmem:[%s1587 + $0x21] sm:$0xff]
        %v1691 = vld [vmem:[%s1587 + $0x29] sm:$0xff]
        %v1692 = vld [vmem:[%s1587 + $0x31] sm:$0xff]
        %v1693 = vld [vmem:[%s1587 + $0x39] sm:$0xff]
        %v1694 = vld [vmem:[%s1587 + $0x41] sm:$0xff]
        %v1695 = vld [vmem:[%s1587 + $0x49] sm:$0xff]
        %v1696 = vld [vmem:[%s1587 + $0x51] sm:$0xff]
        %v1697 = vld [vmem:[%s1587 + $0x59] sm:$0xff]
        %v1698 = vld [vmem:[%s1587 + $0x61] sm:$0xff]
        %v1699 = vld [vmem:[%s1587 + $0x69] sm:$0xff]
        %v1700 = vld [vmem:[%s1587 + $0x71] sm:$0xff]
        %v1701 = vld [vmem:[%s1587 + $0x79] sm:$0xff]
        %v1702 = vld [vmem:[%s1587 + $0x89] sm:$0xff]
        %v1703 = vld [vmem:[%s1587 + $0x91] sm:$0xff]
        %v1704 = vld [vmem:[%s1587 + $0x99] sm:$0xff]
        %v1705 = vld [vmem:[%s1587 + $0xa1] sm:$0xff]
        %v1706 = vld [vmem:[%s1587 + $0xa9] sm:$0xff]
        %v1707 = vld [vmem:[%s1587 + $0xb1] sm:$0xff]
        %v1708 = vld [vmem:[%s1587 + $0xb9] sm:$0xff]
        %v1709 = vld [vmem:[%s1587 + $0xc1] sm:$0xff]
        %v1710 = vld [vmem:[%s1587 + $0xc9] sm:$0xff]
        %v1711 = vld [vmem:[%s1587 + $0xd1] sm:$0xff]
        %v1712 = vld [vmem:[%s1587 + $0xd9] sm:$0xff]
        %v1713 = vld [vmem:[%s1587 + $0xe1] sm:$0xff]
        %v1714 = vld [vmem:[%s1587 + $0xe9] sm:$0xff]
        %v1715 = vld [vmem:[%s1587 + $0xf1] sm:$0xff]
        %v1716 = vld [vmem:[%s1587 + $0xf9] sm:$0xff]
        %v1717 = vld [vmem:[%s1587 + $0x101] sm:$0xff]
        %v1718 = vld [vmem:[#allocation9 + $0x7] sm:$0x1]
        %v1719 = vperm.slane %v1718, 0
        %v1720 = vmul.f32 %v1686, %v1719
        %v1721 = vmul.f32 %v1687, %v1719
        %v1722 = vmul.f32 %v1688, %v1719
        %v1723 = vmul.f32 %v1689, %v1719
        %v1724 = vmul.f32 %v1690, %v1719
        %v1725 = vmul.f32 %v1691, %v1719
        %v1726 = vmul.f32 %v1692, %v1719
        %v1727 = vmul.f32 %v1693, %v1719
        %v1728 = vmul.f32 %v1694, %v1719
        %v1729 = vmul.f32 %v1695, %v1719
        %v1730 = vmul.f32 %v1696, %v1719
        %v1731 = vmul.f32 %v1697, %v1719
        %v1732 = vmul.f32 %v1698, %v1719
        %v1733 = vmul.f32 %v1699, %v1719
        %v1734 = vmul.f32 %v1700, %v1719
        %v1735 = vmul.f32 %v1701, %v1719
        %v1736 = vmul.f32 %v1702, %v1719
        %v1737 = vmul.f32 %v1703, %v1719
        %v1738 = vmul.f32 %v1704, %v1719
        %v1739 = vmul.f32 %v1705, %v1719
        %v1740 = vmul.f32 %v1706, %v1719
        %v1741 = vmul.f32 %v1707, %v1719
        %v1742 = vmul.f32 %v1708, %v1719
        %v1743 = vmul.f32 %v1709, %v1719
        %v1744 = vmul.f32 %v1710, %v1719
        %v1745 = vmul.f32 %v1711, %v1719
        %v1746 = vmul.f32 %v1712, %v1719
        %v1747 = vmul.f32 %v1713, %v1719
        %v1748 = vmul.f32 %v1714, %v1719
        %v1749 = vmul.f32 %v1715, %v1719
        %v1750 = vmul.f32 %v1716, %v1719
        %v1751 = vmul.f32 %v1717, %v1719
        %v1752 = vadd.f32 %v1654, %v1720
        %v1753 = vadd.f32 %v1655, %v1721
        %v1754 = vadd.f32 %v1656, %v1722
        %v1755 = vadd.f32 %v1657, %v1723
        %v1756 = vadd.f32 %v1658, %v1724
        %v1757 = vadd.f32 %v1659, %v1725
        %v1758 = vadd.f32 %v1660, %v1726
        %v1759 = vadd.f32 %v1661, %v1727
        %v1760 = vadd.f32 %v1662, %v1728
        %v1761 = vadd.f32 %v1663, %v1729
        %v1762 = vadd.f32 %v1664, %v1730
        %v1763 = vadd.f32 %v1665, %v1731
        %v1764 = vadd.f32 %v1666, %v1732
        %v1765 = vadd.f32 %v1667, %v1733
        %v1766 = vadd.f32 %v1668, %v1734
        %v1767 = vadd.f32 %v1669, %v1735
        %v1768 = vadd.f32 %v1670, %v1736
        %v1769 = vadd.f32 %v1671, %v1737
        %v1770 = vadd.f32 %v1672, %v1738
        %v1771 = vadd.f32 %v1673, %v1739
        %v1772 = vadd.f32 %v1674, %v1740
        %v1773 = vadd.f32 %v1675, %v1741
        %v1774 = vadd.f32 %v1676, %v1742
        %v1775 = vadd.f32 %v1677, %v1743
        %v1776 = vadd.f32 %v1678, %v1744
        %v1777 = vadd.f32 %v1679, %v1745
        %v1778 = vadd.f32 %v1680, %v1746
        %v1779 = vadd.f32 %v1681, %v1747
        %v1780 = vadd.f32 %v1682, %v1748
        %v1781 = vadd.f32 %v1683, %v1749
        %v1782 = vadd.f32 %v1684, %v1750
        %v1783 = vadd.f32 %v1685, %v1751
        %v1784 = vld [vmem:[%s1587 + $0x2] sm:$0xff]
        %v1785 = vld [vmem:[%s1587 + $0xa] sm:$0xff]
        %v1786 = vld [vmem:[%s1587 + $0x12] sm:$0xff]
        %v1787 = vld [vmem:[%s1587 + $0x1a] sm:$0xff]
        %v1788 = vld [vmem:[%s1587 + $0x22] sm:$0xff]
        %v1789 = vld [vmem:[%s1587 + $0x2a] sm:$0xff]
        %v1790 = vld [vmem:[%s1587 + $0x32] sm:$0xff]
        %v1791 = vld [vmem:[%s1587 + $0x3a] sm:$0xff]
        %v1792 = vld [vmem:[%s1587 + $0x42] sm:$0xff]
        %v1793 = vld [vmem:[%s1587 + $0x4a] sm:$0xff]
        %v1794 = vld [vmem:[%s1587 + $0x52] sm:$0xff]
        %v1795 = vld [vmem:[%s1587 + $0x5a] sm:$0xff]
        %v1796 = vld [vmem:[%s1587 + $0x62] sm:$0xff]
        %v1797 = vld [vmem:[%s1587 + $0x6a] sm:$0xff]
        %v1798 = vld [vmem:[%s1587 + $0x72] sm:$0xff]
        %v1799 = vld [vmem:[%s1587 + $0x7a] sm:$0xff]
        %v1800 = vld [vmem:[%s1587 + $0x8a] sm:$0xff]
        %v1801 = vld [vmem:[%s1587 + $0x92] sm:$0xff]
        %v1802 = vld [vmem:[%s1587 + $0x9a] sm:$0xff]
        %v1803 = vld [vmem:[%s1587 + $0xa2] sm:$0xff]
        %v1804 = vld [vmem:[%s1587 + $0xaa] sm:$0xff]
        %v1805 = vld [vmem:[%s1587 + $0xb2] sm:$0xff]
        %v1806 = vld [vmem:[%s1587 + $0xba] sm:$0xff]
        %v1807 = vld [vmem:[%s1587 + $0xc2] sm:$0xff]
        %v1808 = vld [vmem:[%s1587 + $0xca] sm:$0xff]
        %v1809 = vld [vmem:[%s1587 + $0xd2] sm:$0xff]
        %v1810 = vld [vmem:[%s1587 + $0xda] sm:$0xff]
        %v1811 = vld [vmem:[%s1587 + $0xe2] sm:$0xff]
        %v1812 = vld [vmem:[%s1587 + $0xea] sm:$0xff]
        %v1813 = vld [vmem:[%s1587 + $0xf2] sm:$0xff]
        %v1814 = vld [vmem:[%s1587 + $0xfa] sm:$0xff]
        %v1815 = vld [vmem:[%s1587 + $0x102] sm:$0xff]
        %v1816 = vld [vmem:[#allocation9 + $0x8] sm:$0x1]
        %v1817 = vperm.slane %v1816, 0
        %v1818 = vmul.f32 %v1784, %v1817
        %v1819 = vmul.f32 %v1785, %v1817
        %v1820 = vmul.f32 %v1786, %v1817
        %v1821 = vmul.f32 %v1787, %v1817
        %v1822 = vmul.f32 %v1788, %v1817
        %v1823 = vmul.f32 %v1789, %v1817
        %v1824 = vmul.f32 %v1790, %v1817
        %v1825 = vmul.f32 %v1791, %v1817
        %v1826 = vmul.f32 %v1792, %v1817
        %v1827 = vmul.f32 %v1793, %v1817
        %v1828 = vmul.f32 %v1794, %v1817
        %v1829 = vmul.f32 %v1795, %v1817
        %v1830 = vmul.f32 %v1796, %v1817
        %v1831 = vmul.f32 %v1797, %v1817
        %v1832 = vmul.f32 %v1798, %v1817
        %v1833 = vmul.f32 %v1799, %v1817
        %v1834 = vmul.f32 %v1800, %v1817
        %v1835 = vmul.f32 %v1801, %v1817
        %v1836 = vmul.f32 %v1802, %v1817
        %v1837 = vmul.f32 %v1803, %v1817
        %v1838 = vmul.f32 %v1804, %v1817
        %v1839 = vmul.f32 %v1805, %v1817
        %v1840 = vmul.f32 %v1806, %v1817
        %v1841 = vmul.f32 %v1807, %v1817
        %v1842 = vmul.f32 %v1808, %v1817
        %v1843 = vmul.f32 %v1809, %v1817
        %v1844 = vmul.f32 %v1810, %v1817
        %v1845 = vmul.f32 %v1811, %v1817
        %v1846 = vmul.f32 %v1812, %v1817
        %v1847 = vmul.f32 %v1813, %v1817
        %v1848 = vmul.f32 %v1814, %v1817
        %v1849 = vmul.f32 %v1815, %v1817
        %v1850 = vadd.f32 %v1752, %v1818
        %v1851 = vadd.f32 %v1753, %v1819
        %v1852 = vadd.f32 %v1754, %v1820
        %v1853 = vadd.f32 %v1755, %v1821
        %v1854 = vadd.f32 %v1756, %v1822
        %v1855 = vadd.f32 %v1757, %v1823
        %v1856 = vadd.f32 %v1758, %v1824
        %v1857 = vadd.f32 %v1759, %v1825
        %v1858 = vadd.f32 %v1760, %v1826
        %v1859 = vadd.f32 %v1761, %v1827
        %v1860 = vadd.f32 %v1762, %v1828
        %v1861 = vadd.f32 %v1763, %v1829
        %v1862 = vadd.f32 %v1764, %v1830
        %v1863 = vadd.f32 %v1765, %v1831
        %v1864 = vadd.f32 %v1766, %v1832
        %v1865 = vadd.f32 %v1767, %v1833
        %v1866 = vadd.f32 %v1768, %v1834
        %v1867 = vadd.f32 %v1769, %v1835
        %v1868 = vadd.f32 %v1770, %v1836
        %v1869 = vadd.f32 %v1771, %v1837
        %v1870 = vadd.f32 %v1772, %v1838
        %v1871 = vadd.f32 %v1773, %v1839
        %v1872 = vadd.f32 %v1774, %v1840
        %v1873 = vadd.f32 %v1775, %v1841
        %v1874 = vadd.f32 %v1776, %v1842
        %v1875 = vadd.f32 %v1777, %v1843
        %v1876 = vadd.f32 %v1778, %v1844
        %v1877 = vadd.f32 %v1779, %v1845
        %v1878 = vadd.f32 %v1780, %v1846
        %v1879 = vadd.f32 %v1781, %v1847
        %v1880 = vadd.f32 %v1782, %v1848
        %v1881 = vadd.f32 %v1783, %v1849
        %v1882 = vpack.c.bf16 %v1851, %v1850
        %v1883 = vpack.c.bf16 %v1853, %v1852
        %v1884 = vpack.c.bf16 %v1855, %v1854
        %v1885 = vpack.c.bf16 %v1857, %v1856
        %v1886 = vpack.c.bf16 %v1859, %v1858
        %v1887 = vpack.c.bf16 %v1861, %v1860
        %v1888 = vpack.c.bf16 %v1863, %v1862
        %v1889 = vpack.c.bf16 %v1865, %v1864
        %v1890 = vpack.c.bf16 %v1867, %v1866
        %v1891 = vpack.c.bf16 %v1869, %v1868
        %v1892 = vpack.c.bf16 %v1871, %v1870
        %v1893 = vpack.c.bf16 %v1873, %v1872
        %v1894 = vpack.c.bf16 %v1875, %v1874
        %v1895 = vpack.c.bf16 %v1877, %v1876
        %v1896 = vpack.c.bf16 %v1879, %v1878
        %v1897 = vpack.c.bf16 %v1881, %v1880
        %v1898 = vld [vmem:[#allocation11] sm:$0xf]
        %v1899 = vld [vmem:[#allocation11 + $0x4] sm:$0xf]
        %v1900 = vld [vmem:[#allocation11 + $0x8] sm:$0xf]
        %v1901 = vld [vmem:[#allocation11 + $0xc] sm:$0xf]
        %v1902 = vld [vmem:[#allocation11 + $0x10] sm:$0xf]
        %v1903 = vld [vmem:[#allocation11 + $0x14] sm:$0xf]
        %v1904 = vld [vmem:[#allocation11 + $0x18] sm:$0xf]
        %v1905 = vld [vmem:[#allocation11 + $0x1c] sm:$0xf]
        %v1906 = vld [vmem:[#allocation11 + $0x20] sm:$0xf]
        %v1907 = vld [vmem:[#allocation11 + $0x24] sm:$0xf]
        %v1908 = vld [vmem:[#allocation11 + $0x28] sm:$0xf]
        %v1909 = vld [vmem:[#allocation11 + $0x2c] sm:$0xf]
        %v1910 = vld [vmem:[#allocation11 + $0x30] sm:$0xf]
        %v1911 = vld [vmem:[#allocation11 + $0x34] sm:$0xf]
        %v1912 = vld [vmem:[#allocation11 + $0x38] sm:$0xf]
        %v1913 = vld [vmem:[#allocation11 + $0x3c] sm:$0xf]
        %v1915 = vperm.slane %v998, 0
        %v1933 = vunpack.c.l.b16 %v1898
        %v1934 = vunpack.c.l.b16 %v1899
        %v1935 = vunpack.c.l.b16 %v1900
        %v1936 = vunpack.c.l.b16 %v1901
        %v1937 = vunpack.c.l.b16 %v1902
        %v1938 = vunpack.c.l.b16 %v1903
        %v1939 = vunpack.c.l.b16 %v1904
        %v1940 = vunpack.c.l.b16 %v1905
        %v1941 = vunpack.c.l.b16 %v1906
        %v1942 = vunpack.c.l.b16 %v1907
        %v1943 = vunpack.c.l.b16 %v1908
        %v1944 = vunpack.c.l.b16 %v1909
        %v1945 = vunpack.c.l.b16 %v1910
        %v1946 = vunpack.c.l.b16 %v1911
        %v1947 = vunpack.c.l.b16 %v1912
        %v1948 = vunpack.c.l.b16 %v1913
        %v1949 = vpack.c.b16 %v1934, %v1933
        %v1950 = vpack.c.b16 %v1936, %v1935
        %v1951 = vpack.c.b16 %v1938, %v1937
        %v1952 = vpack.c.b16 %v1940, %v1939
        %v1953 = vpack.c.b16 %v1942, %v1941
        %v1954 = vpack.c.b16 %v1944, %v1943
        %v1955 = vpack.c.b16 %v1946, %v1945
        %v1956 = vpack.c.b16 %v1948, %v1947
        %1965 = vmatpush.bf16.msra.mxu0 %v1956
        %1966 = vmatpush.bf16.msra.mxu0 %v1955
        %1967 = vmatpush.bf16.msra.mxu0 %v1954
        %1968 = vmatpush.bf16.msra.mxu0 %v1953
        %1969 = vmatpush.bf16.msra.mxu0 %v1952
        %1970 = vmatpush.bf16.msra.mxu0 %v1951
        %1971 = vmatpush.bf16.msra.mxu0 %v1950
        %1972 = vmatpush.bf16.msra.mxu0 %v1949
        %1973 = vmatmul.bf16.gmra.mxu0 %v1882
        %v1974 = vpop.f32.mrf.mxu0
        %v1975 = vadd.f32 %v1915, %v1974
        %v1976 = vpop.f32.mrf.mxu0
        %v1977 = vadd.f32 %v1915, %v1976
        %1978 = vmatmul.bf16.gmra.mxu0 %v1883
        %v1979 = vpop.f32.mrf.mxu0
        %v1980 = vadd.f32 %v1915, %v1979
        %v1981 = vpop.f32.mrf.mxu0
        %v1982 = vadd.f32 %v1915, %v1981
        %1983 = vmatmul.bf16.gmra.mxu0 %v1884
        %v1984 = vpop.f32.mrf.mxu0
        %v1985 = vadd.f32 %v1915, %v1984
        %v1986 = vpop.f32.mrf.mxu0
        %v1987 = vadd.f32 %v1915, %v1986
        %1988 = vmatmul.bf16.gmra.mxu0 %v1885
        %v1989 = vpop.f32.mrf.mxu0
        %v1990 = vadd.f32 %v1915, %v1989
        %v1991 = vpop.f32.mrf.mxu0
        %v1992 = vadd.f32 %v1915, %v1991
        %1993 = vmatmul.bf16.gmra.mxu0 %v1886
        %v1994 = vpop.f32.mrf.mxu0
        %v1995 = vadd.f32 %v1915, %v1994
        %v1996 = vpop.f32.mrf.mxu0
        %v1997 = vadd.f32 %v1915, %v1996
        %1998 = vmatmul.bf16.gmra.mxu0 %v1887
        %v1999 = vpop.f32.mrf.mxu0
        %v2000 = vadd.f32 %v1915, %v1999
        %v2001 = vpop.f32.mrf.mxu0
        %v2002 = vadd.f32 %v1915, %v2001
        %2003 = vmatmul.bf16.gmra.mxu0 %v1888
        %v2004 = vpop.f32.mrf.mxu0
        %v2005 = vadd.f32 %v1915, %v2004
        %v2006 = vpop.f32.mrf.mxu0
        %v2007 = vadd.f32 %v1915, %v2006
        %2008 = vmatmul.bf16.gmra.mxu0 %v1889
        %v2009 = vpop.f32.mrf.mxu0
        %v2010 = vadd.f32 %v1915, %v2009
        %v2011 = vpop.f32.mrf.mxu0
        %v2012 = vadd.f32 %v1915, %v2011
        %2013 = vmatmul.bf16.gmra.mxu0 %v1890
        %v2014 = vpop.f32.mrf.mxu0
        %v2015 = vadd.f32 %v1915, %v2014
        %v2016 = vpop.f32.mrf.mxu0
        %v2017 = vadd.f32 %v1915, %v2016
        %2018 = vmatmul.bf16.gmra.mxu0 %v1891
        %v2019 = vpop.f32.mrf.mxu0
        %v2020 = vadd.f32 %v1915, %v2019
        %v2021 = vpop.f32.mrf.mxu0
        %v2022 = vadd.f32 %v1915, %v2021
        %2023 = vmatmul.bf16.gmra.mxu0 %v1892
        %v2024 = vpop.f32.mrf.mxu0
        %v2025 = vadd.f32 %v1915, %v2024
        %v2026 = vpop.f32.mrf.mxu0
        %v2027 = vadd.f32 %v1915, %v2026
        %2028 = vmatmul.bf16.gmra.mxu0 %v1893
        %v2029 = vpop.f32.mrf.mxu0
        %v2030 = vadd.f32 %v1915, %v2029
        %v2031 = vpop.f32.mrf.mxu0
        %v2032 = vadd.f32 %v1915, %v2031
        %2033 = vmatmul.bf16.gmra.mxu0 %v1894
        %v2034 = vpop.f32.mrf.mxu0
        %v2035 = vadd.f32 %v1915, %v2034
        %v2036 = vpop.f32.mrf.mxu0
        %v2037 = vadd.f32 %v1915, %v2036
        %2038 = vmatmul.bf16.gmra.mxu0 %v1895
        %v2039 = vpop.f32.mrf.mxu0
        %v2040 = vadd.f32 %v1915, %v2039
        %v2041 = vpop.f32.mrf.mxu0
        %v2042 = vadd.f32 %v1915, %v2041
        %2043 = vmatmul.bf16.gmra.mxu0 %v1896
        %v2044 = vpop.f32.mrf.mxu0
        %v2045 = vadd.f32 %v1915, %v2044
        %v2046 = vpop.f32.mrf.mxu0
        %v2047 = vadd.f32 %v1915, %v2046
        %2048 = vmatmul.bf16.gmra.mxu0 %v1897
        %v2049 = vpop.f32.mrf.mxu0
        %v2050 = vadd.f32 %v1915, %v2049
        %v2051 = vpop.f32.mrf.mxu0
        %v2052 = vadd.f32 %v1915, %v2051
        %2053 = vdwg.mxu0
        %v2054 = vsub.f32 0.0, %v1975
        %v2055 = vsub.f32 0.0, %v1977
        %v2056 = vsub.f32 0.0, %v1980
        %v2057 = vsub.f32 0.0, %v1982
        %v2058 = vsub.f32 0.0, %v1985
        %v2059 = vsub.f32 0.0, %v1987
        %v2060 = vsub.f32 0.0, %v1990
        %v2061 = vsub.f32 0.0, %v1992
        %v2062 = vsub.f32 0.0, %v1995
        %v2063 = vsub.f32 0.0, %v1997
        %v2064 = vsub.f32 0.0, %v2000
        %v2065 = vsub.f32 0.0, %v2002
        %v2066 = vsub.f32 0.0, %v2005
        %v2067 = vsub.f32 0.0, %v2007
        %v2068 = vsub.f32 0.0, %v2010
        %v2069 = vsub.f32 0.0, %v2012
        %v2070 = vsub.f32 0.0, %v2015
        %v2071 = vsub.f32 0.0, %v2017
        %v2072 = vsub.f32 0.0, %v2020
        %v2073 = vsub.f32 0.0, %v2022
        %v2074 = vsub.f32 0.0, %v2025
        %v2075 = vsub.f32 0.0, %v2027
        %v2076 = vsub.f32 0.0, %v2030
        %v2077 = vsub.f32 0.0, %v2032
        %v2078 = vsub.f32 0.0, %v2035
        %v2079 = vsub.f32 0.0, %v2037
        %v2080 = vsub.f32 0.0, %v2040
        %v2081 = vsub.f32 0.0, %v2042
        %v2082 = vsub.f32 0.0, %v2045
        %v2083 = vsub.f32 0.0, %v2047
        %v2084 = vsub.f32 0.0, %v2050
        %v2085 = vsub.f32 0.0, %v2052
        %v2086 = vmul.f32 %v2054, 1.442695
        %v2087 = vpow.pop %v2086
        %v2088 = vmul.f32 %v2055, 1.442695
        %v2089 = vpow.pop %v2088
        %v2090 = vmul.f32 %v2056, 1.442695
        %v2091 = vpow.pop %v2090
        %v2092 = vmul.f32 %v2057, 1.442695
        %v2093 = vpow.pop %v2092
        %v2094 = vmul.f32 %v2058, 1.442695
        %v2095 = vpow.pop %v2094
        %v2096 = vmul.f32 %v2059, 1.442695
        %v2097 = vpow.pop %v2096
        %v2098 = vmul.f32 %v2060, 1.442695
        %v2099 = vpow.pop %v2098
        %v2100 = vmul.f32 %v2061, 1.442695
        %v2101 = vpow.pop %v2100
        %v2102 = vmul.f32 %v2062, 1.442695
        %v2103 = vpow.pop %v2102
        %v2104 = vmul.f32 %v2063, 1.442695
        %v2105 = vpow.pop %v2104
        %v2106 = vmul.f32 %v2064, 1.442695
        %v2107 = vpow.pop %v2106
        %v2108 = vmul.f32 %v2065, 1.442695
        %v2109 = vpow.pop %v2108
        %v2110 = vmul.f32 %v2066, 1.442695
        %v2111 = vpow.pop %v2110
        %v2112 = vmul.f32 %v2067, 1.442695
        %v2113 = vpow.pop %v2112
        %v2114 = vmul.f32 %v2068, 1.442695
        %v2115 = vpow.pop %v2114
        %v2116 = vmul.f32 %v2069, 1.442695
        %v2117 = vpow.pop %v2116
        %v2118 = vmul.f32 %v2070, 1.442695
        %v2119 = vpow.pop %v2118
        %v2120 = vmul.f32 %v2071, 1.442695
        %v2121 = vpow.pop %v2120
        %v2122 = vmul.f32 %v2072, 1.442695
        %v2123 = vpow.pop %v2122
        %v2124 = vmul.f32 %v2073, 1.442695
        %v2125 = vpow.pop %v2124
        %v2126 = vmul.f32 %v2074, 1.442695
        %v2127 = vpow.pop %v2126
        %v2128 = vmul.f32 %v2075, 1.442695
        %v2129 = vpow.pop %v2128
        %v2130 = vmul.f32 %v2076, 1.442695
        %v2131 = vpow.pop %v2130
        %v2132 = vmul.f32 %v2077, 1.442695
        %v2133 = vpow.pop %v2132
        %v2134 = vmul.f32 %v2078, 1.442695
        %v2135 = vpow.pop %v2134
        %v2136 = vmul.f32 %v2079, 1.442695
        %v2137 = vpow.pop %v2136
        %v2138 = vmul.f32 %v2080, 1.442695
        %v2139 = vpow.pop %v2138
        %v2140 = vmul.f32 %v2081, 1.442695
        %v2141 = vpow.pop %v2140
        %v2142 = vmul.f32 %v2082, 1.442695
        %v2143 = vpow.pop %v2142
        %v2144 = vmul.f32 %v2083, 1.442695
        %v2145 = vpow.pop %v2144
        %v2146 = vmul.f32 %v2084, 1.442695
        %v2147 = vpow.pop %v2146
        %v2148 = vmul.f32 %v2085, 1.442695
        %v2149 = vpow.pop %v2148
        %v2150 = vadd.f32 %v2087, 1.0
        %v2151 = vadd.f32 %v2089, 1.0
        %v2152 = vadd.f32 %v2091, 1.0
        %v2153 = vadd.f32 %v2093, 1.0
        %v2154 = vadd.f32 %v2095, 1.0
        %v2155 = vadd.f32 %v2097, 1.0
        %v2156 = vadd.f32 %v2099, 1.0
        %v2157 = vadd.f32 %v2101, 1.0
        %v2158 = vadd.f32 %v2103, 1.0
        %v2159 = vadd.f32 %v2105, 1.0
        %v2160 = vadd.f32 %v2107, 1.0
        %v2161 = vadd.f32 %v2109, 1.0
        %v2162 = vadd.f32 %v2111, 1.0
        %v2163 = vadd.f32 %v2113, 1.0
        %v2164 = vadd.f32 %v2115, 1.0
        %v2165 = vadd.f32 %v2117, 1.0
        %v2166 = vadd.f32 %v2119, 1.0
        %v2167 = vadd.f32 %v2121, 1.0
        %v2168 = vadd.f32 %v2123, 1.0
        %v2169 = vadd.f32 %v2125, 1.0
        %v2170 = vadd.f32 %v2127, 1.0
        %v2171 = vadd.f32 %v2129, 1.0
        %v2172 = vadd.f32 %v2131, 1.0
        %v2173 = vadd.f32 %v2133, 1.0
        %v2174 = vadd.f32 %v2135, 1.0
        %v2175 = vadd.f32 %v2137, 1.0
        %v2176 = vadd.f32 %v2139, 1.0
        %v2177 = vadd.f32 %v2141, 1.0
        %v2178 = vadd.f32 %v2143, 1.0
        %v2179 = vadd.f32 %v2145, 1.0
        %v2180 = vadd.f32 %v2147, 1.0
        %v2181 = vadd.f32 %v2149, 1.0
        %v2182 = vrcp.pop %v2150
        %v2183 = vrcp.pop %v2151
        %v2184 = vrcp.pop %v2152
        %v2185 = vrcp.pop %v2153
        %v2186 = vrcp.pop %v2154
        %v2187 = vrcp.pop %v2155
        %v2188 = vrcp.pop %v2156
        %v2189 = vrcp.pop %v2157
        %v2190 = vrcp.pop %v2158
        %v2191 = vrcp.pop %v2159
        %v2192 = vrcp.pop %v2160
        %v2193 = vrcp.pop %v2161
        %v2194 = vrcp.pop %v2162
        %v2195 = vrcp.pop %v2163
        %v2196 = vrcp.pop %v2164
        %v2197 = vrcp.pop %v2165
        %v2198 = vrcp.pop %v2166
        %v2199 = vrcp.pop %v2167
        %v2200 = vrcp.pop %v2168
        %v2201 = vrcp.pop %v2169
        %v2202 = vrcp.pop %v2170
        %v2203 = vrcp.pop %v2171
        %v2204 = vrcp.pop %v2172
        %v2205 = vrcp.pop %v2173
        %v2206 = vrcp.pop %v2174
        %v2207 = vrcp.pop %v2175
        %v2208 = vrcp.pop %v2176
        %v2209 = vrcp.pop %v2177
        %v2210 = vrcp.pop %v2178
        %v2211 = vrcp.pop %v2179
        %v2212 = vrcp.pop %v2180
        %v2213 = vrcp.pop %v2181
        %v2214 = vmul.f32 %v1975, %v2182
        %v2215 = vmul.f32 %v1977, %v2183
        %v2216 = vmul.f32 %v1980, %v2184
        %v2217 = vmul.f32 %v1982, %v2185
        %v2218 = vmul.f32 %v1985, %v2186
        %v2219 = vmul.f32 %v1987, %v2187
        %v2220 = vmul.f32 %v1990, %v2188
        %v2221 = vmul.f32 %v1992, %v2189
        %v2222 = vmul.f32 %v1995, %v2190
        %v2223 = vmul.f32 %v1997, %v2191
        %v2224 = vmul.f32 %v2000, %v2192
        %v2225 = vmul.f32 %v2002, %v2193
        %v2226 = vmul.f32 %v2005, %v2194
        %v2227 = vmul.f32 %v2007, %v2195
        %v2228 = vmul.f32 %v2010, %v2196
        %v2229 = vmul.f32 %v2012, %v2197
        %v2230 = vmul.f32 %v2015, %v2198
        %v2231 = vmul.f32 %v2017, %v2199
        %v2232 = vmul.f32 %v2020, %v2200
        %v2233 = vmul.f32 %v2022, %v2201
        %v2234 = vmul.f32 %v2025, %v2202
        %v2235 = vmul.f32 %v2027, %v2203
        %v2236 = vmul.f32 %v2030, %v2204
        %v2237 = vmul.f32 %v2032, %v2205
        %v2238 = vmul.f32 %v2035, %v2206
        %v2239 = vmul.f32 %v2037, %v2207
        %v2240 = vmul.f32 %v2040, %v2208
        %v2241 = vmul.f32 %v2042, %v2209
        %v2242 = vmul.f32 %v2045, %v2210
        %v2243 = vmul.f32 %v2047, %v2211
        %v2244 = vmul.f32 %v2050, %v2212
        %v2245 = vmul.f32 %v2052, %v2213
        %v2246 = vpack.c.bf16 %v2214, %v2214
        %v2247 = vpack.c.bf16 %v2215, %v2215
        %v2248 = vpack.c.bf16 %v2216, %v2216
        %v2249 = vpack.c.bf16 %v2217, %v2217
        %v2250 = vpack.c.bf16 %v2218, %v2218
        %v2251 = vpack.c.bf16 %v2219, %v2219
        %v2252 = vpack.c.bf16 %v2220, %v2220
        %v2253 = vpack.c.bf16 %v2221, %v2221
        %v2254 = vpack.c.bf16 %v2222, %v2222
        %v2255 = vpack.c.bf16 %v2223, %v2223
        %v2256 = vpack.c.bf16 %v2224, %v2224
        %v2257 = vpack.c.bf16 %v2225, %v2225
        %v2258 = vpack.c.bf16 %v2226, %v2226
        %v2259 = vpack.c.bf16 %v2227, %v2227
        %v2260 = vpack.c.bf16 %v2228, %v2228
        %v2261 = vpack.c.bf16 %v2229, %v2229
        %v2262 = vpack.c.bf16 %v2230, %v2230
        %v2263 = vpack.c.bf16 %v2231, %v2231
        %v2264 = vpack.c.bf16 %v2232, %v2232
        %v2265 = vpack.c.bf16 %v2233, %v2233
        %v2266 = vpack.c.bf16 %v2234, %v2234
        %v2267 = vpack.c.bf16 %v2235, %v2235
        %v2268 = vpack.c.bf16 %v2236, %v2236
        %v2269 = vpack.c.bf16 %v2237, %v2237
        %v2270 = vpack.c.bf16 %v2238, %v2238
        %v2271 = vpack.c.bf16 %v2239, %v2239
        %v2272 = vpack.c.bf16 %v2240, %v2240
        %v2273 = vpack.c.bf16 %v2241, %v2241
        %v2274 = vpack.c.bf16 %v2242, %v2242
        %v2275 = vpack.c.bf16 %v2243, %v2243
        %v2276 = vpack.c.bf16 %v2244, %v2244
        %v2277 = vpack.c.bf16 %v2245, %v2245
        %2278 = vst [vmem:[%s436] sm:$0xf] %v2246
        %2279 = vst [vmem:[%s436 + $0x4] sm:$0xf] %v2247
        %2280 = vst [vmem:[%s436 + $0x8] sm:$0xf] %v2248
        %2281 = vst [vmem:[%s436 + $0xc] sm:$0xf] %v2249
        %2282 = vst [vmem:[%s436 + $0x10] sm:$0xf] %v2250
        %2283 = vst [vmem:[%s436 + $0x14] sm:$0xf] %v2251
        %2284 = vst [vmem:[%s436 + $0x18] sm:$0xf] %v2252
        %2285 = vst [vmem:[%s436 + $0x1c] sm:$0xf] %v2253
        %2286 = vst [vmem:[%s436 + $0x20] sm:$0xf] %v2254
        %2287 = vst [vmem:[%s436 + $0x24] sm:$0xf] %v2255
        %2288 = vst [vmem:[%s436 + $0x28] sm:$0xf] %v2256
        %2289 = vst [vmem:[%s436 + $0x2c] sm:$0xf] %v2257
        %2290 = vst [vmem:[%s436 + $0x30] sm:$0xf] %v2258
        %2291 = vst [vmem:[%s436 + $0x34] sm:$0xf] %v2259
        %2292 = vst [vmem:[%s436 + $0x38] sm:$0xf] %v2260
        %2293 = vst [vmem:[%s436 + $0x3c] sm:$0xf] %v2261
        %2294 = vst [vmem:[%s436 + $0x40] sm:$0xf] %v2262
        %2295 = vst [vmem:[%s436 + $0x44] sm:$0xf] %v2263
        %2296 = vst [vmem:[%s436 + $0x48] sm:$0xf] %v2264
        %2297 = vst [vmem:[%s436 + $0x4c] sm:$0xf] %v2265
        %2298 = vst [vmem:[%s436 + $0x50] sm:$0xf] %v2266
        %2299 = vst [vmem:[%s436 + $0x54] sm:$0xf] %v2267
        %2300 = vst [vmem:[%s436 + $0x58] sm:$0xf] %v2268
        %2301 = vst [vmem:[%s436 + $0x5c] sm:$0xf] %v2269
        %2302 = vst [vmem:[%s436 + $0x60] sm:$0xf] %v2270
        %2303 = vst [vmem:[%s436 + $0x64] sm:$0xf] %v2271
        %2304 = vst [vmem:[%s436 + $0x68] sm:$0xf] %v2272
        %2305 = vst [vmem:[%s436 + $0x6c] sm:$0xf] %v2273
        %2306 = vst [vmem:[%s436 + $0x70] sm:$0xf] %v2274
        %2307 = vst [vmem:[%s436 + $0x74] sm:$0xf] %v2275
        %2308 = vst [vmem:[%s436 + $0x78] sm:$0xf] %v2276
        %2309 = vst [vmem:[%s436 + $0x7c] sm:$0xf] %v2277
        %v2310 = vld [vmem:[%s1587] sm:$0xff]
        %v2311 = vld [vmem:[%s1587 + $0x8] sm:$0xff]
        %v2312 = vld [vmem:[%s1587 + $0x10] sm:$0xff]
        %v2313 = vld [vmem:[%s1587 + $0x18] sm:$0xff]
        %v2314 = vld [vmem:[%s1587 + $0x20] sm:$0xff]
        %v2315 = vld [vmem:[%s1587 + $0x28] sm:$0xff]
        %v2316 = vld [vmem:[%s1587 + $0x30] sm:$0xff]
        %v2317 = vld [vmem:[%s1587 + $0x38] sm:$0xff]
        %v2318 = vld [vmem:[%s1587 + $0x40] sm:$0xff]
        %v2319 = vld [vmem:[%s1587 + $0x48] sm:$0xff]
        %v2320 = vld [vmem:[%s1587 + $0x50] sm:$0xff]
        %v2321 = vld [vmem:[%s1587 + $0x58] sm:$0xff]
        %v2322 = vld [vmem:[%s1587 + $0x60] sm:$0xff]
        %v2323 = vld [vmem:[%s1587 + $0x68] sm:$0xff]
        %v2324 = vld [vmem:[%s1587 + $0x70] sm:$0xff]
        %v2325 = vld [vmem:[%s1587 + $0x78] sm:$0xff]
        %v2326 = vld [vmem:[%s1587 + $0x88] sm:$0xff]
        %v2327 = vld [vmem:[%s1587 + $0x90] sm:$0xff]
        %v2328 = vld [vmem:[%s1587 + $0x98] sm:$0xff]
        %v2329 = vld [vmem:[%s1587 + $0xa0] sm:$0xff]
        %v2330 = vld [vmem:[%s1587 + $0xa8] sm:$0xff]
        %v2331 = vld [vmem:[%s1587 + $0xb0] sm:$0xff]
        %v2332 = vld [vmem:[%s1587 + $0xb8] sm:$0xff]
        %v2333 = vld [vmem:[%s1587 + $0xc0] sm:$0xff]
        %v2334 = vld [vmem:[%s1587 + $0xc8] sm:$0xff]
        %v2335 = vld [vmem:[%s1587 + $0xd0] sm:$0xff]
        %v2336 = vld [vmem:[%s1587 + $0xd8] sm:$0xff]
        %v2337 = vld [vmem:[%s1587 + $0xe0] sm:$0xff]
        %v2338 = vld [vmem:[%s1587 + $0xe8] sm:$0xff]
        %v2339 = vld [vmem:[%s1587 + $0xf0] sm:$0xff]
        %v2340 = vld [vmem:[%s1587 + $0xf8] sm:$0xff]
        %v2341 = vld [vmem:[%s1587 + $0x100] sm:$0xff]
        %v2342 = vld [vmem:[#allocation9] sm:$0x1]
        %v2343 = vperm.slane %v2342, 0
        %v2344 = vmul.f32 %v2310, %v2343
        %v2345 = vmul.f32 %v2311, %v2343
        %v2346 = vmul.f32 %v2312, %v2343
        %v2347 = vmul.f32 %v2313, %v2343
        %v2348 = vmul.f32 %v2314, %v2343
        %v2349 = vmul.f32 %v2315, %v2343
        %v2350 = vmul.f32 %v2316, %v2343
        %v2351 = vmul.f32 %v2317, %v2343
        %v2352 = vmul.f32 %v2318, %v2343
        %v2353 = vmul.f32 %v2319, %v2343
        %v2354 = vmul.f32 %v2320, %v2343
        %v2355 = vmul.f32 %v2321, %v2343
        %v2356 = vmul.f32 %v2322, %v2343
        %v2357 = vmul.f32 %v2323, %v2343
        %v2358 = vmul.f32 %v2324, %v2343
        %v2359 = vmul.f32 %v2325, %v2343
        %v2360 = vmul.f32 %v2326, %v2343
        %v2361 = vmul.f32 %v2327, %v2343
        %v2362 = vmul.f32 %v2328, %v2343
        %v2363 = vmul.f32 %v2329, %v2343
        %v2364 = vmul.f32 %v2330, %v2343
        %v2365 = vmul.f32 %v2331, %v2343
        %v2366 = vmul.f32 %v2332, %v2343
        %v2367 = vmul.f32 %v2333, %v2343
        %v2368 = vmul.f32 %v2334, %v2343
        %v2369 = vmul.f32 %v2335, %v2343
        %v2370 = vmul.f32 %v2336, %v2343
        %v2371 = vmul.f32 %v2337, %v2343
        %v2372 = vmul.f32 %v2338, %v2343
        %v2373 = vmul.f32 %v2339, %v2343
        %v2374 = vmul.f32 %v2340, %v2343
        %v2375 = vmul.f32 %v2341, %v2343
        %v2376 = vadd.f32 %v2344, 0.0
        %v2377 = vadd.f32 %v2345, 0.0
        %v2378 = vadd.f32 %v2346, 0.0
        %v2379 = vadd.f32 %v2347, 0.0
        %v2380 = vadd.f32 %v2348, 0.0
        %v2381 = vadd.f32 %v2349, 0.0
        %v2382 = vadd.f32 %v2350, 0.0
        %v2383 = vadd.f32 %v2351, 0.0
        %v2384 = vadd.f32 %v2352, 0.0
        %v2385 = vadd.f32 %v2353, 0.0
        %v2386 = vadd.f32 %v2354, 0.0
        %v2387 = vadd.f32 %v2355, 0.0
        %v2388 = vadd.f32 %v2356, 0.0
        %v2389 = vadd.f32 %v2357, 0.0
        %v2390 = vadd.f32 %v2358, 0.0
        %v2391 = vadd.f32 %v2359, 0.0
        %v2392 = vadd.f32 %v2360, 0.0
        %v2393 = vadd.f32 %v2361, 0.0
        %v2394 = vadd.f32 %v2362, 0.0
        %v2395 = vadd.f32 %v2363, 0.0
        %v2396 = vadd.f32 %v2364, 0.0
        %v2397 = vadd.f32 %v2365, 0.0
        %v2398 = vadd.f32 %v2366, 0.0
        %v2399 = vadd.f32 %v2367, 0.0
        %v2400 = vadd.f32 %v2368, 0.0
        %v2401 = vadd.f32 %v2369, 0.0
        %v2402 = vadd.f32 %v2370, 0.0
        %v2403 = vadd.f32 %v2371, 0.0
        %v2404 = vadd.f32 %v2372, 0.0
        %v2405 = vadd.f32 %v2373, 0.0
        %v2406 = vadd.f32 %v2374, 0.0
        %v2407 = vadd.f32 %v2375, 0.0
        %v2408 = vld [vmem:[%s1587 + $0x1] sm:$0xff]
        %v2409 = vld [vmem:[%s1587 + $0x9] sm:$0xff]
        %v2410 = vld [vmem:[%s1587 + $0x11] sm:$0xff]
        %v2411 = vld [vmem:[%s1587 + $0x19] sm:$0xff]
        %v2412 = vld [vmem:[%s1587 + $0x21] sm:$0xff]
        %v2413 = vld [vmem:[%s1587 + $0x29] sm:$0xff]
        %v2414 = vld [vmem:[%s1587 + $0x31] sm:$0xff]
        %v2415 = vld [vmem:[%s1587 + $0x39] sm:$0xff]
        %v2416 = vld [vmem:[%s1587 + $0x41] sm:$0xff]
        %v2417 = vld [vmem:[%s1587 + $0x49] sm:$0xff]
        %v2418 = vld [vmem:[%s1587 + $0x51] sm:$0xff]
        %v2419 = vld [vmem:[%s1587 + $0x59] sm:$0xff]
        %v2420 = vld [vmem:[%s1587 + $0x61] sm:$0xff]
        %v2421 = vld [vmem:[%s1587 + $0x69] sm:$0xff]
        %v2422 = vld [vmem:[%s1587 + $0x71] sm:$0xff]
        %v2423 = vld [vmem:[%s1587 + $0x79] sm:$0xff]
        %v2424 = vld [vmem:[%s1587 + $0x89] sm:$0xff]
        %v2425 = vld [vmem:[%s1587 + $0x91] sm:$0xff]
        %v2426 = vld [vmem:[%s1587 + $0x99] sm:$0xff]
        %v2427 = vld [vmem:[%s1587 + $0xa1] sm:$0xff]
        %v2428 = vld [vmem:[%s1587 + $0xa9] sm:$0xff]
        %v2429 = vld [vmem:[%s1587 + $0xb1] sm:$0xff]
        %v2430 = vld [vmem:[%s1587 + $0xb9] sm:$0xff]
        %v2431 = vld [vmem:[%s1587 + $0xc1] sm:$0xff]
        %v2432 = vld [vmem:[%s1587 + $0xc9] sm:$0xff]
        %v2433 = vld [vmem:[%s1587 + $0xd1] sm:$0xff]
        %v2434 = vld [vmem:[%s1587 + $0xd9] sm:$0xff]
        %v2435 = vld [vmem:[%s1587 + $0xe1] sm:$0xff]
        %v2436 = vld [vmem:[%s1587 + $0xe9] sm:$0xff]
        %v2437 = vld [vmem:[%s1587 + $0xf1] sm:$0xff]
        %v2438 = vld [vmem:[%s1587 + $0xf9] sm:$0xff]
        %v2439 = vld [vmem:[%s1587 + $0x101] sm:$0xff]
        %v2440 = vld [vmem:[#allocation9 + $0x1] sm:$0x1]
        %v2441 = vperm.slane %v2440, 0
        %v2442 = vmul.f32 %v2408, %v2441
        %v2443 = vmul.f32 %v2409, %v2441
        %v2444 = vmul.f32 %v2410, %v2441
        %v2445 = vmul.f32 %v2411, %v2441
        %v2446 = vmul.f32 %v2412, %v2441
        %v2447 = vmul.f32 %v2413, %v2441
        %v2448 = vmul.f32 %v2414, %v2441
        %v2449 = vmul.f32 %v2415, %v2441
        %v2450 = vmul.f32 %v2416, %v2441
        %v2451 = vmul.f32 %v2417, %v2441
        %v2452 = vmul.f32 %v2418, %v2441
        %v2453 = vmul.f32 %v2419, %v2441
        %v2454 = vmul.f32 %v2420, %v2441
        %v2455 = vmul.f32 %v2421, %v2441
        %v2456 = vmul.f32 %v2422, %v2441
        %v2457 = vmul.f32 %v2423, %v2441
        %v2458 = vmul.f32 %v2424, %v2441
        %v2459 = vmul.f32 %v2425, %v2441
        %v2460 = vmul.f32 %v2426, %v2441
        %v2461 = vmul.f32 %v2427, %v2441
        %v2462 = vmul.f32 %v2428, %v2441
        %v2463 = vmul.f32 %v2429, %v2441
        %v2464 = vmul.f32 %v2430, %v2441
        %v2465 = vmul.f32 %v2431, %v2441
        %v2466 = vmul.f32 %v2432, %v2441
        %v2467 = vmul.f32 %v2433, %v2441
        %v2468 = vmul.f32 %v2434, %v2441
        %v2469 = vmul.f32 %v2435, %v2441
        %v2470 = vmul.f32 %v2436, %v2441
        %v2471 = vmul.f32 %v2437, %v2441
        %v2472 = vmul.f32 %v2438, %v2441
        %v2473 = vmul.f32 %v2439, %v2441
        %v2474 = vadd.f32 %v2376, %v2442
        %v2475 = vadd.f32 %v2377, %v2443
        %v2476 = vadd.f32 %v2378, %v2444
        %v2477 = vadd.f32 %v2379, %v2445
        %v2478 = vadd.f32 %v2380, %v2446
        %v2479 = vadd.f32 %v2381, %v2447
        %v2480 = vadd.f32 %v2382, %v2448
        %v2481 = vadd.f32 %v2383, %v2449
        %v2482 = vadd.f32 %v2384, %v2450
        %v2483 = vadd.f32 %v2385, %v2451
        %v2484 = vadd.f32 %v2386, %v2452
        %v2485 = vadd.f32 %v2387, %v2453
        %v2486 = vadd.f32 %v2388, %v2454
        %v2487 = vadd.f32 %v2389, %v2455
        %v2488 = vadd.f32 %v2390, %v2456
        %v2489 = vadd.f32 %v2391, %v2457
        %v2490 = vadd.f32 %v2392, %v2458
        %v2491 = vadd.f32 %v2393, %v2459
        %v2492 = vadd.f32 %v2394, %v2460
        %v2493 = vadd.f32 %v2395, %v2461
        %v2494 = vadd.f32 %v2396, %v2462
        %v2495 = vadd.f32 %v2397, %v2463
        %v2496 = vadd.f32 %v2398, %v2464
        %v2497 = vadd.f32 %v2399, %v2465
        %v2498 = vadd.f32 %v2400, %v2466
        %v2499 = vadd.f32 %v2401, %v2467
        %v2500 = vadd.f32 %v2402, %v2468
        %v2501 = vadd.f32 %v2403, %v2469
        %v2502 = vadd.f32 %v2404, %v2470
        %v2503 = vadd.f32 %v2405, %v2471
        %v2504 = vadd.f32 %v2406, %v2472
        %v2505 = vadd.f32 %v2407, %v2473
        %v2506 = vld [vmem:[%s1587 + $0x2] sm:$0xff]
        %v2507 = vld [vmem:[%s1587 + $0xa] sm:$0xff]
        %v2508 = vld [vmem:[%s1587 + $0x12] sm:$0xff]
        %v2509 = vld [vmem:[%s1587 + $0x1a] sm:$0xff]
        %v2510 = vld [vmem:[%s1587 + $0x22] sm:$0xff]
        %v2511 = vld [vmem:[%s1587 + $0x2a] sm:$0xff]
        %v2512 = vld [vmem:[%s1587 + $0x32] sm:$0xff]
        %v2513 = vld [vmem:[%s1587 + $0x3a] sm:$0xff]
        %v2514 = vld [vmem:[%s1587 + $0x42] sm:$0xff]
        %v2515 = vld [vmem:[%s1587 + $0x4a] sm:$0xff]
        %v2516 = vld [vmem:[%s1587 + $0x52] sm:$0xff]
        %v2517 = vld [vmem:[%s1587 + $0x5a] sm:$0xff]
        %v2518 = vld [vmem:[%s1587 + $0x62] sm:$0xff]
        %v2519 = vld [vmem:[%s1587 + $0x6a] sm:$0xff]
        %v2520 = vld [vmem:[%s1587 + $0x72] sm:$0xff]
        %v2521 = vld [vmem:[%s1587 + $0x7a] sm:$0xff]
        %v2522 = vld [vmem:[%s1587 + $0x8a] sm:$0xff]
        %v2523 = vld [vmem:[%s1587 + $0x92] sm:$0xff]
        %v2524 = vld [vmem:[%s1587 + $0x9a] sm:$0xff]
        %v2525 = vld [vmem:[%s1587 + $0xa2] sm:$0xff]
        %v2526 = vld [vmem:[%s1587 + $0xaa] sm:$0xff]
        %v2527 = vld [vmem:[%s1587 + $0xb2] sm:$0xff]
        %v2528 = vld [vmem:[%s1587 + $0xba] sm:$0xff]
        %v2529 = vld [vmem:[%s1587 + $0xc2] sm:$0xff]
        %v2530 = vld [vmem:[%s1587 + $0xca] sm:$0xff]
        %v2531 = vld [vmem:[%s1587 + $0xd2] sm:$0xff]
        %v2532 = vld [vmem:[%s1587 + $0xda] sm:$0xff]
        %v2533 = vld [vmem:[%s1587 + $0xe2] sm:$0xff]
        %v2534 = vld [vmem:[%s1587 + $0xea] sm:$0xff]
        %v2535 = vld [vmem:[%s1587 + $0xf2] sm:$0xff]
        %v2536 = vld [vmem:[%s1587 + $0xfa] sm:$0xff]
        %v2537 = vld [vmem:[%s1587 + $0x102] sm:$0xff]
        %v2538 = vld [vmem:[#allocation9 + $0x2] sm:$0x1]
        %v2539 = vperm.slane %v2538, 0
        %v2540 = vmul.f32 %v2506, %v2539
        %v2541 = vmul.f32 %v2507, %v2539
        %v2542 = vmul.f32 %v2508, %v2539
        %v2543 = vmul.f32 %v2509, %v2539
        %v2544 = vmul.f32 %v2510, %v2539
        %v2545 = vmul.f32 %v2511, %v2539
        %v2546 = vmul.f32 %v2512, %v2539
        %v2547 = vmul.f32 %v2513, %v2539
        %v2548 = vmul.f32 %v2514, %v2539
        %v2549 = vmul.f32 %v2515, %v2539
        %v2550 = vmul.f32 %v2516, %v2539
        %v2551 = vmul.f32 %v2517, %v2539
        %v2552 = vmul.f32 %v2518, %v2539
        %v2553 = vmul.f32 %v2519, %v2539
        %v2554 = vmul.f32 %v2520, %v2539
        %v2555 = vmul.f32 %v2521, %v2539
        %v2556 = vmul.f32 %v2522, %v2539
        %v2557 = vmul.f32 %v2523, %v2539
        %v2558 = vmul.f32 %v2524, %v2539
        %v2559 = vmul.f32 %v2525, %v2539
        %v2560 = vmul.f32 %v2526, %v2539
        %v2561 = vmul.f32 %v2527, %v2539
        %v2562 = vmul.f32 %v2528, %v2539
        %v2563 = vmul.f32 %v2529, %v2539
        %v2564 = vmul.f32 %v2530, %v2539
        %v2565 = vmul.f32 %v2531, %v2539
        %v2566 = vmul.f32 %v2532, %v2539
        %v2567 = vmul.f32 %v2533, %v2539
        %v2568 = vmul.f32 %v2534, %v2539
        %v2569 = vmul.f32 %v2535, %v2539
        %v2570 = vmul.f32 %v2536, %v2539
        %v2571 = vmul.f32 %v2537, %v2539
        %v2572 = vadd.f32 %v2474, %v2540
        %v2573 = vadd.f32 %v2475, %v2541
        %v2574 = vadd.f32 %v2476, %v2542
        %v2575 = vadd.f32 %v2477, %v2543
        %v2576 = vadd.f32 %v2478, %v2544
        %v2577 = vadd.f32 %v2479, %v2545
        %v2578 = vadd.f32 %v2480, %v2546
        %v2579 = vadd.f32 %v2481, %v2547
        %v2580 = vadd.f32 %v2482, %v2548
        %v2581 = vadd.f32 %v2483, %v2549
        %v2582 = vadd.f32 %v2484, %v2550
        %v2583 = vadd.f32 %v2485, %v2551
        %v2584 = vadd.f32 %v2486, %v2552
        %v2585 = vadd.f32 %v2487, %v2553
        %v2586 = vadd.f32 %v2488, %v2554
        %v2587 = vadd.f32 %v2489, %v2555
        %v2588 = vadd.f32 %v2490, %v2556
        %v2589 = vadd.f32 %v2491, %v2557
        %v2590 = vadd.f32 %v2492, %v2558
        %v2591 = vadd.f32 %v2493, %v2559
        %v2592 = vadd.f32 %v2494, %v2560
        %v2593 = vadd.f32 %v2495, %v2561
        %v2594 = vadd.f32 %v2496, %v2562
        %v2595 = vadd.f32 %v2497, %v2563
        %v2596 = vadd.f32 %v2498, %v2564
        %v2597 = vadd.f32 %v2499, %v2565
        %v2598 = vadd.f32 %v2500, %v2566
        %v2599 = vadd.f32 %v2501, %v2567
        %v2600 = vadd.f32 %v2502, %v2568
        %v2601 = vadd.f32 %v2503, %v2569
        %v2602 = vadd.f32 %v2504, %v2570
        %v2603 = vadd.f32 %v2505, %v2571
        %s2604 = scalar_lea.vmem [#allocation2], 408
        %v2605 = vld [vmem:[%s2604] sm:$0xff]
        %v2606 = vld [vmem:[%s2604 + $0x8] sm:$0xff]
        %v2607 = vld [vmem:[%s2604 + $0x10] sm:$0xff]
        %v2608 = vld [vmem:[%s2604 + $0x18] sm:$0xff]
        %v2609 = vld [vmem:[%s2604 + $0x20] sm:$0xff]
        %v2610 = vld [vmem:[%s2604 + $0x28] sm:$0xff]
        %v2611 = vld [vmem:[%s2604 + $0x30] sm:$0xff]
        %v2612 = vld [vmem:[%s2604 + $0x38] sm:$0xff]
        %v2613 = vld [vmem:[%s2604 + $0x40] sm:$0xff]
        %v2614 = vld [vmem:[%s2604 + $0x48] sm:$0xff]
        %v2615 = vld [vmem:[%s2604 + $0x50] sm:$0xff]
        %v2616 = vld [vmem:[%s2604 + $0x58] sm:$0xff]
        %v2617 = vld [vmem:[%s2604 + $0x60] sm:$0xff]
        %v2618 = vld [vmem:[%s2604 + $0x68] sm:$0xff]
        %v2619 = vld [vmem:[%s2604 + $0x70] sm:$0xff]
        %v2620 = vld [vmem:[%s2604 + $0x78] sm:$0xff]
        %v2621 = vld [vmem:[%s2604 + $0x88] sm:$0xff]
        %v2622 = vld [vmem:[%s2604 + $0x90] sm:$0xff]
        %v2623 = vld [vmem:[%s2604 + $0x98] sm:$0xff]
        %v2624 = vld [vmem:[%s2604 + $0xa0] sm:$0xff]
        %v2625 = vld [vmem:[%s2604 + $0xa8] sm:$0xff]
        %v2626 = vld [vmem:[%s2604 + $0xb0] sm:$0xff]
        %v2627 = vld [vmem:[%s2604 + $0xb8] sm:$0xff]
        %v2628 = vld [vmem:[%s2604 + $0xc0] sm:$0xff]
        %v2629 = vld [vmem:[%s2604 + $0xc8] sm:$0xff]
        %v2630 = vld [vmem:[%s2604 + $0xd0] sm:$0xff]
        %v2631 = vld [vmem:[%s2604 + $0xd8] sm:$0xff]
        %v2632 = vld [vmem:[%s2604 + $0xe0] sm:$0xff]
        %v2633 = vld [vmem:[%s2604 + $0xe8] sm:$0xff]
        %v2634 = vld [vmem:[%s2604 + $0xf0] sm:$0xff]
        %v2635 = vld [vmem:[%s2604 + $0xf8] sm:$0xff]
        %v2636 = vld [vmem:[%s2604 + $0x100] sm:$0xff]
        %v2637 = vld [vmem:[#allocation9 + $0x3] sm:$0x1]
        %v2638 = vperm.slane %v2637, 0
        %v2639 = vmul.f32 %v2605, %v2638
        %v2640 = vmul.f32 %v2606, %v2638
        %v2641 = vmul.f32 %v2607, %v2638
        %v2642 = vmul.f32 %v2608, %v2638
        %v2643 = vmul.f32 %v2609, %v2638
        %v2644 = vmul.f32 %v2610, %v2638
        %v2645 = vmul.f32 %v2611, %v2638
        %v2646 = vmul.f32 %v2612, %v2638
        %v2647 = vmul.f32 %v2613, %v2638
        %v2648 = vmul.f32 %v2614, %v2638
        %v2649 = vmul.f32 %v2615, %v2638
        %v2650 = vmul.f32 %v2616, %v2638
        %v2651 = vmul.f32 %v2617, %v2638
        %v2652 = vmul.f32 %v2618, %v2638
        %v2653 = vmul.f32 %v2619, %v2638
        %v2654 = vmul.f32 %v2620, %v2638
        %v2655 = vmul.f32 %v2621, %v2638
        %v2656 = vmul.f32 %v2622, %v2638
        %v2657 = vmul.f32 %v2623, %v2638
        %v2658 = vmul.f32 %v2624, %v2638
        %v2659 = vmul.f32 %v2625, %v2638
        %v2660 = vmul.f32 %v2626, %v2638
        %v2661 = vmul.f32 %v2627, %v2638
        %v2662 = vmul.f32 %v2628, %v2638
        %v2663 = vmul.f32 %v2629, %v2638
        %v2664 = vmul.f32 %v2630, %v2638
        %v2665 = vmul.f32 %v2631, %v2638
        %v2666 = vmul.f32 %v2632, %v2638
        %v2667 = vmul.f32 %v2633, %v2638
        %v2668 = vmul.f32 %v2634, %v2638
        %v2669 = vmul.f32 %v2635, %v2638
        %v2670 = vmul.f32 %v2636, %v2638
        %v2671 = vadd.f32 %v2572, %v2639
        %v2672 = vadd.f32 %v2573, %v2640
        %v2673 = vadd.f32 %v2574, %v2641
        %v2674 = vadd.f32 %v2575, %v2642
        %v2675 = vadd.f32 %v2576, %v2643
        %v2676 = vadd.f32 %v2577, %v2644
        %v2677 = vadd.f32 %v2578, %v2645
        %v2678 = vadd.f32 %v2579, %v2646
        %v2679 = vadd.f32 %v2580, %v2647
        %v2680 = vadd.f32 %v2581, %v2648
        %v2681 = vadd.f32 %v2582, %v2649
        %v2682 = vadd.f32 %v2583, %v2650
        %v2683 = vadd.f32 %v2584, %v2651
        %v2684 = vadd.f32 %v2585, %v2652
        %v2685 = vadd.f32 %v2586, %v2653
        %v2686 = vadd.f32 %v2587, %v2654
        %v2687 = vadd.f32 %v2588, %v2655
        %v2688 = vadd.f32 %v2589, %v2656
        %v2689 = vadd.f32 %v2590, %v2657
        %v2690 = vadd.f32 %v2591, %v2658
        %v2691 = vadd.f32 %v2592, %v2659
        %v2692 = vadd.f32 %v2593, %v2660
        %v2693 = vadd.f32 %v2594, %v2661
        %v2694 = vadd.f32 %v2595, %v2662
        %v2695 = vadd.f32 %v2596, %v2663
        %v2696 = vadd.f32 %v2597, %v2664
        %v2697 = vadd.f32 %v2598, %v2665
        %v2698 = vadd.f32 %v2599, %v2666
        %v2699 = vadd.f32 %v2600, %v2667
        %v2700 = vadd.f32 %v2601, %v2668
        %v2701 = vadd.f32 %v2602, %v2669
        %v2702 = vadd.f32 %v2603, %v2670
        %v2703 = vld [vmem:[%s2604 + $0x1] sm:$0xff]
        %v2704 = vld [vmem:[%s2604 + $0x9] sm:$0xff]
        %v2705 = vld [vmem:[%s2604 + $0x11] sm:$0xff]
        %v2706 = vld [vmem:[%s2604 + $0x19] sm:$0xff]
        %v2707 = vld [vmem:[%s2604 + $0x21] sm:$0xff]
        %v2708 = vld [vmem:[%s2604 + $0x29] sm:$0xff]
        %v2709 = vld [vmem:[%s2604 + $0x31] sm:$0xff]
        %v2710 = vld [vmem:[%s2604 + $0x39] sm:$0xff]
        %v2711 = vld [vmem:[%s2604 + $0x41] sm:$0xff]
        %v2712 = vld [vmem:[%s2604 + $0x49] sm:$0xff]
        %v2713 = vld [vmem:[%s2604 + $0x51] sm:$0xff]
        %v2714 = vld [vmem:[%s2604 + $0x59] sm:$0xff]
        %v2715 = vld [vmem:[%s2604 + $0x61] sm:$0xff]
        %v2716 = vld [vmem:[%s2604 + $0x69] sm:$0xff]
        %v2717 = vld [vmem:[%s2604 + $0x71] sm:$0xff]
        %v2718 = vld [vmem:[%s2604 + $0x79] sm:$0xff]
        %v2719 = vld [vmem:[%s2604 + $0x89] sm:$0xff]
        %v2720 = vld [vmem:[%s2604 + $0x91] sm:$0xff]
        %v2721 = vld [vmem:[%s2604 + $0x99] sm:$0xff]
        %v2722 = vld [vmem:[%s2604 + $0xa1] sm:$0xff]
        %v2723 = vld [vmem:[%s2604 + $0xa9] sm:$0xff]
        %v2724 = vld [vmem:[%s2604 + $0xb1] sm:$0xff]
        %v2725 = vld [vmem:[%s2604 + $0xb9] sm:$0xff]
        %v2726 = vld [vmem:[%s2604 + $0xc1] sm:$0xff]
        %v2727 = vld [vmem:[%s2604 + $0xc9] sm:$0xff]
        %v2728 = vld [vmem:[%s2604 + $0xd1] sm:$0xff]
        %v2729 = vld [vmem:[%s2604 + $0xd9] sm:$0xff]
        %v2730 = vld [vmem:[%s2604 + $0xe1] sm:$0xff]
        %v2731 = vld [vmem:[%s2604 + $0xe9] sm:$0xff]
        %v2732 = vld [vmem:[%s2604 + $0xf1] sm:$0xff]
        %v2733 = vld [vmem:[%s2604 + $0xf9] sm:$0xff]
        %v2734 = vld [vmem:[%s2604 + $0x101] sm:$0xff]
        %v2735 = vld [vmem:[#allocation9 + $0x4] sm:$0x1]
        %v2736 = vperm.slane %v2735, 0
        %v2737 = vmul.f32 %v2703, %v2736
        %v2738 = vmul.f32 %v2704, %v2736
        %v2739 = vmul.f32 %v2705, %v2736
        %v2740 = vmul.f32 %v2706, %v2736
        %v2741 = vmul.f32 %v2707, %v2736
        %v2742 = vmul.f32 %v2708, %v2736
        %v2743 = vmul.f32 %v2709, %v2736
        %v2744 = vmul.f32 %v2710, %v2736
        %v2745 = vmul.f32 %v2711, %v2736
        %v2746 = vmul.f32 %v2712, %v2736
        %v2747 = vmul.f32 %v2713, %v2736
        %v2748 = vmul.f32 %v2714, %v2736
        %v2749 = vmul.f32 %v2715, %v2736
        %v2750 = vmul.f32 %v2716, %v2736
        %v2751 = vmul.f32 %v2717, %v2736
        %v2752 = vmul.f32 %v2718, %v2736
        %v2753 = vmul.f32 %v2719, %v2736
        %v2754 = vmul.f32 %v2720, %v2736
        %v2755 = vmul.f32 %v2721, %v2736
        %v2756 = vmul.f32 %v2722, %v2736
        %v2757 = vmul.f32 %v2723, %v2736
        %v2758 = vmul.f32 %v2724, %v2736
        %v2759 = vmul.f32 %v2725, %v2736
        %v2760 = vmul.f32 %v2726, %v2736
        %v2761 = vmul.f32 %v2727, %v2736
        %v2762 = vmul.f32 %v2728, %v2736
        %v2763 = vmul.f32 %v2729, %v2736
        %v2764 = vmul.f32 %v2730, %v2736
        %v2765 = vmul.f32 %v2731, %v2736
        %v2766 = vmul.f32 %v2732, %v2736
        %v2767 = vmul.f32 %v2733, %v2736
        %v2768 = vmul.f32 %v2734, %v2736
        %v2769 = vadd.f32 %v2671, %v2737
        %v2770 = vadd.f32 %v2672, %v2738
        %v2771 = vadd.f32 %v2673, %v2739
        %v2772 = vadd.f32 %v2674, %v2740
        %v2773 = vadd.f32 %v2675, %v2741
        %v2774 = vadd.f32 %v2676, %v2742
        %v2775 = vadd.f32 %v2677, %v2743
        %v2776 = vadd.f32 %v2678, %v2744
        %v2777 = vadd.f32 %v2679, %v2745
        %v2778 = vadd.f32 %v2680, %v2746
        %v2779 = vadd.f32 %v2681, %v2747
        %v2780 = vadd.f32 %v2682, %v2748
        %v2781 = vadd.f32 %v2683, %v2749
        %v2782 = vadd.f32 %v2684, %v2750
        %v2783 = vadd.f32 %v2685, %v2751
        %v2784 = vadd.f32 %v2686, %v2752
        %v2785 = vadd.f32 %v2687, %v2753
        %v2786 = vadd.f32 %v2688, %v2754
        %v2787 = vadd.f32 %v2689, %v2755
        %v2788 = vadd.f32 %v2690, %v2756
        %v2789 = vadd.f32 %v2691, %v2757
        %v2790 = vadd.f32 %v2692, %v2758
        %v2791 = vadd.f32 %v2693, %v2759
        %v2792 = vadd.f32 %v2694, %v2760
        %v2793 = vadd.f32 %v2695, %v2761
        %v2794 = vadd.f32 %v2696, %v2762
        %v2795 = vadd.f32 %v2697, %v2763
        %v2796 = vadd.f32 %v2698, %v2764
        %v2797 = vadd.f32 %v2699, %v2765
        %v2798 = vadd.f32 %v2700, %v2766
        %v2799 = vadd.f32 %v2701, %v2767
        %v2800 = vadd.f32 %v2702, %v2768
        %v2801 = vld [vmem:[%s2604 + $0x2] sm:$0xff]
        %v2802 = vld [vmem:[%s2604 + $0xa] sm:$0xff]
        %v2803 = vld [vmem:[%s2604 + $0x12] sm:$0xff]
        %v2804 = vld [vmem:[%s2604 + $0x1a] sm:$0xff]
        %v2805 = vld [vmem:[%s2604 + $0x22] sm:$0xff]
        %v2806 = vld [vmem:[%s2604 + $0x2a] sm:$0xff]
        %v2807 = vld [vmem:[%s2604 + $0x32] sm:$0xff]
        %v2808 = vld [vmem:[%s2604 + $0x3a] sm:$0xff]
        %v2809 = vld [vmem:[%s2604 + $0x42] sm:$0xff]
        %v2810 = vld [vmem:[%s2604 + $0x4a] sm:$0xff]
        %v2811 = vld [vmem:[%s2604 + $0x52] sm:$0xff]
        %v2812 = vld [vmem:[%s2604 + $0x5a] sm:$0xff]
        %v2813 = vld [vmem:[%s2604 + $0x62] sm:$0xff]
        %v2814 = vld [vmem:[%s2604 + $0x6a] sm:$0xff]
        %v2815 = vld [vmem:[%s2604 + $0x72] sm:$0xff]
        %v2816 = vld [vmem:[%s2604 + $0x7a] sm:$0xff]
        %v2817 = vld [vmem:[%s2604 + $0x8a] sm:$0xff]
        %v2818 = vld [vmem:[%s2604 + $0x92] sm:$0xff]
        %v2819 = vld [vmem:[%s2604 + $0x9a] sm:$0xff]
        %v2820 = vld [vmem:[%s2604 + $0xa2] sm:$0xff]
        %v2821 = vld [vmem:[%s2604 + $0xaa] sm:$0xff]
        %v2822 = vld [vmem:[%s2604 + $0xb2] sm:$0xff]
        %v2823 = vld [vmem:[%s2604 + $0xba] sm:$0xff]
        %v2824 = vld [vmem:[%s2604 + $0xc2] sm:$0xff]
        %v2825 = vld [vmem:[%s2604 + $0xca] sm:$0xff]
        %v2826 = vld [vmem:[%s2604 + $0xd2] sm:$0xff]
        %v2827 = vld [vmem:[%s2604 + $0xda] sm:$0xff]
        %v2828 = vld [vmem:[%s2604 + $0xe2] sm:$0xff]
        %v2829 = vld [vmem:[%s2604 + $0xea] sm:$0xff]
        %v2830 = vld [vmem:[%s2604 + $0xf2] sm:$0xff]
        %v2831 = vld [vmem:[%s2604 + $0xfa] sm:$0xff]
        %v2832 = vld [vmem:[%s2604 + $0x102] sm:$0xff]
        %v2833 = vld [vmem:[#allocation9 + $0x5] sm:$0x1]
        %v2834 = vperm.slane %v2833, 0
        %v2835 = vmul.f32 %v2801, %v2834
        %v2836 = vmul.f32 %v2802, %v2834
        %v2837 = vmul.f32 %v2803, %v2834
        %v2838 = vmul.f32 %v2804, %v2834
        %v2839 = vmul.f32 %v2805, %v2834
        %v2840 = vmul.f32 %v2806, %v2834
        %v2841 = vmul.f32 %v2807, %v2834
        %v2842 = vmul.f32 %v2808, %v2834
        %v2843 = vmul.f32 %v2809, %v2834
        %v2844 = vmul.f32 %v2810, %v2834
        %v2845 = vmul.f32 %v2811, %v2834
        %v2846 = vmul.f32 %v2812, %v2834
        %v2847 = vmul.f32 %v2813, %v2834
        %v2848 = vmul.f32 %v2814, %v2834
        %v2849 = vmul.f32 %v2815, %v2834
        %v2850 = vmul.f32 %v2816, %v2834
        %v2851 = vmul.f32 %v2817, %v2834
        %v2852 = vmul.f32 %v2818, %v2834
        %v2853 = vmul.f32 %v2819, %v2834
        %v2854 = vmul.f32 %v2820, %v2834
        %v2855 = vmul.f32 %v2821, %v2834
        %v2856 = vmul.f32 %v2822, %v2834
        %v2857 = vmul.f32 %v2823, %v2834
        %v2858 = vmul.f32 %v2824, %v2834
        %v2859 = vmul.f32 %v2825, %v2834
        %v2860 = vmul.f32 %v2826, %v2834
        %v2861 = vmul.f32 %v2827, %v2834
        %v2862 = vmul.f32 %v2828, %v2834
        %v2863 = vmul.f32 %v2829, %v2834
        %v2864 = vmul.f32 %v2830, %v2834
        %v2865 = vmul.f32 %v2831, %v2834
        %v2866 = vmul.f32 %v2832, %v2834
        %v2867 = vadd.f32 %v2769, %v2835
        %v2868 = vadd.f32 %v2770, %v2836
        %v2869 = vadd.f32 %v2771, %v2837
        %v2870 = vadd.f32 %v2772, %v2838
        %v2871 = vadd.f32 %v2773, %v2839
        %v2872 = vadd.f32 %v2774, %v2840
        %v2873 = vadd.f32 %v2775, %v2841
        %v2874 = vadd.f32 %v2776, %v2842
        %v2875 = vadd.f32 %v2777, %v2843
        %v2876 = vadd.f32 %v2778, %v2844
        %v2877 = vadd.f32 %v2779, %v2845
        %v2878 = vadd.f32 %v2780, %v2846
        %v2879 = vadd.f32 %v2781, %v2847
        %v2880 = vadd.f32 %v2782, %v2848
        %v2881 = vadd.f32 %v2783, %v2849
        %v2882 = vadd.f32 %v2784, %v2850
        %v2883 = vadd.f32 %v2785, %v2851
        %v2884 = vadd.f32 %v2786, %v2852
        %v2885 = vadd.f32 %v2787, %v2853
        %v2886 = vadd.f32 %v2788, %v2854
        %v2887 = vadd.f32 %v2789, %v2855
        %v2888 = vadd.f32 %v2790, %v2856
        %v2889 = vadd.f32 %v2791, %v2857
        %v2890 = vadd.f32 %v2792, %v2858
        %v2891 = vadd.f32 %v2793, %v2859
        %v2892 = vadd.f32 %v2794, %v2860
        %v2893 = vadd.f32 %v2795, %v2861
        %v2894 = vadd.f32 %v2796, %v2862
        %v2895 = vadd.f32 %v2797, %v2863
        %v2896 = vadd.f32 %v2798, %v2864
        %v2897 = vadd.f32 %v2799, %v2865
        %v2898 = vadd.f32 %v2800, %v2866
        %s2899 = scalar_lea.vmem [#allocation2], 544
        %v2900 = vld [vmem:[%s2899] sm:$0xff]
        %v2901 = vld [vmem:[%s2899 + $0x8] sm:$0xff]
        %v2902 = vld [vmem:[%s2899 + $0x10] sm:$0xff]
        %v2903 = vld [vmem:[%s2899 + $0x18] sm:$0xff]
        %v2904 = vld [vmem:[%s2899 + $0x20] sm:$0xff]
        %v2905 = vld [vmem:[%s2899 + $0x28] sm:$0xff]
        %v2906 = vld [vmem:[%s2899 + $0x30] sm:$0xff]
        %v2907 = vld [vmem:[%s2899 + $0x38] sm:$0xff]
        %v2908 = vld [vmem:[%s2899 + $0x40] sm:$0xff]
        %v2909 = vld [vmem:[%s2899 + $0x48] sm:$0xff]
        %v2910 = vld [vmem:[%s2899 + $0x50] sm:$0xff]
        %v2911 = vld [vmem:[%s2899 + $0x58] sm:$0xff]
        %v2912 = vld [vmem:[%s2899 + $0x60] sm:$0xff]
        %v2913 = vld [vmem:[%s2899 + $0x68] sm:$0xff]
        %v2914 = vld [vmem:[%s2899 + $0x70] sm:$0xff]
        %v2915 = vld [vmem:[%s2899 + $0x78] sm:$0xff]
        %v2916 = vld [vmem:[%s2899 + $0x88] sm:$0xff]
        %v2917 = vld [vmem:[%s2899 + $0x90] sm:$0xff]
        %v2918 = vld [vmem:[%s2899 + $0x98] sm:$0xff]
        %v2919 = vld [vmem:[%s2899 + $0xa0] sm:$0xff]
        %v2920 = vld [vmem:[%s2899 + $0xa8] sm:$0xff]
        %v2921 = vld [vmem:[%s2899 + $0xb0] sm:$0xff]
        %v2922 = vld [vmem:[%s2899 + $0xb8] sm:$0xff]
        %v2923 = vld [vmem:[%s2899 + $0xc0] sm:$0xff]
        %v2924 = vld [vmem:[%s2899 + $0xc8] sm:$0xff]
        %v2925 = vld [vmem:[%s2899 + $0xd0] sm:$0xff]
        %v2926 = vld [vmem:[%s2899 + $0xd8] sm:$0xff]
        %v2927 = vld [vmem:[%s2899 + $0xe0] sm:$0xff]
        %v2928 = vld [vmem:[%s2899 + $0xe8] sm:$0xff]
        %v2929 = vld [vmem:[%s2899 + $0xf0] sm:$0xff]
        %v2930 = vld [vmem:[%s2899 + $0xf8] sm:$0xff]
        %v2931 = vld [vmem:[%s2899 + $0x100] sm:$0xff]
        %v2932 = vld [vmem:[#allocation9 + $0x6] sm:$0x1]
        %v2933 = vperm.slane %v2932, 0
        %v2934 = vmul.f32 %v2900, %v2933
        %v2935 = vmul.f32 %v2901, %v2933
        %v2936 = vmul.f32 %v2902, %v2933
        %v2937 = vmul.f32 %v2903, %v2933
        %v2938 = vmul.f32 %v2904, %v2933
        %v2939 = vmul.f32 %v2905, %v2933
        %v2940 = vmul.f32 %v2906, %v2933
        %v2941 = vmul.f32 %v2907, %v2933
        %v2942 = vmul.f32 %v2908, %v2933
        %v2943 = vmul.f32 %v2909, %v2933
        %v2944 = vmul.f32 %v2910, %v2933
        %v2945 = vmul.f32 %v2911, %v2933
        %v2946 = vmul.f32 %v2912, %v2933
        %v2947 = vmul.f32 %v2913, %v2933
        %v2948 = vmul.f32 %v2914, %v2933
        %v2949 = vmul.f32 %v2915, %v2933
        %v2950 = vmul.f32 %v2916, %v2933
        %v2951 = vmul.f32 %v2917, %v2933
        %v2952 = vmul.f32 %v2918, %v2933
        %v2953 = vmul.f32 %v2919, %v2933
        %v2954 = vmul.f32 %v2920, %v2933
        %v2955 = vmul.f32 %v2921, %v2933
        %v2956 = vmul.f32 %v2922, %v2933
        %v2957 = vmul.f32 %v2923, %v2933
        %v2958 = vmul.f32 %v2924, %v2933
        %v2959 = vmul.f32 %v2925, %v2933
        %v2960 = vmul.f32 %v2926, %v2933
        %v2961 = vmul.f32 %v2927, %v2933
        %v2962 = vmul.f32 %v2928, %v2933
        %v2963 = vmul.f32 %v2929, %v2933
        %v2964 = vmul.f32 %v2930, %v2933
        %v2965 = vmul.f32 %v2931, %v2933
        %v2966 = vadd.f32 %v2867, %v2934
        %v2967 = vadd.f32 %v2868, %v2935
        %v2968 = vadd.f32 %v2869, %v2936
        %v2969 = vadd.f32 %v2870, %v2937
        %v2970 = vadd.f32 %v2871, %v2938
        %v2971 = vadd.f32 %v2872, %v2939
        %v2972 = vadd.f32 %v2873, %v2940
        %v2973 = vadd.f32 %v2874, %v2941
        %v2974 = vadd.f32 %v2875, %v2942
        %v2975 = vadd.f32 %v2876, %v2943
        %v2976 = vadd.f32 %v2877, %v2944
        %v2977 = vadd.f32 %v2878, %v2945
        %v2978 = vadd.f32 %v2879, %v2946
        %v2979 = vadd.f32 %v2880, %v2947
        %v2980 = vadd.f32 %v2881, %v2948
        %v2981 = vadd.f32 %v2882, %v2949
        %v2982 = vadd.f32 %v2883, %v2950
        %v2983 = vadd.f32 %v2884, %v2951
        %v2984 = vadd.f32 %v2885, %v2952
        %v2985 = vadd.f32 %v2886, %v2953
        %v2986 = vadd.f32 %v2887, %v2954
        %v2987 = vadd.f32 %v2888, %v2955
        %v2988 = vadd.f32 %v2889, %v2956
        %v2989 = vadd.f32 %v2890, %v2957
        %v2990 = vadd.f32 %v2891, %v2958
        %v2991 = vadd.f32 %v2892, %v2959
        %v2992 = vadd.f32 %v2893, %v2960
        %v2993 = vadd.f32 %v2894, %v2961
        %v2994 = vadd.f32 %v2895, %v2962
        %v2995 = vadd.f32 %v2896, %v2963
        %v2996 = vadd.f32 %v2897, %v2964
        %v2997 = vadd.f32 %v2898, %v2965
        %v2998 = vld [vmem:[%s2899 + $0x1] sm:$0xff]
        %v2999 = vld [vmem:[%s2899 + $0x9] sm:$0xff]
        %v3000 = vld [vmem:[%s2899 + $0x11] sm:$0xff]
        %v3001 = vld [vmem:[%s2899 + $0x19] sm:$0xff]
        %v3002 = vld [vmem:[%s2899 + $0x21] sm:$0xff]
        %v3003 = vld [vmem:[%s2899 + $0x29] sm:$0xff]
        %v3004 = vld [vmem:[%s2899 + $0x31] sm:$0xff]
        %v3005 = vld [vmem:[%s2899 + $0x39] sm:$0xff]
        %v3006 = vld [vmem:[%s2899 + $0x41] sm:$0xff]
        %v3007 = vld [vmem:[%s2899 + $0x49] sm:$0xff]
        %v3008 = vld [vmem:[%s2899 + $0x51] sm:$0xff]
        %v3009 = vld [vmem:[%s2899 + $0x59] sm:$0xff]
        %v3010 = vld [vmem:[%s2899 + $0x61] sm:$0xff]
        %v3011 = vld [vmem:[%s2899 + $0x69] sm:$0xff]
        %v3012 = vld [vmem:[%s2899 + $0x71] sm:$0xff]
        %v3013 = vld [vmem:[%s2899 + $0x79] sm:$0xff]
        %v3014 = vld [vmem:[%s2899 + $0x89] sm:$0xff]
        %v3015 = vld [vmem:[%s2899 + $0x91] sm:$0xff]
        %v3016 = vld [vmem:[%s2899 + $0x99] sm:$0xff]
        %v3017 = vld [vmem:[%s2899 + $0xa1] sm:$0xff]
        %v3018 = vld [vmem:[%s2899 + $0xa9] sm:$0xff]
        %v3019 = vld [vmem:[%s2899 + $0xb1] sm:$0xff]
        %v3020 = vld [vmem:[%s2899 + $0xb9] sm:$0xff]
        %v3021 = vld [vmem:[%s2899 + $0xc1] sm:$0xff]
        %v3022 = vld [vmem:[%s2899 + $0xc9] sm:$0xff]
        %v3023 = vld [vmem:[%s2899 + $0xd1] sm:$0xff]
        %v3024 = vld [vmem:[%s2899 + $0xd9] sm:$0xff]
        %v3025 = vld [vmem:[%s2899 + $0xe1] sm:$0xff]
        %v3026 = vld [vmem:[%s2899 + $0xe9] sm:$0xff]
        %v3027 = vld [vmem:[%s2899 + $0xf1] sm:$0xff]
        %v3028 = vld [vmem:[%s2899 + $0xf9] sm:$0xff]
        %v3029 = vld [vmem:[%s2899 + $0x101] sm:$0xff]
        %v3030 = vld [vmem:[#allocation9 + $0x7] sm:$0x1]
        %v3031 = vperm.slane %v3030, 0
        %v3032 = vmul.f32 %v2998, %v3031
        %v3033 = vmul.f32 %v2999, %v3031
        %v3034 = vmul.f32 %v3000, %v3031
        %v3035 = vmul.f32 %v3001, %v3031
        %v3036 = vmul.f32 %v3002, %v3031
        %v3037 = vmul.f32 %v3003, %v3031
        %v3038 = vmul.f32 %v3004, %v3031
        %v3039 = vmul.f32 %v3005, %v3031
        %v3040 = vmul.f32 %v3006, %v3031
        %v3041 = vmul.f32 %v3007, %v3031
        %v3042 = vmul.f32 %v3008, %v3031
        %v3043 = vmul.f32 %v3009, %v3031
        %v3044 = vmul.f32 %v3010, %v3031
        %v3045 = vmul.f32 %v3011, %v3031
        %v3046 = vmul.f32 %v3012, %v3031
        %v3047 = vmul.f32 %v3013, %v3031
        %v3048 = vmul.f32 %v3014, %v3031
        %v3049 = vmul.f32 %v3015, %v3031
        %v3050 = vmul.f32 %v3016, %v3031
        %v3051 = vmul.f32 %v3017, %v3031
        %v3052 = vmul.f32 %v3018, %v3031
        %v3053 = vmul.f32 %v3019, %v3031
        %v3054 = vmul.f32 %v3020, %v3031
        %v3055 = vmul.f32 %v3021, %v3031
        %v3056 = vmul.f32 %v3022, %v3031
        %v3057 = vmul.f32 %v3023, %v3031
        %v3058 = vmul.f32 %v3024, %v3031
        %v3059 = vmul.f32 %v3025, %v3031
        %v3060 = vmul.f32 %v3026, %v3031
        %v3061 = vmul.f32 %v3027, %v3031
        %v3062 = vmul.f32 %v3028, %v3031
        %v3063 = vmul.f32 %v3029, %v3031
        %v3064 = vadd.f32 %v2966, %v3032
        %v3065 = vadd.f32 %v2967, %v3033
        %v3066 = vadd.f32 %v2968, %v3034
        %v3067 = vadd.f32 %v2969, %v3035
        %v3068 = vadd.f32 %v2970, %v3036
        %v3069 = vadd.f32 %v2971, %v3037
        %v3070 = vadd.f32 %v2972, %v3038
        %v3071 = vadd.f32 %v2973, %v3039
        %v3072 = vadd.f32 %v2974, %v3040
        %v3073 = vadd.f32 %v2975, %v3041
        %v3074 = vadd.f32 %v2976, %v3042
        %v3075 = vadd.f32 %v2977, %v3043
        %v3076 = vadd.f32 %v2978, %v3044
        %v3077 = vadd.f32 %v2979, %v3045
        %v3078 = vadd.f32 %v2980, %v3046
        %v3079 = vadd.f32 %v2981, %v3047
        %v3080 = vadd.f32 %v2982, %v3048
        %v3081 = vadd.f32 %v2983, %v3049
        %v3082 = vadd.f32 %v2984, %v3050
        %v3083 = vadd.f32 %v2985, %v3051
        %v3084 = vadd.f32 %v2986, %v3052
        %v3085 = vadd.f32 %v2987, %v3053
        %v3086 = vadd.f32 %v2988, %v3054
        %v3087 = vadd.f32 %v2989, %v3055
        %v3088 = vadd.f32 %v2990, %v3056
        %v3089 = vadd.f32 %v2991, %v3057
        %v3090 = vadd.f32 %v2992, %v3058
        %v3091 = vadd.f32 %v2993, %v3059
        %v3092 = vadd.f32 %v2994, %v3060
        %v3093 = vadd.f32 %v2995, %v3061
        %v3094 = vadd.f32 %v2996, %v3062
        %v3095 = vadd.f32 %v2997, %v3063
        %v3096 = vld [vmem:[%s2899 + $0x2] sm:$0xff]
        %v3097 = vld [vmem:[%s2899 + $0xa] sm:$0xff]
        %v3098 = vld [vmem:[%s2899 + $0x12] sm:$0xff]
        %v3099 = vld [vmem:[%s2899 + $0x1a] sm:$0xff]
        %v3100 = vld [vmem:[%s2899 + $0x22] sm:$0xff]
        %v3101 = vld [vmem:[%s2899 + $0x2a] sm:$0xff]
        %v3102 = vld [vmem:[%s2899 + $0x32] sm:$0xff]
        %v3103 = vld [vmem:[%s2899 + $0x3a] sm:$0xff]
        %v3104 = vld [vmem:[%s2899 + $0x42] sm:$0xff]
        %v3105 = vld [vmem:[%s2899 + $0x4a] sm:$0xff]
        %v3106 = vld [vmem:[%s2899 + $0x52] sm:$0xff]
        %v3107 = vld [vmem:[%s2899 + $0x5a] sm:$0xff]
        %v3108 = vld [vmem:[%s2899 + $0x62] sm:$0xff]
        %v3109 = vld [vmem:[%s2899 + $0x6a] sm:$0xff]
        %v3110 = vld [vmem:[%s2899 + $0x72] sm:$0xff]
        %v3111 = vld [vmem:[%s2899 + $0x7a] sm:$0xff]
        %v3112 = vld [vmem:[%s2899 + $0x8a] sm:$0xff]
        %v3113 = vld [vmem:[%s2899 + $0x92] sm:$0xff]
        %v3114 = vld [vmem:[%s2899 + $0x9a] sm:$0xff]
        %v3115 = vld [vmem:[%s2899 + $0xa2] sm:$0xff]
        %v3116 = vld [vmem:[%s2899 + $0xaa] sm:$0xff]
        %v3117 = vld [vmem:[%s2899 + $0xb2] sm:$0xff]
        %v3118 = vld [vmem:[%s2899 + $0xba] sm:$0xff]
        %v3119 = vld [vmem:[%s2899 + $0xc2] sm:$0xff]
        %v3120 = vld [vmem:[%s2899 + $0xca] sm:$0xff]
        %v3121 = vld [vmem:[%s2899 + $0xd2] sm:$0xff]
        %v3122 = vld [vmem:[%s2899 + $0xda] sm:$0xff]
        %v3123 = vld [vmem:[%s2899 + $0xe2] sm:$0xff]
        %v3124 = vld [vmem:[%s2899 + $0xea] sm:$0xff]
        %v3125 = vld [vmem:[%s2899 + $0xf2] sm:$0xff]
        %v3126 = vld [vmem:[%s2899 + $0xfa] sm:$0xff]
        %v3127 = vld [vmem:[%s2899 + $0x102] sm:$0xff]
        %v3128 = vld [vmem:[#allocation9 + $0x8] sm:$0x1]
        %v3129 = vperm.slane %v3128, 0
        %v3130 = vmul.f32 %v3096, %v3129
        %v3131 = vmul.f32 %v3097, %v3129
        %v3132 = vmul.f32 %v3098, %v3129
        %v3133 = vmul.f32 %v3099, %v3129
        %v3134 = vmul.f32 %v3100, %v3129
        %v3135 = vmul.f32 %v3101, %v3129
        %v3136 = vmul.f32 %v3102, %v3129
        %v3137 = vmul.f32 %v3103, %v3129
        %v3138 = vmul.f32 %v3104, %v3129
        %v3139 = vmul.f32 %v3105, %v3129
        %v3140 = vmul.f32 %v3106, %v3129
        %v3141 = vmul.f32 %v3107, %v3129
        %v3142 = vmul.f32 %v3108, %v3129
        %v3143 = vmul.f32 %v3109, %v3129
        %v3144 = vmul.f32 %v3110, %v3129
        %v3145 = vmul.f32 %v3111, %v3129
        %v3146 = vmul.f32 %v3112, %v3129
        %v3147 = vmul.f32 %v3113, %v3129
        %v3148 = vmul.f32 %v3114, %v3129
        %v3149 = vmul.f32 %v3115, %v3129
        %v3150 = vmul.f32 %v3116, %v3129
        %v3151 = vmul.f32 %v3117, %v3129
        %v3152 = vmul.f32 %v3118, %v3129
        %v3153 = vmul.f32 %v3119, %v3129
        %v3154 = vmul.f32 %v3120, %v3129
        %v3155 = vmul.f32 %v3121, %v3129
        %v3156 = vmul.f32 %v3122, %v3129
        %v3157 = vmul.f32 %v3123, %v3129
        %v3158 = vmul.f32 %v3124, %v3129
        %v3159 = vmul.f32 %v3125, %v3129
        %v3160 = vmul.f32 %v3126, %v3129
        %v3161 = vmul.f32 %v3127, %v3129
        %v3162 = vadd.f32 %v3064, %v3130
        %v3163 = vadd.f32 %v3065, %v3131
        %v3164 = vadd.f32 %v3066, %v3132
        %v3165 = vadd.f32 %v3067, %v3133
        %v3166 = vadd.f32 %v3068, %v3134
        %v3167 = vadd.f32 %v3069, %v3135
        %v3168 = vadd.f32 %v3070, %v3136
        %v3169 = vadd.f32 %v3071, %v3137
        %v3170 = vadd.f32 %v3072, %v3138
        %v3171 = vadd.f32 %v3073, %v3139
        %v3172 = vadd.f32 %v3074, %v3140
        %v3173 = vadd.f32 %v3075, %v3141
        %v3174 = vadd.f32 %v3076, %v3142
        %v3175 = vadd.f32 %v3077, %v3143
        %v3176 = vadd.f32 %v3078, %v3144
        %v3177 = vadd.f32 %v3079, %v3145
        %v3178 = vadd.f32 %v3080, %v3146
        %v3179 = vadd.f32 %v3081, %v3147
        %v3180 = vadd.f32 %v3082, %v3148
        %v3181 = vadd.f32 %v3083, %v3149
        %v3182 = vadd.f32 %v3084, %v3150
        %v3183 = vadd.f32 %v3085, %v3151
        %v3184 = vadd.f32 %v3086, %v3152
        %v3185 = vadd.f32 %v3087, %v3153
        %v3186 = vadd.f32 %v3088, %v3154
        %v3187 = vadd.f32 %v3089, %v3155
        %v3188 = vadd.f32 %v3090, %v3156
        %v3189 = vadd.f32 %v3091, %v3157
        %v3190 = vadd.f32 %v3092, %v3158
        %v3191 = vadd.f32 %v3093, %v3159
        %v3192 = vadd.f32 %v3094, %v3160
        %v3193 = vadd.f32 %v3095, %v3161
        %v3194 = vpack.c.bf16 %v3163, %v3162
        %v3195 = vpack.c.bf16 %v3165, %v3164
        %v3196 = vpack.c.bf16 %v3167, %v3166
        %v3197 = vpack.c.bf16 %v3169, %v3168
        %v3198 = vpack.c.bf16 %v3171, %v3170
        %v3199 = vpack.c.bf16 %v3173, %v3172
        %v3200 = vpack.c.bf16 %v3175, %v3174
        %v3201 = vpack.c.bf16 %v3177, %v3176
        %v3202 = vpack.c.bf16 %v3179, %v3178
        %v3203 = vpack.c.bf16 %v3181, %v3180
        %v3204 = vpack.c.bf16 %v3183, %v3182
        %v3205 = vpack.c.bf16 %v3185, %v3184
        %v3206 = vpack.c.bf16 %v3187, %v3186
        %v3207 = vpack.c.bf16 %v3189, %v3188
        %v3208 = vpack.c.bf16 %v3191, %v3190
        %v3209 = vpack.c.bf16 %v3193, %v3192
        %v3210 = vld [vmem:[#allocation11] sm:$0xf]
        %v3211 = vld [vmem:[#allocation11 + $0x4] sm:$0xf]
        %v3212 = vld [vmem:[#allocation11 + $0x8] sm:$0xf]
        %v3213 = vld [vmem:[#allocation11 + $0xc] sm:$0xf]
        %v3214 = vld [vmem:[#allocation11 + $0x10] sm:$0xf]
        %v3215 = vld [vmem:[#allocation11 + $0x14] sm:$0xf]
        %v3216 = vld [vmem:[#allocation11 + $0x18] sm:$0xf]
        %v3217 = vld [vmem:[#allocation11 + $0x1c] sm:$0xf]
        %v3218 = vld [vmem:[#allocation11 + $0x20] sm:$0xf]
        %v3219 = vld [vmem:[#allocation11 + $0x24] sm:$0xf]
        %v3220 = vld [vmem:[#allocation11 + $0x28] sm:$0xf]
        %v3221 = vld [vmem:[#allocation11 + $0x2c] sm:$0xf]
        %v3222 = vld [vmem:[#allocation11 + $0x30] sm:$0xf]
        %v3223 = vld [vmem:[#allocation11 + $0x34] sm:$0xf]
        %v3224 = vld [vmem:[#allocation11 + $0x38] sm:$0xf]
        %v3225 = vld [vmem:[#allocation11 + $0x3c] sm:$0xf]
        %v3242 = vunpack.c.l.b16 %v3210
        %v3243 = vunpack.c.l.b16 %v3211
        %v3244 = vunpack.c.l.b16 %v3212
        %v3245 = vunpack.c.l.b16 %v3213
        %v3246 = vunpack.c.l.b16 %v3214
        %v3247 = vunpack.c.l.b16 %v3215
        %v3248 = vunpack.c.l.b16 %v3216
        %v3249 = vunpack.c.l.b16 %v3217
        %v3250 = vunpack.c.l.b16 %v3218
        %v3251 = vunpack.c.l.b16 %v3219
        %v3252 = vunpack.c.l.b16 %v3220
        %v3253 = vunpack.c.l.b16 %v3221
        %v3254 = vunpack.c.l.b16 %v3222
        %v3255 = vunpack.c.l.b16 %v3223
        %v3256 = vunpack.c.l.b16 %v3224
        %v3257 = vunpack.c.l.b16 %v3225
        %v3258 = vpack.c.b16 %v3243, %v3242
        %v3259 = vpack.c.b16 %v3245, %v3244
        %v3260 = vpack.c.b16 %v3247, %v3246
        %v3261 = vpack.c.b16 %v3249, %v3248
        %v3262 = vpack.c.b16 %v3251, %v3250
        %v3263 = vpack.c.b16 %v3253, %v3252
        %v3264 = vpack.c.b16 %v3255, %v3254
        %v3265 = vpack.c.b16 %v3257, %v3256
        %3274 = vmatpush.bf16.msra.mxu0 %v3265
        %3275 = vmatpush.bf16.msra.mxu0 %v3264
        %3276 = vmatpush.bf16.msra.mxu0 %v3263
        %3277 = vmatpush.bf16.msra.mxu0 %v3262
        %3278 = vmatpush.bf16.msra.mxu0 %v3261
        %3279 = vmatpush.bf16.msra.mxu0 %v3260
        %3280 = vmatpush.bf16.msra.mxu0 %v3259
        %3281 = vmatpush.bf16.msra.mxu0 %v3258
        %3282 = vmatmul.bf16.gmra.mxu0 %v3194
        %v3283 = vpop.f32.mrf.mxu0
        %v3284 = vadd.f32 %v1915, %v3283
        %v3285 = vpop.f32.mrf.mxu0
        %v3286 = vadd.f32 %v1915, %v3285
        %3287 = vmatmul.bf16.gmra.mxu0 %v3195
        %v3288 = vpop.f32.mrf.mxu0
        %v3289 = vadd.f32 %v1915, %v3288
        %v3290 = vpop.f32.mrf.mxu0
        %v3291 = vadd.f32 %v1915, %v3290
        %3292 = vmatmul.bf16.gmra.mxu0 %v3196
        %v3293 = vpop.f32.mrf.mxu0
        %v3294 = vadd.f32 %v1915, %v3293
        %v3295 = vpop.f32.mrf.mxu0
        %v3296 = vadd.f32 %v1915, %v3295
        %3297 = vmatmul.bf16.gmra.mxu0 %v3197
        %v3298 = vpop.f32.mrf.mxu0
        %v3299 = vadd.f32 %v1915, %v3298
        %v3300 = vpop.f32.mrf.mxu0
        %v3301 = vadd.f32 %v1915, %v3300
        %3302 = vmatmul.bf16.gmra.mxu0 %v3198
        %v3303 = vpop.f32.mrf.mxu0
        %v3304 = vadd.f32 %v1915, %v3303
        %v3305 = vpop.f32.mrf.mxu0
        %v3306 = vadd.f32 %v1915, %v3305
        %3307 = vmatmul.bf16.gmra.mxu0 %v3199
        %v3308 = vpop.f32.mrf.mxu0
        %v3309 = vadd.f32 %v1915, %v3308
        %v3310 = vpop.f32.mrf.mxu0
        %v3311 = vadd.f32 %v1915, %v3310
        %3312 = vmatmul.bf16.gmra.mxu0 %v3200
        %v3313 = vpop.f32.mrf.mxu0
        %v3314 = vadd.f32 %v1915, %v3313
        %v3315 = vpop.f32.mrf.mxu0
        %v3316 = vadd.f32 %v1915, %v3315
        %3317 = vmatmul.bf16.gmra.mxu0 %v3201
        %v3318 = vpop.f32.mrf.mxu0
        %v3319 = vadd.f32 %v1915, %v3318
        %v3320 = vpop.f32.mrf.mxu0
        %v3321 = vadd.f32 %v1915, %v3320
        %3322 = vmatmul.bf16.gmra.mxu0 %v3202
        %v3323 = vpop.f32.mrf.mxu0
        %v3324 = vadd.f32 %v1915, %v3323
        %v3325 = vpop.f32.mrf.mxu0
        %v3326 = vadd.f32 %v1915, %v3325
        %3327 = vmatmul.bf16.gmra.mxu0 %v3203
        %v3328 = vpop.f32.mrf.mxu0
        %v3329 = vadd.f32 %v1915, %v3328
        %v3330 = vpop.f32.mrf.mxu0
        %v3331 = vadd.f32 %v1915, %v3330
        %3332 = vmatmul.bf16.gmra.mxu0 %v3204
        %v3333 = vpop.f32.mrf.mxu0
        %v3334 = vadd.f32 %v1915, %v3333
        %v3335 = vpop.f32.mrf.mxu0
        %v3336 = vadd.f32 %v1915, %v3335
        %3337 = vmatmul.bf16.gmra.mxu0 %v3205
        %v3338 = vpop.f32.mrf.mxu0
        %v3339 = vadd.f32 %v1915, %v3338
        %v3340 = vpop.f32.mrf.mxu0
        %v3341 = vadd.f32 %v1915, %v3340
        %3342 = vmatmul.bf16.gmra.mxu0 %v3206
        %v3343 = vpop.f32.mrf.mxu0
        %v3344 = vadd.f32 %v1915, %v3343
        %v3345 = vpop.f32.mrf.mxu0
        %v3346 = vadd.f32 %v1915, %v3345
        %3347 = vmatmul.bf16.gmra.mxu0 %v3207
        %v3348 = vpop.f32.mrf.mxu0
        %v3349 = vadd.f32 %v1915, %v3348
        %v3350 = vpop.f32.mrf.mxu0
        %v3351 = vadd.f32 %v1915, %v3350
        %3352 = vmatmul.bf16.gmra.mxu0 %v3208
        %v3353 = vpop.f32.mrf.mxu0
        %v3354 = vadd.f32 %v1915, %v3353
        %v3355 = vpop.f32.mrf.mxu0
        %v3356 = vadd.f32 %v1915, %v3355
        %3357 = vmatmul.bf16.gmra.mxu0 %v3209
        %v3358 = vpop.f32.mrf.mxu0
        %v3359 = vadd.f32 %v1915, %v3358
        %v3360 = vpop.f32.mrf.mxu0
        %v3361 = vadd.f32 %v1915, %v3360
        %3362 = vdwg.mxu0
        %v3363 = vsub.f32 0.0, %v3284
        %v3364 = vsub.f32 0.0, %v3286
        %v3365 = vsub.f32 0.0, %v3289
        %v3366 = vsub.f32 0.0, %v3291
        %v3367 = vsub.f32 0.0, %v3294
        %v3368 = vsub.f32 0.0, %v3296
        %v3369 = vsub.f32 0.0, %v3299
        %v3370 = vsub.f32 0.0, %v3301
        %v3371 = vsub.f32 0.0, %v3304
        %v3372 = vsub.f32 0.0, %v3306
        %v3373 = vsub.f32 0.0, %v3309
        %v3374 = vsub.f32 0.0, %v3311
        %v3375 = vsub.f32 0.0, %v3314
        %v3376 = vsub.f32 0.0, %v3316
        %v3377 = vsub.f32 0.0, %v3319
        %v3378 = vsub.f32 0.0, %v3321
        %v3379 = vsub.f32 0.0, %v3324
        %v3380 = vsub.f32 0.0, %v3326
        %v3381 = vsub.f32 0.0, %v3329
        %v3382 = vsub.f32 0.0, %v3331
        %v3383 = vsub.f32 0.0, %v3334
        %v3384 = vsub.f32 0.0, %v3336
        %v3385 = vsub.f32 0.0, %v3339
        %v3386 = vsub.f32 0.0, %v3341
        %v3387 = vsub.f32 0.0, %v3344
        %v3388 = vsub.f32 0.0, %v3346
        %v3389 = vsub.f32 0.0, %v3349
        %v3390 = vsub.f32 0.0, %v3351
        %v3391 = vsub.f32 0.0, %v3354
        %v3392 = vsub.f32 0.0, %v3356
        %v3393 = vsub.f32 0.0, %v3359
        %v3394 = vsub.f32 0.0, %v3361
        %v3395 = vmul.f32 %v3363, 1.442695
        %v3396 = vpow.pop %v3395
        %v3397 = vmul.f32 %v3364, 1.442695
        %v3398 = vpow.pop %v3397
        %v3399 = vmul.f32 %v3365, 1.442695
        %v3400 = vpow.pop %v3399
        %v3401 = vmul.f32 %v3366, 1.442695
        %v3402 = vpow.pop %v3401
        %v3403 = vmul.f32 %v3367, 1.442695
        %v3404 = vpow.pop %v3403
        %v3405 = vmul.f32 %v3368, 1.442695
        %v3406 = vpow.pop %v3405
        %v3407 = vmul.f32 %v3369, 1.442695
        %v3408 = vpow.pop %v3407
        %v3409 = vmul.f32 %v3370, 1.442695
        %v3410 = vpow.pop %v3409
        %v3411 = vmul.f32 %v3371, 1.442695
        %v3412 = vpow.pop %v3411
        %v3413 = vmul.f32 %v3372, 1.442695
        %v3414 = vpow.pop %v3413
        %v3415 = vmul.f32 %v3373, 1.442695
        %v3416 = vpow.pop %v3415
        %v3417 = vmul.f32 %v3374, 1.442695
        %v3418 = vpow.pop %v3417
        %v3419 = vmul.f32 %v3375, 1.442695
        %v3420 = vpow.pop %v3419
        %v3421 = vmul.f32 %v3376, 1.442695
        %v3422 = vpow.pop %v3421
        %v3423 = vmul.f32 %v3377, 1.442695
        %v3424 = vpow.pop %v3423
        %v3425 = vmul.f32 %v3378, 1.442695
        %v3426 = vpow.pop %v3425
        %v3427 = vmul.f32 %v3379, 1.442695
        %v3428 = vpow.pop %v3427
        %v3429 = vmul.f32 %v3380, 1.442695
        %v3430 = vpow.pop %v3429
        %v3431 = vmul.f32 %v3381, 1.442695
        %v3432 = vpow.pop %v3431
        %v3433 = vmul.f32 %v3382, 1.442695
        %v3434 = vpow.pop %v3433
        %v3435 = vmul.f32 %v3383, 1.442695
        %v3436 = vpow.pop %v3435
        %v3437 = vmul.f32 %v3384, 1.442695
        %v3438 = vpow.pop %v3437
        %v3439 = vmul.f32 %v3385, 1.442695
        %v3440 = vpow.pop %v3439
        %v3441 = vmul.f32 %v3386, 1.442695
        %v3442 = vpow.pop %v3441
        %v3443 = vmul.f32 %v3387, 1.442695
        %v3444 = vpow.pop %v3443
        %v3445 = vmul.f32 %v3388, 1.442695
        %v3446 = vpow.pop %v3445
        %v3447 = vmul.f32 %v3389, 1.442695
        %v3448 = vpow.pop %v3447
        %v3449 = vmul.f32 %v3390, 1.442695
        %v3450 = vpow.pop %v3449
        %v3451 = vmul.f32 %v3391, 1.442695
        %v3452 = vpow.pop %v3451
        %v3453 = vmul.f32 %v3392, 1.442695
        %v3454 = vpow.pop %v3453
        %v3455 = vmul.f32 %v3393, 1.442695
        %v3456 = vpow.pop %v3455
        %v3457 = vmul.f32 %v3394, 1.442695
        %v3458 = vpow.pop %v3457
        %v3459 = vadd.f32 %v3396, 1.0
        %v3460 = vadd.f32 %v3398, 1.0
        %v3461 = vadd.f32 %v3400, 1.0
        %v3462 = vadd.f32 %v3402, 1.0
        %v3463 = vadd.f32 %v3404, 1.0
        %v3464 = vadd.f32 %v3406, 1.0
        %v3465 = vadd.f32 %v3408, 1.0
        %v3466 = vadd.f32 %v3410, 1.0
        %v3467 = vadd.f32 %v3412, 1.0
        %v3468 = vadd.f32 %v3414, 1.0
        %v3469 = vadd.f32 %v3416, 1.0
        %v3470 = vadd.f32 %v3418, 1.0
        %v3471 = vadd.f32 %v3420, 1.0
        %v3472 = vadd.f32 %v3422, 1.0
        %v3473 = vadd.f32 %v3424, 1.0
        %v3474 = vadd.f32 %v3426, 1.0
        %v3475 = vadd.f32 %v3428, 1.0
        %v3476 = vadd.f32 %v3430, 1.0
        %v3477 = vadd.f32 %v3432, 1.0
        %v3478 = vadd.f32 %v3434, 1.0
        %v3479 = vadd.f32 %v3436, 1.0
        %v3480 = vadd.f32 %v3438, 1.0
        %v3481 = vadd.f32 %v3440, 1.0
        %v3482 = vadd.f32 %v3442, 1.0
        %v3483 = vadd.f32 %v3444, 1.0
        %v3484 = vadd.f32 %v3446, 1.0
        %v3485 = vadd.f32 %v3448, 1.0
        %v3486 = vadd.f32 %v3450, 1.0
        %v3487 = vadd.f32 %v3452, 1.0
        %v3488 = vadd.f32 %v3454, 1.0
        %v3489 = vadd.f32 %v3456, 1.0
        %v3490 = vadd.f32 %v3458, 1.0
        %v3491 = vrcp.pop %v3459
        %v3492 = vrcp.pop %v3460
        %v3493 = vrcp.pop %v3461
        %v3494 = vrcp.pop %v3462
        %v3495 = vrcp.pop %v3463
        %v3496 = vrcp.pop %v3464
        %v3497 = vrcp.pop %v3465
        %v3498 = vrcp.pop %v3466
        %v3499 = vrcp.pop %v3467
        %v3500 = vrcp.pop %v3468
        %v3501 = vrcp.pop %v3469
        %v3502 = vrcp.pop %v3470
        %v3503 = vrcp.pop %v3471
        %v3504 = vrcp.pop %v3472
        %v3505 = vrcp.pop %v3473
        %v3506 = vrcp.pop %v3474
        %v3507 = vrcp.pop %v3475
        %v3508 = vrcp.pop %v3476
        %v3509 = vrcp.pop %v3477
        %v3510 = vrcp.pop %v3478
        %v3511 = vrcp.pop %v3479
        %v3512 = vrcp.pop %v3480
        %v3513 = vrcp.pop %v3481
        %v3514 = vrcp.pop %v3482
        %v3515 = vrcp.pop %v3483
        %v3516 = vrcp.pop %v3484
        %v3517 = vrcp.pop %v3485
        %v3518 = vrcp.pop %v3486
        %v3519 = vrcp.pop %v3487
        %v3520 = vrcp.pop %v3488
        %v3521 = vrcp.pop %v3489
        %v3522 = vrcp.pop %v3490
        %v3523 = vmul.f32 %v3284, %v3491
        %v3524 = vmul.f32 %v3286, %v3492
        %v3525 = vmul.f32 %v3289, %v3493
        %v3526 = vmul.f32 %v3291, %v3494
        %v3527 = vmul.f32 %v3294, %v3495
        %v3528 = vmul.f32 %v3296, %v3496
        %v3529 = vmul.f32 %v3299, %v3497
        %v3530 = vmul.f32 %v3301, %v3498
        %v3531 = vmul.f32 %v3304, %v3499
        %v3532 = vmul.f32 %v3306, %v3500
        %v3533 = vmul.f32 %v3309, %v3501
        %v3534 = vmul.f32 %v3311, %v3502
        %v3535 = vmul.f32 %v3314, %v3503
        %v3536 = vmul.f32 %v3316, %v3504
        %v3537 = vmul.f32 %v3319, %v3505
        %v3538 = vmul.f32 %v3321, %v3506
        %v3539 = vmul.f32 %v3324, %v3507
        %v3540 = vmul.f32 %v3326, %v3508
        %v3541 = vmul.f32 %v3329, %v3509
        %v3542 = vmul.f32 %v3331, %v3510
        %v3543 = vmul.f32 %v3334, %v3511
        %v3544 = vmul.f32 %v3336, %v3512
        %v3545 = vmul.f32 %v3339, %v3513
        %v3546 = vmul.f32 %v3341, %v3514
        %v3547 = vmul.f32 %v3344, %v3515
        %v3548 = vmul.f32 %v3346, %v3516
        %v3549 = vmul.f32 %v3349, %v3517
        %v3550 = vmul.f32 %v3351, %v3518
        %v3551 = vmul.f32 %v3354, %v3519
        %v3552 = vmul.f32 %v3356, %v3520
        %v3553 = vmul.f32 %v3359, %v3521
        %v3554 = vmul.f32 %v3361, %v3522
        %v3555 = vpack.c.bf16 %v3523, %v3523
        %v3556 = vpack.c.bf16 %v3524, %v3524
        %v3557 = vpack.c.bf16 %v3525, %v3525
        %v3558 = vpack.c.bf16 %v3526, %v3526
        %v3559 = vpack.c.bf16 %v3527, %v3527
        %v3560 = vpack.c.bf16 %v3528, %v3528
        %v3561 = vpack.c.bf16 %v3529, %v3529
        %v3562 = vpack.c.bf16 %v3530, %v3530
        %v3563 = vpack.c.bf16 %v3531, %v3531
        %v3564 = vpack.c.bf16 %v3532, %v3532
        %v3565 = vpack.c.bf16 %v3533, %v3533
        %v3566 = vpack.c.bf16 %v3534, %v3534
        %v3567 = vpack.c.bf16 %v3535, %v3535
        %v3568 = vpack.c.bf16 %v3536, %v3536
        %v3569 = vpack.c.bf16 %v3537, %v3537
        %v3570 = vpack.c.bf16 %v3538, %v3538
        %v3571 = vpack.c.bf16 %v3539, %v3539
        %v3572 = vpack.c.bf16 %v3540, %v3540
        %v3573 = vpack.c.bf16 %v3541, %v3541
        %v3574 = vpack.c.bf16 %v3542, %v3542
        %v3575 = vpack.c.bf16 %v3543, %v3543
        %v3576 = vpack.c.bf16 %v3544, %v3544
        %v3577 = vpack.c.bf16 %v3545, %v3545
        %v3578 = vpack.c.bf16 %v3546, %v3546
        %v3579 = vpack.c.bf16 %v3547, %v3547
        %v3580 = vpack.c.bf16 %v3548, %v3548
        %v3581 = vpack.c.bf16 %v3549, %v3549
        %v3582 = vpack.c.bf16 %v3550, %v3550
        %v3583 = vpack.c.bf16 %v3551, %v3551
        %v3584 = vpack.c.bf16 %v3552, %v3552
        %v3585 = vpack.c.bf16 %v3553, %v3553
        %v3586 = vpack.c.bf16 %v3554, %v3554
        %s3587 = scalar_lea.vmem %s436, 128 [#allocation12]
        %3588 = vst [vmem:[%s3587] sm:$0xf] %v3555
        %3589 = vst [vmem:[%s3587 + $0x4] sm:$0xf] %v3556
        %3590 = vst [vmem:[%s3587 + $0x8] sm:$0xf] %v3557
        %3591 = vst [vmem:[%s3587 + $0xc] sm:$0xf] %v3558
        %3592 = vst [vmem:[%s3587 + $0x10] sm:$0xf] %v3559
        %3593 = vst [vmem:[%s3587 + $0x14] sm:$0xf] %v3560
        %3594 = vst [vmem:[%s3587 + $0x18] sm:$0xf] %v3561
        %3595 = vst [vmem:[%s3587 + $0x1c] sm:$0xf] %v3562
        %3596 = vst [vmem:[%s3587 + $0x20] sm:$0xf] %v3563
        %3597 = vst [vmem:[%s3587 + $0x24] sm:$0xf] %v3564
        %3598 = vst [vmem:[%s3587 + $0x28] sm:$0xf] %v3565
        %3599 = vst [vmem:[%s3587 + $0x2c] sm:$0xf] %v3566
        %3600 = vst [vmem:[%s3587 + $0x30] sm:$0xf] %v3567
        %3601 = vst [vmem:[%s3587 + $0x34] sm:$0xf] %v3568
        %3602 = vst [vmem:[%s3587 + $0x38] sm:$0xf] %v3569
        %3603 = vst [vmem:[%s3587 + $0x3c] sm:$0xf] %v3570
        %3604 = vst [vmem:[%s3587 + $0x40] sm:$0xf] %v3571
        %3605 = vst [vmem:[%s3587 + $0x44] sm:$0xf] %v3572
        %3606 = vst [vmem:[%s3587 + $0x48] sm:$0xf] %v3573
        %3607 = vst [vmem:[%s3587 + $0x4c] sm:$0xf] %v3574
        %3608 = vst [vmem:[%s3587 + $0x50] sm:$0xf] %v3575
        %3609 = vst [vmem:[%s3587 + $0x54] sm:$0xf] %v3576
        %3610 = vst [vmem:[%s3587 + $0x58] sm:$0xf] %v3577
        %3611 = vst [vmem:[%s3587 + $0x5c] sm:$0xf] %v3578
        %3612 = vst [vmem:[%s3587 + $0x60] sm:$0xf] %v3579
        %3613 = vst [vmem:[%s3587 + $0x64] sm:$0xf] %v3580
        %3614 = vst [vmem:[%s3587 + $0x68] sm:$0xf] %v3581
        %3615 = vst [vmem:[%s3587 + $0x6c] sm:$0xf] %v3582
        %3616 = vst [vmem:[%s3587 + $0x70] sm:$0xf] %v3583
        %3617 = vst [vmem:[%s3587 + $0x74] sm:$0xf] %v3584
        %3618 = vst [vmem:[%s3587 + $0x78] sm:$0xf] %v3585
        %3619 = vst [vmem:[%s3587 + $0x7c] sm:$0xf] %v3586
        %v3620 = vld [vmem:[%s2899] sm:$0xff]
        %v3621 = vld [vmem:[%s2899 + $0x8] sm:$0xff]
        %v3622 = vld [vmem:[%s2899 + $0x10] sm:$0xff]
        %v3623 = vld [vmem:[%s2899 + $0x18] sm:$0xff]
        %v3624 = vld [vmem:[%s2899 + $0x20] sm:$0xff]
        %v3625 = vld [vmem:[%s2899 + $0x28] sm:$0xff]
        %v3626 = vld [vmem:[%s2899 + $0x30] sm:$0xff]
        %v3627 = vld [vmem:[%s2899 + $0x38] sm:$0xff]
        %v3628 = vld [vmem:[%s2899 + $0x40] sm:$0xff]
        %v3629 = vld [vmem:[%s2899 + $0x48] sm:$0xff]
        %v3630 = vld [vmem:[%s2899 + $0x50] sm:$0xff]
        %v3631 = vld [vmem:[%s2899 + $0x58] sm:$0xff]
        %v3632 = vld [vmem:[%s2899 + $0x60] sm:$0xff]
        %v3633 = vld [vmem:[%s2899 + $0x68] sm:$0xff]
        %v3634 = vld [vmem:[%s2899 + $0x70] sm:$0xff]
        %v3635 = vld [vmem:[%s2899 + $0x78] sm:$0xff]
        %v3636 = vld [vmem:[%s2899 + $0x88] sm:$0xff]
        %v3637 = vld [vmem:[%s2899 + $0x90] sm:$0xff]
        %v3638 = vld [vmem:[%s2899 + $0x98] sm:$0xff]
        %v3639 = vld [vmem:[%s2899 + $0xa0] sm:$0xff]
        %v3640 = vld [vmem:[%s2899 + $0xa8] sm:$0xff]
        %v3641 = vld [vmem:[%s2899 + $0xb0] sm:$0xff]
        %v3642 = vld [vmem:[%s2899 + $0xb8] sm:$0xff]
        %v3643 = vld [vmem:[%s2899 + $0xc0] sm:$0xff]
        %v3644 = vld [vmem:[%s2899 + $0xc8] sm:$0xff]
        %v3645 = vld [vmem:[%s2899 + $0xd0] sm:$0xff]
        %v3646 = vld [vmem:[%s2899 + $0xd8] sm:$0xff]
        %v3647 = vld [vmem:[%s2899 + $0xe0] sm:$0xff]
        %v3648 = vld [vmem:[%s2899 + $0xe8] sm:$0xff]
        %v3649 = vld [vmem:[%s2899 + $0xf0] sm:$0xff]
        %v3650 = vld [vmem:[%s2899 + $0xf8] sm:$0xff]
        %v3651 = vld [vmem:[%s2899 + $0x100] sm:$0xff]
        %v3652 = vld [vmem:[#allocation9] sm:$0x1]
        %v3653 = vperm.slane %v3652, 0
        %v3654 = vmul.f32 %v3620, %v3653
        %v3655 = vmul.f32 %v3621, %v3653
        %v3656 = vmul.f32 %v3622, %v3653
        %v3657 = vmul.f32 %v3623, %v3653
        %v3658 = vmul.f32 %v3624, %v3653
        %v3659 = vmul.f32 %v3625, %v3653
        %v3660 = vmul.f32 %v3626, %v3653
        %v3661 = vmul.f32 %v3627, %v3653
        %v3662 = vmul.f32 %v3628, %v3653
        %v3663 = vmul.f32 %v3629, %v3653
        %v3664 = vmul.f32 %v3630, %v3653
        %v3665 = vmul.f32 %v3631, %v3653
        %v3666 = vmul.f32 %v3632, %v3653
        %v3667 = vmul.f32 %v3633, %v3653
        %v3668 = vmul.f32 %v3634, %v3653
        %v3669 = vmul.f32 %v3635, %v3653
        %v3670 = vmul.f32 %v3636, %v3653
        %v3671 = vmul.f32 %v3637, %v3653
        %v3672 = vmul.f32 %v3638, %v3653
        %v3673 = vmul.f32 %v3639, %v3653
        %v3674 = vmul.f32 %v3640, %v3653
        %v3675 = vmul.f32 %v3641, %v3653
        %v3676 = vmul.f32 %v3642, %v3653
        %v3677 = vmul.f32 %v3643, %v3653
        %v3678 = vmul.f32 %v3644, %v3653
        %v3679 = vmul.f32 %v3645, %v3653
        %v3680 = vmul.f32 %v3646, %v3653
        %v3681 = vmul.f32 %v3647, %v3653
        %v3682 = vmul.f32 %v3648, %v3653
        %v3683 = vmul.f32 %v3649, %v3653
        %v3684 = vmul.f32 %v3650, %v3653
        %v3685 = vmul.f32 %v3651, %v3653
        %v3686 = vadd.f32 %v3654, 0.0
        %v3687 = vadd.f32 %v3655, 0.0
        %v3688 = vadd.f32 %v3656, 0.0
        %v3689 = vadd.f32 %v3657, 0.0
        %v3690 = vadd.f32 %v3658, 0.0
        %v3691 = vadd.f32 %v3659, 0.0
        %v3692 = vadd.f32 %v3660, 0.0
        %v3693 = vadd.f32 %v3661, 0.0
        %v3694 = vadd.f32 %v3662, 0.0
        %v3695 = vadd.f32 %v3663, 0.0
        %v3696 = vadd.f32 %v3664, 0.0
        %v3697 = vadd.f32 %v3665, 0.0
        %v3698 = vadd.f32 %v3666, 0.0
        %v3699 = vadd.f32 %v3667, 0.0
        %v3700 = vadd.f32 %v3668, 0.0
        %v3701 = vadd.f32 %v3669, 0.0
        %v3702 = vadd.f32 %v3670, 0.0
        %v3703 = vadd.f32 %v3671, 0.0
        %v3704 = vadd.f32 %v3672, 0.0
        %v3705 = vadd.f32 %v3673, 0.0
        %v3706 = vadd.f32 %v3674, 0.0
        %v3707 = vadd.f32 %v3675, 0.0
        %v3708 = vadd.f32 %v3676, 0.0
        %v3709 = vadd.f32 %v3677, 0.0
        %v3710 = vadd.f32 %v3678, 0.0
        %v3711 = vadd.f32 %v3679, 0.0
        %v3712 = vadd.f32 %v3680, 0.0
        %v3713 = vadd.f32 %v3681, 0.0
        %v3714 = vadd.f32 %v3682, 0.0
        %v3715 = vadd.f32 %v3683, 0.0
        %v3716 = vadd.f32 %v3684, 0.0
        %v3717 = vadd.f32 %v3685, 0.0
        %v3718 = vld [vmem:[%s2899 + $0x1] sm:$0xff]
        %v3719 = vld [vmem:[%s2899 + $0x9] sm:$0xff]
        %v3720 = vld [vmem:[%s2899 + $0x11] sm:$0xff]
        %v3721 = vld [vmem:[%s2899 + $0x19] sm:$0xff]
        %v3722 = vld [vmem:[%s2899 + $0x21] sm:$0xff]
        %v3723 = vld [vmem:[%s2899 + $0x29] sm:$0xff]
        %v3724 = vld [vmem:[%s2899 + $0x31] sm:$0xff]
        %v3725 = vld [vmem:[%s2899 + $0x39] sm:$0xff]
        %v3726 = vld [vmem:[%s2899 + $0x41] sm:$0xff]
        %v3727 = vld [vmem:[%s2899 + $0x49] sm:$0xff]
        %v3728 = vld [vmem:[%s2899 + $0x51] sm:$0xff]
        %v3729 = vld [vmem:[%s2899 + $0x59] sm:$0xff]
        %v3730 = vld [vmem:[%s2899 + $0x61] sm:$0xff]
        %v3731 = vld [vmem:[%s2899 + $0x69] sm:$0xff]
        %v3732 = vld [vmem:[%s2899 + $0x71] sm:$0xff]
        %v3733 = vld [vmem:[%s2899 + $0x79] sm:$0xff]
        %v3734 = vld [vmem:[%s2899 + $0x89] sm:$0xff]
        %v3735 = vld [vmem:[%s2899 + $0x91] sm:$0xff]
        %v3736 = vld [vmem:[%s2899 + $0x99] sm:$0xff]
        %v3737 = vld [vmem:[%s2899 + $0xa1] sm:$0xff]
        %v3738 = vld [vmem:[%s2899 + $0xa9] sm:$0xff]
        %v3739 = vld [vmem:[%s2899 + $0xb1] sm:$0xff]
        %v3740 = vld [vmem:[%s2899 + $0xb9] sm:$0xff]
        %v3741 = vld [vmem:[%s2899 + $0xc1] sm:$0xff]
        %v3742 = vld [vmem:[%s2899 + $0xc9] sm:$0xff]
        %v3743 = vld [vmem:[%s2899 + $0xd1] sm:$0xff]
        %v3744 = vld [vmem:[%s2899 + $0xd9] sm:$0xff]
        %v3745 = vld [vmem:[%s2899 + $0xe1] sm:$0xff]
        %v3746 = vld [vmem:[%s2899 + $0xe9] sm:$0xff]
        %v3747 = vld [vmem:[%s2899 + $0xf1] sm:$0xff]
        %v3748 = vld [vmem:[%s2899 + $0xf9] sm:$0xff]
        %v3749 = vld [vmem:[%s2899 + $0x101] sm:$0xff]
        %v3750 = vld [vmem:[#allocation9 + $0x1] sm:$0x1]
        %v3751 = vperm.slane %v3750, 0
        %v3752 = vmul.f32 %v3718, %v3751
        %v3753 = vmul.f32 %v3719, %v3751
        %v3754 = vmul.f32 %v3720, %v3751
        %v3755 = vmul.f32 %v3721, %v3751
        %v3756 = vmul.f32 %v3722, %v3751
        %v3757 = vmul.f32 %v3723, %v3751
        %v3758 = vmul.f32 %v3724, %v3751
        %v3759 = vmul.f32 %v3725, %v3751
        %v3760 = vmul.f32 %v3726, %v3751
        %v3761 = vmul.f32 %v3727, %v3751
        %v3762 = vmul.f32 %v3728, %v3751
        %v3763 = vmul.f32 %v3729, %v3751
        %v3764 = vmul.f32 %v3730, %v3751
        %v3765 = vmul.f32 %v3731, %v3751
        %v3766 = vmul.f32 %v3732, %v3751
        %v3767 = vmul.f32 %v3733, %v3751
        %v3768 = vmul.f32 %v3734, %v3751
        %v3769 = vmul.f32 %v3735, %v3751
        %v3770 = vmul.f32 %v3736, %v3751
        %v3771 = vmul.f32 %v3737, %v3751
        %v3772 = vmul.f32 %v3738, %v3751
        %v3773 = vmul.f32 %v3739, %v3751
        %v3774 = vmul.f32 %v3740, %v3751
        %v3775 = vmul.f32 %v3741, %v3751
        %v3776 = vmul.f32 %v3742, %v3751
        %v3777 = vmul.f32 %v3743, %v3751
        %v3778 = vmul.f32 %v3744, %v3751
        %v3779 = vmul.f32 %v3745, %v3751
        %v3780 = vmul.f32 %v3746, %v3751
        %v3781 = vmul.f32 %v3747, %v3751
        %v3782 = vmul.f32 %v3748, %v3751
        %v3783 = vmul.f32 %v3749, %v3751
        %v3784 = vadd.f32 %v3686, %v3752
        %v3785 = vadd.f32 %v3687, %v3753
        %v3786 = vadd.f32 %v3688, %v3754
        %v3787 = vadd.f32 %v3689, %v3755
        %v3788 = vadd.f32 %v3690, %v3756
        %v3789 = vadd.f32 %v3691, %v3757
        %v3790 = vadd.f32 %v3692, %v3758
        %v3791 = vadd.f32 %v3693, %v3759
        %v3792 = vadd.f32 %v3694, %v3760
        %v3793 = vadd.f32 %v3695, %v3761
        %v3794 = vadd.f32 %v3696, %v3762
        %v3795 = vadd.f32 %v3697, %v3763
        %v3796 = vadd.f32 %v3698, %v3764
        %v3797 = vadd.f32 %v3699, %v3765
        %v3798 = vadd.f32 %v3700, %v3766
        %v3799 = vadd.f32 %v3701, %v3767
        %v3800 = vadd.f32 %v3702, %v3768
        %v3801 = vadd.f32 %v3703, %v3769
        %v3802 = vadd.f32 %v3704, %v3770
        %v3803 = vadd.f32 %v3705, %v3771
        %v3804 = vadd.f32 %v3706, %v3772
        %v3805 = vadd.f32 %v3707, %v3773
        %v3806 = vadd.f32 %v3708, %v3774
        %v3807 = vadd.f32 %v3709, %v3775
        %v3808 = vadd.f32 %v3710, %v3776
        %v3809 = vadd.f32 %v3711, %v3777
        %v3810 = vadd.f32 %v3712, %v3778
        %v3811 = vadd.f32 %v3713, %v3779
        %v3812 = vadd.f32 %v3714, %v3780
        %v3813 = vadd.f32 %v3715, %v3781
        %v3814 = vadd.f32 %v3716, %v3782
        %v3815 = vadd.f32 %v3717, %v3783
        %v3816 = vld [vmem:[%s2899 + $0x2] sm:$0xff]
        %v3817 = vld [vmem:[%s2899 + $0xa] sm:$0xff]
        %v3818 = vld [vmem:[%s2899 + $0x12] sm:$0xff]
        %v3819 = vld [vmem:[%s2899 + $0x1a] sm:$0xff]
        %v3820 = vld [vmem:[%s2899 + $0x22] sm:$0xff]
        %v3821 = vld [vmem:[%s2899 + $0x2a] sm:$0xff]
        %v3822 = vld [vmem:[%s2899 + $0x32] sm:$0xff]
        %v3823 = vld [vmem:[%s2899 + $0x3a] sm:$0xff]
        %v3824 = vld [vmem:[%s2899 + $0x42] sm:$0xff]
        %v3825 = vld [vmem:[%s2899 + $0x4a] sm:$0xff]
        %v3826 = vld [vmem:[%s2899 + $0x52] sm:$0xff]
        %v3827 = vld [vmem:[%s2899 + $0x5a] sm:$0xff]
        %v3828 = vld [vmem:[%s2899 + $0x62] sm:$0xff]
        %v3829 = vld [vmem:[%s2899 + $0x6a] sm:$0xff]
        %v3830 = vld [vmem:[%s2899 + $0x72] sm:$0xff]
        %v3831 = vld [vmem:[%s2899 + $0x7a] sm:$0xff]
        %v3832 = vld [vmem:[%s2899 + $0x8a] sm:$0xff]
        %v3833 = vld [vmem:[%s2899 + $0x92] sm:$0xff]
        %v3834 = vld [vmem:[%s2899 + $0x9a] sm:$0xff]
        %v3835 = vld [vmem:[%s2899 + $0xa2] sm:$0xff]
        %v3836 = vld [vmem:[%s2899 + $0xaa] sm:$0xff]
        %v3837 = vld [vmem:[%s2899 + $0xb2] sm:$0xff]
        %v3838 = vld [vmem:[%s2899 + $0xba] sm:$0xff]
        %v3839 = vld [vmem:[%s2899 + $0xc2] sm:$0xff]
        %v3840 = vld [vmem:[%s2899 + $0xca] sm:$0xff]
        %v3841 = vld [vmem:[%s2899 + $0xd2] sm:$0xff]
        %v3842 = vld [vmem:[%s2899 + $0xda] sm:$0xff]
        %v3843 = vld [vmem:[%s2899 + $0xe2] sm:$0xff]
        %v3844 = vld [vmem:[%s2899 + $0xea] sm:$0xff]
        %v3845 = vld [vmem:[%s2899 + $0xf2] sm:$0xff]
        %v3846 = vld [vmem:[%s2899 + $0xfa] sm:$0xff]
        %v3847 = vld [vmem:[%s2899 + $0x102] sm:$0xff]
        %v3848 = vld [vmem:[#allocation9 + $0x2] sm:$0x1]
        %v3849 = vperm.slane %v3848, 0
        %v3850 = vmul.f32 %v3816, %v3849
        %v3851 = vmul.f32 %v3817, %v3849
        %v3852 = vmul.f32 %v3818, %v3849
        %v3853 = vmul.f32 %v3819, %v3849
        %v3854 = vmul.f32 %v3820, %v3849
        %v3855 = vmul.f32 %v3821, %v3849
        %v3856 = vmul.f32 %v3822, %v3849
        %v3857 = vmul.f32 %v3823, %v3849
        %v3858 = vmul.f32 %v3824, %v3849
        %v3859 = vmul.f32 %v3825, %v3849
        %v3860 = vmul.f32 %v3826, %v3849
        %v3861 = vmul.f32 %v3827, %v3849
        %v3862 = vmul.f32 %v3828, %v3849
        %v3863 = vmul.f32 %v3829, %v3849
        %v3864 = vmul.f32 %v3830, %v3849
        %v3865 = vmul.f32 %v3831, %v3849
        %v3866 = vmul.f32 %v3832, %v3849
        %v3867 = vmul.f32 %v3833, %v3849
        %v3868 = vmul.f32 %v3834, %v3849
        %v3869 = vmul.f32 %v3835, %v3849
        %v3870 = vmul.f32 %v3836, %v3849
        %v3871 = vmul.f32 %v3837, %v3849
        %v3872 = vmul.f32 %v3838, %v3849
        %v3873 = vmul.f32 %v3839, %v3849
        %v3874 = vmul.f32 %v3840, %v3849
        %v3875 = vmul.f32 %v3841, %v3849
        %v3876 = vmul.f32 %v3842, %v3849
        %v3877 = vmul.f32 %v3843, %v3849
        %v3878 = vmul.f32 %v3844, %v3849
        %v3879 = vmul.f32 %v3845, %v3849
        %v3880 = vmul.f32 %v3846, %v3849
        %v3881 = vmul.f32 %v3847, %v3849
        %v3882 = vadd.f32 %v3784, %v3850
        %v3883 = vadd.f32 %v3785, %v3851
        %v3884 = vadd.f32 %v3786, %v3852
        %v3885 = vadd.f32 %v3787, %v3853
        %v3886 = vadd.f32 %v3788, %v3854
        %v3887 = vadd.f32 %v3789, %v3855
        %v3888 = vadd.f32 %v3790, %v3856
        %v3889 = vadd.f32 %v3791, %v3857
        %v3890 = vadd.f32 %v3792, %v3858
        %v3891 = vadd.f32 %v3793, %v3859
        %v3892 = vadd.f32 %v3794, %v3860
        %v3893 = vadd.f32 %v3795, %v3861
        %v3894 = vadd.f32 %v3796, %v3862
        %v3895 = vadd.f32 %v3797, %v3863
        %v3896 = vadd.f32 %v3798, %v3864
        %v3897 = vadd.f32 %v3799, %v3865
        %v3898 = vadd.f32 %v3800, %v3866
        %v3899 = vadd.f32 %v3801, %v3867
        %v3900 = vadd.f32 %v3802, %v3868
        %v3901 = vadd.f32 %v3803, %v3869
        %v3902 = vadd.f32 %v3804, %v3870
        %v3903 = vadd.f32 %v3805, %v3871
        %v3904 = vadd.f32 %v3806, %v3872
        %v3905 = vadd.f32 %v3807, %v3873
        %v3906 = vadd.f32 %v3808, %v3874
        %v3907 = vadd.f32 %v3809, %v3875
        %v3908 = vadd.f32 %v3810, %v3876
        %v3909 = vadd.f32 %v3811, %v3877
        %v3910 = vadd.f32 %v3812, %v3878
        %v3911 = vadd.f32 %v3813, %v3879
        %v3912 = vadd.f32 %v3814, %v3880
        %v3913 = vadd.f32 %v3815, %v3881
        %s3914 = scalar_lea.vmem [#allocation2], 680
        %v3915 = vld [vmem:[%s3914] sm:$0xff]
        %v3916 = vld [vmem:[%s3914 + $0x8] sm:$0xff]
        %v3917 = vld [vmem:[%s3914 + $0x10] sm:$0xff]
        %v3918 = vld [vmem:[%s3914 + $0x18] sm:$0xff]
        %v3919 = vld [vmem:[%s3914 + $0x20] sm:$0xff]
        %v3920 = vld [vmem:[%s3914 + $0x28] sm:$0xff]
        %v3921 = vld [vmem:[%s3914 + $0x30] sm:$0xff]
        %v3922 = vld [vmem:[%s3914 + $0x38] sm:$0xff]
        %v3923 = vld [vmem:[%s3914 + $0x40] sm:$0xff]
        %v3924 = vld [vmem:[%s3914 + $0x48] sm:$0xff]
        %v3925 = vld [vmem:[%s3914 + $0x50] sm:$0xff]
        %v3926 = vld [vmem:[%s3914 + $0x58] sm:$0xff]
        %v3927 = vld [vmem:[%s3914 + $0x60] sm:$0xff]
        %v3928 = vld [vmem:[%s3914 + $0x68] sm:$0xff]
        %v3929 = vld [vmem:[%s3914 + $0x70] sm:$0xff]
        %v3930 = vld [vmem:[%s3914 + $0x78] sm:$0xff]
        %v3931 = vld [vmem:[%s3914 + $0x88] sm:$0xff]
        %v3932 = vld [vmem:[%s3914 + $0x90] sm:$0xff]
        %v3933 = vld [vmem:[%s3914 + $0x98] sm:$0xff]
        %v3934 = vld [vmem:[%s3914 + $0xa0] sm:$0xff]
        %v3935 = vld [vmem:[%s3914 + $0xa8] sm:$0xff]
        %v3936 = vld [vmem:[%s3914 + $0xb0] sm:$0xff]
        %v3937 = vld [vmem:[%s3914 + $0xb8] sm:$0xff]
        %v3938 = vld [vmem:[%s3914 + $0xc0] sm:$0xff]
        %v3939 = vld [vmem:[%s3914 + $0xc8] sm:$0xff]
        %v3940 = vld [vmem:[%s3914 + $0xd0] sm:$0xff]
        %v3941 = vld [vmem:[%s3914 + $0xd8] sm:$0xff]
        %v3942 = vld [vmem:[%s3914 + $0xe0] sm:$0xff]
        %v3943 = vld [vmem:[%s3914 + $0xe8] sm:$0xff]
        %v3944 = vld [vmem:[%s3914 + $0xf0] sm:$0xff]
        %v3945 = vld [vmem:[%s3914 + $0xf8] sm:$0xff]
        %v3946 = vld [vmem:[%s3914 + $0x100] sm:$0xff]
        %v3947 = vld [vmem:[#allocation9 + $0x3] sm:$0x1]
        %v3948 = vperm.slane %v3947, 0
        %v3949 = vmul.f32 %v3915, %v3948
        %v3950 = vmul.f32 %v3916, %v3948
        %v3951 = vmul.f32 %v3917, %v3948
        %v3952 = vmul.f32 %v3918, %v3948
        %v3953 = vmul.f32 %v3919, %v3948
        %v3954 = vmul.f32 %v3920, %v3948
        %v3955 = vmul.f32 %v3921, %v3948
        %v3956 = vmul.f32 %v3922, %v3948
        %v3957 = vmul.f32 %v3923, %v3948
        %v3958 = vmul.f32 %v3924, %v3948
        %v3959 = vmul.f32 %v3925, %v3948
        %v3960 = vmul.f32 %v3926, %v3948
        %v3961 = vmul.f32 %v3927, %v3948
        %v3962 = vmul.f32 %v3928, %v3948
        %v3963 = vmul.f32 %v3929, %v3948
        %v3964 = vmul.f32 %v3930, %v3948
        %v3965 = vmul.f32 %v3931, %v3948
        %v3966 = vmul.f32 %v3932, %v3948
        %v3967 = vmul.f32 %v3933, %v3948
        %v3968 = vmul.f32 %v3934, %v3948
        %v3969 = vmul.f32 %v3935, %v3948
        %v3970 = vmul.f32 %v3936, %v3948
        %v3971 = vmul.f32 %v3937, %v3948
        %v3972 = vmul.f32 %v3938, %v3948
        %v3973 = vmul.f32 %v3939, %v3948
        %v3974 = vmul.f32 %v3940, %v3948
        %v3975 = vmul.f32 %v3941, %v3948
        %v3976 = vmul.f32 %v3942, %v3948
        %v3977 = vmul.f32 %v3943, %v3948
        %v3978 = vmul.f32 %v3944, %v3948
        %v3979 = vmul.f32 %v3945, %v3948
        %v3980 = vmul.f32 %v3946, %v3948
        %v3981 = vadd.f32 %v3882, %v3949
        %v3982 = vadd.f32 %v3883, %v3950
        %v3983 = vadd.f32 %v3884, %v3951
        %v3984 = vadd.f32 %v3885, %v3952
        %v3985 = vadd.f32 %v3886, %v3953
        %v3986 = vadd.f32 %v3887, %v3954
        %v3987 = vadd.f32 %v3888, %v3955
        %v3988 = vadd.f32 %v3889, %v3956
        %v3989 = vadd.f32 %v3890, %v3957
        %v3990 = vadd.f32 %v3891, %v3958
        %v3991 = vadd.f32 %v3892, %v3959
        %v3992 = vadd.f32 %v3893, %v3960
        %v3993 = vadd.f32 %v3894, %v3961
        %v3994 = vadd.f32 %v3895, %v3962
        %v3995 = vadd.f32 %v3896, %v3963
        %v3996 = vadd.f32 %v3897, %v3964
        %v3997 = vadd.f32 %v3898, %v3965
        %v3998 = vadd.f32 %v3899, %v3966
        %v3999 = vadd.f32 %v3900, %v3967
        %v4000 = vadd.f32 %v3901, %v3968
        %v4001 = vadd.f32 %v3902, %v3969
        %v4002 = vadd.f32 %v3903, %v3970
        %v4003 = vadd.f32 %v3904, %v3971
        %v4004 = vadd.f32 %v3905, %v3972
        %v4005 = vadd.f32 %v3906, %v3973
        %v4006 = vadd.f32 %v3907, %v3974
        %v4007 = vadd.f32 %v3908, %v3975
        %v4008 = vadd.f32 %v3909, %v3976
        %v4009 = vadd.f32 %v3910, %v3977
        %v4010 = vadd.f32 %v3911, %v3978
        %v4011 = vadd.f32 %v3912, %v3979
        %v4012 = vadd.f32 %v3913, %v3980
        %v4013 = vld [vmem:[%s3914 + $0x1] sm:$0xff]
        %v4014 = vld [vmem:[%s3914 + $0x9] sm:$0xff]
        %v4015 = vld [vmem:[%s3914 + $0x11] sm:$0xff]
        %v4016 = vld [vmem:[%s3914 + $0x19] sm:$0xff]
        %v4017 = vld [vmem:[%s3914 + $0x21] sm:$0xff]
        %v4018 = vld [vmem:[%s3914 + $0x29] sm:$0xff]
        %v4019 = vld [vmem:[%s3914 + $0x31] sm:$0xff]
        %v4020 = vld [vmem:[%s3914 + $0x39] sm:$0xff]
        %v4021 = vld [vmem:[%s3914 + $0x41] sm:$0xff]
        %v4022 = vld [vmem:[%s3914 + $0x49] sm:$0xff]
        %v4023 = vld [vmem:[%s3914 + $0x51] sm:$0xff]
        %v4024 = vld [vmem:[%s3914 + $0x59] sm:$0xff]
        %v4025 = vld [vmem:[%s3914 + $0x61] sm:$0xff]
        %v4026 = vld [vmem:[%s3914 + $0x69] sm:$0xff]
        %v4027 = vld [vmem:[%s3914 + $0x71] sm:$0xff]
        %v4028 = vld [vmem:[%s3914 + $0x79] sm:$0xff]
        %v4029 = vld [vmem:[%s3914 + $0x89] sm:$0xff]
        %v4030 = vld [vmem:[%s3914 + $0x91] sm:$0xff]
        %v4031 = vld [vmem:[%s3914 + $0x99] sm:$0xff]
        %v4032 = vld [vmem:[%s3914 + $0xa1] sm:$0xff]
        %v4033 = vld [vmem:[%s3914 + $0xa9] sm:$0xff]
        %v4034 = vld [vmem:[%s3914 + $0xb1] sm:$0xff]
        %v4035 = vld [vmem:[%s3914 + $0xb9] sm:$0xff]
        %v4036 = vld [vmem:[%s3914 + $0xc1] sm:$0xff]
        %v4037 = vld [vmem:[%s3914 + $0xc9] sm:$0xff]
        %v4038 = vld [vmem:[%s3914 + $0xd1] sm:$0xff]
        %v4039 = vld [vmem:[%s3914 + $0xd9] sm:$0xff]
        %v4040 = vld [vmem:[%s3914 + $0xe1] sm:$0xff]
        %v4041 = vld [vmem:[%s3914 + $0xe9] sm:$0xff]
        %v4042 = vld [vmem:[%s3914 + $0xf1] sm:$0xff]
        %v4043 = vld [vmem:[%s3914 + $0xf9] sm:$0xff]
        %v4044 = vld [vmem:[%s3914 + $0x101] sm:$0xff]
        %v4045 = vld [vmem:[#allocation9 + $0x4] sm:$0x1]
        %v4046 = vperm.slane %v4045, 0
        %v4047 = vmul.f32 %v4013, %v4046
        %v4048 = vmul.f32 %v4014, %v4046
        %v4049 = vmul.f32 %v4015, %v4046
        %v4050 = vmul.f32 %v4016, %v4046
        %v4051 = vmul.f32 %v4017, %v4046
        %v4052 = vmul.f32 %v4018, %v4046
        %v4053 = vmul.f32 %v4019, %v4046
        %v4054 = vmul.f32 %v4020, %v4046
        %v4055 = vmul.f32 %v4021, %v4046
        %v4056 = vmul.f32 %v4022, %v4046
        %v4057 = vmul.f32 %v4023, %v4046
        %v4058 = vmul.f32 %v4024, %v4046
        %v4059 = vmul.f32 %v4025, %v4046
        %v4060 = vmul.f32 %v4026, %v4046
        %v4061 = vmul.f32 %v4027, %v4046
        %v4062 = vmul.f32 %v4028, %v4046
        %v4063 = vmul.f32 %v4029, %v4046
        %v4064 = vmul.f32 %v4030, %v4046
        %v4065 = vmul.f32 %v4031, %v4046
        %v4066 = vmul.f32 %v4032, %v4046
        %v4067 = vmul.f32 %v4033, %v4046
        %v4068 = vmul.f32 %v4034, %v4046
        %v4069 = vmul.f32 %v4035, %v4046
        %v4070 = vmul.f32 %v4036, %v4046
        %v4071 = vmul.f32 %v4037, %v4046
        %v4072 = vmul.f32 %v4038, %v4046
        %v4073 = vmul.f32 %v4039, %v4046
        %v4074 = vmul.f32 %v4040, %v4046
        %v4075 = vmul.f32 %v4041, %v4046
        %v4076 = vmul.f32 %v4042, %v4046
        %v4077 = vmul.f32 %v4043, %v4046
        %v4078 = vmul.f32 %v4044, %v4046
        %v4079 = vadd.f32 %v3981, %v4047
        %v4080 = vadd.f32 %v3982, %v4048
        %v4081 = vadd.f32 %v3983, %v4049
        %v4082 = vadd.f32 %v3984, %v4050
        %v4083 = vadd.f32 %v3985, %v4051
        %v4084 = vadd.f32 %v3986, %v4052
        %v4085 = vadd.f32 %v3987, %v4053
        %v4086 = vadd.f32 %v3988, %v4054
        %v4087 = vadd.f32 %v3989, %v4055
        %v4088 = vadd.f32 %v3990, %v4056
        %v4089 = vadd.f32 %v3991, %v4057
        %v4090 = vadd.f32 %v3992, %v4058
        %v4091 = vadd.f32 %v3993, %v4059
        %v4092 = vadd.f32 %v3994, %v4060
        %v4093 = vadd.f32 %v3995, %v4061
        %v4094 = vadd.f32 %v3996, %v4062
        %v4095 = vadd.f32 %v3997, %v4063
        %v4096 = vadd.f32 %v3998, %v4064
        %v4097 = vadd.f32 %v3999, %v4065
        %v4098 = vadd.f32 %v4000, %v4066
        %v4099 = vadd.f32 %v4001, %v4067
        %v4100 = vadd.f32 %v4002, %v4068
        %v4101 = vadd.f32 %v4003, %v4069
        %v4102 = vadd.f32 %v4004, %v4070
        %v4103 = vadd.f32 %v4005, %v4071
        %v4104 = vadd.f32 %v4006, %v4072
        %v4105 = vadd.f32 %v4007, %v4073
        %v4106 = vadd.f32 %v4008, %v4074
        %v4107 = vadd.f32 %v4009, %v4075
        %v4108 = vadd.f32 %v4010, %v4076
        %v4109 = vadd.f32 %v4011, %v4077
        %v4110 = vadd.f32 %v4012, %v4078
        %v4111 = vld [vmem:[%s3914 + $0x2] sm:$0xff]
        %v4112 = vld [vmem:[%s3914 + $0xa] sm:$0xff]
        %v4113 = vld [vmem:[%s3914 + $0x12] sm:$0xff]
        %v4114 = vld [vmem:[%s3914 + $0x1a] sm:$0xff]
        %v4115 = vld [vmem:[%s3914 + $0x22] sm:$0xff]
        %v4116 = vld [vmem:[%s3914 + $0x2a] sm:$0xff]
        %v4117 = vld [vmem:[%s3914 + $0x32] sm:$0xff]
        %v4118 = vld [vmem:[%s3914 + $0x3a] sm:$0xff]
        %v4119 = vld [vmem:[%s3914 + $0x42] sm:$0xff]
        %v4120 = vld [vmem:[%s3914 + $0x4a] sm:$0xff]
        %v4121 = vld [vmem:[%s3914 + $0x52] sm:$0xff]
        %v4122 = vld [vmem:[%s3914 + $0x5a] sm:$0xff]
        %v4123 = vld [vmem:[%s3914 + $0x62] sm:$0xff]
        %v4124 = vld [vmem:[%s3914 + $0x6a] sm:$0xff]
        %v4125 = vld [vmem:[%s3914 + $0x72] sm:$0xff]
        %v4126 = vld [vmem:[%s3914 + $0x7a] sm:$0xff]
        %v4127 = vld [vmem:[%s3914 + $0x8a] sm:$0xff]
        %v4128 = vld [vmem:[%s3914 + $0x92] sm:$0xff]
        %v4129 = vld [vmem:[%s3914 + $0x9a] sm:$0xff]
        %v4130 = vld [vmem:[%s3914 + $0xa2] sm:$0xff]
        %v4131 = vld [vmem:[%s3914 + $0xaa] sm:$0xff]
        %v4132 = vld [vmem:[%s3914 + $0xb2] sm:$0xff]
        %v4133 = vld [vmem:[%s3914 + $0xba] sm:$0xff]
        %v4134 = vld [vmem:[%s3914 + $0xc2] sm:$0xff]
        %v4135 = vld [vmem:[%s3914 + $0xca] sm:$0xff]
        %v4136 = vld [vmem:[%s3914 + $0xd2] sm:$0xff]
        %v4137 = vld [vmem:[%s3914 + $0xda] sm:$0xff]
        %v4138 = vld [vmem:[%s3914 + $0xe2] sm:$0xff]
        %v4139 = vld [vmem:[%s3914 + $0xea] sm:$0xff]
        %v4140 = vld [vmem:[%s3914 + $0xf2] sm:$0xff]
        %v4141 = vld [vmem:[%s3914 + $0xfa] sm:$0xff]
        %v4142 = vld [vmem:[%s3914 + $0x102] sm:$0xff]
        %v4143 = vld [vmem:[#allocation9 + $0x5] sm:$0x1]
        %v4144 = vperm.slane %v4143, 0
        %v4145 = vmul.f32 %v4111, %v4144
        %v4146 = vmul.f32 %v4112, %v4144
        %v4147 = vmul.f32 %v4113, %v4144
        %v4148 = vmul.f32 %v4114, %v4144
        %v4149 = vmul.f32 %v4115, %v4144
        %v4150 = vmul.f32 %v4116, %v4144
        %v4151 = vmul.f32 %v4117, %v4144
        %v4152 = vmul.f32 %v4118, %v4144
        %v4153 = vmul.f32 %v4119, %v4144
        %v4154 = vmul.f32 %v4120, %v4144
        %v4155 = vmul.f32 %v4121, %v4144
        %v4156 = vmul.f32 %v4122, %v4144
        %v4157 = vmul.f32 %v4123, %v4144
        %v4158 = vmul.f32 %v4124, %v4144
        %v4159 = vmul.f32 %v4125, %v4144
        %v4160 = vmul.f32 %v4126, %v4144
        %v4161 = vmul.f32 %v4127, %v4144
        %v4162 = vmul.f32 %v4128, %v4144
        %v4163 = vmul.f32 %v4129, %v4144
        %v4164 = vmul.f32 %v4130, %v4144
        %v4165 = vmul.f32 %v4131, %v4144
        %v4166 = vmul.f32 %v4132, %v4144
        %v4167 = vmul.f32 %v4133, %v4144
        %v4168 = vmul.f32 %v4134, %v4144
        %v4169 = vmul.f32 %v4135, %v4144
        %v4170 = vmul.f32 %v4136, %v4144
        %v4171 = vmul.f32 %v4137, %v4144
        %v4172 = vmul.f32 %v4138, %v4144
        %v4173 = vmul.f32 %v4139, %v4144
        %v4174 = vmul.f32 %v4140, %v4144
        %v4175 = vmul.f32 %v4141, %v4144
        %v4176 = vmul.f32 %v4142, %v4144
        %v4177 = vadd.f32 %v4079, %v4145
        %v4178 = vadd.f32 %v4080, %v4146
        %v4179 = vadd.f32 %v4081, %v4147
        %v4180 = vadd.f32 %v4082, %v4148
        %v4181 = vadd.f32 %v4083, %v4149
        %v4182 = vadd.f32 %v4084, %v4150
        %v4183 = vadd.f32 %v4085, %v4151
        %v4184 = vadd.f32 %v4086, %v4152
        %v4185 = vadd.f32 %v4087, %v4153
        %v4186 = vadd.f32 %v4088, %v4154
        %v4187 = vadd.f32 %v4089, %v4155
        %v4188 = vadd.f32 %v4090, %v4156
        %v4189 = vadd.f32 %v4091, %v4157
        %v4190 = vadd.f32 %v4092, %v4158
        %v4191 = vadd.f32 %v4093, %v4159
        %v4192 = vadd.f32 %v4094, %v4160
        %v4193 = vadd.f32 %v4095, %v4161
        %v4194 = vadd.f32 %v4096, %v4162
        %v4195 = vadd.f32 %v4097, %v4163
        %v4196 = vadd.f32 %v4098, %v4164
        %v4197 = vadd.f32 %v4099, %v4165
        %v4198 = vadd.f32 %v4100, %v4166
        %v4199 = vadd.f32 %v4101, %v4167
        %v4200 = vadd.f32 %v4102, %v4168
        %v4201 = vadd.f32 %v4103, %v4169
        %v4202 = vadd.f32 %v4104, %v4170
        %v4203 = vadd.f32 %v4105, %v4171
        %v4204 = vadd.f32 %v4106, %v4172
        %v4205 = vadd.f32 %v4107, %v4173
        %v4206 = vadd.f32 %v4108, %v4174
        %v4207 = vadd.f32 %v4109, %v4175
        %v4208 = vadd.f32 %v4110, %v4176
        %s4209 = scalar_lea.vmem [#allocation2], 816
        %v4210 = vld [vmem:[%s4209] sm:$0xff]
        %v4211 = vld [vmem:[%s4209 + $0x8] sm:$0xff]
        %v4212 = vld [vmem:[%s4209 + $0x10] sm:$0xff]
        %v4213 = vld [vmem:[%s4209 + $0x18] sm:$0xff]
        %v4214 = vld [vmem:[%s4209 + $0x20] sm:$0xff]
        %v4215 = vld [vmem:[%s4209 + $0x28] sm:$0xff]
        %v4216 = vld [vmem:[%s4209 + $0x30] sm:$0xff]
        %v4217 = vld [vmem:[%s4209 + $0x38] sm:$0xff]
        %v4218 = vld [vmem:[%s4209 + $0x40] sm:$0xff]
        %v4219 = vld [vmem:[%s4209 + $0x48] sm:$0xff]
        %v4220 = vld [vmem:[%s4209 + $0x50] sm:$0xff]
        %v4221 = vld [vmem:[%s4209 + $0x58] sm:$0xff]
        %v4222 = vld [vmem:[%s4209 + $0x60] sm:$0xff]
        %v4223 = vld [vmem:[%s4209 + $0x68] sm:$0xff]
        %v4224 = vld [vmem:[%s4209 + $0x70] sm:$0xff]
        %v4225 = vld [vmem:[%s4209 + $0x78] sm:$0xff]
        %v4226 = vld [vmem:[%s4209 + $0x88] sm:$0xff]
        %v4227 = vld [vmem:[%s4209 + $0x90] sm:$0xff]
        %v4228 = vld [vmem:[%s4209 + $0x98] sm:$0xff]
        %v4229 = vld [vmem:[%s4209 + $0xa0] sm:$0xff]
        %v4230 = vld [vmem:[%s4209 + $0xa8] sm:$0xff]
        %v4231 = vld [vmem:[%s4209 + $0xb0] sm:$0xff]
        %v4232 = vld [vmem:[%s4209 + $0xb8] sm:$0xff]
        %v4233 = vld [vmem:[%s4209 + $0xc0] sm:$0xff]
        %v4234 = vld [vmem:[%s4209 + $0xc8] sm:$0xff]
        %v4235 = vld [vmem:[%s4209 + $0xd0] sm:$0xff]
        %v4236 = vld [vmem:[%s4209 + $0xd8] sm:$0xff]
        %v4237 = vld [vmem:[%s4209 + $0xe0] sm:$0xff]
        %v4238 = vld [vmem:[%s4209 + $0xe8] sm:$0xff]
        %v4239 = vld [vmem:[%s4209 + $0xf0] sm:$0xff]
        %v4240 = vld [vmem:[%s4209 + $0xf8] sm:$0xff]
        %v4241 = vld [vmem:[%s4209 + $0x100] sm:$0xff]
        %v4242 = vld [vmem:[#allocation9 + $0x6] sm:$0x1]
        %v4243 = vperm.slane %v4242, 0
        %v4244 = vmul.f32 %v4210, %v4243
        %v4245 = vmul.f32 %v4211, %v4243
        %v4246 = vmul.f32 %v4212, %v4243
        %v4247 = vmul.f32 %v4213, %v4243
        %v4248 = vmul.f32 %v4214, %v4243
        %v4249 = vmul.f32 %v4215, %v4243
        %v4250 = vmul.f32 %v4216, %v4243
        %v4251 = vmul.f32 %v4217, %v4243
        %v4252 = vmul.f32 %v4218, %v4243
        %v4253 = vmul.f32 %v4219, %v4243
        %v4254 = vmul.f32 %v4220, %v4243
        %v4255 = vmul.f32 %v4221, %v4243
        %v4256 = vmul.f32 %v4222, %v4243
        %v4257 = vmul.f32 %v4223, %v4243
        %v4258 = vmul.f32 %v4224, %v4243
        %v4259 = vmul.f32 %v4225, %v4243
        %v4260 = vmul.f32 %v4226, %v4243
        %v4261 = vmul.f32 %v4227, %v4243
        %v4262 = vmul.f32 %v4228, %v4243
        %v4263 = vmul.f32 %v4229, %v4243
        %v4264 = vmul.f32 %v4230, %v4243
        %v4265 = vmul.f32 %v4231, %v4243
        %v4266 = vmul.f32 %v4232, %v4243
        %v4267 = vmul.f32 %v4233, %v4243
        %v4268 = vmul.f32 %v4234, %v4243
        %v4269 = vmul.f32 %v4235, %v4243
        %v4270 = vmul.f32 %v4236, %v4243
        %v4271 = vmul.f32 %v4237, %v4243
        %v4272 = vmul.f32 %v4238, %v4243
        %v4273 = vmul.f32 %v4239, %v4243
        %v4274 = vmul.f32 %v4240, %v4243
        %v4275 = vmul.f32 %v4241, %v4243
        %v4276 = vadd.f32 %v4177, %v4244
        %v4277 = vadd.f32 %v4178, %v4245
        %v4278 = vadd.f32 %v4179, %v4246
        %v4279 = vadd.f32 %v4180, %v4247
        %v4280 = vadd.f32 %v4181, %v4248
        %v4281 = vadd.f32 %v4182, %v4249
        %v4282 = vadd.f32 %v4183, %v4250
        %v4283 = vadd.f32 %v4184, %v4251
        %v4284 = vadd.f32 %v4185, %v4252
        %v4285 = vadd.f32 %v4186, %v4253
        %v4286 = vadd.f32 %v4187, %v4254
        %v4287 = vadd.f32 %v4188, %v4255
        %v4288 = vadd.f32 %v4189, %v4256
        %v4289 = vadd.f32 %v4190, %v4257
        %v4290 = vadd.f32 %v4191, %v4258
        %v4291 = vadd.f32 %v4192, %v4259
        %v4292 = vadd.f32 %v4193, %v4260
        %v4293 = vadd.f32 %v4194, %v4261
        %v4294 = vadd.f32 %v4195, %v4262
        %v4295 = vadd.f32 %v4196, %v4263
        %v4296 = vadd.f32 %v4197, %v4264
        %v4297 = vadd.f32 %v4198, %v4265
        %v4298 = vadd.f32 %v4199, %v4266
        %v4299 = vadd.f32 %v4200, %v4267
        %v4300 = vadd.f32 %v4201, %v4268
        %v4301 = vadd.f32 %v4202, %v4269
        %v4302 = vadd.f32 %v4203, %v4270
        %v4303 = vadd.f32 %v4204, %v4271
        %v4304 = vadd.f32 %v4205, %v4272
        %v4305 = vadd.f32 %v4206, %v4273
        %v4306 = vadd.f32 %v4207, %v4274
        %v4307 = vadd.f32 %v4208, %v4275
        %v4308 = vld [vmem:[%s4209 + $0x1] sm:$0xff]
        %v4309 = vld [vmem:[%s4209 + $0x9] sm:$0xff]
        %v4310 = vld [vmem:[%s4209 + $0x11] sm:$0xff]
        %v4311 = vld [vmem:[%s4209 + $0x19] sm:$0xff]
        %v4312 = vld [vmem:[%s4209 + $0x21] sm:$0xff]
        %v4313 = vld [vmem:[%s4209 + $0x29] sm:$0xff]
        %v4314 = vld [vmem:[%s4209 + $0x31] sm:$0xff]
        %v4315 = vld [vmem:[%s4209 + $0x39] sm:$0xff]
        %v4316 = vld [vmem:[%s4209 + $0x41] sm:$0xff]
        %v4317 = vld [vmem:[%s4209 + $0x49] sm:$0xff]
        %v4318 = vld [vmem:[%s4209 + $0x51] sm:$0xff]
        %v4319 = vld [vmem:[%s4209 + $0x59] sm:$0xff]
        %v4320 = vld [vmem:[%s4209 + $0x61] sm:$0xff]
        %v4321 = vld [vmem:[%s4209 + $0x69] sm:$0xff]
        %v4322 = vld [vmem:[%s4209 + $0x71] sm:$0xff]
        %v4323 = vld [vmem:[%s4209 + $0x79] sm:$0xff]
        %v4324 = vld [vmem:[%s4209 + $0x89] sm:$0xff]
        %v4325 = vld [vmem:[%s4209 + $0x91] sm:$0xff]
        %v4326 = vld [vmem:[%s4209 + $0x99] sm:$0xff]
        %v4327 = vld [vmem:[%s4209 + $0xa1] sm:$0xff]
        %v4328 = vld [vmem:[%s4209 + $0xa9] sm:$0xff]
        %v4329 = vld [vmem:[%s4209 + $0xb1] sm:$0xff]
        %v4330 = vld [vmem:[%s4209 + $0xb9] sm:$0xff]
        %v4331 = vld [vmem:[%s4209 + $0xc1] sm:$0xff]
        %v4332 = vld [vmem:[%s4209 + $0xc9] sm:$0xff]
        %v4333 = vld [vmem:[%s4209 + $0xd1] sm:$0xff]
        %v4334 = vld [vmem:[%s4209 + $0xd9] sm:$0xff]
        %v4335 = vld [vmem:[%s4209 + $0xe1] sm:$0xff]
        %v4336 = vld [vmem:[%s4209 + $0xe9] sm:$0xff]
        %v4337 = vld [vmem:[%s4209 + $0xf1] sm:$0xff]
        %v4338 = vld [vmem:[%s4209 + $0xf9] sm:$0xff]
        %v4339 = vld [vmem:[%s4209 + $0x101] sm:$0xff]
        %v4340 = vld [vmem:[#allocation9 + $0x7] sm:$0x1]
        %v4341 = vperm.slane %v4340, 0
        %v4342 = vmul.f32 %v4308, %v4341
        %v4343 = vmul.f32 %v4309, %v4341
        %v4344 = vmul.f32 %v4310, %v4341
        %v4345 = vmul.f32 %v4311, %v4341
        %v4346 = vmul.f32 %v4312, %v4341
        %v4347 = vmul.f32 %v4313, %v4341
        %v4348 = vmul.f32 %v4314, %v4341
        %v4349 = vmul.f32 %v4315, %v4341
        %v4350 = vmul.f32 %v4316, %v4341
        %v4351 = vmul.f32 %v4317, %v4341
        %v4352 = vmul.f32 %v4318, %v4341
        %v4353 = vmul.f32 %v4319, %v4341
        %v4354 = vmul.f32 %v4320, %v4341
        %v4355 = vmul.f32 %v4321, %v4341
        %v4356 = vmul.f32 %v4322, %v4341
        %v4357 = vmul.f32 %v4323, %v4341
        %v4358 = vmul.f32 %v4324, %v4341
        %v4359 = vmul.f32 %v4325, %v4341
        %v4360 = vmul.f32 %v4326, %v4341
        %v4361 = vmul.f32 %v4327, %v4341
        %v4362 = vmul.f32 %v4328, %v4341
        %v4363 = vmul.f32 %v4329, %v4341
        %v4364 = vmul.f32 %v4330, %v4341
        %v4365 = vmul.f32 %v4331, %v4341
        %v4366 = vmul.f32 %v4332, %v4341
        %v4367 = vmul.f32 %v4333, %v4341
        %v4368 = vmul.f32 %v4334, %v4341
        %v4369 = vmul.f32 %v4335, %v4341
        %v4370 = vmul.f32 %v4336, %v4341
        %v4371 = vmul.f32 %v4337, %v4341
        %v4372 = vmul.f32 %v4338, %v4341
        %v4373 = vmul.f32 %v4339, %v4341
        %v4374 = vadd.f32 %v4276, %v4342
        %v4375 = vadd.f32 %v4277, %v4343
        %v4376 = vadd.f32 %v4278, %v4344
        %v4377 = vadd.f32 %v4279, %v4345
        %v4378 = vadd.f32 %v4280, %v4346
        %v4379 = vadd.f32 %v4281, %v4347
        %v4380 = vadd.f32 %v4282, %v4348
        %v4381 = vadd.f32 %v4283, %v4349
        %v4382 = vadd.f32 %v4284, %v4350
        %v4383 = vadd.f32 %v4285, %v4351
        %v4384 = vadd.f32 %v4286, %v4352
        %v4385 = vadd.f32 %v4287, %v4353
        %v4386 = vadd.f32 %v4288, %v4354
        %v4387 = vadd.f32 %v4289, %v4355
        %v4388 = vadd.f32 %v4290, %v4356
        %v4389 = vadd.f32 %v4291, %v4357
        %v4390 = vadd.f32 %v4292, %v4358
        %v4391 = vadd.f32 %v4293, %v4359
        %v4392 = vadd.f32 %v4294, %v4360
        %v4393 = vadd.f32 %v4295, %v4361
        %v4394 = vadd.f32 %v4296, %v4362
        %v4395 = vadd.f32 %v4297, %v4363
        %v4396 = vadd.f32 %v4298, %v4364
        %v4397 = vadd.f32 %v4299, %v4365
        %v4398 = vadd.f32 %v4300, %v4366
        %v4399 = vadd.f32 %v4301, %v4367
        %v4400 = vadd.f32 %v4302, %v4368
        %v4401 = vadd.f32 %v4303, %v4369
        %v4402 = vadd.f32 %v4304, %v4370
        %v4403 = vadd.f32 %v4305, %v4371
        %v4404 = vadd.f32 %v4306, %v4372
        %v4405 = vadd.f32 %v4307, %v4373
        %v4406 = vld [vmem:[%s4209 + $0x2] sm:$0xff]
        %v4407 = vld [vmem:[%s4209 + $0xa] sm:$0xff]
        %v4408 = vld [vmem:[%s4209 + $0x12] sm:$0xff]
        %v4409 = vld [vmem:[%s4209 + $0x1a] sm:$0xff]
        %v4410 = vld [vmem:[%s4209 + $0x22] sm:$0xff]
        %v4411 = vld [vmem:[%s4209 + $0x2a] sm:$0xff]
        %v4412 = vld [vmem:[%s4209 + $0x32] sm:$0xff]
        %v4413 = vld [vmem:[%s4209 + $0x3a] sm:$0xff]
        %v4414 = vld [vmem:[%s4209 + $0x42] sm:$0xff]
        %v4415 = vld [vmem:[%s4209 + $0x4a] sm:$0xff]
        %v4416 = vld [vmem:[%s4209 + $0x52] sm:$0xff]
        %v4417 = vld [vmem:[%s4209 + $0x5a] sm:$0xff]
        %v4418 = vld [vmem:[%s4209 + $0x62] sm:$0xff]
        %v4419 = vld [vmem:[%s4209 + $0x6a] sm:$0xff]
        %v4420 = vld [vmem:[%s4209 + $0x72] sm:$0xff]
        %v4421 = vld [vmem:[%s4209 + $0x7a] sm:$0xff]
        %v4422 = vld [vmem:[%s4209 + $0x8a] sm:$0xff]
        %v4423 = vld [vmem:[%s4209 + $0x92] sm:$0xff]
        %v4424 = vld [vmem:[%s4209 + $0x9a] sm:$0xff]
        %v4425 = vld [vmem:[%s4209 + $0xa2] sm:$0xff]
        %v4426 = vld [vmem:[%s4209 + $0xaa] sm:$0xff]
        %v4427 = vld [vmem:[%s4209 + $0xb2] sm:$0xff]
        %v4428 = vld [vmem:[%s4209 + $0xba] sm:$0xff]
        %v4429 = vld [vmem:[%s4209 + $0xc2] sm:$0xff]
        %v4430 = vld [vmem:[%s4209 + $0xca] sm:$0xff]
        %v4431 = vld [vmem:[%s4209 + $0xd2] sm:$0xff]
        %v4432 = vld [vmem:[%s4209 + $0xda] sm:$0xff]
        %v4433 = vld [vmem:[%s4209 + $0xe2] sm:$0xff]
        %v4434 = vld [vmem:[%s4209 + $0xea] sm:$0xff]
        %v4435 = vld [vmem:[%s4209 + $0xf2] sm:$0xff]
        %v4436 = vld [vmem:[%s4209 + $0xfa] sm:$0xff]
        %v4437 = vld [vmem:[%s4209 + $0x102] sm:$0xff]
        %v4438 = vld [vmem:[#allocation9 + $0x8] sm:$0x1]
        %v4439 = vperm.slane %v4438, 0
        %v4440 = vmul.f32 %v4406, %v4439
        %v4441 = vmul.f32 %v4407, %v4439
        %v4442 = vmul.f32 %v4408, %v4439
        %v4443 = vmul.f32 %v4409, %v4439
        %v4444 = vmul.f32 %v4410, %v4439
        %v4445 = vmul.f32 %v4411, %v4439
        %v4446 = vmul.f32 %v4412, %v4439
        %v4447 = vmul.f32 %v4413, %v4439
        %v4448 = vmul.f32 %v4414, %v4439
        %v4449 = vmul.f32 %v4415, %v4439
        %v4450 = vmul.f32 %v4416, %v4439
        %v4451 = vmul.f32 %v4417, %v4439
        %v4452 = vmul.f32 %v4418, %v4439
        %v4453 = vmul.f32 %v4419, %v4439
        %v4454 = vmul.f32 %v4420, %v4439
        %v4455 = vmul.f32 %v4421, %v4439
        %v4456 = vmul.f32 %v4422, %v4439
        %v4457 = vmul.f32 %v4423, %v4439
        %v4458 = vmul.f32 %v4424, %v4439
        %v4459 = vmul.f32 %v4425, %v4439
        %v4460 = vmul.f32 %v4426, %v4439
        %v4461 = vmul.f32 %v4427, %v4439
        %v4462 = vmul.f32 %v4428, %v4439
        %v4463 = vmul.f32 %v4429, %v4439
        %v4464 = vmul.f32 %v4430, %v4439
        %v4465 = vmul.f32 %v4431, %v4439
        %v4466 = vmul.f32 %v4432, %v4439
        %v4467 = vmul.f32 %v4433, %v4439
        %v4468 = vmul.f32 %v4434, %v4439
        %v4469 = vmul.f32 %v4435, %v4439
        %v4470 = vmul.f32 %v4436, %v4439
        %v4471 = vmul.f32 %v4437, %v4439
        %v4472 = vadd.f32 %v4374, %v4440
        %v4473 = vadd.f32 %v4375, %v4441
        %v4474 = vadd.f32 %v4376, %v4442
        %v4475 = vadd.f32 %v4377, %v4443
        %v4476 = vadd.f32 %v4378, %v4444
        %v4477 = vadd.f32 %v4379, %v4445
        %v4478 = vadd.f32 %v4380, %v4446
        %v4479 = vadd.f32 %v4381, %v4447
        %v4480 = vadd.f32 %v4382, %v4448
        %v4481 = vadd.f32 %v4383, %v4449
        %v4482 = vadd.f32 %v4384, %v4450
        %v4483 = vadd.f32 %v4385, %v4451
        %v4484 = vadd.f32 %v4386, %v4452
        %v4485 = vadd.f32 %v4387, %v4453
        %v4486 = vadd.f32 %v4388, %v4454
        %v4487 = vadd.f32 %v4389, %v4455
        %v4488 = vadd.f32 %v4390, %v4456
        %v4489 = vadd.f32 %v4391, %v4457
        %v4490 = vadd.f32 %v4392, %v4458
        %v4491 = vadd.f32 %v4393, %v4459
        %v4492 = vadd.f32 %v4394, %v4460
        %v4493 = vadd.f32 %v4395, %v4461
        %v4494 = vadd.f32 %v4396, %v4462
        %v4495 = vadd.f32 %v4397, %v4463
        %v4496 = vadd.f32 %v4398, %v4464
        %v4497 = vadd.f32 %v4399, %v4465
        %v4498 = vadd.f32 %v4400, %v4466
        %v4499 = vadd.f32 %v4401, %v4467
        %v4500 = vadd.f32 %v4402, %v4468
        %v4501 = vadd.f32 %v4403, %v4469
        %v4502 = vadd.f32 %v4404, %v4470
        %v4503 = vadd.f32 %v4405, %v4471
        %v4504 = vpack.c.bf16 %v4473, %v4472
        %v4505 = vpack.c.bf16 %v4475, %v4474
        %v4506 = vpack.c.bf16 %v4477, %v4476
        %v4507 = vpack.c.bf16 %v4479, %v4478
        %v4508 = vpack.c.bf16 %v4481, %v4480
        %v4509 = vpack.c.bf16 %v4483, %v4482
        %v4510 = vpack.c.bf16 %v4485, %v4484
        %v4511 = vpack.c.bf16 %v4487, %v4486
        %v4512 = vpack.c.bf16 %v4489, %v4488
        %v4513 = vpack.c.bf16 %v4491, %v4490
        %v4514 = vpack.c.bf16 %v4493, %v4492
        %v4515 = vpack.c.bf16 %v4495, %v4494
        %v4516 = vpack.c.bf16 %v4497, %v4496
        %v4517 = vpack.c.bf16 %v4499, %v4498
        %v4518 = vpack.c.bf16 %v4501, %v4500
        %v4519 = vpack.c.bf16 %v4503, %v4502
        %v4520 = vld [vmem:[#allocation11] sm:$0xf]
        %v4521 = vld [vmem:[#allocation11 + $0x4] sm:$0xf]
        %v4522 = vld [vmem:[#allocation11 + $0x8] sm:$0xf]
        %v4523 = vld [vmem:[#allocation11 + $0xc] sm:$0xf]
        %v4524 = vld [vmem:[#allocation11 + $0x10] sm:$0xf]
        %v4525 = vld [vmem:[#allocation11 + $0x14] sm:$0xf]
        %v4526 = vld [vmem:[#allocation11 + $0x18] sm:$0xf]
        %v4527 = vld [vmem:[#allocation11 + $0x1c] sm:$0xf]
        %v4528 = vld [vmem:[#allocation11 + $0x20] sm:$0xf]
        %v4529 = vld [vmem:[#allocation11 + $0x24] sm:$0xf]
        %v4530 = vld [vmem:[#allocation11 + $0x28] sm:$0xf]
        %v4531 = vld [vmem:[#allocation11 + $0x2c] sm:$0xf]
        %v4532 = vld [vmem:[#allocation11 + $0x30] sm:$0xf]
        %v4533 = vld [vmem:[#allocation11 + $0x34] sm:$0xf]
        %v4534 = vld [vmem:[#allocation11 + $0x38] sm:$0xf]
        %v4535 = vld [vmem:[#allocation11 + $0x3c] sm:$0xf]
        %v4552 = vunpack.c.l.b16 %v4520
        %v4553 = vunpack.c.l.b16 %v4521
        %v4554 = vunpack.c.l.b16 %v4522
        %v4555 = vunpack.c.l.b16 %v4523
        %v4556 = vunpack.c.l.b16 %v4524
        %v4557 = vunpack.c.l.b16 %v4525
        %v4558 = vunpack.c.l.b16 %v4526
        %v4559 = vunpack.c.l.b16 %v4527
        %v4560 = vunpack.c.l.b16 %v4528
        %v4561 = vunpack.c.l.b16 %v4529
        %v4562 = vunpack.c.l.b16 %v4530
        %v4563 = vunpack.c.l.b16 %v4531
        %v4564 = vunpack.c.l.b16 %v4532
        %v4565 = vunpack.c.l.b16 %v4533
        %v4566 = vunpack.c.l.b16 %v4534
        %v4567 = vunpack.c.l.b16 %v4535
        %v4568 = vpack.c.b16 %v4553, %v4552
        %v4569 = vpack.c.b16 %v4555, %v4554
        %v4570 = vpack.c.b16 %v4557, %v4556
        %v4571 = vpack.c.b16 %v4559, %v4558
        %v4572 = vpack.c.b16 %v4561, %v4560
        %v4573 = vpack.c.b16 %v4563, %v4562
        %v4574 = vpack.c.b16 %v4565, %v4564
        %v4575 = vpack.c.b16 %v4567, %v4566
        %4584 = vmatpush.bf16.msra.mxu0 %v4575
        %4585 = vmatpush.bf16.msra.mxu0 %v4574
        %4586 = vmatpush.bf16.msra.mxu0 %v4573
        %4587 = vmatpush.bf16.msra.mxu0 %v4572
        %4588 = vmatpush.bf16.msra.mxu0 %v4571
        %4589 = vmatpush.bf16.msra.mxu0 %v4570
        %4590 = vmatpush.bf16.msra.mxu0 %v4569
        %4591 = vmatpush.bf16.msra.mxu0 %v4568
        %4592 = vmatmul.bf16.gmra.mxu0 %v4504
        %v4593 = vpop.f32.mrf.mxu0
        %v4594 = vadd.f32 %v1915, %v4593
        %v4595 = vpop.f32.mrf.mxu0
        %v4596 = vadd.f32 %v1915, %v4595
        %4597 = vmatmul.bf16.gmra.mxu0 %v4505
        %v4598 = vpop.f32.mrf.mxu0
        %v4599 = vadd.f32 %v1915, %v4598
        %v4600 = vpop.f32.mrf.mxu0
        %v4601 = vadd.f32 %v1915, %v4600
        %4602 = vmatmul.bf16.gmra.mxu0 %v4506
        %v4603 = vpop.f32.mrf.mxu0
        %v4604 = vadd.f32 %v1915, %v4603
        %v4605 = vpop.f32.mrf.mxu0
        %v4606 = vadd.f32 %v1915, %v4605
        %4607 = vmatmul.bf16.gmra.mxu0 %v4507
        %v4608 = vpop.f32.mrf.mxu0
        %v4609 = vadd.f32 %v1915, %v4608
        %v4610 = vpop.f32.mrf.mxu0
        %v4611 = vadd.f32 %v1915, %v4610
        %4612 = vmatmul.bf16.gmra.mxu0 %v4508
        %v4613 = vpop.f32.mrf.mxu0
        %v4614 = vadd.f32 %v1915, %v4613
        %v4615 = vpop.f32.mrf.mxu0
        %v4616 = vadd.f32 %v1915, %v4615
        %4617 = vmatmul.bf16.gmra.mxu0 %v4509
        %v4618 = vpop.f32.mrf.mxu0
        %v4619 = vadd.f32 %v1915, %v4618
        %v4620 = vpop.f32.mrf.mxu0
        %v4621 = vadd.f32 %v1915, %v4620
        %4622 = vmatmul.bf16.gmra.mxu0 %v4510
        %v4623 = vpop.f32.mrf.mxu0
        %v4624 = vadd.f32 %v1915, %v4623
        %v4625 = vpop.f32.mrf.mxu0
        %v4626 = vadd.f32 %v1915, %v4625
        %4627 = vmatmul.bf16.gmra.mxu0 %v4511
        %v4628 = vpop.f32.mrf.mxu0
        %v4629 = vadd.f32 %v1915, %v4628
        %v4630 = vpop.f32.mrf.mxu0
        %v4631 = vadd.f32 %v1915, %v4630
        %4632 = vmatmul.bf16.gmra.mxu0 %v4512
        %v4633 = vpop.f32.mrf.mxu0
        %v4634 = vadd.f32 %v1915, %v4633
        %v4635 = vpop.f32.mrf.mxu0
        %v4636 = vadd.f32 %v1915, %v4635
        %4637 = vmatmul.bf16.gmra.mxu0 %v4513
        %v4638 = vpop.f32.mrf.mxu0
        %v4639 = vadd.f32 %v1915, %v4638
        %v4640 = vpop.f32.mrf.mxu0
        %v4641 = vadd.f32 %v1915, %v4640
        %4642 = vmatmul.bf16.gmra.mxu0 %v4514
        %v4643 = vpop.f32.mrf.mxu0
        %v4644 = vadd.f32 %v1915, %v4643
        %v4645 = vpop.f32.mrf.mxu0
        %v4646 = vadd.f32 %v1915, %v4645
        %4647 = vmatmul.bf16.gmra.mxu0 %v4515
        %v4648 = vpop.f32.mrf.mxu0
        %v4649 = vadd.f32 %v1915, %v4648
        %v4650 = vpop.f32.mrf.mxu0
        %v4651 = vadd.f32 %v1915, %v4650
        %4652 = vmatmul.bf16.gmra.mxu0 %v4516
        %v4653 = vpop.f32.mrf.mxu0
        %v4654 = vadd.f32 %v1915, %v4653
        %v4655 = vpop.f32.mrf.mxu0
        %v4656 = vadd.f32 %v1915, %v4655
        %4657 = vmatmul.bf16.gmra.mxu0 %v4517
        %v4658 = vpop.f32.mrf.mxu0
        %v4659 = vadd.f32 %v1915, %v4658
        %v4660 = vpop.f32.mrf.mxu0
        %v4661 = vadd.f32 %v1915, %v4660
        %4662 = vmatmul.bf16.gmra.mxu0 %v4518
        %v4663 = vpop.f32.mrf.mxu0
        %v4664 = vadd.f32 %v1915, %v4663
        %v4665 = vpop.f32.mrf.mxu0
        %v4666 = vadd.f32 %v1915, %v4665
        %4667 = vmatmul.bf16.gmra.mxu0 %v4519
        %v4668 = vpop.f32.mrf.mxu0
        %v4669 = vadd.f32 %v1915, %v4668
        %v4670 = vpop.f32.mrf.mxu0
        %v4671 = vadd.f32 %v1915, %v4670
        %4672 = vdwg.mxu0
        %v4673 = vsub.f32 0.0, %v4594
        %v4674 = vsub.f32 0.0, %v4596
        %v4675 = vsub.f32 0.0, %v4599
        %v4676 = vsub.f32 0.0, %v4601
        %v4677 = vsub.f32 0.0, %v4604
        %v4678 = vsub.f32 0.0, %v4606
        %v4679 = vsub.f32 0.0, %v4609
        %v4680 = vsub.f32 0.0, %v4611
        %v4681 = vsub.f32 0.0, %v4614
        %v4682 = vsub.f32 0.0, %v4616
        %v4683 = vsub.f32 0.0, %v4619
        %v4684 = vsub.f32 0.0, %v4621
        %v4685 = vsub.f32 0.0, %v4624
        %v4686 = vsub.f32 0.0, %v4626
        %v4687 = vsub.f32 0.0, %v4629
        %v4688 = vsub.f32 0.0, %v4631
        %v4689 = vsub.f32 0.0, %v4634
        %v4690 = vsub.f32 0.0, %v4636
        %v4691 = vsub.f32 0.0, %v4639
        %v4692 = vsub.f32 0.0, %v4641
        %v4693 = vsub.f32 0.0, %v4644
        %v4694 = vsub.f32 0.0, %v4646
        %v4695 = vsub.f32 0.0, %v4649
        %v4696 = vsub.f32 0.0, %v4651
        %v4697 = vsub.f32 0.0, %v4654
        %v4698 = vsub.f32 0.0, %v4656
        %v4699 = vsub.f32 0.0, %v4659
        %v4700 = vsub.f32 0.0, %v4661
        %v4701 = vsub.f32 0.0, %v4664
        %v4702 = vsub.f32 0.0, %v4666
        %v4703 = vsub.f32 0.0, %v4669
        %v4704 = vsub.f32 0.0, %v4671
        %v4705 = vmul.f32 %v4673, 1.442695
        %v4706 = vpow.pop %v4705
        %v4707 = vmul.f32 %v4674, 1.442695
        %v4708 = vpow.pop %v4707
        %v4709 = vmul.f32 %v4675, 1.442695
        %v4710 = vpow.pop %v4709
        %v4711 = vmul.f32 %v4676, 1.442695
        %v4712 = vpow.pop %v4711
        %v4713 = vmul.f32 %v4677, 1.442695
        %v4714 = vpow.pop %v4713
        %v4715 = vmul.f32 %v4678, 1.442695
        %v4716 = vpow.pop %v4715
        %v4717 = vmul.f32 %v4679, 1.442695
        %v4718 = vpow.pop %v4717
        %v4719 = vmul.f32 %v4680, 1.442695
        %v4720 = vpow.pop %v4719
        %v4721 = vmul.f32 %v4681, 1.442695
        %v4722 = vpow.pop %v4721
        %v4723 = vmul.f32 %v4682, 1.442695
        %v4724 = vpow.pop %v4723
        %v4725 = vmul.f32 %v4683, 1.442695
        %v4726 = vpow.pop %v4725
        %v4727 = vmul.f32 %v4684, 1.442695
        %v4728 = vpow.pop %v4727
        %v4729 = vmul.f32 %v4685, 1.442695
        %v4730 = vpow.pop %v4729
        %v4731 = vmul.f32 %v4686, 1.442695
        %v4732 = vpow.pop %v4731
        %v4733 = vmul.f32 %v4687, 1.442695
        %v4734 = vpow.pop %v4733
        %v4735 = vmul.f32 %v4688, 1.442695
        %v4736 = vpow.pop %v4735
        %v4737 = vmul.f32 %v4689, 1.442695
        %v4738 = vpow.pop %v4737
        %v4739 = vmul.f32 %v4690, 1.442695
        %v4740 = vpow.pop %v4739
        %v4741 = vmul.f32 %v4691, 1.442695
        %v4742 = vpow.pop %v4741
        %v4743 = vmul.f32 %v4692, 1.442695
        %v4744 = vpow.pop %v4743
        %v4745 = vmul.f32 %v4693, 1.442695
        %v4746 = vpow.pop %v4745
        %v4747 = vmul.f32 %v4694, 1.442695
        %v4748 = vpow.pop %v4747
        %v4749 = vmul.f32 %v4695, 1.442695
        %v4750 = vpow.pop %v4749
        %v4751 = vmul.f32 %v4696, 1.442695
        %v4752 = vpow.pop %v4751
        %v4753 = vmul.f32 %v4697, 1.442695
        %v4754 = vpow.pop %v4753
        %v4755 = vmul.f32 %v4698, 1.442695
        %v4756 = vpow.pop %v4755
        %v4757 = vmul.f32 %v4699, 1.442695
        %v4758 = vpow.pop %v4757
        %v4759 = vmul.f32 %v4700, 1.442695
        %v4760 = vpow.pop %v4759
        %v4761 = vmul.f32 %v4701, 1.442695
        %v4762 = vpow.pop %v4761
        %v4763 = vmul.f32 %v4702, 1.442695
        %v4764 = vpow.pop %v4763
        %v4765 = vmul.f32 %v4703, 1.442695
        %v4766 = vpow.pop %v4765
        %v4767 = vmul.f32 %v4704, 1.442695
        %v4768 = vpow.pop %v4767
        %v4769 = vadd.f32 %v4706, 1.0
        %v4770 = vadd.f32 %v4708, 1.0
        %v4771 = vadd.f32 %v4710, 1.0
        %v4772 = vadd.f32 %v4712, 1.0
        %v4773 = vadd.f32 %v4714, 1.0
        %v4774 = vadd.f32 %v4716, 1.0
        %v4775 = vadd.f32 %v4718, 1.0
        %v4776 = vadd.f32 %v4720, 1.0
        %v4777 = vadd.f32 %v4722, 1.0
        %v4778 = vadd.f32 %v4724, 1.0
        %v4779 = vadd.f32 %v4726, 1.0
        %v4780 = vadd.f32 %v4728, 1.0
        %v4781 = vadd.f32 %v4730, 1.0
        %v4782 = vadd.f32 %v4732, 1.0
        %v4783 = vadd.f32 %v4734, 1.0
        %v4784 = vadd.f32 %v4736, 1.0
        %v4785 = vadd.f32 %v4738, 1.0
        %v4786 = vadd.f32 %v4740, 1.0
        %v4787 = vadd.f32 %v4742, 1.0
        %v4788 = vadd.f32 %v4744, 1.0
        %v4789 = vadd.f32 %v4746, 1.0
        %v4790 = vadd.f32 %v4748, 1.0
        %v4791 = vadd.f32 %v4750, 1.0
        %v4792 = vadd.f32 %v4752, 1.0
        %v4793 = vadd.f32 %v4754, 1.0
        %v4794 = vadd.f32 %v4756, 1.0
        %v4795 = vadd.f32 %v4758, 1.0
        %v4796 = vadd.f32 %v4760, 1.0
        %v4797 = vadd.f32 %v4762, 1.0
        %v4798 = vadd.f32 %v4764, 1.0
        %v4799 = vadd.f32 %v4766, 1.0
        %v4800 = vadd.f32 %v4768, 1.0
        %v4801 = vrcp.pop %v4769
        %v4802 = vrcp.pop %v4770
        %v4803 = vrcp.pop %v4771
        %v4804 = vrcp.pop %v4772
        %v4805 = vrcp.pop %v4773
        %v4806 = vrcp.pop %v4774
        %v4807 = vrcp.pop %v4775
        %v4808 = vrcp.pop %v4776
        %v4809 = vrcp.pop %v4777
        %v4810 = vrcp.pop %v4778
        %v4811 = vrcp.pop %v4779
        %v4812 = vrcp.pop %v4780
        %v4813 = vrcp.pop %v4781
        %v4814 = vrcp.pop %v4782
        %v4815 = vrcp.pop %v4783
        %v4816 = vrcp.pop %v4784
        %v4817 = vrcp.pop %v4785
        %v4818 = vrcp.pop %v4786
        %v4819 = vrcp.pop %v4787
        %v4820 = vrcp.pop %v4788
        %v4821 = vrcp.pop %v4789
        %v4822 = vrcp.pop %v4790
        %v4823 = vrcp.pop %v4791
        %v4824 = vrcp.pop %v4792
        %v4825 = vrcp.pop %v4793
        %v4826 = vrcp.pop %v4794
        %v4827 = vrcp.pop %v4795
        %v4828 = vrcp.pop %v4796
        %v4829 = vrcp.pop %v4797
        %v4830 = vrcp.pop %v4798
        %v4831 = vrcp.pop %v4799
        %v4832 = vrcp.pop %v4800
        %v4833 = vmul.f32 %v4594, %v4801
        %v4834 = vmul.f32 %v4596, %v4802
        %v4835 = vmul.f32 %v4599, %v4803
        %v4836 = vmul.f32 %v4601, %v4804
        %v4837 = vmul.f32 %v4604, %v4805
        %v4838 = vmul.f32 %v4606, %v4806
        %v4839 = vmul.f32 %v4609, %v4807
        %v4840 = vmul.f32 %v4611, %v4808
        %v4841 = vmul.f32 %v4614, %v4809
        %v4842 = vmul.f32 %v4616, %v4810
        %v4843 = vmul.f32 %v4619, %v4811
        %v4844 = vmul.f32 %v4621, %v4812
        %v4845 = vmul.f32 %v4624, %v4813
        %v4846 = vmul.f32 %v4626, %v4814
        %v4847 = vmul.f32 %v4629, %v4815
        %v4848 = vmul.f32 %v4631, %v4816
        %v4849 = vmul.f32 %v4634, %v4817
        %v4850 = vmul.f32 %v4636, %v4818
        %v4851 = vmul.f32 %v4639, %v4819
        %v4852 = vmul.f32 %v4641, %v4820
        %v4853 = vmul.f32 %v4644, %v4821
        %v4854 = vmul.f32 %v4646, %v4822
        %v4855 = vmul.f32 %v4649, %v4823
        %v4856 = vmul.f32 %v4651, %v4824
        %v4857 = vmul.f32 %v4654, %v4825
        %v4858 = vmul.f32 %v4656, %v4826
        %v4859 = vmul.f32 %v4659, %v4827
        %v4860 = vmul.f32 %v4661, %v4828
        %v4861 = vmul.f32 %v4664, %v4829
        %v4862 = vmul.f32 %v4666, %v4830
        %v4863 = vmul.f32 %v4669, %v4831
        %v4864 = vmul.f32 %v4671, %v4832
        %v4865 = vpack.c.bf16 %v4833, %v4833
        %v4866 = vpack.c.bf16 %v4834, %v4834
        %v4867 = vpack.c.bf16 %v4835, %v4835
        %v4868 = vpack.c.bf16 %v4836, %v4836
        %v4869 = vpack.c.bf16 %v4837, %v4837
        %v4870 = vpack.c.bf16 %v4838, %v4838
        %v4871 = vpack.c.bf16 %v4839, %v4839
        %v4872 = vpack.c.bf16 %v4840, %v4840
        %v4873 = vpack.c.bf16 %v4841, %v4841
        %v4874 = vpack.c.bf16 %v4842, %v4842
        %v4875 = vpack.c.bf16 %v4843, %v4843
        %v4876 = vpack.c.bf16 %v4844, %v4844
        %v4877 = vpack.c.bf16 %v4845, %v4845
        %v4878 = vpack.c.bf16 %v4846, %v4846
        %v4879 = vpack.c.bf16 %v4847, %v4847
        %v4880 = vpack.c.bf16 %v4848, %v4848
        %v4881 = vpack.c.bf16 %v4849, %v4849
        %v4882 = vpack.c.bf16 %v4850, %v4850
        %v4883 = vpack.c.bf16 %v4851, %v4851
        %v4884 = vpack.c.bf16 %v4852, %v4852
        %v4885 = vpack.c.bf16 %v4853, %v4853
        %v4886 = vpack.c.bf16 %v4854, %v4854
        %v4887 = vpack.c.bf16 %v4855, %v4855
        %v4888 = vpack.c.bf16 %v4856, %v4856
        %v4889 = vpack.c.bf16 %v4857, %v4857
        %v4890 = vpack.c.bf16 %v4858, %v4858
        %v4891 = vpack.c.bf16 %v4859, %v4859
        %v4892 = vpack.c.bf16 %v4860, %v4860
        %v4893 = vpack.c.bf16 %v4861, %v4861
        %v4894 = vpack.c.bf16 %v4862, %v4862
        %v4895 = vpack.c.bf16 %v4863, %v4863
        %v4896 = vpack.c.bf16 %v4864, %v4864
        %s4897 = scalar_lea.vmem %s436, 256 [#allocation12]
        %4898 = vst [vmem:[%s4897] sm:$0xf] %v4865
        %4899 = vst [vmem:[%s4897 + $0x4] sm:$0xf] %v4866
        %4900 = vst [vmem:[%s4897 + $0x8] sm:$0xf] %v4867
        %4901 = vst [vmem:[%s4897 + $0xc] sm:$0xf] %v4868
        %4902 = vst [vmem:[%s4897 + $0x10] sm:$0xf] %v4869
        %4903 = vst [vmem:[%s4897 + $0x14] sm:$0xf] %v4870
        %4904 = vst [vmem:[%s4897 + $0x18] sm:$0xf] %v4871
        %4905 = vst [vmem:[%s4897 + $0x1c] sm:$0xf] %v4872
        %4906 = vst [vmem:[%s4897 + $0x20] sm:$0xf] %v4873
        %4907 = vst [vmem:[%s4897 + $0x24] sm:$0xf] %v4874
        %4908 = vst [vmem:[%s4897 + $0x28] sm:$0xf] %v4875
        %4909 = vst [vmem:[%s4897 + $0x2c] sm:$0xf] %v4876
        %4910 = vst [vmem:[%s4897 + $0x30] sm:$0xf] %v4877
        %4911 = vst [vmem:[%s4897 + $0x34] sm:$0xf] %v4878
        %4912 = vst [vmem:[%s4897 + $0x38] sm:$0xf] %v4879
        %4913 = vst [vmem:[%s4897 + $0x3c] sm:$0xf] %v4880
        %4914 = vst [vmem:[%s4897 + $0x40] sm:$0xf] %v4881
        %4915 = vst [vmem:[%s4897 + $0x44] sm:$0xf] %v4882
        %4916 = vst [vmem:[%s4897 + $0x48] sm:$0xf] %v4883
        %4917 = vst [vmem:[%s4897 + $0x4c] sm:$0xf] %v4884
        %4918 = vst [vmem:[%s4897 + $0x50] sm:$0xf] %v4885
        %4919 = vst [vmem:[%s4897 + $0x54] sm:$0xf] %v4886
        %4920 = vst [vmem:[%s4897 + $0x58] sm:$0xf] %v4887
        %4921 = vst [vmem:[%s4897 + $0x5c] sm:$0xf] %v4888
        %4922 = vst [vmem:[%s4897 + $0x60] sm:$0xf] %v4889
        %4923 = vst [vmem:[%s4897 + $0x64] sm:$0xf] %v4890
        %4924 = vst [vmem:[%s4897 + $0x68] sm:$0xf] %v4891
        %4925 = vst [vmem:[%s4897 + $0x6c] sm:$0xf] %v4892
        %4926 = vst [vmem:[%s4897 + $0x70] sm:$0xf] %v4893
        %4927 = vst [vmem:[%s4897 + $0x74] sm:$0xf] %v4894
        %4928 = vst [vmem:[%s4897 + $0x78] sm:$0xf] %v4895
        %4929 = vst [vmem:[%s4897 + $0x7c] sm:$0xf] %v4896
        %v4930 = vld [vmem:[%s4209] sm:$0xff]
        %v4931 = vld [vmem:[%s4209 + $0x8] sm:$0xff]
        %v4932 = vld [vmem:[%s4209 + $0x10] sm:$0xff]
        %v4933 = vld [vmem:[%s4209 + $0x18] sm:$0xff]
        %v4934 = vld [vmem:[%s4209 + $0x20] sm:$0xff]
        %v4935 = vld [vmem:[%s4209 + $0x28] sm:$0xff]
        %v4936 = vld [vmem:[%s4209 + $0x30] sm:$0xff]
        %v4937 = vld [vmem:[%s4209 + $0x38] sm:$0xff]
        %v4938 = vld [vmem:[%s4209 + $0x40] sm:$0xff]
        %v4939 = vld [vmem:[%s4209 + $0x48] sm:$0xff]
        %v4940 = vld [vmem:[%s4209 + $0x50] sm:$0xff]
        %v4941 = vld [vmem:[%s4209 + $0x58] sm:$0xff]
        %v4942 = vld [vmem:[%s4209 + $0x60] sm:$0xff]
        %v4943 = vld [vmem:[%s4209 + $0x68] sm:$0xff]
        %v4944 = vld [vmem:[%s4209 + $0x70] sm:$0xff]
        %v4945 = vld [vmem:[%s4209 + $0x78] sm:$0xff]
        %v4946 = vld [vmem:[%s4209 + $0x88] sm:$0xff]
        %v4947 = vld [vmem:[%s4209 + $0x90] sm:$0xff]
        %v4948 = vld [vmem:[%s4209 + $0x98] sm:$0xff]
        %v4949 = vld [vmem:[%s4209 + $0xa0] sm:$0xff]
        %v4950 = vld [vmem:[%s4209 + $0xa8] sm:$0xff]
        %v4951 = vld [vmem:[%s4209 + $0xb0] sm:$0xff]
        %v4952 = vld [vmem:[%s4209 + $0xb8] sm:$0xff]
        %v4953 = vld [vmem:[%s4209 + $0xc0] sm:$0xff]
        %v4954 = vld [vmem:[%s4209 + $0xc8] sm:$0xff]
        %v4955 = vld [vmem:[%s4209 + $0xd0] sm:$0xff]
        %v4956 = vld [vmem:[%s4209 + $0xd8] sm:$0xff]
        %v4957 = vld [vmem:[%s4209 + $0xe0] sm:$0xff]
        %v4958 = vld [vmem:[%s4209 + $0xe8] sm:$0xff]
        %v4959 = vld [vmem:[%s4209 + $0xf0] sm:$0xff]
        %v4960 = vld [vmem:[%s4209 + $0xf8] sm:$0xff]
        %v4961 = vld [vmem:[%s4209 + $0x100] sm:$0xff]
        %v4962 = vld [vmem:[#allocation9] sm:$0x1]
        %v4963 = vperm.slane %v4962, 0
        %v4964 = vmul.f32 %v4930, %v4963
        %v4965 = vmul.f32 %v4931, %v4963
        %v4966 = vmul.f32 %v4932, %v4963
        %v4967 = vmul.f32 %v4933, %v4963
        %v4968 = vmul.f32 %v4934, %v4963
        %v4969 = vmul.f32 %v4935, %v4963
        %v4970 = vmul.f32 %v4936, %v4963
        %v4971 = vmul.f32 %v4937, %v4963
        %v4972 = vmul.f32 %v4938, %v4963
        %v4973 = vmul.f32 %v4939, %v4963
        %v4974 = vmul.f32 %v4940, %v4963
        %v4975 = vmul.f32 %v4941, %v4963
        %v4976 = vmul.f32 %v4942, %v4963
        %v4977 = vmul.f32 %v4943, %v4963
        %v4978 = vmul.f32 %v4944, %v4963
        %v4979 = vmul.f32 %v4945, %v4963
        %v4980 = vmul.f32 %v4946, %v4963
        %v4981 = vmul.f32 %v4947, %v4963
        %v4982 = vmul.f32 %v4948, %v4963
        %v4983 = vmul.f32 %v4949, %v4963
        %v4984 = vmul.f32 %v4950, %v4963
        %v4985 = vmul.f32 %v4951, %v4963
        %v4986 = vmul.f32 %v4952, %v4963
        %v4987 = vmul.f32 %v4953, %v4963
        %v4988 = vmul.f32 %v4954, %v4963
        %v4989 = vmul.f32 %v4955, %v4963
        %v4990 = vmul.f32 %v4956, %v4963
        %v4991 = vmul.f32 %v4957, %v4963
        %v4992 = vmul.f32 %v4958, %v4963
        %v4993 = vmul.f32 %v4959, %v4963
        %v4994 = vmul.f32 %v4960, %v4963
        %v4995 = vmul.f32 %v4961, %v4963
        %v4996 = vadd.f32 %v4964, 0.0
        %v4997 = vadd.f32 %v4965, 0.0
        %v4998 = vadd.f32 %v4966, 0.0
        %v4999 = vadd.f32 %v4967, 0.0
        %v5000 = vadd.f32 %v4968, 0.0
        %v5001 = vadd.f32 %v4969, 0.0
        %v5002 = vadd.f32 %v4970, 0.0
        %v5003 = vadd.f32 %v4971, 0.0
        %v5004 = vadd.f32 %v4972, 0.0
        %v5005 = vadd.f32 %v4973, 0.0
        %v5006 = vadd.f32 %v4974, 0.0
        %v5007 = vadd.f32 %v4975, 0.0
        %v5008 = vadd.f32 %v4976, 0.0
        %v5009 = vadd.f32 %v4977, 0.0
        %v5010 = vadd.f32 %v4978, 0.0
        %v5011 = vadd.f32 %v4979, 0.0
        %v5012 = vadd.f32 %v4980, 0.0
        %v5013 = vadd.f32 %v4981, 0.0
        %v5014 = vadd.f32 %v4982, 0.0
        %v5015 = vadd.f32 %v4983, 0.0
        %v5016 = vadd.f32 %v4984, 0.0
        %v5017 = vadd.f32 %v4985, 0.0
        %v5018 = vadd.f32 %v4986, 0.0
        %v5019 = vadd.f32 %v4987, 0.0
        %v5020 = vadd.f32 %v4988, 0.0
        %v5021 = vadd.f32 %v4989, 0.0
        %v5022 = vadd.f32 %v4990, 0.0
        %v5023 = vadd.f32 %v4991, 0.0
        %v5024 = vadd.f32 %v4992, 0.0
        %v5025 = vadd.f32 %v4993, 0.0
        %v5026 = vadd.f32 %v4994, 0.0
        %v5027 = vadd.f32 %v4995, 0.0
        %v5028 = vld [vmem:[%s4209 + $0x1] sm:$0xff]
        %v5029 = vld [vmem:[%s4209 + $0x9] sm:$0xff]
        %v5030 = vld [vmem:[%s4209 + $0x11] sm:$0xff]
        %v5031 = vld [vmem:[%s4209 + $0x19] sm:$0xff]
        %v5032 = vld [vmem:[%s4209 + $0x21] sm:$0xff]
        %v5033 = vld [vmem:[%s4209 + $0x29] sm:$0xff]
        %v5034 = vld [vmem:[%s4209 + $0x31] sm:$0xff]
        %v5035 = vld [vmem:[%s4209 + $0x39] sm:$0xff]
        %v5036 = vld [vmem:[%s4209 + $0x41] sm:$0xff]
        %v5037 = vld [vmem:[%s4209 + $0x49] sm:$0xff]
        %v5038 = vld [vmem:[%s4209 + $0x51] sm:$0xff]
        %v5039 = vld [vmem:[%s4209 + $0x59] sm:$0xff]
        %v5040 = vld [vmem:[%s4209 + $0x61] sm:$0xff]
        %v5041 = vld [vmem:[%s4209 + $0x69] sm:$0xff]
        %v5042 = vld [vmem:[%s4209 + $0x71] sm:$0xff]
        %v5043 = vld [vmem:[%s4209 + $0x79] sm:$0xff]
        %v5044 = vld [vmem:[%s4209 + $0x89] sm:$0xff]
        %v5045 = vld [vmem:[%s4209 + $0x91] sm:$0xff]
        %v5046 = vld [vmem:[%s4209 + $0x99] sm:$0xff]
        %v5047 = vld [vmem:[%s4209 + $0xa1] sm:$0xff]
        %v5048 = vld [vmem:[%s4209 + $0xa9] sm:$0xff]
        %v5049 = vld [vmem:[%s4209 + $0xb1] sm:$0xff]
        %v5050 = vld [vmem:[%s4209 + $0xb9] sm:$0xff]
        %v5051 = vld [vmem:[%s4209 + $0xc1] sm:$0xff]
        %v5052 = vld [vmem:[%s4209 + $0xc9] sm:$0xff]
        %v5053 = vld [vmem:[%s4209 + $0xd1] sm:$0xff]
        %v5054 = vld [vmem:[%s4209 + $0xd9] sm:$0xff]
        %v5055 = vld [vmem:[%s4209 + $0xe1] sm:$0xff]
        %v5056 = vld [vmem:[%s4209 + $0xe9] sm:$0xff]
        %v5057 = vld [vmem:[%s4209 + $0xf1] sm:$0xff]
        %v5058 = vld [vmem:[%s4209 + $0xf9] sm:$0xff]
        %v5059 = vld [vmem:[%s4209 + $0x101] sm:$0xff]
        %v5060 = vld [vmem:[#allocation9 + $0x1] sm:$0x1]
        %v5061 = vperm.slane %v5060, 0
        %v5062 = vmul.f32 %v5028, %v5061
        %v5063 = vmul.f32 %v5029, %v5061
        %v5064 = vmul.f32 %v5030, %v5061
        %v5065 = vmul.f32 %v5031, %v5061
        %v5066 = vmul.f32 %v5032, %v5061
        %v5067 = vmul.f32 %v5033, %v5061
        %v5068 = vmul.f32 %v5034, %v5061
        %v5069 = vmul.f32 %v5035, %v5061
        %v5070 = vmul.f32 %v5036, %v5061
        %v5071 = vmul.f32 %v5037, %v5061
        %v5072 = vmul.f32 %v5038, %v5061
        %v5073 = vmul.f32 %v5039, %v5061
        %v5074 = vmul.f32 %v5040, %v5061
        %v5075 = vmul.f32 %v5041, %v5061
        %v5076 = vmul.f32 %v5042, %v5061
        %v5077 = vmul.f32 %v5043, %v5061
        %v5078 = vmul.f32 %v5044, %v5061
        %v5079 = vmul.f32 %v5045, %v5061
        %v5080 = vmul.f32 %v5046, %v5061
        %v5081 = vmul.f32 %v5047, %v5061
        %v5082 = vmul.f32 %v5048, %v5061
        %v5083 = vmul.f32 %v5049, %v5061
        %v5084 = vmul.f32 %v5050, %v5061
        %v5085 = vmul.f32 %v5051, %v5061
        %v5086 = vmul.f32 %v5052, %v5061
        %v5087 = vmul.f32 %v5053, %v5061
        %v5088 = vmul.f32 %v5054, %v5061
        %v5089 = vmul.f32 %v5055, %v5061
        %v5090 = vmul.f32 %v5056, %v5061
        %v5091 = vmul.f32 %v5057, %v5061
        %v5092 = vmul.f32 %v5058, %v5061
        %v5093 = vmul.f32 %v5059, %v5061
        %v5094 = vadd.f32 %v4996, %v5062
        %v5095 = vadd.f32 %v4997, %v5063
        %v5096 = vadd.f32 %v4998, %v5064
        %v5097 = vadd.f32 %v4999, %v5065
        %v5098 = vadd.f32 %v5000, %v5066
        %v5099 = vadd.f32 %v5001, %v5067
        %v5100 = vadd.f32 %v5002, %v5068
        %v5101 = vadd.f32 %v5003, %v5069
        %v5102 = vadd.f32 %v5004, %v5070
        %v5103 = vadd.f32 %v5005, %v5071
        %v5104 = vadd.f32 %v5006, %v5072
        %v5105 = vadd.f32 %v5007, %v5073
        %v5106 = vadd.f32 %v5008, %v5074
        %v5107 = vadd.f32 %v5009, %v5075
        %v5108 = vadd.f32 %v5010, %v5076
        %v5109 = vadd.f32 %v5011, %v5077
        %v5110 = vadd.f32 %v5012, %v5078
        %v5111 = vadd.f32 %v5013, %v5079
        %v5112 = vadd.f32 %v5014, %v5080
        %v5113 = vadd.f32 %v5015, %v5081
        %v5114 = vadd.f32 %v5016, %v5082
        %v5115 = vadd.f32 %v5017, %v5083
        %v5116 = vadd.f32 %v5018, %v5084
        %v5117 = vadd.f32 %v5019, %v5085
        %v5118 = vadd.f32 %v5020, %v5086
        %v5119 = vadd.f32 %v5021, %v5087
        %v5120 = vadd.f32 %v5022, %v5088
        %v5121 = vadd.f32 %v5023, %v5089
        %v5122 = vadd.f32 %v5024, %v5090
        %v5123 = vadd.f32 %v5025, %v5091
        %v5124 = vadd.f32 %v5026, %v5092
        %v5125 = vadd.f32 %v5027, %v5093
        %v5126 = vld [vmem:[%s4209 + $0x2] sm:$0xff]
        %v5127 = vld [vmem:[%s4209 + $0xa] sm:$0xff]
        %v5128 = vld [vmem:[%s4209 + $0x12] sm:$0xff]
        %v5129 = vld [vmem:[%s4209 + $0x1a] sm:$0xff]
        %v5130 = vld [vmem:[%s4209 + $0x22] sm:$0xff]
        %v5131 = vld [vmem:[%s4209 + $0x2a] sm:$0xff]
        %v5132 = vld [vmem:[%s4209 + $0x32] sm:$0xff]
        %v5133 = vld [vmem:[%s4209 + $0x3a] sm:$0xff]
        %v5134 = vld [vmem:[%s4209 + $0x42] sm:$0xff]
        %v5135 = vld [vmem:[%s4209 + $0x4a] sm:$0xff]
        %v5136 = vld [vmem:[%s4209 + $0x52] sm:$0xff]
        %v5137 = vld [vmem:[%s4209 + $0x5a] sm:$0xff]
        %v5138 = vld [vmem:[%s4209 + $0x62] sm:$0xff]
        %v5139 = vld [vmem:[%s4209 + $0x6a] sm:$0xff]
        %v5140 = vld [vmem:[%s4209 + $0x72] sm:$0xff]
        %v5141 = vld [vmem:[%s4209 + $0x7a] sm:$0xff]
        %v5142 = vld [vmem:[%s4209 + $0x8a] sm:$0xff]
        %v5143 = vld [vmem:[%s4209 + $0x92] sm:$0xff]
        %v5144 = vld [vmem:[%s4209 + $0x9a] sm:$0xff]
        %v5145 = vld [vmem:[%s4209 + $0xa2] sm:$0xff]
        %v5146 = vld [vmem:[%s4209 + $0xaa] sm:$0xff]
        %v5147 = vld [vmem:[%s4209 + $0xb2] sm:$0xff]
        %v5148 = vld [vmem:[%s4209 + $0xba] sm:$0xff]
        %v5149 = vld [vmem:[%s4209 + $0xc2] sm:$0xff]
        %v5150 = vld [vmem:[%s4209 + $0xca] sm:$0xff]
        %v5151 = vld [vmem:[%s4209 + $0xd2] sm:$0xff]
        %v5152 = vld [vmem:[%s4209 + $0xda] sm:$0xff]
        %v5153 = vld [vmem:[%s4209 + $0xe2] sm:$0xff]
        %v5154 = vld [vmem:[%s4209 + $0xea] sm:$0xff]
        %v5155 = vld [vmem:[%s4209 + $0xf2] sm:$0xff]
        %v5156 = vld [vmem:[%s4209 + $0xfa] sm:$0xff]
        %v5157 = vld [vmem:[%s4209 + $0x102] sm:$0xff]
        %v5158 = vld [vmem:[#allocation9 + $0x2] sm:$0x1]
        %v5159 = vperm.slane %v5158, 0
        %v5160 = vmul.f32 %v5126, %v5159
        %v5161 = vmul.f32 %v5127, %v5159
        %v5162 = vmul.f32 %v5128, %v5159
        %v5163 = vmul.f32 %v5129, %v5159
        %v5164 = vmul.f32 %v5130, %v5159
        %v5165 = vmul.f32 %v5131, %v5159
        %v5166 = vmul.f32 %v5132, %v5159
        %v5167 = vmul.f32 %v5133, %v5159
        %v5168 = vmul.f32 %v5134, %v5159
        %v5169 = vmul.f32 %v5135, %v5159
        %v5170 = vmul.f32 %v5136, %v5159
        %v5171 = vmul.f32 %v5137, %v5159
        %v5172 = vmul.f32 %v5138, %v5159
        %v5173 = vmul.f32 %v5139, %v5159
        %v5174 = vmul.f32 %v5140, %v5159
        %v5175 = vmul.f32 %v5141, %v5159
        %v5176 = vmul.f32 %v5142, %v5159
        %v5177 = vmul.f32 %v5143, %v5159
        %v5178 = vmul.f32 %v5144, %v5159
        %v5179 = vmul.f32 %v5145, %v5159
        %v5180 = vmul.f32 %v5146, %v5159
        %v5181 = vmul.f32 %v5147, %v5159
        %v5182 = vmul.f32 %v5148, %v5159
        %v5183 = vmul.f32 %v5149, %v5159
        %v5184 = vmul.f32 %v5150, %v5159
        %v5185 = vmul.f32 %v5151, %v5159
        %v5186 = vmul.f32 %v5152, %v5159
        %v5187 = vmul.f32 %v5153, %v5159
        %v5188 = vmul.f32 %v5154, %v5159
        %v5189 = vmul.f32 %v5155, %v5159
        %v5190 = vmul.f32 %v5156, %v5159
        %v5191 = vmul.f32 %v5157, %v5159
        %v5192 = vadd.f32 %v5094, %v5160
        %v5193 = vadd.f32 %v5095, %v5161
        %v5194 = vadd.f32 %v5096, %v5162
        %v5195 = vadd.f32 %v5097, %v5163
        %v5196 = vadd.f32 %v5098, %v5164
        %v5197 = vadd.f32 %v5099, %v5165
        %v5198 = vadd.f32 %v5100, %v5166
        %v5199 = vadd.f32 %v5101, %v5167
        %v5200 = vadd.f32 %v5102, %v5168
        %v5201 = vadd.f32 %v5103, %v5169
        %v5202 = vadd.f32 %v5104, %v5170
        %v5203 = vadd.f32 %v5105, %v5171
        %v5204 = vadd.f32 %v5106, %v5172
        %v5205 = vadd.f32 %v5107, %v5173
        %v5206 = vadd.f32 %v5108, %v5174
        %v5207 = vadd.f32 %v5109, %v5175
        %v5208 = vadd.f32 %v5110, %v5176
        %v5209 = vadd.f32 %v5111, %v5177
        %v5210 = vadd.f32 %v5112, %v5178
        %v5211 = vadd.f32 %v5113, %v5179
        %v5212 = vadd.f32 %v5114, %v5180
        %v5213 = vadd.f32 %v5115, %v5181
        %v5214 = vadd.f32 %v5116, %v5182
        %v5215 = vadd.f32 %v5117, %v5183
        %v5216 = vadd.f32 %v5118, %v5184
        %v5217 = vadd.f32 %v5119, %v5185
        %v5218 = vadd.f32 %v5120, %v5186
        %v5219 = vadd.f32 %v5121, %v5187
        %v5220 = vadd.f32 %v5122, %v5188
        %v5221 = vadd.f32 %v5123, %v5189
        %v5222 = vadd.f32 %v5124, %v5190
        %v5223 = vadd.f32 %v5125, %v5191
        %s5224 = scalar_lea.vmem [#allocation2], 952
        %v5225 = vld [vmem:[%s5224] sm:$0xff]
        %v5226 = vld [vmem:[%s5224 + $0x8] sm:$0xff]
        %v5227 = vld [vmem:[%s5224 + $0x10] sm:$0xff]
        %v5228 = vld [vmem:[%s5224 + $0x18] sm:$0xff]
        %v5229 = vld [vmem:[%s5224 + $0x20] sm:$0xff]
        %v5230 = vld [vmem:[%s5224 + $0x28] sm:$0xff]
        %v5231 = vld [vmem:[%s5224 + $0x30] sm:$0xff]
        %v5232 = vld [vmem:[%s5224 + $0x38] sm:$0xff]
        %v5233 = vld [vmem:[%s5224 + $0x40] sm:$0xff]
        %v5234 = vld [vmem:[%s5224 + $0x48] sm:$0xff]
        %v5235 = vld [vmem:[%s5224 + $0x50] sm:$0xff]
        %v5236 = vld [vmem:[%s5224 + $0x58] sm:$0xff]
        %v5237 = vld [vmem:[%s5224 + $0x60] sm:$0xff]
        %v5238 = vld [vmem:[%s5224 + $0x68] sm:$0xff]
        %v5239 = vld [vmem:[%s5224 + $0x70] sm:$0xff]
        %v5240 = vld [vmem:[%s5224 + $0x78] sm:$0xff]
        %v5241 = vld [vmem:[%s5224 + $0x88] sm:$0xff]
        %v5242 = vld [vmem:[%s5224 + $0x90] sm:$0xff]
        %v5243 = vld [vmem:[%s5224 + $0x98] sm:$0xff]
        %v5244 = vld [vmem:[%s5224 + $0xa0] sm:$0xff]
        %v5245 = vld [vmem:[%s5224 + $0xa8] sm:$0xff]
        %v5246 = vld [vmem:[%s5224 + $0xb0] sm:$0xff]
        %v5247 = vld [vmem:[%s5224 + $0xb8] sm:$0xff]
        %v5248 = vld [vmem:[%s5224 + $0xc0] sm:$0xff]
        %v5249 = vld [vmem:[%s5224 + $0xc8] sm:$0xff]
        %v5250 = vld [vmem:[%s5224 + $0xd0] sm:$0xff]
        %v5251 = vld [vmem:[%s5224 + $0xd8] sm:$0xff]
        %v5252 = vld [vmem:[%s5224 + $0xe0] sm:$0xff]
        %v5253 = vld [vmem:[%s5224 + $0xe8] sm:$0xff]
        %v5254 = vld [vmem:[%s5224 + $0xf0] sm:$0xff]
        %v5255 = vld [vmem:[%s5224 + $0xf8] sm:$0xff]
        %v5256 = vld [vmem:[%s5224 + $0x100] sm:$0xff]
        %v5257 = vld [vmem:[#allocation9 + $0x3] sm:$0x1]
        %v5258 = vperm.slane %v5257, 0
        %v5259 = vmul.f32 %v5225, %v5258
        %v5260 = vmul.f32 %v5226, %v5258
        %v5261 = vmul.f32 %v5227, %v5258
        %v5262 = vmul.f32 %v5228, %v5258
        %v5263 = vmul.f32 %v5229, %v5258
        %v5264 = vmul.f32 %v5230, %v5258
        %v5265 = vmul.f32 %v5231, %v5258
        %v5266 = vmul.f32 %v5232, %v5258
        %v5267 = vmul.f32 %v5233, %v5258
        %v5268 = vmul.f32 %v5234, %v5258
        %v5269 = vmul.f32 %v5235, %v5258
        %v5270 = vmul.f32 %v5236, %v5258
        %v5271 = vmul.f32 %v5237, %v5258
        %v5272 = vmul.f32 %v5238, %v5258
        %v5273 = vmul.f32 %v5239, %v5258
        %v5274 = vmul.f32 %v5240, %v5258
        %v5275 = vmul.f32 %v5241, %v5258
        %v5276 = vmul.f32 %v5242, %v5258
        %v5277 = vmul.f32 %v5243, %v5258
        %v5278 = vmul.f32 %v5244, %v5258
        %v5279 = vmul.f32 %v5245, %v5258
        %v5280 = vmul.f32 %v5246, %v5258
        %v5281 = vmul.f32 %v5247, %v5258
        %v5282 = vmul.f32 %v5248, %v5258
        %v5283 = vmul.f32 %v5249, %v5258
        %v5284 = vmul.f32 %v5250, %v5258
        %v5285 = vmul.f32 %v5251, %v5258
        %v5286 = vmul.f32 %v5252, %v5258
        %v5287 = vmul.f32 %v5253, %v5258
        %v5288 = vmul.f32 %v5254, %v5258
        %v5289 = vmul.f32 %v5255, %v5258
        %v5290 = vmul.f32 %v5256, %v5258
        %v5291 = vadd.f32 %v5192, %v5259
        %v5292 = vadd.f32 %v5193, %v5260
        %v5293 = vadd.f32 %v5194, %v5261
        %v5294 = vadd.f32 %v5195, %v5262
        %v5295 = vadd.f32 %v5196, %v5263
        %v5296 = vadd.f32 %v5197, %v5264
        %v5297 = vadd.f32 %v5198, %v5265
        %v5298 = vadd.f32 %v5199, %v5266
        %v5299 = vadd.f32 %v5200, %v5267
        %v5300 = vadd.f32 %v5201, %v5268
        %v5301 = vadd.f32 %v5202, %v5269
        %v5302 = vadd.f32 %v5203, %v5270
        %v5303 = vadd.f32 %v5204, %v5271
        %v5304 = vadd.f32 %v5205, %v5272
        %v5305 = vadd.f32 %v5206, %v5273
        %v5306 = vadd.f32 %v5207, %v5274
        %v5307 = vadd.f32 %v5208, %v5275
        %v5308 = vadd.f32 %v5209, %v5276
        %v5309 = vadd.f32 %v5210, %v5277
        %v5310 = vadd.f32 %v5211, %v5278
        %v5311 = vadd.f32 %v5212, %v5279
        %v5312 = vadd.f32 %v5213, %v5280
        %v5313 = vadd.f32 %v5214, %v5281
        %v5314 = vadd.f32 %v5215, %v5282
        %v5315 = vadd.f32 %v5216, %v5283
        %v5316 = vadd.f32 %v5217, %v5284
        %v5317 = vadd.f32 %v5218, %v5285
        %v5318 = vadd.f32 %v5219, %v5286
        %v5319 = vadd.f32 %v5220, %v5287
        %v5320 = vadd.f32 %v5221, %v5288
        %v5321 = vadd.f32 %v5222, %v5289
        %v5322 = vadd.f32 %v5223, %v5290
        %v5323 = vld [vmem:[%s5224 + $0x1] sm:$0xff]
        %v5324 = vld [vmem:[%s5224 + $0x9] sm:$0xff]
        %v5325 = vld [vmem:[%s5224 + $0x11] sm:$0xff]
        %v5326 = vld [vmem:[%s5224 + $0x19] sm:$0xff]
        %v5327 = vld [vmem:[%s5224 + $0x21] sm:$0xff]
        %v5328 = vld [vmem:[%s5224 + $0x29] sm:$0xff]
        %v5329 = vld [vmem:[%s5224 + $0x31] sm:$0xff]
        %v5330 = vld [vmem:[%s5224 + $0x39] sm:$0xff]
        %v5331 = vld [vmem:[%s5224 + $0x41] sm:$0xff]
        %v5332 = vld [vmem:[%s5224 + $0x49] sm:$0xff]
        %v5333 = vld [vmem:[%s5224 + $0x51] sm:$0xff]
        %v5334 = vld [vmem:[%s5224 + $0x59] sm:$0xff]
        %v5335 = vld [vmem:[%s5224 + $0x61] sm:$0xff]
        %v5336 = vld [vmem:[%s5224 + $0x69] sm:$0xff]
        %v5337 = vld [vmem:[%s5224 + $0x71] sm:$0xff]
        %v5338 = vld [vmem:[%s5224 + $0x79] sm:$0xff]
        %v5339 = vld [vmem:[%s5224 + $0x89] sm:$0xff]
        %v5340 = vld [vmem:[%s5224 + $0x91] sm:$0xff]
        %v5341 = vld [vmem:[%s5224 + $0x99] sm:$0xff]
        %v5342 = vld [vmem:[%s5224 + $0xa1] sm:$0xff]
        %v5343 = vld [vmem:[%s5224 + $0xa9] sm:$0xff]
        %v5344 = vld [vmem:[%s5224 + $0xb1] sm:$0xff]
        %v5345 = vld [vmem:[%s5224 + $0xb9] sm:$0xff]
        %v5346 = vld [vmem:[%s5224 + $0xc1] sm:$0xff]
        %v5347 = vld [vmem:[%s5224 + $0xc9] sm:$0xff]
        %v5348 = vld [vmem:[%s5224 + $0xd1] sm:$0xff]
        %v5349 = vld [vmem:[%s5224 + $0xd9] sm:$0xff]
        %v5350 = vld [vmem:[%s5224 + $0xe1] sm:$0xff]
        %v5351 = vld [vmem:[%s5224 + $0xe9] sm:$0xff]
        %v5352 = vld [vmem:[%s5224 + $0xf1] sm:$0xff]
        %v5353 = vld [vmem:[%s5224 + $0xf9] sm:$0xff]
        %v5354 = vld [vmem:[%s5224 + $0x101] sm:$0xff]
        %v5355 = vld [vmem:[#allocation9 + $0x4] sm:$0x1]
        %v5356 = vperm.slane %v5355, 0
        %v5357 = vmul.f32 %v5323, %v5356
        %v5358 = vmul.f32 %v5324, %v5356
        %v5359 = vmul.f32 %v5325, %v5356
        %v5360 = vmul.f32 %v5326, %v5356
        %v5361 = vmul.f32 %v5327, %v5356
        %v5362 = vmul.f32 %v5328, %v5356
        %v5363 = vmul.f32 %v5329, %v5356
        %v5364 = vmul.f32 %v5330, %v5356
        %v5365 = vmul.f32 %v5331, %v5356
        %v5366 = vmul.f32 %v5332, %v5356
        %v5367 = vmul.f32 %v5333, %v5356
        %v5368 = vmul.f32 %v5334, %v5356
        %v5369 = vmul.f32 %v5335, %v5356
        %v5370 = vmul.f32 %v5336, %v5356
        %v5371 = vmul.f32 %v5337, %v5356
        %v5372 = vmul.f32 %v5338, %v5356
        %v5373 = vmul.f32 %v5339, %v5356
        %v5374 = vmul.f32 %v5340, %v5356
        %v5375 = vmul.f32 %v5341, %v5356
        %v5376 = vmul.f32 %v5342, %v5356
        %v5377 = vmul.f32 %v5343, %v5356
        %v5378 = vmul.f32 %v5344, %v5356
        %v5379 = vmul.f32 %v5345, %v5356
        %v5380 = vmul.f32 %v5346, %v5356
        %v5381 = vmul.f32 %v5347, %v5356
        %v5382 = vmul.f32 %v5348, %v5356
        %v5383 = vmul.f32 %v5349, %v5356
        %v5384 = vmul.f32 %v5350, %v5356
        %v5385 = vmul.f32 %v5351, %v5356
        %v5386 = vmul.f32 %v5352, %v5356
        %v5387 = vmul.f32 %v5353, %v5356
        %v5388 = vmul.f32 %v5354, %v5356
        %v5389 = vadd.f32 %v5291, %v5357
        %v5390 = vadd.f32 %v5292, %v5358
        %v5391 = vadd.f32 %v5293, %v5359
        %v5392 = vadd.f32 %v5294, %v5360
        %v5393 = vadd.f32 %v5295, %v5361
        %v5394 = vadd.f32 %v5296, %v5362
        %v5395 = vadd.f32 %v5297, %v5363
        %v5396 = vadd.f32 %v5298, %v5364
        %v5397 = vadd.f32 %v5299, %v5365
        %v5398 = vadd.f32 %v5300, %v5366
        %v5399 = vadd.f32 %v5301, %v5367
        %v5400 = vadd.f32 %v5302, %v5368
        %v5401 = vadd.f32 %v5303, %v5369
        %v5402 = vadd.f32 %v5304, %v5370
        %v5403 = vadd.f32 %v5305, %v5371
        %v5404 = vadd.f32 %v5306, %v5372
        %v5405 = vadd.f32 %v5307, %v5373
        %v5406 = vadd.f32 %v5308, %v5374
        %v5407 = vadd.f32 %v5309, %v5375
        %v5408 = vadd.f32 %v5310, %v5376
        %v5409 = vadd.f32 %v5311, %v5377
        %v5410 = vadd.f32 %v5312, %v5378
        %v5411 = vadd.f32 %v5313, %v5379
        %v5412 = vadd.f32 %v5314, %v5380
        %v5413 = vadd.f32 %v5315, %v5381
        %v5414 = vadd.f32 %v5316, %v5382
        %v5415 = vadd.f32 %v5317, %v5383
        %v5416 = vadd.f32 %v5318, %v5384
        %v5417 = vadd.f32 %v5319, %v5385
        %v5418 = vadd.f32 %v5320, %v5386
        %v5419 = vadd.f32 %v5321, %v5387
        %v5420 = vadd.f32 %v5322, %v5388
        %v5421 = vld [vmem:[%s5224 + $0x2] sm:$0xff]
        %v5422 = vld [vmem:[%s5224 + $0xa] sm:$0xff]
        %v5423 = vld [vmem:[%s5224 + $0x12] sm:$0xff]
        %v5424 = vld [vmem:[%s5224 + $0x1a] sm:$0xff]
        %v5425 = vld [vmem:[%s5224 + $0x22] sm:$0xff]
        %v5426 = vld [vmem:[%s5224 + $0x2a] sm:$0xff]
        %v5427 = vld [vmem:[%s5224 + $0x32] sm:$0xff]
        %v5428 = vld [vmem:[%s5224 + $0x3a] sm:$0xff]
        %v5429 = vld [vmem:[%s5224 + $0x42] sm:$0xff]
        %v5430 = vld [vmem:[%s5224 + $0x4a] sm:$0xff]
        %v5431 = vld [vmem:[%s5224 + $0x52] sm:$0xff]
        %v5432 = vld [vmem:[%s5224 + $0x5a] sm:$0xff]
        %v5433 = vld [vmem:[%s5224 + $0x62] sm:$0xff]
        %v5434 = vld [vmem:[%s5224 + $0x6a] sm:$0xff]
        %v5435 = vld [vmem:[%s5224 + $0x72] sm:$0xff]
        %v5436 = vld [vmem:[%s5224 + $0x7a] sm:$0xff]
        %v5437 = vld [vmem:[%s5224 + $0x8a] sm:$0xff]
        %v5438 = vld [vmem:[%s5224 + $0x92] sm:$0xff]
        %v5439 = vld [vmem:[%s5224 + $0x9a] sm:$0xff]
        %v5440 = vld [vmem:[%s5224 + $0xa2] sm:$0xff]
        %v5441 = vld [vmem:[%s5224 + $0xaa] sm:$0xff]
        %v5442 = vld [vmem:[%s5224 + $0xb2] sm:$0xff]
        %v5443 = vld [vmem:[%s5224 + $0xba] sm:$0xff]
        %v5444 = vld [vmem:[%s5224 + $0xc2] sm:$0xff]
        %v5445 = vld [vmem:[%s5224 + $0xca] sm:$0xff]
        %v5446 = vld [vmem:[%s5224 + $0xd2] sm:$0xff]
        %v5447 = vld [vmem:[%s5224 + $0xda] sm:$0xff]
        %v5448 = vld [vmem:[%s5224 + $0xe2] sm:$0xff]
        %v5449 = vld [vmem:[%s5224 + $0xea] sm:$0xff]
        %v5450 = vld [vmem:[%s5224 + $0xf2] sm:$0xff]
        %v5451 = vld [vmem:[%s5224 + $0xfa] sm:$0xff]
        %v5452 = vld [vmem:[%s5224 + $0x102] sm:$0xff]
        %v5453 = vld [vmem:[#allocation9 + $0x5] sm:$0x1]
        %v5454 = vperm.slane %v5453, 0
        %v5455 = vmul.f32 %v5421, %v5454
        %v5456 = vmul.f32 %v5422, %v5454
        %v5457 = vmul.f32 %v5423, %v5454
        %v5458 = vmul.f32 %v5424, %v5454
        %v5459 = vmul.f32 %v5425, %v5454
        %v5460 = vmul.f32 %v5426, %v5454
        %v5461 = vmul.f32 %v5427, %v5454
        %v5462 = vmul.f32 %v5428, %v5454
        %v5463 = vmul.f32 %v5429, %v5454
        %v5464 = vmul.f32 %v5430, %v5454
        %v5465 = vmul.f32 %v5431, %v5454
        %v5466 = vmul.f32 %v5432, %v5454
        %v5467 = vmul.f32 %v5433, %v5454
        %v5468 = vmul.f32 %v5434, %v5454
        %v5469 = vmul.f32 %v5435, %v5454
        %v5470 = vmul.f32 %v5436, %v5454
        %v5471 = vmul.f32 %v5437, %v5454
        %v5472 = vmul.f32 %v5438, %v5454
        %v5473 = vmul.f32 %v5439, %v5454
        %v5474 = vmul.f32 %v5440, %v5454
        %v5475 = vmul.f32 %v5441, %v5454
        %v5476 = vmul.f32 %v5442, %v5454
        %v5477 = vmul.f32 %v5443, %v5454
        %v5478 = vmul.f32 %v5444, %v5454
        %v5479 = vmul.f32 %v5445, %v5454
        %v5480 = vmul.f32 %v5446, %v5454
        %v5481 = vmul.f32 %v5447, %v5454
        %v5482 = vmul.f32 %v5448, %v5454
        %v5483 = vmul.f32 %v5449, %v5454
        %v5484 = vmul.f32 %v5450, %v5454
        %v5485 = vmul.f32 %v5451, %v5454
        %v5486 = vmul.f32 %v5452, %v5454
        %v5487 = vadd.f32 %v5389, %v5455
        %v5488 = vadd.f32 %v5390, %v5456
        %v5489 = vadd.f32 %v5391, %v5457
        %v5490 = vadd.f32 %v5392, %v5458
        %v5491 = vadd.f32 %v5393, %v5459
        %v5492 = vadd.f32 %v5394, %v5460
        %v5493 = vadd.f32 %v5395, %v5461
        %v5494 = vadd.f32 %v5396, %v5462
        %v5495 = vadd.f32 %v5397, %v5463
        %v5496 = vadd.f32 %v5398, %v5464
        %v5497 = vadd.f32 %v5399, %v5465
        %v5498 = vadd.f32 %v5400, %v5466
        %v5499 = vadd.f32 %v5401, %v5467
        %v5500 = vadd.f32 %v5402, %v5468
        %v5501 = vadd.f32 %v5403, %v5469
        %v5502 = vadd.f32 %v5404, %v5470
        %v5503 = vadd.f32 %v5405, %v5471
        %v5504 = vadd.f32 %v5406, %v5472
        %v5505 = vadd.f32 %v5407, %v5473
        %v5506 = vadd.f32 %v5408, %v5474
        %v5507 = vadd.f32 %v5409, %v5475
        %v5508 = vadd.f32 %v5410, %v5476
        %v5509 = vadd.f32 %v5411, %v5477
        %v5510 = vadd.f32 %v5412, %v5478
        %v5511 = vadd.f32 %v5413, %v5479
        %v5512 = vadd.f32 %v5414, %v5480
        %v5513 = vadd.f32 %v5415, %v5481
        %v5514 = vadd.f32 %v5416, %v5482
        %v5515 = vadd.f32 %v5417, %v5483
        %v5516 = vadd.f32 %v5418, %v5484
        %v5517 = vadd.f32 %v5419, %v5485
        %v5518 = vadd.f32 %v5420, %v5486
        %s5519 = scalar_lea.vmem [#allocation2], 1088
        %v5520 = vld [vmem:[%s5519] sm:$0xff]
        %v5521 = vld [vmem:[%s5519 + $0x8] sm:$0xff]
        %v5522 = vld [vmem:[%s5519 + $0x10] sm:$0xff]
        %v5523 = vld [vmem:[%s5519 + $0x18] sm:$0xff]
        %v5524 = vld [vmem:[%s5519 + $0x20] sm:$0xff]
        %v5525 = vld [vmem:[%s5519 + $0x28] sm:$0xff]
        %v5526 = vld [vmem:[%s5519 + $0x30] sm:$0xff]
        %v5527 = vld [vmem:[%s5519 + $0x38] sm:$0xff]
        %v5528 = vld [vmem:[%s5519 + $0x40] sm:$0xff]
        %v5529 = vld [vmem:[%s5519 + $0x48] sm:$0xff]
        %v5530 = vld [vmem:[%s5519 + $0x50] sm:$0xff]
        %v5531 = vld [vmem:[%s5519 + $0x58] sm:$0xff]
        %v5532 = vld [vmem:[%s5519 + $0x60] sm:$0xff]
        %v5533 = vld [vmem:[%s5519 + $0x68] sm:$0xff]
        %v5534 = vld [vmem:[%s5519 + $0x70] sm:$0xff]
        %v5535 = vld [vmem:[%s5519 + $0x78] sm:$0xff]
        %v5536 = vld [vmem:[%s5519 + $0x88] sm:$0xff]
        %v5537 = vld [vmem:[%s5519 + $0x90] sm:$0xff]
        %v5538 = vld [vmem:[%s5519 + $0x98] sm:$0xff]
        %v5539 = vld [vmem:[%s5519 + $0xa0] sm:$0xff]
        %v5540 = vld [vmem:[%s5519 + $0xa8] sm:$0xff]
        %v5541 = vld [vmem:[%s5519 + $0xb0] sm:$0xff]
        %v5542 = vld [vmem:[%s5519 + $0xb8] sm:$0xff]
        %v5543 = vld [vmem:[%s5519 + $0xc0] sm:$0xff]
        %v5544 = vld [vmem:[%s5519 + $0xc8] sm:$0xff]
        %v5545 = vld [vmem:[%s5519 + $0xd0] sm:$0xff]
        %v5546 = vld [vmem:[%s5519 + $0xd8] sm:$0xff]
        %v5547 = vld [vmem:[%s5519 + $0xe0] sm:$0xff]
        %v5548 = vld [vmem:[%s5519 + $0xe8] sm:$0xff]
        %v5549 = vld [vmem:[%s5519 + $0xf0] sm:$0xff]
        %v5550 = vld [vmem:[%s5519 + $0xf8] sm:$0xff]
        %v5551 = vld [vmem:[%s5519 + $0x100] sm:$0xff]
        %v5552 = vld [vmem:[#allocation9 + $0x6] sm:$0x1]
        %v5553 = vperm.slane %v5552, 0
        %v5554 = vmul.f32 %v5520, %v5553
        %v5555 = vmul.f32 %v5521, %v5553
        %v5556 = vmul.f32 %v5522, %v5553
        %v5557 = vmul.f32 %v5523, %v5553
        %v5558 = vmul.f32 %v5524, %v5553
        %v5559 = vmul.f32 %v5525, %v5553
        %v5560 = vmul.f32 %v5526, %v5553
        %v5561 = vmul.f32 %v5527, %v5553
        %v5562 = vmul.f32 %v5528, %v5553
        %v5563 = vmul.f32 %v5529, %v5553
        %v5564 = vmul.f32 %v5530, %v5553
        %v5565 = vmul.f32 %v5531, %v5553
        %v5566 = vmul.f32 %v5532, %v5553
        %v5567 = vmul.f32 %v5533, %v5553
        %v5568 = vmul.f32 %v5534, %v5553
        %v5569 = vmul.f32 %v5535, %v5553
        %v5570 = vmul.f32 %v5536, %v5553
        %v5571 = vmul.f32 %v5537, %v5553
        %v5572 = vmul.f32 %v5538, %v5553
        %v5573 = vmul.f32 %v5539, %v5553
        %v5574 = vmul.f32 %v5540, %v5553
        %v5575 = vmul.f32 %v5541, %v5553
        %v5576 = vmul.f32 %v5542, %v5553
        %v5577 = vmul.f32 %v5543, %v5553
        %v5578 = vmul.f32 %v5544, %v5553
        %v5579 = vmul.f32 %v5545, %v5553
        %v5580 = vmul.f32 %v5546, %v5553
        %v5581 = vmul.f32 %v5547, %v5553
        %v5582 = vmul.f32 %v5548, %v5553
        %v5583 = vmul.f32 %v5549, %v5553
        %v5584 = vmul.f32 %v5550, %v5553
        %v5585 = vmul.f32 %v5551, %v5553
        %v5586 = vadd.f32 %v5487, %v5554
        %v5587 = vadd.f32 %v5488, %v5555
        %v5588 = vadd.f32 %v5489, %v5556
        %v5589 = vadd.f32 %v5490, %v5557
        %v5590 = vadd.f32 %v5491, %v5558
        %v5591 = vadd.f32 %v5492, %v5559
        %v5592 = vadd.f32 %v5493, %v5560
        %v5593 = vadd.f32 %v5494, %v5561
        %v5594 = vadd.f32 %v5495, %v5562
        %v5595 = vadd.f32 %v5496, %v5563
        %v5596 = vadd.f32 %v5497, %v5564
        %v5597 = vadd.f32 %v5498, %v5565
        %v5598 = vadd.f32 %v5499, %v5566
        %v5599 = vadd.f32 %v5500, %v5567
        %v5600 = vadd.f32 %v5501, %v5568
        %v5601 = vadd.f32 %v5502, %v5569
        %v5602 = vadd.f32 %v5503, %v5570
        %v5603 = vadd.f32 %v5504, %v5571
        %v5604 = vadd.f32 %v5505, %v5572
        %v5605 = vadd.f32 %v5506, %v5573
        %v5606 = vadd.f32 %v5507, %v5574
        %v5607 = vadd.f32 %v5508, %v5575
        %v5608 = vadd.f32 %v5509, %v5576
        %v5609 = vadd.f32 %v5510, %v5577
        %v5610 = vadd.f32 %v5511, %v5578
        %v5611 = vadd.f32 %v5512, %v5579
        %v5612 = vadd.f32 %v5513, %v5580
        %v5613 = vadd.f32 %v5514, %v5581
        %v5614 = vadd.f32 %v5515, %v5582
        %v5615 = vadd.f32 %v5516, %v5583
        %v5616 = vadd.f32 %v5517, %v5584
        %v5617 = vadd.f32 %v5518, %v5585
        %v5618 = vld [vmem:[%s5519 + $0x1] sm:$0xff]
        %v5619 = vld [vmem:[%s5519 + $0x9] sm:$0xff]
        %v5620 = vld [vmem:[%s5519 + $0x11] sm:$0xff]
        %v5621 = vld [vmem:[%s5519 + $0x19] sm:$0xff]
        %v5622 = vld [vmem:[%s5519 + $0x21] sm:$0xff]
        %v5623 = vld [vmem:[%s5519 + $0x29] sm:$0xff]
        %v5624 = vld [vmem:[%s5519 + $0x31] sm:$0xff]
        %v5625 = vld [vmem:[%s5519 + $0x39] sm:$0xff]
        %v5626 = vld [vmem:[%s5519 + $0x41] sm:$0xff]
        %v5627 = vld [vmem:[%s5519 + $0x49] sm:$0xff]
        %v5628 = vld [vmem:[%s5519 + $0x51] sm:$0xff]
        %v5629 = vld [vmem:[%s5519 + $0x59] sm:$0xff]
        %v5630 = vld [vmem:[%s5519 + $0x61] sm:$0xff]
        %v5631 = vld [vmem:[%s5519 + $0x69] sm:$0xff]
        %v5632 = vld [vmem:[%s5519 + $0x71] sm:$0xff]
        %v5633 = vld [vmem:[%s5519 + $0x79] sm:$0xff]
        %v5634 = vld [vmem:[%s5519 + $0x89] sm:$0xff]
        %v5635 = vld [vmem:[%s5519 + $0x91] sm:$0xff]
        %v5636 = vld [vmem:[%s5519 + $0x99] sm:$0xff]
        %v5637 = vld [vmem:[%s5519 + $0xa1] sm:$0xff]
        %v5638 = vld [vmem:[%s5519 + $0xa9] sm:$0xff]
        %v5639 = vld [vmem:[%s5519 + $0xb1] sm:$0xff]
        %v5640 = vld [vmem:[%s5519 + $0xb9] sm:$0xff]
        %v5641 = vld [vmem:[%s5519 + $0xc1] sm:$0xff]
        %v5642 = vld [vmem:[%s5519 + $0xc9] sm:$0xff]
        %v5643 = vld [vmem:[%s5519 + $0xd1] sm:$0xff]
        %v5644 = vld [vmem:[%s5519 + $0xd9] sm:$0xff]
        %v5645 = vld [vmem:[%s5519 + $0xe1] sm:$0xff]
        %v5646 = vld [vmem:[%s5519 + $0xe9] sm:$0xff]
        %v5647 = vld [vmem:[%s5519 + $0xf1] sm:$0xff]
        %v5648 = vld [vmem:[%s5519 + $0xf9] sm:$0xff]
        %v5649 = vld [vmem:[%s5519 + $0x101] sm:$0xff]
        %v5650 = vld [vmem:[#allocation9 + $0x7] sm:$0x1]
        %v5651 = vperm.slane %v5650, 0
        %v5652 = vmul.f32 %v5618, %v5651
        %v5653 = vmul.f32 %v5619, %v5651
        %v5654 = vmul.f32 %v5620, %v5651
        %v5655 = vmul.f32 %v5621, %v5651
        %v5656 = vmul.f32 %v5622, %v5651
        %v5657 = vmul.f32 %v5623, %v5651
        %v5658 = vmul.f32 %v5624, %v5651
        %v5659 = vmul.f32 %v5625, %v5651
        %v5660 = vmul.f32 %v5626, %v5651
        %v5661 = vmul.f32 %v5627, %v5651
        %v5662 = vmul.f32 %v5628, %v5651
        %v5663 = vmul.f32 %v5629, %v5651
        %v5664 = vmul.f32 %v5630, %v5651
        %v5665 = vmul.f32 %v5631, %v5651
        %v5666 = vmul.f32 %v5632, %v5651
        %v5667 = vmul.f32 %v5633, %v5651
        %v5668 = vmul.f32 %v5634, %v5651
        %v5669 = vmul.f32 %v5635, %v5651
        %v5670 = vmul.f32 %v5636, %v5651
        %v5671 = vmul.f32 %v5637, %v5651
        %v5672 = vmul.f32 %v5638, %v5651
        %v5673 = vmul.f32 %v5639, %v5651
        %v5674 = vmul.f32 %v5640, %v5651
        %v5675 = vmul.f32 %v5641, %v5651
        %v5676 = vmul.f32 %v5642, %v5651
        %v5677 = vmul.f32 %v5643, %v5651
        %v5678 = vmul.f32 %v5644, %v5651
        %v5679 = vmul.f32 %v5645, %v5651
        %v5680 = vmul.f32 %v5646, %v5651
        %v5681 = vmul.f32 %v5647, %v5651
        %v5682 = vmul.f32 %v5648, %v5651
        %v5683 = vmul.f32 %v5649, %v5651
        %v5684 = vadd.f32 %v5586, %v5652
        %v5685 = vadd.f32 %v5587, %v5653
        %v5686 = vadd.f32 %v5588, %v5654
        %v5687 = vadd.f32 %v5589, %v5655
        %v5688 = vadd.f32 %v5590, %v5656
        %v5689 = vadd.f32 %v5591, %v5657
        %v5690 = vadd.f32 %v5592, %v5658
        %v5691 = vadd.f32 %v5593, %v5659
        %v5692 = vadd.f32 %v5594, %v5660
        %v5693 = vadd.f32 %v5595, %v5661
        %v5694 = vadd.f32 %v5596, %v5662
        %v5695 = vadd.f32 %v5597, %v5663
        %v5696 = vadd.f32 %v5598, %v5664
        %v5697 = vadd.f32 %v5599, %v5665
        %v5698 = vadd.f32 %v5600, %v5666
        %v5699 = vadd.f32 %v5601, %v5667
        %v5700 = vadd.f32 %v5602, %v5668
        %v5701 = vadd.f32 %v5603, %v5669
        %v5702 = vadd.f32 %v5604, %v5670
        %v5703 = vadd.f32 %v5605, %v5671
        %v5704 = vadd.f32 %v5606, %v5672
        %v5705 = vadd.f32 %v5607, %v5673
        %v5706 = vadd.f32 %v5608, %v5674
        %v5707 = vadd.f32 %v5609, %v5675
        %v5708 = vadd.f32 %v5610, %v5676
        %v5709 = vadd.f32 %v5611, %v5677
        %v5710 = vadd.f32 %v5612, %v5678
        %v5711 = vadd.f32 %v5613, %v5679
        %v5712 = vadd.f32 %v5614, %v5680
        %v5713 = vadd.f32 %v5615, %v5681
        %v5714 = vadd.f32 %v5616, %v5682
        %v5715 = vadd.f32 %v5617, %v5683
        %v5716 = vld [vmem:[%s5519 + $0x2] sm:$0xff]
        %v5717 = vld [vmem:[%s5519 + $0xa] sm:$0xff]
        %v5718 = vld [vmem:[%s5519 + $0x12] sm:$0xff]
        %v5719 = vld [vmem:[%s5519 + $0x1a] sm:$0xff]
        %v5720 = vld [vmem:[%s5519 + $0x22] sm:$0xff]
        %v5721 = vld [vmem:[%s5519 + $0x2a] sm:$0xff]
        %v5722 = vld [vmem:[%s5519 + $0x32] sm:$0xff]
        %v5723 = vld [vmem:[%s5519 + $0x3a] sm:$0xff]
        %v5724 = vld [vmem:[%s5519 + $0x42] sm:$0xff]
        %v5725 = vld [vmem:[%s5519 + $0x4a] sm:$0xff]
        %v5726 = vld [vmem:[%s5519 + $0x52] sm:$0xff]
        %v5727 = vld [vmem:[%s5519 + $0x5a] sm:$0xff]
        %v5728 = vld [vmem:[%s5519 + $0x62] sm:$0xff]
        %v5729 = vld [vmem:[%s5519 + $0x6a] sm:$0xff]
        %v5730 = vld [vmem:[%s5519 + $0x72] sm:$0xff]
        %v5731 = vld [vmem:[%s5519 + $0x7a] sm:$0xff]
        %v5732 = vld [vmem:[%s5519 + $0x8a] sm:$0xff]
        %v5733 = vld [vmem:[%s5519 + $0x92] sm:$0xff]
        %v5734 = vld [vmem:[%s5519 + $0x9a] sm:$0xff]
        %v5735 = vld [vmem:[%s5519 + $0xa2] sm:$0xff]
        %v5736 = vld [vmem:[%s5519 + $0xaa] sm:$0xff]
        %v5737 = vld [vmem:[%s5519 + $0xb2] sm:$0xff]
        %v5738 = vld [vmem:[%s5519 + $0xba] sm:$0xff]
        %v5739 = vld [vmem:[%s5519 + $0xc2] sm:$0xff]
        %v5740 = vld [vmem:[%s5519 + $0xca] sm:$0xff]
        %v5741 = vld [vmem:[%s5519 + $0xd2] sm:$0xff]
        %v5742 = vld [vmem:[%s5519 + $0xda] sm:$0xff]
        %v5743 = vld [vmem:[%s5519 + $0xe2] sm:$0xff]
        %v5744 = vld [vmem:[%s5519 + $0xea] sm:$0xff]
        %v5745 = vld [vmem:[%s5519 + $0xf2] sm:$0xff]
        %v5746 = vld [vmem:[%s5519 + $0xfa] sm:$0xff]
        %v5747 = vld [vmem:[%s5519 + $0x102] sm:$0xff]
        %v5748 = vld [vmem:[#allocation9 + $0x8] sm:$0x1]
        %v5749 = vperm.slane %v5748, 0
        %v5750 = vmul.f32 %v5716, %v5749
        %v5751 = vmul.f32 %v5717, %v5749
        %v5752 = vmul.f32 %v5718, %v5749
        %v5753 = vmul.f32 %v5719, %v5749
        %v5754 = vmul.f32 %v5720, %v5749
        %v5755 = vmul.f32 %v5721, %v5749
        %v5756 = vmul.f32 %v5722, %v5749
        %v5757 = vmul.f32 %v5723, %v5749
        %v5758 = vmul.f32 %v5724, %v5749
        %v5759 = vmul.f32 %v5725, %v5749
        %v5760 = vmul.f32 %v5726, %v5749
        %v5761 = vmul.f32 %v5727, %v5749
        %v5762 = vmul.f32 %v5728, %v5749
        %v5763 = vmul.f32 %v5729, %v5749
        %v5764 = vmul.f32 %v5730, %v5749
        %v5765 = vmul.f32 %v5731, %v5749
        %v5766 = vmul.f32 %v5732, %v5749
        %v5767 = vmul.f32 %v5733, %v5749
        %v5768 = vmul.f32 %v5734, %v5749
        %v5769 = vmul.f32 %v5735, %v5749
        %v5770 = vmul.f32 %v5736, %v5749
        %v5771 = vmul.f32 %v5737, %v5749
        %v5772 = vmul.f32 %v5738, %v5749
        %v5773 = vmul.f32 %v5739, %v5749
        %v5774 = vmul.f32 %v5740, %v5749
        %v5775 = vmul.f32 %v5741, %v5749
        %v5776 = vmul.f32 %v5742, %v5749
        %v5777 = vmul.f32 %v5743, %v5749
        %v5778 = vmul.f32 %v5744, %v5749
        %v5779 = vmul.f32 %v5745, %v5749
        %v5780 = vmul.f32 %v5746, %v5749
        %v5781 = vmul.f32 %v5747, %v5749
        %v5782 = vadd.f32 %v5684, %v5750
        %v5783 = vadd.f32 %v5685, %v5751
        %v5784 = vadd.f32 %v5686, %v5752
        %v5785 = vadd.f32 %v5687, %v5753
        %v5786 = vadd.f32 %v5688, %v5754
        %v5787 = vadd.f32 %v5689, %v5755
        %v5788 = vadd.f32 %v5690, %v5756
        %v5789 = vadd.f32 %v5691, %v5757
        %v5790 = vadd.f32 %v5692, %v5758
        %v5791 = vadd.f32 %v5693, %v5759
        %v5792 = vadd.f32 %v5694, %v5760
        %v5793 = vadd.f32 %v5695, %v5761
        %v5794 = vadd.f32 %v5696, %v5762
        %v5795 = vadd.f32 %v5697, %v5763
        %v5796 = vadd.f32 %v5698, %v5764
        %v5797 = vadd.f32 %v5699, %v5765
        %v5798 = vadd.f32 %v5700, %v5766
        %v5799 = vadd.f32 %v5701, %v5767
        %v5800 = vadd.f32 %v5702, %v5768
        %v5801 = vadd.f32 %v5703, %v5769
        %v5802 = vadd.f32 %v5704, %v5770
        %v5803 = vadd.f32 %v5705, %v5771
        %v5804 = vadd.f32 %v5706, %v5772
        %v5805 = vadd.f32 %v5707, %v5773
        %v5806 = vadd.f32 %v5708, %v5774
        %v5807 = vadd.f32 %v5709, %v5775
        %v5808 = vadd.f32 %v5710, %v5776
        %v5809 = vadd.f32 %v5711, %v5777
        %v5810 = vadd.f32 %v5712, %v5778
        %v5811 = vadd.f32 %v5713, %v5779
        %v5812 = vadd.f32 %v5714, %v5780
        %v5813 = vadd.f32 %v5715, %v5781
        %v5814 = vpack.c.bf16 %v5783, %v5782
        %v5815 = vpack.c.bf16 %v5785, %v5784
        %v5816 = vpack.c.bf16 %v5787, %v5786
        %v5817 = vpack.c.bf16 %v5789, %v5788
        %v5818 = vpack.c.bf16 %v5791, %v5790
        %v5819 = vpack.c.bf16 %v5793, %v5792
        %v5820 = vpack.c.bf16 %v5795, %v5794
        %v5821 = vpack.c.bf16 %v5797, %v5796
        %v5822 = vpack.c.bf16 %v5799, %v5798
        %v5823 = vpack.c.bf16 %v5801, %v5800
        %v5824 = vpack.c.bf16 %v5803, %v5802
        %v5825 = vpack.c.bf16 %v5805, %v5804
        %v5826 = vpack.c.bf16 %v5807, %v5806
        %v5827 = vpack.c.bf16 %v5809, %v5808
        %v5828 = vpack.c.bf16 %v5811, %v5810
        %v5829 = vpack.c.bf16 %v5813, %v5812
        %v5830 = vld [vmem:[#allocation11] sm:$0xf]
        %v5831 = vld [vmem:[#allocation11 + $0x4] sm:$0xf]
        %v5832 = vld [vmem:[#allocation11 + $0x8] sm:$0xf]
        %v5833 = vld [vmem:[#allocation11 + $0xc] sm:$0xf]
        %v5834 = vld [vmem:[#allocation11 + $0x10] sm:$0xf]
        %v5835 = vld [vmem:[#allocation11 + $0x14] sm:$0xf]
        %v5836 = vld [vmem:[#allocation11 + $0x18] sm:$0xf]
        %v5837 = vld [vmem:[#allocation11 + $0x1c] sm:$0xf]
        %v5838 = vld [vmem:[#allocation11 + $0x20] sm:$0xf]
        %v5839 = vld [vmem:[#allocation11 + $0x24] sm:$0xf]
        %v5840 = vld [vmem:[#allocation11 + $0x28] sm:$0xf]
        %v5841 = vld [vmem:[#allocation11 + $0x2c] sm:$0xf]
        %v5842 = vld [vmem:[#allocation11 + $0x30] sm:$0xf]
        %v5843 = vld [vmem:[#allocation11 + $0x34] sm:$0xf]
        %v5844 = vld [vmem:[#allocation11 + $0x38] sm:$0xf]
        %v5845 = vld [vmem:[#allocation11 + $0x3c] sm:$0xf]
        %v5862 = vunpack.c.l.b16 %v5830
        %v5863 = vunpack.c.l.b16 %v5831
        %v5864 = vunpack.c.l.b16 %v5832
        %v5865 = vunpack.c.l.b16 %v5833
        %v5866 = vunpack.c.l.b16 %v5834
        %v5867 = vunpack.c.l.b16 %v5835
        %v5868 = vunpack.c.l.b16 %v5836
        %v5869 = vunpack.c.l.b16 %v5837
        %v5870 = vunpack.c.l.b16 %v5838
        %v5871 = vunpack.c.l.b16 %v5839
        %v5872 = vunpack.c.l.b16 %v5840
        %v5873 = vunpack.c.l.b16 %v5841
        %v5874 = vunpack.c.l.b16 %v5842
        %v5875 = vunpack.c.l.b16 %v5843
        %v5876 = vunpack.c.l.b16 %v5844
        %v5877 = vunpack.c.l.b16 %v5845
        %v5878 = vpack.c.b16 %v5863, %v5862
        %v5879 = vpack.c.b16 %v5865, %v5864
        %v5880 = vpack.c.b16 %v5867, %v5866
        %v5881 = vpack.c.b16 %v5869, %v5868
        %v5882 = vpack.c.b16 %v5871, %v5870
        %v5883 = vpack.c.b16 %v5873, %v5872
        %v5884 = vpack.c.b16 %v5875, %v5874
        %v5885 = vpack.c.b16 %v5877, %v5876
        %5894 = vmatpush.bf16.msra.mxu0 %v5885
        %5895 = vmatpush.bf16.msra.mxu0 %v5884
        %5896 = vmatpush.bf16.msra.mxu0 %v5883
        %5897 = vmatpush.bf16.msra.mxu0 %v5882
        %5898 = vmatpush.bf16.msra.mxu0 %v5881
        %5899 = vmatpush.bf16.msra.mxu0 %v5880
        %5900 = vmatpush.bf16.msra.mxu0 %v5879
        %5901 = vmatpush.bf16.msra.mxu0 %v5878
        %5902 = vmatmul.bf16.gmra.mxu0 %v5814
        %v5903 = vpop.f32.mrf.mxu0
        %v5904 = vadd.f32 %v1915, %v5903
        %v5905 = vpop.f32.mrf.mxu0
        %v5906 = vadd.f32 %v1915, %v5905
        %5907 = vmatmul.bf16.gmra.mxu0 %v5815
        %v5908 = vpop.f32.mrf.mxu0
        %v5909 = vadd.f32 %v1915, %v5908
        %v5910 = vpop.f32.mrf.mxu0
        %v5911 = vadd.f32 %v1915, %v5910
        %5912 = vmatmul.bf16.gmra.mxu0 %v5816
        %v5913 = vpop.f32.mrf.mxu0
        %v5914 = vadd.f32 %v1915, %v5913
        %v5915 = vpop.f32.mrf.mxu0
        %v5916 = vadd.f32 %v1915, %v5915
        %5917 = vmatmul.bf16.gmra.mxu0 %v5817
        %v5918 = vpop.f32.mrf.mxu0
        %v5919 = vadd.f32 %v1915, %v5918
        %v5920 = vpop.f32.mrf.mxu0
        %v5921 = vadd.f32 %v1915, %v5920
        %5922 = vmatmul.bf16.gmra.mxu0 %v5818
        %v5923 = vpop.f32.mrf.mxu0
        %v5924 = vadd.f32 %v1915, %v5923
        %v5925 = vpop.f32.mrf.mxu0
        %v5926 = vadd.f32 %v1915, %v5925
        %5927 = vmatmul.bf16.gmra.mxu0 %v5819
        %v5928 = vpop.f32.mrf.mxu0
        %v5929 = vadd.f32 %v1915, %v5928
        %v5930 = vpop.f32.mrf.mxu0
        %v5931 = vadd.f32 %v1915, %v5930
        %5932 = vmatmul.bf16.gmra.mxu0 %v5820
        %v5933 = vpop.f32.mrf.mxu0
        %v5934 = vadd.f32 %v1915, %v5933
        %v5935 = vpop.f32.mrf.mxu0
        %v5936 = vadd.f32 %v1915, %v5935
        %5937 = vmatmul.bf16.gmra.mxu0 %v5821
        %v5938 = vpop.f32.mrf.mxu0
        %v5939 = vadd.f32 %v1915, %v5938
        %v5940 = vpop.f32.mrf.mxu0
        %v5941 = vadd.f32 %v1915, %v5940
        %5942 = vmatmul.bf16.gmra.mxu0 %v5822
        %v5943 = vpop.f32.mrf.mxu0
        %v5944 = vadd.f32 %v1915, %v5943
        %v5945 = vpop.f32.mrf.mxu0
        %v5946 = vadd.f32 %v1915, %v5945
        %5947 = vmatmul.bf16.gmra.mxu0 %v5823
        %v5948 = vpop.f32.mrf.mxu0
        %v5949 = vadd.f32 %v1915, %v5948
        %v5950 = vpop.f32.mrf.mxu0
        %v5951 = vadd.f32 %v1915, %v5950
        %5952 = vmatmul.bf16.gmra.mxu0 %v5824
        %v5953 = vpop.f32.mrf.mxu0
        %v5954 = vadd.f32 %v1915, %v5953
        %v5955 = vpop.f32.mrf.mxu0
        %v5956 = vadd.f32 %v1915, %v5955
        %5957 = vmatmul.bf16.gmra.mxu0 %v5825
        %v5958 = vpop.f32.mrf.mxu0
        %v5959 = vadd.f32 %v1915, %v5958
        %v5960 = vpop.f32.mrf.mxu0
        %v5961 = vadd.f32 %v1915, %v5960
        %5962 = vmatmul.bf16.gmra.mxu0 %v5826
        %v5963 = vpop.f32.mrf.mxu0
        %v5964 = vadd.f32 %v1915, %v5963
        %v5965 = vpop.f32.mrf.mxu0
        %v5966 = vadd.f32 %v1915, %v5965
        %5967 = vmatmul.bf16.gmra.mxu0 %v5827
        %v5968 = vpop.f32.mrf.mxu0
        %v5969 = vadd.f32 %v1915, %v5968
        %v5970 = vpop.f32.mrf.mxu0
        %v5971 = vadd.f32 %v1915, %v5970
        %5972 = vmatmul.bf16.gmra.mxu0 %v5828
        %v5973 = vpop.f32.mrf.mxu0
        %v5974 = vadd.f32 %v1915, %v5973
        %v5975 = vpop.f32.mrf.mxu0
        %v5976 = vadd.f32 %v1915, %v5975
        %5977 = vmatmul.bf16.gmra.mxu0 %v5829
        %v5978 = vpop.f32.mrf.mxu0
        %v5979 = vadd.f32 %v1915, %v5978
        %v5980 = vpop.f32.mrf.mxu0
        %v5981 = vadd.f32 %v1915, %v5980
        %5982 = vdwg.mxu0
        %v5983 = vsub.f32 0.0, %v5904
        %v5984 = vsub.f32 0.0, %v5906
        %v5985 = vsub.f32 0.0, %v5909
        %v5986 = vsub.f32 0.0, %v5911
        %v5987 = vsub.f32 0.0, %v5914
        %v5988 = vsub.f32 0.0, %v5916
        %v5989 = vsub.f32 0.0, %v5919
        %v5990 = vsub.f32 0.0, %v5921
        %v5991 = vsub.f32 0.0, %v5924
        %v5992 = vsub.f32 0.0, %v5926
        %v5993 = vsub.f32 0.0, %v5929
        %v5994 = vsub.f32 0.0, %v5931
        %v5995 = vsub.f32 0.0, %v5934
        %v5996 = vsub.f32 0.0, %v5936
        %v5997 = vsub.f32 0.0, %v5939
        %v5998 = vsub.f32 0.0, %v5941
        %v5999 = vsub.f32 0.0, %v5944
        %v6000 = vsub.f32 0.0, %v5946
        %v6001 = vsub.f32 0.0, %v5949
        %v6002 = vsub.f32 0.0, %v5951
        %v6003 = vsub.f32 0.0, %v5954
        %v6004 = vsub.f32 0.0, %v5956
        %v6005 = vsub.f32 0.0, %v5959
        %v6006 = vsub.f32 0.0, %v5961
        %v6007 = vsub.f32 0.0, %v5964
        %v6008 = vsub.f32 0.0, %v5966
        %v6009 = vsub.f32 0.0, %v5969
        %v6010 = vsub.f32 0.0, %v5971
        %v6011 = vsub.f32 0.0, %v5974
        %v6012 = vsub.f32 0.0, %v5976
        %v6013 = vsub.f32 0.0, %v5979
        %v6014 = vsub.f32 0.0, %v5981
        %v6015 = vmul.f32 %v5983, 1.442695
        %v6016 = vpow.pop %v6015
        %v6017 = vmul.f32 %v5984, 1.442695
        %v6018 = vpow.pop %v6017
        %v6019 = vmul.f32 %v5985, 1.442695
        %v6020 = vpow.pop %v6019
        %v6021 = vmul.f32 %v5986, 1.442695
        %v6022 = vpow.pop %v6021
        %v6023 = vmul.f32 %v5987, 1.442695
        %v6024 = vpow.pop %v6023
        %v6025 = vmul.f32 %v5988, 1.442695
        %v6026 = vpow.pop %v6025
        %v6027 = vmul.f32 %v5989, 1.442695
        %v6028 = vpow.pop %v6027
        %v6029 = vmul.f32 %v5990, 1.442695
        %v6030 = vpow.pop %v6029
        %v6031 = vmul.f32 %v5991, 1.442695
        %v6032 = vpow.pop %v6031
        %v6033 = vmul.f32 %v5992, 1.442695
        %v6034 = vpow.pop %v6033
        %v6035 = vmul.f32 %v5993, 1.442695
        %v6036 = vpow.pop %v6035
        %v6037 = vmul.f32 %v5994, 1.442695
        %v6038 = vpow.pop %v6037
        %v6039 = vmul.f32 %v5995, 1.442695
        %v6040 = vpow.pop %v6039
        %v6041 = vmul.f32 %v5996, 1.442695
        %v6042 = vpow.pop %v6041
        %v6043 = vmul.f32 %v5997, 1.442695
        %v6044 = vpow.pop %v6043
        %v6045 = vmul.f32 %v5998, 1.442695
        %v6046 = vpow.pop %v6045
        %v6047 = vmul.f32 %v5999, 1.442695
        %v6048 = vpow.pop %v6047
        %v6049 = vmul.f32 %v6000, 1.442695
        %v6050 = vpow.pop %v6049
        %v6051 = vmul.f32 %v6001, 1.442695
        %v6052 = vpow.pop %v6051
        %v6053 = vmul.f32 %v6002, 1.442695
        %v6054 = vpow.pop %v6053
        %v6055 = vmul.f32 %v6003, 1.442695
        %v6056 = vpow.pop %v6055
        %v6057 = vmul.f32 %v6004, 1.442695
        %v6058 = vpow.pop %v6057
        %v6059 = vmul.f32 %v6005, 1.442695
        %v6060 = vpow.pop %v6059
        %v6061 = vmul.f32 %v6006, 1.442695
        %v6062 = vpow.pop %v6061
        %v6063 = vmul.f32 %v6007, 1.442695
        %v6064 = vpow.pop %v6063
        %v6065 = vmul.f32 %v6008, 1.442695
        %v6066 = vpow.pop %v6065
        %v6067 = vmul.f32 %v6009, 1.442695
        %v6068 = vpow.pop %v6067
        %v6069 = vmul.f32 %v6010, 1.442695
        %v6070 = vpow.pop %v6069
        %v6071 = vmul.f32 %v6011, 1.442695
        %v6072 = vpow.pop %v6071
        %v6073 = vmul.f32 %v6012, 1.442695
        %v6074 = vpow.pop %v6073
        %v6075 = vmul.f32 %v6013, 1.442695
        %v6076 = vpow.pop %v6075
        %v6077 = vmul.f32 %v6014, 1.442695
        %v6078 = vpow.pop %v6077
        %v6079 = vadd.f32 %v6016, 1.0
        %v6080 = vadd.f32 %v6018, 1.0
        %v6081 = vadd.f32 %v6020, 1.0
        %v6082 = vadd.f32 %v6022, 1.0
        %v6083 = vadd.f32 %v6024, 1.0
        %v6084 = vadd.f32 %v6026, 1.0
        %v6085 = vadd.f32 %v6028, 1.0
        %v6086 = vadd.f32 %v6030, 1.0
        %v6087 = vadd.f32 %v6032, 1.0
        %v6088 = vadd.f32 %v6034, 1.0
        %v6089 = vadd.f32 %v6036, 1.0
        %v6090 = vadd.f32 %v6038, 1.0
        %v6091 = vadd.f32 %v6040, 1.0
        %v6092 = vadd.f32 %v6042, 1.0
        %v6093 = vadd.f32 %v6044, 1.0
        %v6094 = vadd.f32 %v6046, 1.0
        %v6095 = vadd.f32 %v6048, 1.0
        %v6096 = vadd.f32 %v6050, 1.0
        %v6097 = vadd.f32 %v6052, 1.0
        %v6098 = vadd.f32 %v6054, 1.0
        %v6099 = vadd.f32 %v6056, 1.0
        %v6100 = vadd.f32 %v6058, 1.0
        %v6101 = vadd.f32 %v6060, 1.0
        %v6102 = vadd.f32 %v6062, 1.0
        %v6103 = vadd.f32 %v6064, 1.0
        %v6104 = vadd.f32 %v6066, 1.0
        %v6105 = vadd.f32 %v6068, 1.0
        %v6106 = vadd.f32 %v6070, 1.0
        %v6107 = vadd.f32 %v6072, 1.0
        %v6108 = vadd.f32 %v6074, 1.0
        %v6109 = vadd.f32 %v6076, 1.0
        %v6110 = vadd.f32 %v6078, 1.0
        %v6111 = vrcp.pop %v6079
        %v6112 = vrcp.pop %v6080
        %v6113 = vrcp.pop %v6081
        %v6114 = vrcp.pop %v6082
        %v6115 = vrcp.pop %v6083
        %v6116 = vrcp.pop %v6084
        %v6117 = vrcp.pop %v6085
        %v6118 = vrcp.pop %v6086
        %v6119 = vrcp.pop %v6087
        %v6120 = vrcp.pop %v6088
        %v6121 = vrcp.pop %v6089
        %v6122 = vrcp.pop %v6090
        %v6123 = vrcp.pop %v6091
        %v6124 = vrcp.pop %v6092
        %v6125 = vrcp.pop %v6093
        %v6126 = vrcp.pop %v6094
        %v6127 = vrcp.pop %v6095
        %v6128 = vrcp.pop %v6096
        %v6129 = vrcp.pop %v6097
        %v6130 = vrcp.pop %v6098
        %v6131 = vrcp.pop %v6099
        %v6132 = vrcp.pop %v6100
        %v6133 = vrcp.pop %v6101
        %v6134 = vrcp.pop %v6102
        %v6135 = vrcp.pop %v6103
        %v6136 = vrcp.pop %v6104
        %v6137 = vrcp.pop %v6105
        %v6138 = vrcp.pop %v6106
        %v6139 = vrcp.pop %v6107
        %v6140 = vrcp.pop %v6108
        %v6141 = vrcp.pop %v6109
        %v6142 = vrcp.pop %v6110
        %v6143 = vmul.f32 %v5904, %v6111
        %v6144 = vmul.f32 %v5906, %v6112
        %v6145 = vmul.f32 %v5909, %v6113
        %v6146 = vmul.f32 %v5911, %v6114
        %v6147 = vmul.f32 %v5914, %v6115
        %v6148 = vmul.f32 %v5916, %v6116
        %v6149 = vmul.f32 %v5919, %v6117
        %v6150 = vmul.f32 %v5921, %v6118
        %v6151 = vmul.f32 %v5924, %v6119
        %v6152 = vmul.f32 %v5926, %v6120
        %v6153 = vmul.f32 %v5929, %v6121
        %v6154 = vmul.f32 %v5931, %v6122
        %v6155 = vmul.f32 %v5934, %v6123
        %v6156 = vmul.f32 %v5936, %v6124
        %v6157 = vmul.f32 %v5939, %v6125
        %v6158 = vmul.f32 %v5941, %v6126
        %v6159 = vmul.f32 %v5944, %v6127
        %v6160 = vmul.f32 %v5946, %v6128
        %v6161 = vmul.f32 %v5949, %v6129
        %v6162 = vmul.f32 %v5951, %v6130
        %v6163 = vmul.f32 %v5954, %v6131
        %v6164 = vmul.f32 %v5956, %v6132
        %v6165 = vmul.f32 %v5959, %v6133
        %v6166 = vmul.f32 %v5961, %v6134
        %v6167 = vmul.f32 %v5964, %v6135
        %v6168 = vmul.f32 %v5966, %v6136
        %v6169 = vmul.f32 %v5969, %v6137
        %v6170 = vmul.f32 %v5971, %v6138
        %v6171 = vmul.f32 %v5974, %v6139
        %v6172 = vmul.f32 %v5976, %v6140
        %v6173 = vmul.f32 %v5979, %v6141
        %v6174 = vmul.f32 %v5981, %v6142
        %v6175 = vpack.c.bf16 %v6143, %v6143
        %v6176 = vpack.c.bf16 %v6144, %v6144
        %v6177 = vpack.c.bf16 %v6145, %v6145
        %v6178 = vpack.c.bf16 %v6146, %v6146
        %v6179 = vpack.c.bf16 %v6147, %v6147
        %v6180 = vpack.c.bf16 %v6148, %v6148
        %v6181 = vpack.c.bf16 %v6149, %v6149
        %v6182 = vpack.c.bf16 %v6150, %v6150
        %v6183 = vpack.c.bf16 %v6151, %v6151
        %v6184 = vpack.c.bf16 %v6152, %v6152
        %v6185 = vpack.c.bf16 %v6153, %v6153
        %v6186 = vpack.c.bf16 %v6154, %v6154
        %v6187 = vpack.c.bf16 %v6155, %v6155
        %v6188 = vpack.c.bf16 %v6156, %v6156
        %v6189 = vpack.c.bf16 %v6157, %v6157
        %v6190 = vpack.c.bf16 %v6158, %v6158
        %v6191 = vpack.c.bf16 %v6159, %v6159
        %v6192 = vpack.c.bf16 %v6160, %v6160
        %v6193 = vpack.c.bf16 %v6161, %v6161
        %v6194 = vpack.c.bf16 %v6162, %v6162
        %v6195 = vpack.c.bf16 %v6163, %v6163
        %v6196 = vpack.c.bf16 %v6164, %v6164
        %v6197 = vpack.c.bf16 %v6165, %v6165
        %v6198 = vpack.c.bf16 %v6166, %v6166
        %v6199 = vpack.c.bf16 %v6167, %v6167
        %v6200 = vpack.c.bf16 %v6168, %v6168
        %v6201 = vpack.c.bf16 %v6169, %v6169
        %v6202 = vpack.c.bf16 %v6170, %v6170
        %v6203 = vpack.c.bf16 %v6171, %v6171
        %v6204 = vpack.c.bf16 %v6172, %v6172
        %v6205 = vpack.c.bf16 %v6173, %v6173
        %v6206 = vpack.c.bf16 %v6174, %v6174
        %s6207 = scalar_lea.vmem %s436, 384 [#allocation12]
        %6208 = vst [vmem:[%s6207] sm:$0xf] %v6175
        %6209 = vst [vmem:[%s6207 + $0x4] sm:$0xf] %v6176
        %6210 = vst [vmem:[%s6207 + $0x8] sm:$0xf] %v6177
        %6211 = vst [vmem:[%s6207 + $0xc] sm:$0xf] %v6178
        %6212 = vst [vmem:[%s6207 + $0x10] sm:$0xf] %v6179
        %6213 = vst [vmem:[%s6207 + $0x14] sm:$0xf] %v6180
        %6214 = vst [vmem:[%s6207 + $0x18] sm:$0xf] %v6181
        %6215 = vst [vmem:[%s6207 + $0x1c] sm:$0xf] %v6182
        %6216 = vst [vmem:[%s6207 + $0x20] sm:$0xf] %v6183
        %6217 = vst [vmem:[%s6207 + $0x24] sm:$0xf] %v6184
        %6218 = vst [vmem:[%s6207 + $0x28] sm:$0xf] %v6185
        %6219 = vst [vmem:[%s6207 + $0x2c] sm:$0xf] %v6186
        %6220 = vst [vmem:[%s6207 + $0x30] sm:$0xf] %v6187
        %6221 = vst [vmem:[%s6207 + $0x34] sm:$0xf] %v6188
        %6222 = vst [vmem:[%s6207 + $0x38] sm:$0xf] %v6189
        %6223 = vst [vmem:[%s6207 + $0x3c] sm:$0xf] %v6190
        %6224 = vst [vmem:[%s6207 + $0x40] sm:$0xf] %v6191
        %6225 = vst [vmem:[%s6207 + $0x44] sm:$0xf] %v6192
        %6226 = vst [vmem:[%s6207 + $0x48] sm:$0xf] %v6193
        %6227 = vst [vmem:[%s6207 + $0x4c] sm:$0xf] %v6194
        %6228 = vst [vmem:[%s6207 + $0x50] sm:$0xf] %v6195
        %6229 = vst [vmem:[%s6207 + $0x54] sm:$0xf] %v6196
        %6230 = vst [vmem:[%s6207 + $0x58] sm:$0xf] %v6197
        %6231 = vst [vmem:[%s6207 + $0x5c] sm:$0xf] %v6198
        %6232 = vst [vmem:[%s6207 + $0x60] sm:$0xf] %v6199
        %6233 = vst [vmem:[%s6207 + $0x64] sm:$0xf] %v6200
        %6234 = vst [vmem:[%s6207 + $0x68] sm:$0xf] %v6201
        %6235 = vst [vmem:[%s6207 + $0x6c] sm:$0xf] %v6202
        %6236 = vst [vmem:[%s6207 + $0x70] sm:$0xf] %v6203
        %6237 = vst [vmem:[%s6207 + $0x74] sm:$0xf] %v6204
        %6238 = vst [vmem:[%s6207 + $0x78] sm:$0xf] %v6205
        %6239 = vst [vmem:[%s6207 + $0x7c] sm:$0xf] %v6206
        %s6240 = sand.u32 %s212, 1
        %s6241 = scalar_lea.sflag [#allocation5], %s6240
        %s6242 = sand.u32 %s212, 1
        %s6243 = smul.addr %s6242, 512
        %s6244 = scalar_lea.vmem [#allocation12], %s6243
        // Predicated region
        $region81: #{tpu_custom_call.1} parent=43 // pred_check
          %p6245 = pneg %p222
        $region82: #{tpu_custom_call.1} parent=43 // pred_check_branch
          %6247 = sbr.rel (%p6245) target = $region84
        $region83: #{tpu_custom_call.1} parent=43 // pred_region
          %s6248 = smul.u32 8, %s32
          %6250 = vsyncadd %s6241, 0
          %s6251 = smul.addr %s6248, 16
          %s6252 = smul.addr %s31, 256
          %s6253 = sadd.s32 %s6251, %s6252
          %s6254 = smul.addr %s6253, 4
          %s6255 = scalar_lea.hbm %s6, %s6254
          %s6256 = sshll.u32 %s6244, 4
          %s6257 = int_to_ptr.vmem [resolvable:$true] %s6256
          %s6258 = sshll.u32 %s6255, 4
          %s6259 = int_to_ptr.hbm [resolvable:$true] %s6258
          %6264 = dma.vmem_to_hbm [thread:$0]  %s6257, 8192, %s6259, %s6241, 64, 64, 4
        $region84: #{tpu_custom_call.1} parent=43 // pred_fallthru
          _
      $region44: #{tpu_custom_call.1} parent=5 // pred_fallthru
        _
      %p6265 = scmp.le.s32.totalorder 2, %s22
      // Predicated region
      $region85: #{tpu_custom_call.1} parent=5 // pred_check
        %p6266 = pneg %p6265
      $region86: #{tpu_custom_call.1} parent=5 // pred_check_branch
        %6268 = sbr.rel (%p6266) target = $region88
      $region87: #{tpu_custom_call.1} parent=5 // pred_region
        %s6269 = ssub.s32 %s22, 2
        // Predicated region
        $region89: #{tpu_custom_call.1} parent=87 // pred_check
          %p6270 = pneg %p228
        $region90: #{tpu_custom_call.1} parent=87 // pred_check_branch
          %6272 = sbr.rel (%p6270) target = $region92
        $region91: #{tpu_custom_call.1} parent=87 // pred_region
          %s6273 = sand.u32 %s213, 1
          %s6274 = scalar_lea.sflag [#allocation5], %s6273
          %s6275 = sand.u32 %s213, 1
          %s6276 = smul.addr %s6275, 512
          %s6277 = scalar_lea.vmem [#allocation12], %s6276
          %6279 = dma.done %s6274, 8192
        $region92: #{tpu_custom_call.1} parent=87 // pred_fallthru
          _
      $region88: #{tpu_custom_call.1} parent=5 // pred_fallthru
        _
    $region6: #{tpu_custom_call.1} parent=1 // loop_footer
      %s26 = sadd.s32 1, %s22
    $region7: #{tpu_custom_call.1} parent=1 // loop_footer_branch
      %21 = sbr.rel target = $region3
    $region8: #{tpu_custom_call.1} parent=1 // loop_exit
      _
    %6280 = vsyncpa [#allocation4], 1
    %s6281 = scalar_lea.sflag [#allocation4], 1
    %6282 = vsyncpa %s6281, 1
    %6283 = vsyncpa [#allocation7], 1
    %s6284 = scalar_lea.sflag [#allocation7], 1
    %6285 = vsyncpa %s6284, 1
    %6286 = vsyncpa [#allocation10], 1
    %6287 = vsyncpa [#allocation5], 1
    %s6288 = scalar_lea.sflag [#allocation5], 1
    %6289 = vsyncpa %s6288, 1

</llo_original>
